<compile_context>
chip_gen: v6e
topology: v6e:2x2x1
jax: 0.10.0
libtpu: 0.0.40
codegen_flags: <defaults>
</compile_context>

<pallas_src>
import functools
import math

import jax
import jax.numpy as jnp
from jax.experimental import pallas as pl
from jax.experimental.pallas import tpu as pltpu

NEG_BIG = -1e30     # large finite negative (safer than -inf for fully-masked rows)
LN_EPS = 1e-5


# ----------------------------- in-kernel helpers -----------------------------

def _layer_norm(x, g, b, eps=LN_EPS):
    # x: [S, D]; g, b: [1, D]
    mu = jnp.mean(x, axis=-1, keepdims=True)
    xc = x - mu
    var = jnp.mean(xc * xc, axis=-1, keepdims=True)
    return xc * jax.lax.rsqrt(var + eps) * g + b


def _softmax_rows(s):
    m = jnp.max(s, axis=-1, keepdims=True)
    p = jnp.exp(s - m)
    denom = jnp.sum(p, axis=-1, keepdims=True)
    return p * pl.reciprocal(denom, approx=True)


def _mha(q_proj, kv_proj, mask, wo_ref, bo_ref, *, nhead, d_model, k_off, v_off):
    """Per-head attention + fused output projection.

    q_proj : [Sq, *] with Q columns at [0:D]  (may be the fused QKV tensor)
    kv_proj: [Sk, *] with K columns at [k_off:k_off+D], V at [v_off:v_off+D]
    mask   : [Sq, Sk] additive float mask
    Output projection is accumulated head-by-head against the matching
    [dh, D] row-slice of Wo so no head concatenation is needed.
    """
    dh = d_model // nhead
    scale = 1.0 / math.sqrt(dh)
    out = None
    for h in range(nhead):
        qh = q_proj[:, h * dh:(h + 1) * dh]
        kh = kv_proj[:, k_off + h * dh: k_off + (h + 1) * dh]
        vh = kv_proj[:, v_off + h * dh: v_off + (h + 1) * dh]
        s = jnp.dot(qh, kh.T, preferred_element_type=jnp.float32) * scale + mask
        p = _softmax_rows(s)
        oh = jnp.dot(p, vh, preferred_element_type=jnp.float32)            # [Sq, dh]
        contrib = jnp.dot(oh, wo_ref[h * dh:(h + 1) * dh, :],
                          preferred_element_type=jnp.float32)              # [Sq, D]
        out = contrib if out is None else out + contrib
    return out + bo_ref[...]


# -------------------------------- kernels ------------------------------------

def _encoder_layer_kernel(x_ref, mask_ref,
                          wqkv_ref, bqkv_ref, wo_ref, bo_ref,
                          ln1_g_ref, ln1_b_ref,
                          w1_ref, b1_ref, w2_ref, b2_ref,
                          ln2_g_ref, ln2_b_ref,
                          o_ref, *, nhead):
    x = x_ref[0]                              # [S, D]
    mask = mask_ref[0]                        # [S, S] additive
    D = x.shape[-1]

    # fused QKV projection + self-attention + output projection
    qkv = jnp.dot(x, wqkv_ref[...], preferred_element_type=jnp.float32) + bqkv_ref[...]
    attn = _mha(qkv, qkv, mask, wo_ref, bo_ref,
                nhead=nhead, d_model=D, k_off=D, v_off=2 * D)
    h1 = _layer_norm(x + attn, ln1_g_ref[...], ln1_b_ref[...])

    # feed-forward + residual + LN, all in-VMEM
    ff = jnp.dot(h1, w1_ref[...], preferred_element_type=jnp.float32) + b1_ref[...]
    ff = jnp.maximum(ff, 0.0)
    ff = jnp.dot(ff, w2_ref[...], preferred_element_type=jnp.float32) + b2_ref[...]
    out = _layer_norm(h1 + ff, ln2_g_ref[...], ln2_b_ref[...])

    o_ref[0] = out.astype(o_ref.dtype)


def _decoder_layer_kernel(y_ref, mem_ref, smask_ref, mmask_ref,
                          s_wqkv_ref, s_bqkv_ref, s_wo_ref, s_bo_ref,
                          c_wq_ref, c_bq_ref, c_wkv_ref, c_bkv_ref, c_wo_ref, c_bo_ref,
                          w1_ref, b1_ref, w2_ref, b2_ref,
                          ln1_g_ref, ln1_b_ref, ln2_g_ref, ln2_b_ref, ln3_g_ref, ln3_b_ref,
                          o_ref, *, nhead):
    y = y_ref[0]                              # [St, D]
    mem = mem_ref[0]                          # [Ss, D]
    smask = smask_ref[0]                      # [St, St]
    mmask = mmask_ref[0]                      # [St, Ss]
    D = y.shape[-1]

    # masked self-attention (fused QKV) + residual + LN
    qkv = jnp.dot(y, s_wqkv_ref[...], preferred_element_type=jnp.float32) + s_bqkv_ref[...]
    sa = _mha(qkv, qkv, smask, s_wo_ref, s_bo_ref,
              nhead=nhead, d_model=D, k_off=D, v_off=2 * D)
    h1 = _layer_norm(y + sa, ln1_g_ref[...], ln1_b_ref[...])

    # cross-attention (fused KV over memory) + residual + LN
    q_c = jnp.dot(h1, c_wq_ref[...], preferred_element_type=jnp.float32) + c_bq_ref[...]
    kv_c = jnp.dot(mem, c_wkv_ref[...], preferred_element_type=jnp.float32) + c_bkv_ref[...]
    ca = _mha(q_c, kv_c, mmask, c_wo_ref, c_bo_ref,
              nhead=nhead, d_model=D, k_off=0, v_off=D)
    h2 = _layer_norm(h1 + ca, ln2_g_ref[...], ln2_b_ref[...])

    # feed-forward + residual + LN
    ff = jnp.dot(h2, w1_ref[...], preferred_element_type=jnp.float32) + b1_ref[...]
    ff = jnp.maximum(ff, 0.0)
    ff = jnp.dot(ff, w2_ref[...], preferred_element_type=jnp.float32) + b2_ref[...]
    out = _layer_norm(h2 + ff, ln3_g_ref[...], ln3_b_ref[...])

    o_ref[0] = out.astype(o_ref.dtype)


def _proj_kernel(x_ref, w_ref, b_ref, o_ref):
    o_ref[...] = (jnp.dot(x_ref[...], w_ref[...], preferred_element_type=jnp.float32)
                  + b_ref[...]).astype(o_ref.dtype)


# ------------------------------ layer wrappers --------------------------------

def encoder_layer(x, mask, p, *, nhead):
    B, S, D = x.shape
    a = p["attn"]
    weights = [a["wqkv"], a["bqkv"], a["wo"], a["bo"],
               p["ln1_g"], p["ln1_b"],
               p["w1"], p["b1"], p["w2"], p["b2"],
               p["ln2_g"], p["ln2_b"]]
    in_specs = ([pl.BlockSpec((1, S, D), lambda b: (b, 0, 0)),
                 pl.BlockSpec((1, S, S), lambda b: (b, 0, 0))]
                + [pl.BlockSpec(w.shape, lambda b: (0, 0)) for w in weights])
    return pl.pallas_call(
        functools.partial(_encoder_layer_kernel, nhead=nhead),
        out_shape=jax.ShapeDtypeStruct((B, S, D), x.dtype),
        grid=(B,),
        in_specs=in_specs,
        out_specs=pl.BlockSpec((1, S, D), lambda b: (b, 0, 0)),
        compiler_params=pltpu.CompilerParams(dimension_semantics=("parallel",)),
    )(x, mask, *weights)


def decoder_layer(y, mem, self_mask, mem_mask, p, *, nhead):
    B, St, D = y.shape
    Ss = mem.shape[1]
    sa, ca = p["self_attn"], p["cross_attn"]
    weights = [sa["wqkv"], sa["bqkv"], sa["wo"], sa["bo"],
               ca["wq"], ca["bq"], ca["wkv"], ca["bkv"], ca["wo"], ca["bo"],
               p["w1"], p["b1"], p["w2"], p["b2"],
               p["ln1_g"], p["ln1_b"], p["ln2_g"], p["ln2_b"], p["ln3_g"], p["ln3_b"]]
    in_specs = ([pl.BlockSpec((1, St, D), lambda b: (b, 0, 0)),
                 pl.BlockSpec((1, Ss, D), lambda b: (b, 0, 0)),
                 pl.BlockSpec((1, St, St), lambda b: (b, 0, 0)),
                 pl.BlockSpec((1, St, Ss), lambda b: (b, 0, 0))]
                + [pl.BlockSpec(w.shape, lambda b: (0, 0)) for w in weights])
    return pl.pallas_call(
        functools.partial(_decoder_layer_kernel, nhead=nhead),
        out_shape=jax.ShapeDtypeStruct((B, St, D), y.dtype),
        grid=(B,),
        in_specs=in_specs,
        out_specs=pl.BlockSpec((1, St, D), lambda b: (b, 0, 0)),
        compiler_params=pltpu.CompilerParams(dimension_semantics=("parallel",)),
    )(y, mem, self_mask, mem_mask, *weights)


def vocab_projection(x2, w_pad, b_pad):
    M = x2.shape[0]
    N = w_pad.shape[-1]
    vmem = functools.partial(pl.BlockSpec, memory_space=pltpu.MemorySpace.VMEM)
    return pl.pallas_call(
        _proj_kernel,
        out_shape=jax.ShapeDtypeStruct((M, N), x2.dtype),
        in_specs=[vmem(), vmem(), vmem()],
        out_specs=vmem(),
    )(x2, w_pad, b_pad)


# -------------------------------- model glue ----------------------------------

def make_pe_table(d_model, max_len=5000):
    position = jnp.arange(max_len, dtype=jnp.float32)[:, None]
    div_term = jnp.exp(
        jnp.arange(0, d_model, 2, dtype=jnp.float32) * (-math.log(10000.0) / d_model))
    pe = jnp.zeros((max_len, d_model), jnp.float32)
    pe = pe.at[:, 0::2].set(jnp.sin(position * div_term))
    pe = pe.at[:, 1::2].set(jnp.cos(position * div_term))
    return pe  # [max_len, d_model]


def trans_model_forward(params, src_token, tgt_token, *, nhead):
    B, Ss = src_token.shape
    St = tgt_token.shape[1]
    src_pad = src_token == 0
    tgt_pad = tgt_token == 0

    # Embeddings + (bug-faithful) positional encoding: out = 2*emb + pe[:B][:, None, :]
    # TODO(synk): embedding gather stays in XLA; at realistic sizes fold it into the
    # first encoder kernel via PrefetchScalarGridSpec.
    pe = params["pe"]
    src_embed = 2.0 * jnp.take(params["src_emb"], src_token, axis=0) + pe[:B][:, None, :]
    tgt_embed = 2.0 * jnp.take(params["tgt_emb"], tgt_token, axis=0) + pe[:B][:, None, :]

    # Additive masks (tiny [B, Tq, Tk] tensors; heads broadcast in-kernel)
    src_kpm = jnp.where(src_pad, NEG_BIG, 0.0).astype(jnp.float32)      # [B, Ss]
    tgt_kpm = jnp.where(tgt_pad, NEG_BIG, 0.0).astype(jnp.float32)      # [B, St]
    enc_mask = jnp.broadcast_to(src_kpm[:, None, :], (B, Ss, Ss))
    causal = jnp.where(jnp.triu(jnp.ones((St, St), dtype=bool), k=1),
                       NEG_BIG, 0.0).astype(jnp.float32)
    dec_self_mask = causal[None, :, :] + tgt_kpm[:, None, :]            # [B, St, St]
    dec_mem_mask = jnp.broadcast_to(src_kpm[:, None, :], (B, St, Ss))

    # Encoder (one fused pallas_call per layer)
    x = src_embed
    for p in params["enc"]:
        x = encoder_layer(x, enc_mask, p, nhead=nhead)
    memory = x

    # Decoder (one fused pallas_call per layer)
    y = tgt_embed
    for p in params["dec"]:
        y = decoder_layer(y, memory, dec_self_mask, dec_mem_mask, p, nhead=nhead)

    # Final vocab projection — lane-dense: pad N up to a multiple of 128, slice back.
    D = y.shape[-1]
    V = params["proj_w"].shape[-1]
    Vpad = max(128, ((V + 127) // 128) * 128)
    w_pad = jnp.zeros((D, Vpad), jnp.float32).at[:, :V].set(params["proj_w"])
    b_pad = jnp.zeros((1, Vpad), jnp.float32).at[:, :V].set(params["proj_b"])
    logits = vocab_projection(y.reshape(B * St, D), w_pad, b_pad)
    return logits[:, :V].reshape(B, St, V)


# -------------------------------- param init -----------------------------------

def init_params(key, d_model, nhead, dff, n_enc, n_dec, src_vocab, tgt_vocab,
                max_len=5000):
    keys = iter(jax.random.split(key, 4096))
    scale = 0.05

    def dense(shape):
        return jax.random.normal(next(keys), shape, jnp.float32) * scale

    ones = lambda n: jnp.ones((1, n), jnp.float32)
    zeros = lambda n: jnp.zeros((1, n), jnp.float32)

    def self_attn():
        return {"wqkv": dense((d_model, 3 * d_model)), "bqkv": dense((1, 3 * d_model)),
                "wo": dense((d_model, d_model)), "bo": dense((1, d_model))}

    def cross_attn():
        return {"wq": dense((d_model, d_model)), "bq": dense((1, d_model)),
                "wkv": dense((d_model, 2 * d_model)), "bkv": dense((1, 2 * d_model)),
                "wo": dense((d_model, d_model)), "bo": dense((1, d_model))}

    def enc_layer():
        return {"attn": self_attn(),
                "w1": dense((d_model, dff)), "b1": dense((1, dff)),
                "w2": dense((dff, d_model)), "b2": dense((1, d_model)),
                "ln1_g": ones(d_model), "ln1_b": zeros(d_model),
                "ln2_g": ones(d_model), "ln2_b": zeros(d_model)}

    def dec_layer():
        return {"self_attn": self_attn(), "cross_attn": cross_attn(),
                "w1": dense((d_model, dff)), "b1": dense((1, dff)),
                "w2": dense((dff, d_model)), "b2": dense((1, d_model)),
                "ln1_g": ones(d_model), "ln1_b": zeros(d_model),
                "ln2_g": ones(d_model), "ln2_b": zeros(d_model),
                "ln3_g": ones(d_model), "ln3_b": zeros(d_model)}

    return {
        "src_emb": dense((src_vocab, d_model)),
        "tgt_emb": dense((tgt_vocab, d_model)),
        "proj_w": dense((d_model, tgt_vocab)),
        "proj_b": dense((1, tgt_vocab)),
        "enc": [enc_layer() for _ in range(n_enc)],
        "dec": [dec_layer() for _ in range(n_dec)],
        "pe": make_pe_table(d_model, max_len),
    }


# ----------------------------------- main ---------------------------------------

if __name__ == "__main__":
    # Small but module-consistent configuration.
    SRC_VOCAB, TGT_VOCAB = 5, 7          # fixed by the vocab dicts
    D_MODEL, NHEAD, DFF = 64, 4, 128
    N_ENC, N_DEC = 2, 2
    B, S_SRC, S_TGT = 2, 8, 8

    key = jax.random.PRNGKey(0)
    k_params, k_src, k_tgt = jax.random.split(key, 3)

    params = init_params(k_params, D_MODEL, NHEAD, DFF, N_ENC, N_DEC,
                         SRC_VOCAB, TGT_VOCAB, max_len=64)

    # Deterministic token inputs: random non-zero content tokens, trailing 'P'(=0)
    # padding; tgt starts with 'S'(=5) so no attention row is fully masked.
    src_token = jax.random.randint(k_src, (B, S_SRC), 1, SRC_VOCAB).astype(jnp.int32)
    src_token = src_token.at[:, -2:].set(0)
    tgt_token = jax.random.randint(k_tgt, (B, S_TGT), 1, 5).astype(jnp.int32)
    tgt_token = tgt_token.at[:, 0].set(5).at[:, -1].set(0)

    forward = jax.jit(functools.partial(trans_model_forward, nhead=NHEAD))
    vocab_logits = jax.block_until_ready(forward(params, src_token, tgt_token))

    assert vocab_logits.shape == (B, S_TGT, TGT_VOCAB), vocab_logits.shape
    assert bool(jnp.all(jnp.isfinite(vocab_logits)))
    print("KERNEL_OK")
</pallas_src>

<mosaic_0001>
module attributes {stable_mosaic.version = 11 : i64} {
  func.func @_encoder_layer_kernel(%arg0: i32, %arg1: memref<1x8x64xf32, #tpu.memory_space<vmem>>, %arg2: memref<1x8x8xf32, #tpu.memory_space<vmem>>, %arg3: memref<64x192xf32, #tpu.memory_space<vmem>>, %arg4: memref<1x192xf32, #tpu.memory_space<vmem>>, %arg5: memref<64x64xf32, #tpu.memory_space<vmem>>, %arg6: memref<1x64xf32, #tpu.memory_space<vmem>>, %arg7: memref<1x64xf32, #tpu.memory_space<vmem>>, %arg8: memref<1x64xf32, #tpu.memory_space<vmem>>, %arg9: memref<64x128xf32, #tpu.memory_space<vmem>>, %arg10: memref<1x128xf32, #tpu.memory_space<vmem>>, %arg11: memref<128x64xf32, #tpu.memory_space<vmem>>, %arg12: memref<1x64xf32, #tpu.memory_space<vmem>>, %arg13: memref<1x64xf32, #tpu.memory_space<vmem>>, %arg14: memref<1x64xf32, #tpu.memory_space<vmem>>, %arg15: memref<1x8x64xf32, #tpu.memory_space<vmem>>) attributes {dimension_semantics = [#tpu.dimension_semantics<parallel>], iteration_bounds = array<i64: 2>, scalar_prefetch = 0 : i64, scratch_operands = 0 : i64, tpu.core_type = #tpu.core_type<tc>, window_params = [{transform_indices = @transform_0, window_bounds = array<i64: 1, 8, 64>}, {transform_indices = @transform_1, window_bounds = array<i64: 1, 8, 8>}, {pipeline_mode = #tpu.pipeline_mode<synchronous>, transform_indices = @transform_2, window_bounds = array<i64: 64, 192>}, {pipeline_mode = #tpu.pipeline_mode<synchronous>, transform_indices = @transform_3, window_bounds = array<i64: 1, 192>}, {pipeline_mode = #tpu.pipeline_mode<synchronous>, transform_indices = @transform_4, window_bounds = array<i64: 64, 64>}, {pipeline_mode = #tpu.pipeline_mode<synchronous>, transform_indices = @transform_5, window_bounds = array<i64: 1, 64>}, {pipeline_mode = #tpu.pipeline_mode<synchronous>, transform_indices = @transform_6, window_bounds = array<i64: 1, 64>}, {pipeline_mode = #tpu.pipeline_mode<synchronous>, transform_indices = @transform_7, window_bounds = array<i64: 1, 64>}, {pipeline_mode = #tpu.pipeline_mode<synchronous>, transform_indices = @transform_8, window_bounds = array<i64: 64, 128>}, {pipeline_mode = #tpu.pipeline_mode<synchronous>, transform_indices = @transform_9, window_bounds = array<i64: 1, 128>}, {pipeline_mode = #tpu.pipeline_mode<synchronous>, transform_indices = @transform_10, window_bounds = array<i64: 128, 64>}, {pipeline_mode = #tpu.pipeline_mode<synchronous>, transform_indices = @transform_11, window_bounds = array<i64: 1, 64>}, {pipeline_mode = #tpu.pipeline_mode<synchronous>, transform_indices = @transform_12, window_bounds = array<i64: 1, 64>}, {pipeline_mode = #tpu.pipeline_mode<synchronous>, transform_indices = @transform_13, window_bounds = array<i64: 1, 64>}, {transform_indices = @transform_14, window_bounds = array<i64: 1, 8, 64>}]} {
    %c0 = arith.constant 0 : index
    %c0_0 = arith.constant 0 : index
    %c0_1 = arith.constant 0 : index
    %0 = vector.load %arg1[%c0, %c0_0, %c0_1] : memref<1x8x64xf32, #tpu.memory_space<vmem>>, vector<1x8x64xf32>
    %1 = vector.shape_cast %0 : vector<1x8x64xf32> to vector<8x64xf32>
    %c0_2 = arith.constant 0 : index
    %c0_3 = arith.constant 0 : index
    %c0_4 = arith.constant 0 : index
    %2 = vector.load %arg2[%c0_2, %c0_3, %c0_4] : memref<1x8x8xf32, #tpu.memory_space<vmem>>, vector<1x8x8xf32>
    %3 = vector.shape_cast %2 : vector<1x8x8xf32> to vector<8x8xf32>
    %c0_5 = arith.constant 0 : index
    %c0_6 = arith.constant 0 : index
    %4 = vector.load %arg3[%c0_5, %c0_6] : memref<64x192xf32, #tpu.memory_space<vmem>>, vector<64x192xf32>
    %cst = arith.constant dense<0.000000e+00> : vector<8x192xf32>
    %5 = tpu.matmul %1, %4, %cst {dimension_numbers = #tpu.dot_dimension_numbers<[1], [0], [0], [1], [0, 0, 1, 1], [], []>} : vector<8x64xf32>, vector<64x192xf32>, vector<8x192xf32> -> vector<8x192xf32>
    %c0_7 = arith.constant 0 : index
    %c0_8 = arith.constant 0 : index
    %6 = vector.load %arg4[%c0_7, %c0_8] : memref<1x192xf32, #tpu.memory_space<vmem>>, vector<1x192xf32>
    %7 = vector.broadcast %6 : vector<1x192xf32> to vector<8x192xf32>
    %8 = arith.addf %5, %7 : vector<8x192xf32>
    %9 = vector.extract_strided_slice %8 {offsets = [0, 0], sizes = [8, 16], strides = [1, 1]} : vector<8x192xf32> to vector<8x16xf32>
    %10 = vector.extract_strided_slice %8 {offsets = [0, 64], sizes = [8, 16], strides = [1, 1]} : vector<8x192xf32> to vector<8x16xf32>
    %11 = vector.extract_strided_slice %8 {offsets = [0, 128], sizes = [8, 16], strides = [1, 1]} : vector<8x192xf32> to vector<8x16xf32>
    %12 = tpu.transpose %10, [1, 0] : vector<8x16xf32> -> vector<16x8xf32>
    %cst_9 = arith.constant dense<0.000000e+00> : vector<8x8xf32>
    %13 = tpu.matmul %9, %12, %cst_9 {dimension_numbers = #tpu.dot_dimension_numbers<[1], [0], [0], [1], [0, 0, 1, 1], [], []>} : vector<8x16xf32>, vector<16x8xf32>, vector<8x8xf32> -> vector<8x8xf32>
    %cst_10 = arith.constant 2.500000e-01 : f32
    %14 = vector.broadcast %cst_10 : f32 to vector<8x8xf32>
    %15 = arith.mulf %13, %14 : vector<8x8xf32>
    %16 = arith.addf %15, %3 : vector<8x8xf32>
    %cst_11 = arith.constant dense<0xFF800000> : vector<8xf32>
    %17 = vector.multi_reduction <maximumf>, %16, %cst_11 [1] : vector<8x8xf32> to vector<8xf32>
    %18 = vector.shape_cast %17 : vector<8xf32> to vector<8x1xf32>
    %19 = vector.broadcast %18 : vector<8x1xf32> to vector<8x8xf32>
    %20 = arith.subf %16, %19 : vector<8x8xf32>
    %21 = math.exp %20 : vector<8x8xf32>
    %cst_12 = arith.constant dense<0.000000e+00> : vector<8xf32>
    %22 = vector.multi_reduction <add>, %21, %cst_12 [1] : vector<8x8xf32> to vector<8xf32>
    %23 = vector.shape_cast %22 : vector<8xf32> to vector<8x1xf32>
    %24 = tpu.reciprocal %23 {approx = true} : vector<8x1xf32> -> vector<8x1xf32>
    %25 = vector.broadcast %24 : vector<8x1xf32> to vector<8x8xf32>
    %26 = arith.mulf %21, %25 : vector<8x8xf32>
    %cst_13 = arith.constant dense<0.000000e+00> : vector<8x16xf32>
    %27 = tpu.matmul %26, %11, %cst_13 {dimension_numbers = #tpu.dot_dimension_numbers<[1], [0], [0], [1], [0, 0, 1, 1], [], []>} : vector<8x8xf32>, vector<8x16xf32>, vector<8x16xf32> -> vector<8x16xf32>
    %c0_14 = arith.constant 0 : index
    %c0_15 = arith.constant 0 : index
    %28 = vector.load %arg5[%c0_14, %c0_15] : memref<64x64xf32, #tpu.memory_space<vmem>>, vector<16x64xf32>
    %cst_16 = arith.constant dense<0.000000e+00> : vector<8x64xf32>
    %29 = tpu.matmul %27, %28, %cst_16 {dimension_numbers = #tpu.dot_dimension_numbers<[1], [0], [0], [1], [0, 0, 1, 1], [], []>} : vector<8x16xf32>, vector<16x64xf32>, vector<8x64xf32> -> vector<8x64xf32>
    %30 = vector.extract_strided_slice %8 {offsets = [0, 16], sizes = [8, 16], strides = [1, 1]} : vector<8x192xf32> to vector<8x16xf32>
    %31 = vector.extract_strided_slice %8 {offsets = [0, 80], sizes = [8, 16], strides = [1, 1]} : vector<8x192xf32> to vector<8x16xf32>
    %32 = vector.extract_strided_slice %8 {offsets = [0, 144], sizes = [8, 16], strides = [1, 1]} : vector<8x192xf32> to vector<8x16xf32>
    %33 = tpu.transpose %31, [1, 0] : vector<8x16xf32> -> vector<16x8xf32>
    %cst_17 = arith.constant dense<0.000000e+00> : vector<8x8xf32>
    %34 = tpu.matmul %30, %33, %cst_17 {dimension_numbers = #tpu.dot_dimension_numbers<[1], [0], [0], [1], [0, 0, 1, 1], [], []>} : vector<8x16xf32>, vector<16x8xf32>, vector<8x8xf32> -> vector<8x8xf32>
    %cst_18 = arith.constant 2.500000e-01 : f32
    %35 = vector.broadcast %cst_18 : f32 to vector<8x8xf32>
    %36 = arith.mulf %34, %35 : vector<8x8xf32>
    %37 = arith.addf %36, %3 : vector<8x8xf32>
    %cst_19 = arith.constant dense<0xFF800000> : vector<8xf32>
    %38 = vector.multi_reduction <maximumf>, %37, %cst_19 [1] : vector<8x8xf32> to vector<8xf32>
    %39 = vector.shape_cast %38 : vector<8xf32> to vector<8x1xf32>
    %40 = vector.broadcast %39 : vector<8x1xf32> to vector<8x8xf32>
    %41 = arith.subf %37, %40 : vector<8x8xf32>
    %42 = math.exp %41 : vector<8x8xf32>
    %cst_20 = arith.constant dense<0.000000e+00> : vector<8xf32>
    %43 = vector.multi_reduction <add>, %42, %cst_20 [1] : vector<8x8xf32> to vector<8xf32>
    %44 = vector.shape_cast %43 : vector<8xf32> to vector<8x1xf32>
    %45 = tpu.reciprocal %44 {approx = true} : vector<8x1xf32> -> vector<8x1xf32>
    %46 = vector.broadcast %45 : vector<8x1xf32> to vector<8x8xf32>
    %47 = arith.mulf %42, %46 : vector<8x8xf32>
    %cst_21 = arith.constant dense<0.000000e+00> : vector<8x16xf32>
    %48 = tpu.matmul %47, %32, %cst_21 {dimension_numbers = #tpu.dot_dimension_numbers<[1], [0], [0], [1], [0, 0, 1, 1], [], []>} : vector<8x8xf32>, vector<8x16xf32>, vector<8x16xf32> -> vector<8x16xf32>
    %c16 = arith.constant 16 : index
    %c0_22 = arith.constant 0 : index
    %49 = vector.load %arg5[%c16, %c0_22] : memref<64x64xf32, #tpu.memory_space<vmem>>, vector<16x64xf32>
    %cst_23 = arith.constant dense<0.000000e+00> : vector<8x64xf32>
    %50 = tpu.matmul %48, %49, %cst_23 {dimension_numbers = #tpu.dot_dimension_numbers<[1], [0], [0], [1], [0, 0, 1, 1], [], []>} : vector<8x16xf32>, vector<16x64xf32>, vector<8x64xf32> -> vector<8x64xf32>
    %51 = arith.addf %29, %50 : vector<8x64xf32>
    %52 = vector.extract_strided_slice %8 {offsets = [0, 32], sizes = [8, 16], strides = [1, 1]} : vector<8x192xf32> to vector<8x16xf32>
    %53 = vector.extract_strided_slice %8 {offsets = [0, 96], sizes = [8, 16], strides = [1, 1]} : vector<8x192xf32> to vector<8x16xf32>
    %54 = vector.extract_strided_slice %8 {offsets = [0, 160], sizes = [8, 16], strides = [1, 1]} : vector<8x192xf32> to vector<8x16xf32>
    %55 = tpu.transpose %53, [1, 0] : vector<8x16xf32> -> vector<16x8xf32>
    %cst_24 = arith.constant dense<0.000000e+00> : vector<8x8xf32>
    %56 = tpu.matmul %52, %55, %cst_24 {dimension_numbers = #tpu.dot_dimension_numbers<[1], [0], [0], [1], [0, 0, 1, 1], [], []>} : vector<8x16xf32>, vector<16x8xf32>, vector<8x8xf32> -> vector<8x8xf32>
    %cst_25 = arith.constant 2.500000e-01 : f32
    %57 = vector.broadcast %cst_25 : f32 to vector<8x8xf32>
    %58 = arith.mulf %56, %57 : vector<8x8xf32>
    %59 = arith.addf %58, %3 : vector<8x8xf32>
    %cst_26 = arith.constant dense<0xFF800000> : vector<8xf32>
    %60 = vector.multi_reduction <maximumf>, %59, %cst_26 [1] : vector<8x8xf32> to vector<8xf32>
    %61 = vector.shape_cast %60 : vector<8xf32> to vector<8x1xf32>
    %62 = vector.broadcast %61 : vector<8x1xf32> to vector<8x8xf32>
    %63 = arith.subf %59, %62 : vector<8x8xf32>
    %64 = math.exp %63 : vector<8x8xf32>
    %cst_27 = arith.constant dense<0.000000e+00> : vector<8xf32>
    %65 = vector.multi_reduction <add>, %64, %cst_27 [1] : vector<8x8xf32> to vector<8xf32>
    %66 = vector.shape_cast %65 : vector<8xf32> to vector<8x1xf32>
    %67 = tpu.reciprocal %66 {approx = true} : vector<8x1xf32> -> vector<8x1xf32>
    %68 = vector.broadcast %67 : vector<8x1xf32> to vector<8x8xf32>
    %69 = arith.mulf %64, %68 : vector<8x8xf32>
    %cst_28 = arith.constant dense<0.000000e+00> : vector<8x16xf32>
    %70 = tpu.matmul %69, %54, %cst_28 {dimension_numbers = #tpu.dot_dimension_numbers<[1], [0], [0], [1], [0, 0, 1, 1], [], []>} : vector<8x8xf32>, vector<8x16xf32>, vector<8x16xf32> -> vector<8x16xf32>
    %c32 = arith.constant 32 : index
    %c0_29 = arith.constant 0 : index
    %71 = vector.load %arg5[%c32, %c0_29] : memref<64x64xf32, #tpu.memory_space<vmem>>, vector<16x64xf32>
    %cst_30 = arith.constant dense<0.000000e+00> : vector<8x64xf32>
    %72 = tpu.matmul %70, %71, %cst_30 {dimension_numbers = #tpu.dot_dimension_numbers<[1], [0], [0], [1], [0, 0, 1, 1], [], []>} : vector<8x16xf32>, vector<16x64xf32>, vector<8x64xf32> -> vector<8x64xf32>
    %73 = arith.addf %51, %72 : vector<8x64xf32>
    %74 = vector.extract_strided_slice %8 {offsets = [0, 48], sizes = [8, 16], strides = [1, 1]} : vector<8x192xf32> to vector<8x16xf32>
    %75 = vector.extract_strided_slice %8 {offsets = [0, 112], sizes = [8, 16], strides = [1, 1]} : vector<8x192xf32> to vector<8x16xf32>
    %76 = vector.extract_strided_slice %8 {offsets = [0, 176], sizes = [8, 16], strides = [1, 1]} : vector<8x192xf32> to vector<8x16xf32>
    %77 = tpu.transpose %75, [1, 0] : vector<8x16xf32> -> vector<16x8xf32>
    %cst_31 = arith.constant dense<0.000000e+00> : vector<8x8xf32>
    %78 = tpu.matmul %74, %77, %cst_31 {dimension_numbers = #tpu.dot_dimension_numbers<[1], [0], [0], [1], [0, 0, 1, 1], [], []>} : vector<8x16xf32>, vector<16x8xf32>, vector<8x8xf32> -> vector<8x8xf32>
    %cst_32 = arith.constant 2.500000e-01 : f32
    %79 = vector.broadcast %cst_32 : f32 to vector<8x8xf32>
    %80 = arith.mulf %78, %79 : vector<8x8xf32>
    %81 = arith.addf %80, %3 : vector<8x8xf32>
    %cst_33 = arith.constant dense<0xFF800000> : vector<8xf32>
    %82 = vector.multi_reduction <maximumf>, %81, %cst_33 [1] : vector<8x8xf32> to vector<8xf32>
    %83 = vector.shape_cast %82 : vector<8xf32> to vector<8x1xf32>
    %84 = vector.broadcast %83 : vector<8x1xf32> to vector<8x8xf32>
    %85 = arith.subf %81, %84 : vector<8x8xf32>
    %86 = math.exp %85 : vector<8x8xf32>
    %cst_34 = arith.constant dense<0.000000e+00> : vector<8xf32>
    %87 = vector.multi_reduction <add>, %86, %cst_34 [1] : vector<8x8xf32> to vector<8xf32>
    %88 = vector.shape_cast %87 : vector<8xf32> to vector<8x1xf32>
    %89 = tpu.reciprocal %88 {approx = true} : vector<8x1xf32> -> vector<8x1xf32>
    %90 = vector.broadcast %89 : vector<8x1xf32> to vector<8x8xf32>
    %91 = arith.mulf %86, %90 : vector<8x8xf32>
    %cst_35 = arith.constant dense<0.000000e+00> : vector<8x16xf32>
    %92 = tpu.matmul %91, %76, %cst_35 {dimension_numbers = #tpu.dot_dimension_numbers<[1], [0], [0], [1], [0, 0, 1, 1], [], []>} : vector<8x8xf32>, vector<8x16xf32>, vector<8x16xf32> -> vector<8x16xf32>
    %c48 = arith.constant 48 : index
    %c0_36 = arith.constant 0 : index
    %93 = vector.load %arg5[%c48, %c0_36] : memref<64x64xf32, #tpu.memory_space<vmem>>, vector<16x64xf32>
    %cst_37 = arith.constant dense<0.000000e+00> : vector<8x64xf32>
    %94 = tpu.matmul %92, %93, %cst_37 {dimension_numbers = #tpu.dot_dimension_numbers<[1], [0], [0], [1], [0, 0, 1, 1], [], []>} : vector<8x16xf32>, vector<16x64xf32>, vector<8x64xf32> -> vector<8x64xf32>
    %95 = arith.addf %73, %94 : vector<8x64xf32>
    %c0_38 = arith.constant 0 : index
    %c0_39 = arith.constant 0 : index
    %96 = vector.load %arg6[%c0_38, %c0_39] : memref<1x64xf32, #tpu.memory_space<vmem>>, vector<1x64xf32>
    %97 = vector.broadcast %96 : vector<1x64xf32> to vector<8x64xf32>
    %98 = arith.addf %95, %97 : vector<8x64xf32>
    %99 = arith.addf %1, %98 : vector<8x64xf32>
    %c0_40 = arith.constant 0 : index
    %c0_41 = arith.constant 0 : index
    %100 = vector.load %arg7[%c0_40, %c0_41] : memref<1x64xf32, #tpu.memory_space<vmem>>, vector<1x64xf32>
    %c0_42 = arith.constant 0 : index
    %c0_43 = arith.constant 0 : index
    %101 = vector.load %arg8[%c0_42, %c0_43] : memref<1x64xf32, #tpu.memory_space<vmem>>, vector<1x64xf32>
    %cst_44 = arith.constant dense<0.000000e+00> : vector<8xf32>
    %102 = vector.multi_reduction <add>, %99, %cst_44 [1] : vector<8x64xf32> to vector<8xf32>
    %103 = vector.shape_cast %102 : vector<8xf32> to vector<8x1xf32>
    %cst_45 = arith.constant 6.400000e+01 : f32
    %104 = vector.broadcast %cst_45 : f32 to vector<8x1xf32>
    %105 = arith.divf %103, %104 : vector<8x1xf32>
    %106 = vector.broadcast %105 : vector<8x1xf32> to vector<8x64xf32>
    %107 = arith.subf %99, %106 : vector<8x64xf32>
    %108 = arith.mulf %107, %107 : vector<8x64xf32>
    %cst_46 = arith.constant dense<0.000000e+00> : vector<8xf32>
    %109 = vector.multi_reduction <add>, %108, %cst_46 [1] : vector<8x64xf32> to vector<8xf32>
    %110 = vector.shape_cast %109 : vector<8xf32> to vector<8x1xf32>
    %cst_47 = arith.constant 6.400000e+01 : f32
    %111 = vector.broadcast %cst_47 : f32 to vector<8x1xf32>
    %112 = arith.divf %110, %111 : vector<8x1xf32>
    %cst_48 = arith.constant 9.99999974E-6 : f32
    %113 = vector.broadcast %cst_48 : f32 to vector<8x1xf32>
    %114 = arith.addf %112, %113 : vector<8x1xf32>
    %115 = math.rsqrt %114 : vector<8x1xf32>
    %116 = vector.broadcast %115 : vector<8x1xf32> to vector<8x64xf32>
    %117 = arith.mulf %107, %116 : vector<8x64xf32>
    %118 = vector.broadcast %100 : vector<1x64xf32> to vector<8x64xf32>
    %119 = arith.mulf %117, %118 : vector<8x64xf32>
    %120 = vector.broadcast %101 : vector<1x64xf32> to vector<8x64xf32>
    %121 = arith.addf %119, %120 : vector<8x64xf32>
    %c0_49 = arith.constant 0 : index
    %c0_50 = arith.constant 0 : index
    %122 = vector.load %arg9[%c0_49, %c0_50] : memref<64x128xf32, #tpu.memory_space<vmem>>, vector<64x128xf32>
    %cst_51 = arith.constant dense<0.000000e+00> : vector<8x128xf32>
    %123 = tpu.matmul %121, %122, %cst_51 {dimension_numbers = #tpu.dot_dimension_numbers<[1], [0], [0], [1], [0, 0, 1, 1], [], []>} : vector<8x64xf32>, vector<64x128xf32>, vector<8x128xf32> -> vector<8x128xf32>
    %c0_52 = arith.constant 0 : index
    %c0_53 = arith.constant 0 : index
    %124 = vector.load %arg10[%c0_52, %c0_53] : memref<1x128xf32, #tpu.memory_space<vmem>>, vector<1x128xf32>
    %125 = vector.broadcast %124 : vector<1x128xf32> to vector<8x128xf32>
    %126 = arith.addf %123, %125 : vector<8x128xf32>
    %cst_54 = arith.constant 0.000000e+00 : f32
    %127 = vector.broadcast %cst_54 : f32 to vector<8x128xf32>
    %128 = arith.maximumf %126, %127 : vector<8x128xf32>
    %c0_55 = arith.constant 0 : index
    %c0_56 = arith.constant 0 : index
    %129 = vector.load %arg11[%c0_55, %c0_56] : memref<128x64xf32, #tpu.memory_space<vmem>>, vector<128x64xf32>
    %cst_57 = arith.constant dense<0.000000e+00> : vector<8x64xf32>
    %130 = tpu.matmul %128, %129, %cst_57 {dimension_numbers = #tpu.dot_dimension_numbers<[1], [0], [0], [1], [0, 0, 1, 1], [], []>} : vector<8x128xf32>, vector<128x64xf32>, vector<8x64xf32> -> vector<8x64xf32>
    %c0_58 = arith.constant 0 : index
    %c0_59 = arith.constant 0 : index
    %131 = vector.load %arg12[%c0_58, %c0_59] : memref<1x64xf32, #tpu.memory_space<vmem>>, vector<1x64xf32>
    %132 = vector.broadcast %131 : vector<1x64xf32> to vector<8x64xf32>
    %133 = arith.addf %130, %132 : vector<8x64xf32>
    %134 = arith.addf %121, %133 : vector<8x64xf32>
    %c0_60 = arith.constant 0 : index
    %c0_61 = arith.constant 0 : index
    %135 = vector.load %arg13[%c0_60, %c0_61] : memref<1x64xf32, #tpu.memory_space<vmem>>, vector<1x64xf32>
    %c0_62 = arith.constant 0 : index
    %c0_63 = arith.constant 0 : index
    %136 = vector.load %arg14[%c0_62, %c0_63] : memref<1x64xf32, #tpu.memory_space<vmem>>, vector<1x64xf32>
    %cst_64 = arith.constant dense<0.000000e+00> : vector<8xf32>
    %137 = vector.multi_reduction <add>, %134, %cst_64 [1] : vector<8x64xf32> to vector<8xf32>
    %138 = vector.shape_cast %137 : vector<8xf32> to vector<8x1xf32>
    %cst_65 = arith.constant 6.400000e+01 : f32
    %139 = vector.broadcast %cst_65 : f32 to vector<8x1xf32>
    %140 = arith.divf %138, %139 : vector<8x1xf32>
    %141 = vector.broadcast %140 : vector<8x1xf32> to vector<8x64xf32>
    %142 = arith.subf %134, %141 : vector<8x64xf32>
    %143 = arith.mulf %142, %142 : vector<8x64xf32>
    %cst_66 = arith.constant dense<0.000000e+00> : vector<8xf32>
    %144 = vector.multi_reduction <add>, %143, %cst_66 [1] : vector<8x64xf32> to vector<8xf32>
    %145 = vector.shape_cast %144 : vector<8xf32> to vector<8x1xf32>
    %cst_67 = arith.constant 6.400000e+01 : f32
    %146 = vector.broadcast %cst_67 : f32 to vector<8x1xf32>
    %147 = arith.divf %145, %146 : vector<8x1xf32>
    %cst_68 = arith.constant 9.99999974E-6 : f32
    %148 = vector.broadcast %cst_68 : f32 to vector<8x1xf32>
    %149 = arith.addf %147, %148 : vector<8x1xf32>
    %150 = math.rsqrt %149 : vector<8x1xf32>
    %151 = vector.broadcast %150 : vector<8x1xf32> to vector<8x64xf32>
    %152 = arith.mulf %142, %151 : vector<8x64xf32>
    %153 = vector.broadcast %135 : vector<1x64xf32> to vector<8x64xf32>
    %154 = arith.mulf %152, %153 : vector<8x64xf32>
    %155 = vector.broadcast %136 : vector<1x64xf32> to vector<8x64xf32>
    %156 = arith.addf %154, %155 : vector<8x64xf32>
    %c0_69 = arith.constant 0 : index
    %c0_70 = arith.constant 0 : index
    %c0_71 = arith.constant 0 : index
    %157 = vector.load %arg15[%c0_69, %c0_70, %c0_71] : memref<1x8x64xf32, #tpu.memory_space<vmem>>, vector<1x8x64xf32>
    %158 = vector.shape_cast %157 : vector<1x8x64xf32> to vector<8x64xf32>
    %159 = vector.shape_cast %156 : vector<8x64xf32> to vector<1x8x64xf32>
    tpu.vector_store %arg15[%c0_69, %c0_70, %c0_71], %159 {strides = array<i32>} : memref<1x8x64xf32, #tpu.memory_space<vmem>>, vector<1x8x64xf32>,
    return
  }
  func.func @transform_0(%arg0: i32) -> (i32, i32, i32) {
    %c0_i32 = arith.constant 0 : i32
    %c0_i32_0 = arith.constant 0 : i32
    %c0_i32_1 = arith.constant 0 : i32
    return %arg0, %c0_i32, %c0_i32_0 : i32, i32, i32
  }
  func.func @transform_1(%arg0: i32) -> (i32, i32, i32) {
    %c0_i32 = arith.constant 0 : i32
    %c0_i32_0 = arith.constant 0 : i32
    %c0_i32_1 = arith.constant 0 : i32
    return %arg0, %c0_i32, %c0_i32_0 : i32, i32, i32
  }
  func.func @transform_2(%arg0: i32) -> (i32, i32) {
    %c0_i32 = arith.constant 0 : i32
    %c0_i32_0 = arith.constant 0 : i32
    %c0_i32_1 = arith.constant 0 : i32
    return %c0_i32, %c0_i32_0 : i32, i32
  }
  func.func @transform_3(%arg0: i32) -> (i32, i32) {
    %c0_i32 = arith.constant 0 : i32
    %c0_i32_0 = arith.constant 0 : i32
    %c0_i32_1 = arith.constant 0 : i32
    return %c0_i32, %c0_i32_0 : i32, i32
  }
  func.func @transform_4(%arg0: i32) -> (i32, i32) {
    %c0_i32 = arith.constant 0 : i32
    %c0_i32_0 = arith.constant 0 : i32
    %c0_i32_1 = arith.constant 0 : i32
    return %c0_i32, %c0_i32_0 : i32, i32
  }
  func.func @transform_5(%arg0: i32) -> (i32, i32) {
    %c0_i32 = arith.constant 0 : i32
    %c0_i32_0 = arith.constant 0 : i32
    %c0_i32_1 = arith.constant 0 : i32
    return %c0_i32, %c0_i32_0 : i32, i32
  }
  func.func @transform_6(%arg0: i32) -> (i32, i32) {
    %c0_i32 = arith.constant 0 : i32
    %c0_i32_0 = arith.constant 0 : i32
    %c0_i32_1 = arith.constant 0 : i32
    return %c0_i32, %c0_i32_0 : i32, i32
  }
  func.func @transform_7(%arg0: i32) -> (i32, i32) {
    %c0_i32 = arith.constant 0 : i32
    %c0_i32_0 = arith.constant 0 : i32
    %c0_i32_1 = arith.constant 0 : i32
    return %c0_i32, %c0_i32_0 : i32, i32
  }
  func.func @transform_8(%arg0: i32) -> (i32, i32) {
    %c0_i32 = arith.constant 0 : i32
    %c0_i32_0 = arith.constant 0 : i32
    %c0_i32_1 = arith.constant 0 : i32
    return %c0_i32, %c0_i32_0 : i32, i32
  }
  func.func @transform_9(%arg0: i32) -> (i32, i32) {
    %c0_i32 = arith.constant 0 : i32
    %c0_i32_0 = arith.constant 0 : i32
    %c0_i32_1 = arith.constant 0 : i32
    return %c0_i32, %c0_i32_0 : i32, i32
  }
  func.func @transform_10(%arg0: i32) -> (i32, i32) {
    %c0_i32 = arith.constant 0 : i32
    %c0_i32_0 = arith.constant 0 : i32
    %c0_i32_1 = arith.constant 0 : i32
    return %c0_i32, %c0_i32_0 : i32, i32
  }
  func.func @transform_11(%arg0: i32) -> (i32, i32) {
    %c0_i32 = arith.constant 0 : i32
    %c0_i32_0 = arith.constant 0 : i32
    %c0_i32_1 = arith.constant 0 : i32
    return %c0_i32, %c0_i32_0 : i32, i32
  }
  func.func @transform_12(%arg0: i32) -> (i32, i32) {
    %c0_i32 = arith.constant 0 : i32
    %c0_i32_0 = arith.constant 0 : i32
    %c0_i32_1 = arith.constant 0 : i32
    return %c0_i32, %c0_i32_0 : i32, i32
  }
  func.func @transform_13(%arg0: i32) -> (i32, i32) {
    %c0_i32 = arith.constant 0 : i32
    %c0_i32_0 = arith.constant 0 : i32
    %c0_i32_1 = arith.constant 0 : i32
    return %c0_i32, %c0_i32_0 : i32, i32
  }
  func.func @transform_14(%arg0: i32) -> (i32, i32, i32) {
    %c0_i32 = arith.constant 0 : i32
    %c0_i32_0 = arith.constant 0 : i32
    %c0_i32_1 = arith.constant 0 : i32
    return %arg0, %c0_i32, %c0_i32_0 : i32, i32, i32
  }
}

module attributes {stable_mosaic.version = 11 : i64} {
  func.func @_decoder_layer_kernel(%arg0: i32, %arg1: memref<1x8x64xf32, #tpu.memory_space<vmem>>, %arg2: memref<1x8x64xf32, #tpu.memory_space<vmem>>, %arg3: memref<1x8x8xf32, #tpu.memory_space<vmem>>, %arg4: memref<1x8x8xf32, #tpu.memory_space<vmem>>, %arg5: memref<64x192xf32, #tpu.memory_space<vmem>>, %arg6: memref<1x192xf32, #tpu.memory_space<vmem>>, %arg7: memref<64x64xf32, #tpu.memory_space<vmem>>, %arg8: memref<1x64xf32, #tpu.memory_space<vmem>>, %arg9: memref<64x64xf32, #tpu.memory_space<vmem>>, %arg10: memref<1x64xf32, #tpu.memory_space<vmem>>, %arg11: memref<64x128xf32, #tpu.memory_space<vmem>>, %arg12: memref<1x128xf32, #tpu.memory_space<vmem>>, %arg13: memref<64x64xf32, #tpu.memory_space<vmem>>, %arg14: memref<1x64xf32, #tpu.memory_space<vmem>>, %arg15: memref<64x128xf32, #tpu.memory_space<vmem>>, %arg16: memref<1x128xf32, #tpu.memory_space<vmem>>, %arg17: memref<128x64xf32, #tpu.memory_space<vmem>>, %arg18: memref<1x64xf32, #tpu.memory_space<vmem>>, %arg19: memref<1x64xf32, #tpu.memory_space<vmem>>, %arg20: memref<1x64xf32, #tpu.memory_space<vmem>>, %arg21: memref<1x64xf32, #tpu.memory_space<vmem>>, %arg22: memref<1x64xf32, #tpu.memory_space<vmem>>, %arg23: memref<1x64xf32, #tpu.memory_space<vmem>>, %arg24: memref<1x64xf32, #tpu.memory_space<vmem>>, %arg25: memref<1x8x64xf32, #tpu.memory_space<vmem>>) attributes {dimension_semantics = [#tpu.dimension_semantics<parallel>], iteration_bounds = array<i64: 2>, scalar_prefetch = 0 : i64, scratch_operands = 0 : i64, tpu.core_type = #tpu.core_type<tc>, window_params = [{transform_indices = @transform_0, window_bounds = array<i64: 1, 8, 64>}, {transform_indices = @transform_1, window_bounds = array<i64: 1, 8, 64>}, {transform_indices = @transform_2, window_bounds = array<i64: 1, 8, 8>}, {transform_indices = @transform_3, window_bounds = array<i64: 1, 8, 8>}, {pipeline_mode = #tpu.pipeline_mode<synchronous>, transform_indices = @transform_4, window_bounds = array<i64: 64, 192>}, {pipeline_mode = #tpu.pipeline_mode<synchronous>, transform_indices = @transform_5, window_bounds = array<i64: 1, 192>}, {pipeline_mode = #tpu.pipeline_mode<synchronous>, transform_indices = @transform_6, window_bounds = array<i64: 64, 64>}, {pipeline_mode = #tpu.pipeline_mode<synchronous>, transform_indices = @transform_7, window_bounds = array<i64: 1, 64>}, {pipeline_mode = #tpu.pipeline_mode<synchronous>, transform_indices = @transform_8, window_bounds = array<i64: 64, 64>}, {pipeline_mode = #tpu.pipeline_mode<synchronous>, transform_indices = @transform_9, window_bounds = array<i64: 1, 64>}, {pipeline_mode = #tpu.pipeline_mode<synchronous>, transform_indices = @transform_10, window_bounds = array<i64: 64, 128>}, {pipeline_mode = #tpu.pipeline_mode<synchronous>, transform_indices = @transform_11, window_bounds = array<i64: 1, 128>}, {pipeline_mode = #tpu.pipeline_mode<synchronous>, transform_indices = @transform_12, window_bounds = array<i64: 64, 64>}, {pipeline_mode = #tpu.pipeline_mode<synchronous>, transform_indices = @transform_13, window_bounds = array<i64: 1, 64>}, {pipeline_mode = #tpu.pipeline_mode<synchronous>, transform_indices = @transform_14, window_bounds = array<i64: 64, 128>}, {pipeline_mode = #tpu.pipeline_mode<synchronous>, transform_indices = @transform_15, window_bounds = array<i64: 1, 128>}, {pipeline_mode = #tpu.pipeline_mode<synchronous>, transform_indices = @transform_16, window_bounds = array<i64: 128, 64>}, {pipeline_mode = #tpu.pipeline_mode<synchronous>, transform_indices = @transform_17, window_bounds = array<i64: 1, 64>}, {pipeline_mode = #tpu.pipeline_mode<synchronous>, transform_indices = @transform_18, window_bounds = array<i64: 1, 64>}, {pipeline_mode = #tpu.pipeline_mode<synchronous>, transform_indices = @transform_19, window_bounds = array<i64: 1, 64>}, {pipeline_mode = #tpu.pipeline_mode<synchronous>, transform_indices = @transform_20, window_bounds = array<i64: 1, 64>}, {pipeline_mode = #tpu.pipeline_mode<synchronous>, transform_indices = @transform_21, window_bounds = array<i64: 1, 64>}, {pipeline_mode = #tpu.pipeline_mode<synchronous>, transform_indices = @transform_22, window_bounds = array<i64: 1, 64>}, {pipeline_mode = #tpu.pipeline_mode<synchronous>, transform_indices = @transform_23, window_bounds = array<i64: 1, 64>}, {transform_indices = @transform_24, window_bounds = array<i64: 1, 8, 64>}]} {
    %c0 = arith.constant 0 : index
    %c0_0 = arith.constant 0 : index
    %c0_1 = arith.constant 0 : index
    %0 = vector.load %arg1[%c0, %c0_0, %c0_1] : memref<1x8x64xf32, #tpu.memory_space<vmem>>, vector<1x8x64xf32>
    %1 = vector.shape_cast %0 : vector<1x8x64xf32> to vector<8x64xf32>
    %c0_2 = arith.constant 0 : index
    %c0_3 = arith.constant 0 : index
    %c0_4 = arith.constant 0 : index
    %2 = vector.load %arg2[%c0_2, %c0_3, %c0_4] : memref<1x8x64xf32, #tpu.memory_space<vmem>>, vector<1x8x64xf32>
    %3 = vector.shape_cast %2 : vector<1x8x64xf32> to vector<8x64xf32>
    %c0_5 = arith.constant 0 : index
    %c0_6 = arith.constant 0 : index
    %c0_7 = arith.constant 0 : index
    %4 = vector.load %arg3[%c0_5, %c0_6, %c0_7] : memref<1x8x8xf32, #tpu.memory_space<vmem>>, vector<1x8x8xf32>
    %5 = vector.shape_cast %4 : vector<1x8x8xf32> to vector<8x8xf32>
    %c0_8 = arith.constant 0 : index
    %c0_9 = arith.constant 0 : index
    %c0_10 = arith.constant 0 : index
    %6 = vector.load %arg4[%c0_8, %c0_9, %c0_10] : memref<1x8x8xf32, #tpu.memory_space<vmem>>, vector<1x8x8xf32>
    %7 = vector.shape_cast %6 : vector<1x8x8xf32> to vector<8x8xf32>
    %c0_11 = arith.constant 0 : index
    %c0_12 = arith.constant 0 : index
    %8 = vector.load %arg5[%c0_11, %c0_12] : memref<64x192xf32, #tpu.memory_space<vmem>>, vector<64x192xf32>
    %cst = arith.constant dense<0.000000e+00> : vector<8x192xf32>
    %9 = tpu.matmul %1, %8, %cst {dimension_numbers = #tpu.dot_dimension_numbers<[1], [0], [0], [1], [0, 0, 1, 1], [], []>} : vector<8x64xf32>, vector<64x192xf32>, vector<8x192xf32> -> vector<8x192xf32>
    %c0_13 = arith.constant 0 : index
    %c0_14 = arith.constant 0 : index
    %10 = vector.load %arg6[%c0_13, %c0_14] : memref<1x192xf32, #tpu.memory_space<vmem>>, vector<1x192xf32>
    %11 = vector.broadcast %10 : vector<1x192xf32> to vector<8x192xf32>
    %12 = arith.addf %9, %11 : vector<8x192xf32>
    %13 = vector.extract_strided_slice %12 {offsets = [0, 0], sizes = [8, 16], strides = [1, 1]} : vector<8x192xf32> to vector<8x16xf32>
    %14 = vector.extract_strided_slice %12 {offsets = [0, 64], sizes = [8, 16], strides = [1, 1]} : vector<8x192xf32> to vector<8x16xf32>
    %15 = vector.extract_strided_slice %12 {offsets = [0, 128], sizes = [8, 16], strides = [1, 1]} : vector<8x192xf32> to vector<8x16xf32>
    %16 = tpu.transpose %14, [1, 0] : vector<8x16xf32> -> vector<16x8xf32>
    %cst_15 = arith.constant dense<0.000000e+00> : vector<8x8xf32>
    %17 = tpu.matmul %13, %16, %cst_15 {dimension_numbers = #tpu.dot_dimension_numbers<[1], [0], [0], [1], [0, 0, 1, 1], [], []>} : vector<8x16xf32>, vector<16x8xf32>, vector<8x8xf32> -> vector<8x8xf32>
    %cst_16 = arith.constant 2.500000e-01 : f32
    %18 = vector.broadcast %cst_16 : f32 to vector<8x8xf32>
    %19 = arith.mulf %17, %18 : vector<8x8xf32>
    %20 = arith.addf %19, %5 : vector<8x8xf32>
    %cst_17 = arith.constant dense<0xFF800000> : vector<8xf32>
    %21 = vector.multi_reduction <maximumf>, %20, %cst_17 [1] : vector<8x8xf32> to vector<8xf32>
    %22 = vector.shape_cast %21 : vector<8xf32> to vector<8x1xf32>
    %23 = vector.broadcast %22 : vector<8x1xf32> to vector<8x8xf32>
    %24 = arith.subf %20, %23 : vector<8x8xf32>
    %25 = math.exp %24 : vector<8x8xf32>
    %cst_18 = arith.constant dense<0.000000e+00> : vector<8xf32>
    %26 = vector.multi_reduction <add>, %25, %cst_18 [1] : vector<8x8xf32> to vector<8xf32>
    %27 = vector.shape_cast %26 : vector<8xf32> to vector<8x1xf32>
    %28 = tpu.reciprocal %27 {approx = true} : vector<8x1xf32> -> vector<8x1xf32>
    %29 = vector.broadcast %28 : vector<8x1xf32> to vector<8x8xf32>
    %30 = arith.mulf %25, %29 : vector<8x8xf32>
    %cst_19 = arith.constant dense<0.000000e+00> : vector<8x16xf32>
    %31 = tpu.matmul %30, %15, %cst_19 {dimension_numbers = #tpu.dot_dimension_numbers<[1], [0], [0], [1], [0, 0, 1, 1], [], []>} : vector<8x8xf32>, vector<8x16xf32>, vector<8x16xf32> -> vector<8x16xf32>
    %c0_20 = arith.constant 0 : index
    %c0_21 = arith.constant 0 : index
    %32 = vector.load %arg7[%c0_20, %c0_21] : memref<64x64xf32, #tpu.memory_space<vmem>>, vector<16x64xf32>
    %cst_22 = arith.constant dense<0.000000e+00> : vector<8x64xf32>
    %33 = tpu.matmul %31, %32, %cst_22 {dimension_numbers = #tpu.dot_dimension_numbers<[1], [0], [0], [1], [0, 0, 1, 1], [], []>} : vector<8x16xf32>, vector<16x64xf32>, vector<8x64xf32> -> vector<8x64xf32>
    %34 = vector.extract_strided_slice %12 {offsets = [0, 16], sizes = [8, 16], strides = [1, 1]} : vector<8x192xf32> to vector<8x16xf32>
    %35 = vector.extract_strided_slice %12 {offsets = [0, 80], sizes = [8, 16], strides = [1, 1]} : vector<8x192xf32> to vector<8x16xf32>
    %36 = vector.extract_strided_slice %12 {offsets = [0, 144], sizes = [8, 16], strides = [1, 1]} : vector<8x192xf32> to vector<8x16xf32>
    %37 = tpu.transpose %35, [1, 0] : vector<8x16xf32> -> vector<16x8xf32>
    %cst_23 = arith.constant dense<0.000000e+00> : vector<8x8xf32>
    %38 = tpu.matmul %34, %37, %cst_23 {dimension_numbers = #tpu.dot_dimension_numbers<[1], [0], [0], [1], [0, 0, 1, 1], [], []>} : vector<8x16xf32>, vector<16x8xf32>, vector<8x8xf32> -> vector<8x8xf32>
    %cst_24 = arith.constant 2.500000e-01 : f32
    %39 = vector.broadcast %cst_24 : f32 to vector<8x8xf32>
    %40 = arith.mulf %38, %39 : vector<8x8xf32>
    %41 = arith.addf %40, %5 : vector<8x8xf32>
    %cst_25 = arith.constant dense<0xFF800000> : vector<8xf32>
    %42 = vector.multi_reduction <maximumf>, %41, %cst_25 [1] : vector<8x8xf32> to vector<8xf32>
    %43 = vector.shape_cast %42 : vector<8xf32> to vector<8x1xf32>
    %44 = vector.broadcast %43 : vector<8x1xf32> to vector<8x8xf32>
    %45 = arith.subf %41, %44 : vector<8x8xf32>
    %46 = math.exp %45 : vector<8x8xf32>
    %cst_26 = arith.constant dense<0.000000e+00> : vector<8xf32>
    %47 = vector.multi_reduction <add>, %46, %cst_26 [1] : vector<8x8xf32> to vector<8xf32>
    %48 = vector.shape_cast %47 : vector<8xf32> to vector<8x1xf32>
    %49 = tpu.reciprocal %48 {approx = true} : vector<8x1xf32> -> vector<8x1xf32>
    %50 = vector.broadcast %49 : vector<8x1xf32> to vector<8x8xf32>
    %51 = arith.mulf %46, %50 : vector<8x8xf32>
    %cst_27 = arith.constant dense<0.000000e+00> : vector<8x16xf32>
    %52 = tpu.matmul %51, %36, %cst_27 {dimension_numbers = #tpu.dot_dimension_numbers<[1], [0], [0], [1], [0, 0, 1, 1], [], []>} : vector<8x8xf32>, vector<8x16xf32>, vector<8x16xf32> -> vector<8x16xf32>
    %c16 = arith.constant 16 : index
    %c0_28 = arith.constant 0 : index
    %53 = vector.load %arg7[%c16, %c0_28] : memref<64x64xf32, #tpu.memory_space<vmem>>, vector<16x64xf32>
    %cst_29 = arith.constant dense<0.000000e+00> : vector<8x64xf32>
    %54 = tpu.matmul %52, %53, %cst_29 {dimension_numbers = #tpu.dot_dimension_numbers<[1], [0], [0], [1], [0, 0, 1, 1], [], []>} : vector<8x16xf32>, vector<16x64xf32>, vector<8x64xf32> -> vector<8x64xf32>
    %55 = arith.addf %33, %54 : vector<8x64xf32>
    %56 = vector.extract_strided_slice %12 {offsets = [0, 32], sizes = [8, 16], strides = [1, 1]} : vector<8x192xf32> to vector<8x16xf32>
    %57 = vector.extract_strided_slice %12 {offsets = [0, 96], sizes = [8, 16], strides = [1, 1]} : vector<8x192xf32> to vector<8x16xf32>
    %58 = vector.extract_strided_slice %12 {offsets = [0, 160], sizes = [8, 16], strides = [1, 1]} : vector<8x192xf32> to vector<8x16xf32>
    %59 = tpu.transpose %57, [1, 0] : vector<8x16xf32> -> vector<16x8xf32>
    %cst_30 = arith.constant dense<0.000000e+00> : vector<8x8xf32>
    %60 = tpu.matmul %56, %59, %cst_30 {dimension_numbers = #tpu.dot_dimension_numbers<[1], [0], [0], [1], [0, 0, 1, 1], [], []>} : vector<8x16xf32>, vector<16x8xf32>, vector<8x8xf32> -> vector<8x8xf32>
    %cst_31 = arith.constant 2.500000e-01 : f32
    %61 = vector.broadcast %cst_31 : f32 to vector<8x8xf32>
    %62 = arith.mulf %60, %61 : vector<8x8xf32>
    %63 = arith.addf %62, %5 : vector<8x8xf32>
    %cst_32 = arith.constant dense<0xFF800000> : vector<8xf32>
    %64 = vector.multi_reduction <maximumf>, %63, %cst_32 [1] : vector<8x8xf32> to vector<8xf32>
    %65 = vector.shape_cast %64 : vector<8xf32> to vector<8x1xf32>
    %66 = vector.broadcast %65 : vector<8x1xf32> to vector<8x8xf32>
    %67 = arith.subf %63, %66 : vector<8x8xf32>
    %68 = math.exp %67 : vector<8x8xf32>
    %cst_33 = arith.constant dense<0.000000e+00> : vector<8xf32>
    %69 = vector.multi_reduction <add>, %68, %cst_33 [1] : vector<8x8xf32> to vector<8xf32>
    %70 = vector.shape_cast %69 : vector<8xf32> to vector<8x1xf32>
    %71 = tpu.reciprocal %70 {approx = true} : vector<8x1xf32> -> vector<8x1xf32>
    %72 = vector.broadcast %71 : vector<8x1xf32> to vector<8x8xf32>
    %73 = arith.mulf %68, %72 : vector<8x8xf32>
    %cst_34 = arith.constant dense<0.000000e+00> : vector<8x16xf32>
    %74 = tpu.matmul %73, %58, %cst_34 {dimension_numbers = #tpu.dot_dimension_numbers<[1], [0], [0], [1], [0, 0, 1, 1], [], []>} : vector<8x8xf32>, vector<8x16xf32>, vector<8x16xf32> -> vector<8x16xf32>
    %c32 = arith.constant 32 : index
    %c0_35 = arith.constant 0 : index
    %75 = vector.load %arg7[%c32, %c0_35] : memref<64x64xf32, #tpu.memory_space<vmem>>, vector<16x64xf32>
    %cst_36 = arith.constant dense<0.000000e+00> : vector<8x64xf32>
    %76 = tpu.matmul %74, %75, %cst_36 {dimension_numbers = #tpu.dot_dimension_numbers<[1], [0], [0], [1], [0, 0, 1, 1], [], []>} : vector<8x16xf32>, vector<16x64xf32>, vector<8x64xf32> -> vector<8x64xf32>
    %77 = arith.addf %55, %76 : vector<8x64xf32>
    %78 = vector.extract_strided_slice %12 {offsets = [0, 48], sizes = [8, 16], strides = [1, 1]} : vector<8x192xf32> to vector<8x16xf32>
    %79 = vector.extract_strided_slice %12 {offsets = [0, 112], sizes = [8, 16], strides = [1, 1]} : vector<8x192xf32> to vector<8x16xf32>
    %80 = vector.extract_strided_slice %12 {offsets = [0, 176], sizes = [8, 16], strides = [1, 1]} : vector<8x192xf32> to vector<8x16xf32>
    %81 = tpu.transpose %79, [1, 0] : vector<8x16xf32> -> vector<16x8xf32>
    %cst_37 = arith.constant dense<0.000000e+00> : vector<8x8xf32>
    %82 = tpu.matmul %78, %81, %cst_37 {dimension_numbers = #tpu.dot_dimension_numbers<[1], [0], [0], [1], [0, 0, 1, 1], [], []>} : vector<8x16xf32>, vector<16x8xf32>, vector<8x8xf32> -> vector<8x8xf32>
    %cst_38 = arith.constant 2.500000e-01 : f32
    %83 = vector.broadcast %cst_38 : f32 to vector<8x8xf32>
    %84 = arith.mulf %82, %83 : vector<8x8xf32>
    %85 = arith.addf %84, %5 : vector<8x8xf32>
    %cst_39 = arith.constant dense<0xFF800000> : vector<8xf32>
    %86 = vector.multi_reduction <maximumf>, %85, %cst_39 [1] : vector<8x8xf32> to vector<8xf32>
    %87 = vector.shape_cast %86 : vector<8xf32> to vector<8x1xf32>
    %88 = vector.broadcast %87 : vector<8x1xf32> to vector<8x8xf32>
    %89 = arith.subf %85, %88 : vector<8x8xf32>
    %90 = math.exp %89 : vector<8x8xf32>
    %cst_40 = arith.constant dense<0.000000e+00> : vector<8xf32>
    %91 = vector.multi_reduction <add>, %90, %cst_40 [1] : vector<8x8xf32> to vector<8xf32>
    %92 = vector.shape_cast %91 : vector<8xf32> to vector<8x1xf32>
    %93 = tpu.reciprocal %92 {approx = true} : vector<8x1xf32> -> vector<8x1xf32>
    %94 = vector.broadcast %93 : vector<8x1xf32> to vector<8x8xf32>
    %95 = arith.mulf %90, %94 : vector<8x8xf32>
    %cst_41 = arith.constant dense<0.000000e+00> : vector<8x16xf32>
    %96 = tpu.matmul %95, %80, %cst_41 {dimension_numbers = #tpu.dot_dimension_numbers<[1], [0], [0], [1], [0, 0, 1, 1], [], []>} : vector<8x8xf32>, vector<8x16xf32>, vector<8x16xf32> -> vector<8x16xf32>
    %c48 = arith.constant 48 : index
    %c0_42 = arith.constant 0 : index
    %97 = vector.load %arg7[%c48, %c0_42] : memref<64x64xf32, #tpu.memory_space<vmem>>, vector<16x64xf32>
    %cst_43 = arith.constant dense<0.000000e+00> : vector<8x64xf32>
    %98 = tpu.matmul %96, %97, %cst_43 {dimension_numbers = #tpu.dot_dimension_numbers<[1], [0], [0], [1], [0, 0, 1, 1], [], []>} : vector<8x16xf32>, vector<16x64xf32>, vector<8x64xf32> -> vector<8x64xf32>
    %99 = arith.addf %77, %98 : vector<8x64xf32>
    %c0_44 = arith.constant 0 : index
    %c0_45 = arith.constant 0 : index
    %100 = vector.load %arg8[%c0_44, %c0_45] : memref<1x64xf32, #tpu.memory_space<vmem>>, vector<1x64xf32>
    %101 = vector.broadcast %100 : vector<1x64xf32> to vector<8x64xf32>
    %102 = arith.addf %99, %101 : vector<8x64xf32>
    %103 = arith.addf %1, %102 : vector<8x64xf32>
    %c0_46 = arith.constant 0 : index
    %c0_47 = arith.constant 0 : index
    %104 = vector.load %arg19[%c0_46, %c0_47] : memref<1x64xf32, #tpu.memory_space<vmem>>, vector<1x64xf32>
    %c0_48 = arith.constant 0 : index
    %c0_49 = arith.constant 0 : index
    %105 = vector.load %arg20[%c0_48, %c0_49] : memref<1x64xf32, #tpu.memory_space<vmem>>, vector<1x64xf32>
    %cst_50 = arith.constant dense<0.000000e+00> : vector<8xf32>
    %106 = vector.multi_reduction <add>, %103, %cst_50 [1] : vector<8x64xf32> to vector<8xf32>
    %107 = vector.shape_cast %106 : vector<8xf32> to vector<8x1xf32>
    %cst_51 = arith.constant 6.400000e+01 : f32
    %108 = vector.broadcast %cst_51 : f32 to vector<8x1xf32>
    %109 = arith.divf %107, %108 : vector<8x1xf32>
    %110 = vector.broadcast %109 : vector<8x1xf32> to vector<8x64xf32>
    %111 = arith.subf %103, %110 : vector<8x64xf32>
    %112 = arith.mulf %111, %111 : vector<8x64xf32>
    %cst_52 = arith.constant dense<0.000000e+00> : vector<8xf32>
    %113 = vector.multi_reduction <add>, %112, %cst_52 [1] : vector<8x64xf32> to vector<8xf32>
    %114 = vector.shape_cast %113 : vector<8xf32> to vector<8x1xf32>
    %cst_53 = arith.constant 6.400000e+01 : f32
    %115 = vector.broadcast %cst_53 : f32 to vector<8x1xf32>
    %116 = arith.divf %114, %115 : vector<8x1xf32>
    %cst_54 = arith.constant 9.99999974E-6 : f32
    %117 = vector.broadcast %cst_54 : f32 to vector<8x1xf32>
    %118 = arith.addf %116, %117 : vector<8x1xf32>
    %119 = math.rsqrt %118 : vector<8x1xf32>
    %120 = vector.broadcast %119 : vector<8x1xf32> to vector<8x64xf32>
    %121 = arith.mulf %111, %120 : vector<8x64xf32>
    %122 = vector.broadcast %104 : vector<1x64xf32> to vector<8x64xf32>
    %123 = arith.mulf %121, %122 : vector<8x64xf32>
    %124 = vector.broadcast %105 : vector<1x64xf32> to vector<8x64xf32>
    %125 = arith.addf %123, %124 : vector<8x64xf32>
    %c0_55 = arith.constant 0 : index
    %c0_56 = arith.constant 0 : index
    %126 = vector.load %arg9[%c0_55, %c0_56] : memref<64x64xf32, #tpu.memory_space<vmem>>, vector<64x64xf32>
    %cst_57 = arith.constant dense<0.000000e+00> : vector<8x64xf32>
    %127 = tpu.matmul %125, %126, %cst_57 {dimension_numbers = #tpu.dot_dimension_numbers<[1], [0], [0], [1], [0, 0, 1, 1], [], []>} : vector<8x64xf32>, vector<64x64xf32>, vector<8x64xf32> -> vector<8x64xf32>
    %c0_58 = arith.constant 0 : index
    %c0_59 = arith.constant 0 : index
    %128 = vector.load %arg10[%c0_58, %c0_59] : memref<1x64xf32, #tpu.memory_space<vmem>>, vector<1x64xf32>
    %129 = vector.broadcast %128 : vector<1x64xf32> to vector<8x64xf32>
    %130 = arith.addf %127, %129 : vector<8x64xf32>
    %c0_60 = arith.constant 0 : index
    %c0_61 = arith.constant 0 : index
    %131 = vector.load %arg11[%c0_60, %c0_61] : memref<64x128xf32, #tpu.memory_space<vmem>>, vector<64x128xf32>
    %cst_62 = arith.constant dense<0.000000e+00> : vector<8x128xf32>
    %132 = tpu.matmul %3, %131, %cst_62 {dimension_numbers = #tpu.dot_dimension_numbers<[1], [0], [0], [1], [0, 0, 1, 1], [], []>} : vector<8x64xf32>, vector<64x128xf32>, vector<8x128xf32> -> vector<8x128xf32>
    %c0_63 = arith.constant 0 : index
    %c0_64 = arith.constant 0 : index
    %133 = vector.load %arg12[%c0_63, %c0_64] : memref<1x128xf32, #tpu.memory_space<vmem>>, vector<1x128xf32>
    %134 = vector.broadcast %133 : vector<1x128xf32> to vector<8x128xf32>
    %135 = arith.addf %132, %134 : vector<8x128xf32>
    %136 = vector.extract_strided_slice %130 {offsets = [0, 0], sizes = [8, 16], strides = [1, 1]} : vector<8x64xf32> to vector<8x16xf32>
    %137 = vector.extract_strided_slice %135 {offsets = [0, 0], sizes = [8, 16], strides = [1, 1]} : vector<8x128xf32> to vector<8x16xf32>
    %138 = vector.extract_strided_slice %135 {offsets = [0, 64], sizes = [8, 16], strides = [1, 1]} : vector<8x128xf32> to vector<8x16xf32>
    %139 = tpu.transpose %137, [1, 0] : vector<8x16xf32> -> vector<16x8xf32>
    %cst_65 = arith.constant dense<0.000000e+00> : vector<8x8xf32>
    %140 = tpu.matmul %136, %139, %cst_65 {dimension_numbers = #tpu.dot_dimension_numbers<[1], [0], [0], [1], [0, 0, 1, 1], [], []>} : vector<8x16xf32>, vector<16x8xf32>, vector<8x8xf32> -> vector<8x8xf32>
    %cst_66 = arith.constant 2.500000e-01 : f32
    %141 = vector.broadcast %cst_66 : f32 to vector<8x8xf32>
    %142 = arith.mulf %140, %141 : vector<8x8xf32>
    %143 = arith.addf %142, %7 : vector<8x8xf32>
    %cst_67 = arith.constant dense<0xFF800000> : vector<8xf32>
    %144 = vector.multi_reduction <maximumf>, %143, %cst_67 [1] : vector<8x8xf32> to vector<8xf32>
    %145 = vector.shape_cast %144 : vector<8xf32> to vector<8x1xf32>
    %146 = vector.broadcast %145 : vector<8x1xf32> to vector<8x8xf32>
    %147 = arith.subf %143, %146 : vector<8x8xf32>
    %148 = math.exp %147 : vector<8x8xf32>
    %cst_68 = arith.constant dense<0.000000e+00> : vector<8xf32>
    %149 = vector.multi_reduction <add>, %148, %cst_68 [1] : vector<8x8xf32> to vector<8xf32>
    %150 = vector.shape_cast %149 : vector<8xf32> to vector<8x1xf32>
    %151 = tpu.reciprocal %150 {approx = true} : vector<8x1xf32> -> vector<8x1xf32>
    %152 = vector.broadcast %151 : vector<8x1xf32> to vector<8x8xf32>
    %153 = arith.mulf %148, %152 : vector<8x8xf32>
    %cst_69 = arith.constant dense<0.000000e+00> : vector<8x16xf32>
    %154 = tpu.matmul %153, %138, %cst_69 {dimension_numbers = #tpu.dot_dimension_numbers<[1], [0], [0], [1], [0, 0, 1, 1], [], []>} : vector<8x8xf32>, vector<8x16xf32>, vector<8x16xf32> -> vector<8x16xf32>
    %c0_70 = arith.constant 0 : index
    %c0_71 = arith.constant 0 : index
    %155 = vector.load %arg13[%c0_70, %c0_71] : memref<64x64xf32, #tpu.memory_space<vmem>>, vector<16x64xf32>
    %cst_72 = arith.constant dense<0.000000e+00> : vector<8x64xf32>
    %156 = tpu.matmul %154, %155, %cst_72 {dimension_numbers = #tpu.dot_dimension_numbers<[1], [0], [0], [1], [0, 0, 1, 1], [], []>} : vector<8x16xf32>, vector<16x64xf32>, vector<8x64xf32> -> vector<8x64xf32>
    %157 = vector.extract_strided_slice %130 {offsets = [0, 16], sizes = [8, 16], strides = [1, 1]} : vector<8x64xf32> to vector<8x16xf32>
    %158 = vector.extract_strided_slice %135 {offsets = [0, 16], sizes = [8, 16], strides = [1, 1]} : vector<8x128xf32> to vector<8x16xf32>
    %159 = vector.extract_strided_slice %135 {offsets = [0, 80], sizes = [8, 16], strides = [1, 1]} : vector<8x128xf32> to vector<8x16xf32>
    %160 = tpu.transpose %158, [1, 0] : vector<8x16xf32> -> vector<16x8xf32>
    %cst_73 = arith.constant dense<0.000000e+00> : vector<8x8xf32>
    %161 = tpu.matmul %157, %160, %cst_73 {dimension_numbers = #tpu.dot_dimension_numbers<[1], [0], [0], [1], [0, 0, 1, 1], [], []>} : vector<8x16xf32>, vector<16x8xf32>, vector<8x8xf32> -> vector<8x8xf32>
    %cst_74 = arith.constant 2.500000e-01 : f32
    %162 = vector.broadcast %cst_74 : f32 to vector<8x8xf32>
    %163 = arith.mulf %161, %162 : vector<8x8xf32>
    %164 = arith.addf %163, %7 : vector<8x8xf32>
    %cst_75 = arith.constant dense<0xFF800000> : vector<8xf32>
    %165 = vector.multi_reduction <maximumf>, %164, %cst_75 [1] : vector<8x8xf32> to vector<8xf32>
    %166 = vector.shape_cast %165 : vector<8xf32> to vector<8x1xf32>
    %167 = vector.broadcast %166 : vector<8x1xf32> to vector<8x8xf32>
    %168 = arith.subf %164, %167 : vector<8x8xf32>
    %169 = math.exp %168 : vector<8x8xf32>
    %cst_76 = arith.constant dense<0.000000e+00> : vector<8xf32>
    %170 = vector.multi_reduction <add>, %169, %cst_76 [1] : vector<8x8xf32> to vector<8xf32>
    %171 = vector.shape_cast %170 : vector<8xf32> to vector<8x1xf32>
    %172 = tpu.reciprocal %171 {approx = true} : vector<8x1xf32> -> vector<8x1xf32>
    %173 = vector.broadcast %172 : vector<8x1xf32> to vector<8x8xf32>
    %174 = arith.mulf %169, %173 : vector<8x8xf32>
    %cst_77 = arith.constant dense<0.000000e+00> : vector<8x16xf32>
    %175 = tpu.matmul %174, %159, %cst_77 {dimension_numbers = #tpu.dot_dimension_numbers<[1], [0], [0], [1], [0, 0, 1, 1], [], []>} : vector<8x8xf32>, vector<8x16xf32>, vector<8x16xf32> -> vector<8x16xf32>
    %c16_78 = arith.constant 16 : index
    %c0_79 = arith.constant 0 : index
    %176 = vector.load %arg13[%c16_78, %c0_79] : memref<64x64xf32, #tpu.memory_space<vmem>>, vector<16x64xf32>
    %cst_80 = arith.constant dense<0.000000e+00> : vector<8x64xf32>
    %177 = tpu.matmul %175, %176, %cst_80 {dimension_numbers = #tpu.dot_dimension_numbers<[1], [0], [0], [1], [0, 0, 1, 1], [], []>} : vector<8x16xf32>, vector<16x64xf32>, vector<8x64xf32> -> vector<8x64xf32>
    %178 = arith.addf %156, %177 : vector<8x64xf32>
    %179 = vector.extract_strided_slice %130 {offsets = [0, 32], sizes = [8, 16], strides = [1, 1]} : vector<8x64xf32> to vector<8x16xf32>
    %180 = vector.extract_strided_slice %135 {offsets = [0, 32], sizes = [8, 16], strides = [1, 1]} : vector<8x128xf32> to vector<8x16xf32>
    %181 = vector.extract_strided_slice %135 {offsets = [0, 96], sizes = [8, 16], strides = [1, 1]} : vector<8x128xf32> to vector<8x16xf32>
    %182 = tpu.transpose %180, [1, 0] : vector<8x16xf32> -> vector<16x8xf32>
    %cst_81 = arith.constant dense<0.000000e+00> : vector<8x8xf32>
    %183 = tpu.matmul %179, %182, %cst_81 {dimension_numbers = #tpu.dot_dimension_numbers<[1], [0], [0], [1], [0, 0, 1, 1], [], []>} : vector<8x16xf32>, vector<16x8xf32>, vector<8x8xf32> -> vector<8x8xf32>
    %cst_82 = arith.constant 2.500000e-01 : f32
    %184 = vector.broadcast %cst_82 : f32 to vector<8x8xf32>
    %185 = arith.mulf %183, %184 : vector<8x8xf32>
    %186 = arith.addf %185, %7 : vector<8x8xf32>
    %cst_83 = arith.constant dense<0xFF800000> : vector<8xf32>
    %187 = vector.multi_reduction <maximumf>, %186, %cst_83 [1] : vector<8x8xf32> to vector<8xf32>
    %188 = vector.shape_cast %187 : vector<8xf32> to vector<8x1xf32>
    %189 = vector.broadcast %188 : vector<8x1xf32> to vector<8x8xf32>
    %190 = arith.subf %186, %189 : vector<8x8xf32>
    %191 = math.exp %190 : vector<8x8xf32>
    %cst_84 = arith.constant dense<0.000000e+00> : vector<8xf32>
    %192 = vector.multi_reduction <add>, %191, %cst_84 [1] : vector<8x8xf32> to vector<8xf32>
    %193 = vector.shape_cast %192 : vector<8xf32> to vector<8x1xf32>
    %194 = tpu.reciprocal %193 {approx = true} : vector<8x1xf32> -> vector<8x1xf32>
    %195 = vector.broadcast %194 : vector<8x1xf32> to vector<8x8xf32>
    %196 = arith.mulf %191, %195 : vector<8x8xf32>
    %cst_85 = arith.constant dense<0.000000e+00> : vector<8x16xf32>
    %197 = tpu.matmul %196, %181, %cst_85 {dimension_numbers = #tpu.dot_dimension_numbers<[1], [0], [0], [1], [0, 0, 1, 1], [], []>} : vector<8x8xf32>, vector<8x16xf32>, vector<8x16xf32> -> vector<8x16xf32>
    %c32_86 = arith.constant 32 : index
    %c0_87 = arith.constant 0 : index
    %198 = vector.load %arg13[%c32_86, %c0_87] : memref<64x64xf32, #tpu.memory_space<vmem>>, vector<16x64xf32>
    %cst_88 = arith.constant dense<0.000000e+00> : vector<8x64xf32>
    %199 = tpu.matmul %197, %198, %cst_88 {dimension_numbers = #tpu.dot_dimension_numbers<[1], [0], [0], [1], [0, 0, 1, 1], [], []>} : vector<8x16xf32>, vector<16x64xf32>, vector<8x64xf32> -> vector<8x64xf32>
    %200 = arith.addf %178, %199 : vector<8x64xf32>
    %201 = vector.extract_strided_slice %130 {offsets = [0, 48], sizes = [8, 16], strides = [1, 1]} : vector<8x64xf32> to vector<8x16xf32>
    %202 = vector.extract_strided_slice %135 {offsets = [0, 48], sizes = [8, 16], strides = [1, 1]} : vector<8x128xf32> to vector<8x16xf32>
    %203 = vector.extract_strided_slice %135 {offsets = [0, 112], sizes = [8, 16], strides = [1, 1]} : vector<8x128xf32> to vector<8x16xf32>
    %204 = tpu.transpose %202, [1, 0] : vector<8x16xf32> -> vector<16x8xf32>
    %cst_89 = arith.constant dense<0.000000e+00> : vector<8x8xf32>
    %205 = tpu.matmul %201, %204, %cst_89 {dimension_numbers = #tpu.dot_dimension_numbers<[1], [0], [0], [1], [0, 0, 1, 1], [], []>} : vector<8x16xf32>, vector<16x8xf32>, vector<8x8xf32> -> vector<8x8xf32>
    %cst_90 = arith.constant 2.500000e-01 : f32
    %206 = vector.broadcast %cst_90 : f32 to vector<8x8xf32>
    %207 = arith.mulf %205, %206 : vector<8x8xf32>
    %208 = arith.addf %207, %7 : vector<8x8xf32>
    %cst_91 = arith.constant dense<0xFF800000> : vector<8xf32>
    %209 = vector.multi_reduction <maximumf>, %208, %cst_91 [1] : vector<8x8xf32> to vector<8xf32>
    %210 = vector.shape_cast %209 : vector<8xf32> to vector<8x1xf32>
    %211 = vector.broadcast %210 : vector<8x1xf32> to vector<8x8xf32>
    %212 = arith.subf %208, %211 : vector<8x8xf32>
    %213 = math.exp %212 : vector<8x8xf32>
    %cst_92 = arith.constant dense<0.000000e+00> : vector<8xf32>
    %214 = vector.multi_reduction <add>, %213, %cst_92 [1] : vector<8x8xf32> to vector<8xf32>
    %215 = vector.shape_cast %214 : vector<8xf32> to vector<8x1xf32>
    %216 = tpu.reciprocal %215 {approx = true} : vector<8x1xf32> -> vector<8x1xf32>
    %217 = vector.broadcast %216 : vector<8x1xf32> to vector<8x8xf32>
    %218 = arith.mulf %213, %217 : vector<8x8xf32>
    %cst_93 = arith.constant dense<0.000000e+00> : vector<8x16xf32>
    %219 = tpu.matmul %218, %203, %cst_93 {dimension_numbers = #tpu.dot_dimension_numbers<[1], [0], [0], [1], [0, 0, 1, 1], [], []>} : vector<8x8xf32>, vector<8x16xf32>, vector<8x16xf32> -> vector<8x16xf32>
    %c48_94 = arith.constant 48 : index
    %c0_95 = arith.constant 0 : index
    %220 = vector.load %arg13[%c48_94, %c0_95] : memref<64x64xf32, #tpu.memory_space<vmem>>, vector<16x64xf32>
    %cst_96 = arith.constant dense<0.000000e+00> : vector<8x64xf32>
    %221 = tpu.matmul %219, %220, %cst_96 {dimension_numbers = #tpu.dot_dimension_numbers<[1], [0], [0], [1], [0, 0, 1, 1], [], []>} : vector<8x16xf32>, vector<16x64xf32>, vector<8x64xf32> -> vector<8x64xf32>
    %222 = arith.addf %200, %221 : vector<8x64xf32>
    %c0_97 = arith.constant 0 : index
    %c0_98 = arith.constant 0 : index
    %223 = vector.load %arg14[%c0_97, %c0_98] : memref<1x64xf32, #tpu.memory_space<vmem>>, vector<1x64xf32>
    %224 = vector.broadcast %223 : vector<1x64xf32> to vector<8x64xf32>
    %225 = arith.addf %222, %224 : vector<8x64xf32>
    %226 = arith.addf %125, %225 : vector<8x64xf32>
    %c0_99 = arith.constant 0 : index
    %c0_100 = arith.constant 0 : index
    %227 = vector.load %arg21[%c0_99, %c0_100] : memref<1x64xf32, #tpu.memory_space<vmem>>, vector<1x64xf32>
    %c0_101 = arith.constant 0 : index
    %c0_102 = arith.constant 0 : index
    %228 = vector.load %arg22[%c0_101, %c0_102] : memref<1x64xf32, #tpu.memory_space<vmem>>, vector<1x64xf32>
    %cst_103 = arith.constant dense<0.000000e+00> : vector<8xf32>
    %229 = vector.multi_reduction <add>, %226, %cst_103 [1] : vector<8x64xf32> to vector<8xf32>
    %230 = vector.shape_cast %229 : vector<8xf32> to vector<8x1xf32>
    %cst_104 = arith.constant 6.400000e+01 : f32
    %231 = vector.broadcast %cst_104 : f32 to vector<8x1xf32>
    %232 = arith.divf %230, %231 : vector<8x1xf32>
    %233 = vector.broadcast %232 : vector<8x1xf32> to vector<8x64xf32>
    %234 = arith.subf %226, %233 : vector<8x64xf32>
    %235 = arith.mulf %234, %234 : vector<8x64xf32>
    %cst_105 = arith.constant dense<0.000000e+00> : vector<8xf32>
    %236 = vector.multi_reduction <add>, %235, %cst_105 [1] : vector<8x64xf32> to vector<8xf32>
    %237 = vector.shape_cast %236 : vector<8xf32> to vector<8x1xf32>
    %cst_106 = arith.constant 6.400000e+01 : f32
    %238 = vector.broadcast %cst_106 : f32 to vector<8x1xf32>
    %239 = arith.divf %237, %238 : vector<8x1xf32>
    %cst_107 = arith.constant 9.99999974E-6 : f32
    %240 = vector.broadcast %cst_107 : f32 to vector<8x1xf32>
    %241 = arith.addf %239, %240 : vector<8x1xf32>
    %242 = math.rsqrt %241 : vector<8x1xf32>
    %243 = vector.broadcast %242 : vector<8x1xf32> to vector<8x64xf32>
    %244 = arith.mulf %234, %243 : vector<8x64xf32>
    %245 = vector.broadcast %227 : vector<1x64xf32> to vector<8x64xf32>
    %246 = arith.mulf %244, %245 : vector<8x64xf32>
    %247 = vector.broadcast %228 : vector<1x64xf32> to vector<8x64xf32>
    %248 = arith.addf %246, %247 : vector<8x64xf32>
    %c0_108 = arith.constant 0 : index
    %c0_109 = arith.constant 0 : index
    %249 = vector.load %arg15[%c0_108, %c0_109] : memref<64x128xf32, #tpu.memory_space<vmem>>, vector<64x128xf32>
    %cst_110 = arith.constant dense<0.000000e+00> : vector<8x128xf32>
    %250 = tpu.matmul %248, %249, %cst_110 {dimension_numbers = #tpu.dot_dimension_numbers<[1], [0], [0], [1], [0, 0, 1, 1], [], []>} : vector<8x64xf32>, vector<64x128xf32>, vector<8x128xf32> -> vector<8x128xf32>
    %c0_111 = arith.constant 0 : index
    %c0_112 = arith.constant 0 : index
    %251 = vector.load %arg16[%c0_111, %c0_112] : memref<1x128xf32, #tpu.memory_space<vmem>>, vector<1x128xf32>
    %252 = vector.broadcast %251 : vector<1x128xf32> to vector<8x128xf32>
    %253 = arith.addf %250, %252 : vector<8x128xf32>
    %cst_113 = arith.constant 0.000000e+00 : f32
    %254 = vector.broadcast %cst_113 : f32 to vector<8x128xf32>
    %255 = arith.maximumf %253, %254 : vector<8x128xf32>
    %c0_114 = arith.constant 0 : index
    %c0_115 = arith.constant 0 : index
    %256 = vector.load %arg17[%c0_114, %c0_115] : memref<128x64xf32, #tpu.memory_space<vmem>>, vector<128x64xf32>
    %cst_116 = arith.constant dense<0.000000e+00> : vector<8x64xf32>
    %257 = tpu.matmul %255, %256, %cst_116 {dimension_numbers = #tpu.dot_dimension_numbers<[1], [0], [0], [1], [0, 0, 1, 1], [], []>} : vector<8x128xf32>, vector<128x64xf32>, vector<8x64xf32> -> vector<8x64xf32>
    %c0_117 = arith.constant 0 : index
    %c0_118 = arith.constant 0 : index
    %258 = vector.load %arg18[%c0_117, %c0_118] : memref<1x64xf32, #tpu.memory_space<vmem>>, vector<1x64xf32>
    %259 = vector.broadcast %258 : vector<1x64xf32> to vector<8x64xf32>
    %260 = arith.addf %257, %259 : vector<8x64xf32>
    %261 = arith.addf %248, %260 : vector<8x64xf32>
    %c0_119 = arith.constant 0 : index
    %c0_120 = arith.constant 0 : index
    %262 = vector.load %arg23[%c0_119, %c0_120] : memref<1x64xf32, #tpu.memory_space<vmem>>, vector<1x64xf32>
    %c0_121 = arith.constant 0 : index
    %c0_122 = arith.constant 0 : index
    %263 = vector.load %arg24[%c0_121, %c0_122] : memref<1x64xf32, #tpu.memory_space<vmem>>, vector<1x64xf32>
    %cst_123 = arith.constant dense<0.000000e+00> : vector<8xf32>
    %264 = vector.multi_reduction <add>, %261, %cst_123 [1] : vector<8x64xf32> to vector<8xf32>
    %265 = vector.shape_cast %264 : vector<8xf32> to vector<8x1xf32>
    %cst_124 = arith.constant 6.400000e+01 : f32
    %266 = vector.broadcast %cst_124 : f32 to vector<8x1xf32>
    %267 = arith.divf %265, %266 : vector<8x1xf32>
    %268 = vector.broadcast %267 : vector<8x1xf32> to vector<8x64xf32>
    %269 = arith.subf %261, %268 : vector<8x64xf32>
    %270 = arith.mulf %269, %269 : vector<8x64xf32>
    %cst_125 = arith.constant dense<0.000000e+00> : vector<8xf32>
    %271 = vector.multi_reduction <add>, %270, %cst_125 [1] : vector<8x64xf32> to vector<8xf32>
    %272 = vector.shape_cast %271 : vector<8xf32> to vector<8x1xf32>
    %cst_126 = arith.constant 6.400000e+01 : f32
    %273 = vector.broadcast %cst_126 : f32 to vector<8x1xf32>
    %274 = arith.divf %272, %273 : vector<8x1xf32>
    %cst_127 = arith.constant 9.99999974E-6 : f32
    %275 = vector.broadcast %cst_127 : f32 to vector<8x1xf32>
    %276 = arith.addf %274, %275 : vector<8x1xf32>
    %277 = math.rsqrt %276 : vector<8x1xf32>
    %278 = vector.broadcast %277 : vector<8x1xf32> to vector<8x64xf32>
    %279 = arith.mulf %269, %278 : vector<8x64xf32>
    %280 = vector.broadcast %262 : vector<1x64xf32> to vector<8x64xf32>
    %281 = arith.mulf %279, %280 : vector<8x64xf32>
    %282 = vector.broadcast %263 : vector<1x64xf32> to vector<8x64xf32>
    %283 = arith.addf %281, %282 : vector<8x64xf32>
    %c0_128 = arith.constant 0 : index
    %c0_129 = arith.constant 0 : index
    %c0_130 = arith.constant 0 : index
    %284 = vector.load %arg25[%c0_128, %c0_129, %c0_130] : memref<1x8x64xf32, #tpu.memory_space<vmem>>, vector<1x8x64xf32>
    %285 = vector.shape_cast %284 : vector<1x8x64xf32> to vector<8x64xf32>
    %286 = vector.shape_cast %283 : vector<8x64xf32> to vector<1x8x64xf32>
    tpu.vector_store %arg25[%c0_128, %c0_129, %c0_130], %286 {strides = array<i32>} : memref<1x8x64xf32, #tpu.memory_space<vmem>>, vector<1x8x64xf32>,
    return
  }
  func.func @transform_0(%arg0: i32) -> (i32, i32, i32) {
    %c0_i32 = arith.constant 0 : i32
    %c0_i32_0 = arith.constant 0 : i32
    %c0_i32_1 = arith.constant 0 : i32
    return %arg0, %c0_i32, %c0_i32_0 : i32, i32, i32
  }
  func.func @transform_1(%arg0: i32) -> (i32, i32, i32) {
    %c0_i32 = arith.constant 0 : i32
    %c0_i32_0 = arith.constant 0 : i32
    %c0_i32_1 = arith.constant 0 : i32
    return %arg0, %c0_i32, %c0_i32_0 : i32, i32, i32
  }
  func.func @transform_2(%arg0: i32) -> (i32, i32, i32) {
    %c0_i32 = arith.constant 0 : i32
    %c0_i32_0 = arith.constant 0 : i32
    %c0_i32_1 = arith.constant 0 : i32
    return %arg0, %c0_i32, %c0_i32_0 : i32, i32, i32
  }
  func.func @transform_3(%arg0: i32) -> (i32, i32, i32) {
    %c0_i32 = arith.constant 0 : i32
    %c0_i32_0 = arith.constant 0 : i32
    %c0_i32_1 = arith.constant 0 : i32
    return %arg0, %c0_i32, %c0_i32_0 : i32, i32, i32
  }
  func.func @transform_4(%arg0: i32) -> (i32, i32) {
    %c0_i32 = arith.constant 0 : i32
    %c0_i32_0 = arith.constant 0 : i32
    %c0_i32_1 = arith.constant 0 : i32
    return %c0_i32, %c0_i32_0 : i32, i32
  }
  func.func @transform_5(%arg0: i32) -> (i32, i32) {
    %c0_i32 = arith.constant 0 : i32
    %c0_i32_0 = arith.constant 0 : i32
    %c0_i32_1 = arith.constant 0 : i32
    return %c0_i32, %c0_i32_0 : i32, i32
  }
  func.func @transform_6(%arg0: i32) -> (i32, i32) {
    %c0_i32 = arith.constant 0 : i32
    %c0_i32_0 = arith.constant 0 : i32
    %c0_i32_1 = arith.constant 0 : i32
    return %c0_i32, %c0_i32_0 : i32, i32
  }
  func.func @transform_7(%arg0: i32) -> (i32, i32) {
    %c0_i32 = arith.constant 0 : i32
    %c0_i32_0 = arith.constant 0 : i32
    %c0_i32_1 = arith.constant 0 : i32
    return %c0_i32, %c0_i32_0 : i32, i32
  }
  func.func @transform_8(%arg0: i32) -> (i32, i32) {
    %c0_i32 = arith.constant 0 : i32
    %c0_i32_0 = arith.constant 0 : i32
    %c0_i32_1 = arith.constant 0 : i32
    return %c0_i32, %c0_i32_0 : i32, i32
  }
  func.func @transform_9(%arg0: i32) -> (i32, i32) {
    %c0_i32 = arith.constant 0 : i32
    %c0_i32_0 = arith.constant 0 : i32
    %c0_i32_1 = arith.constant 0 : i32
    return %c0_i32, %c0_i32_0 : i32, i32
  }
  func.func @transform_10(%arg0: i32) -> (i32, i32) {
    %c0_i32 = arith.constant 0 : i32
    %c0_i32_0 = arith.constant 0 : i32
    %c0_i32_1 = arith.constant 0 : i32
    return %c0_i32, %c0_i32_0 : i32, i32
  }
  func.func @transform_11(%arg0: i32) -> (i32, i32) {
    %c0_i32 = arith.constant 0 : i32
    %c0_i32_0 = arith.constant 0 : i32
    %c0_i32_1 = arith.constant 0 : i32
    return %c0_i32, %c0_i32_0 : i32, i32
  }
  func.func @transform_12(%arg0: i32) -> (i32, i32) {
    %c0_i32 = arith.constant 0 : i32
    %c0_i32_0 = arith.constant 0 : i32
    %c0_i32_1 = arith.constant 0 : i32
    return %c0_i32, %c0_i32_0 : i32, i32
  }
  func.func @transform_13(%arg0: i32) -> (i32, i32) {
    %c0_i32 = arith.constant 0 : i32
    %c0_i32_0 = arith.constant 0 : i32
    %c0_i32_1 = arith.constant 0 : i32
    return %c0_i32, %c0_i32_0 : i32, i32
  }
  func.func @transform_14(%arg0: i32) -> (i32, i32) {
    %c0_i32 = arith.constant 0 : i32
    %c0_i32_0 = arith.constant 0 : i32
    %c0_i32_1 = arith.constant 0 : i32
    return %c0_i32, %c0_i32_0 : i32, i32
  }
  func.func @transform_15(%arg0: i32) -> (i32, i32) {
    %c0_i32 = arith.constant 0 : i32
    %c0_i32_0 = arith.constant 0 : i32
    %c0_i32_1 = arith.constant 0 : i32
    return %c0_i32, %c0_i32_0 : i32, i32
  }
  func.func @transform_16(%arg0: i32) -> (i32, i32) {
    %c0_i32 = arith.constant 0 : i32
    %c0_i32_0 = arith.constant 0 : i32
    %c0_i32_1 = arith.constant 0 : i32
    return %c0_i32, %c0_i32_0 : i32, i32
  }
  func.func @transform_17(%arg0: i32) -> (i32, i32) {
    %c0_i32 = arith.constant 0 : i32
    %c0_i32_0 = arith.constant 0 : i32
    %c0_i32_1 = arith.constant 0 : i32
    return %c0_i32, %c0_i32_0 : i32, i32
  }
  func.func @transform_18(%arg0: i32) -> (i32, i32) {
    %c0_i32 = arith.constant 0 : i32
    %c0_i32_0 = arith.constant 0 : i32
    %c0_i32_1 = arith.constant 0 : i32
    return %c0_i32, %c0_i32_0 : i32, i32
  }
  func.func @transform_19(%arg0: i32) -> (i32, i32) {
    %c0_i32 = arith.constant 0 : i32
    %c0_i32_0 = arith.constant 0 : i32
    %c0_i32_1 = arith.constant 0 : i32
    return %c0_i32, %c0_i32_0 : i32, i32
  }
  func.func @transform_20(%arg0: i32) -> (i32, i32) {
    %c0_i32 = arith.constant 0 : i32
    %c0_i32_0 = arith.constant 0 : i32
    %c0_i32_1 = arith.constant 0 : i32
    return %c0_i32, %c0_i32_0 : i32, i32
  }
  func.func @transform_21(%arg0: i32) -> (i32, i32) {
    %c0_i32 = arith.constant 0 : i32
    %c0_i32_0 = arith.constant 0 : i32
    %c0_i32_1 = arith.constant 0 : i32
    return %c0_i32, %c0_i32_0 : i32, i32
  }
  func.func @transform_22(%arg0: i32) -> (i32, i32) {
    %c0_i32 = arith.constant 0 : i32
    %c0_i32_0 = arith.constant 0 : i32
    %c0_i32_1 = arith.constant 0 : i32
    return %c0_i32, %c0_i32_0 : i32, i32
  }
  func.func @transform_23(%arg0: i32) -> (i32, i32) {
    %c0_i32 = arith.constant 0 : i32
    %c0_i32_0 = arith.constant 0 : i32
    %c0_i32_1 = arith.constant 0 : i32
    return %c0_i32, %c0_i32_0 : i32, i32
  }
  func.func @transform_24(%arg0: i32) -> (i32, i32, i32) {
    %c0_i32 = arith.constant 0 : i32
    %c0_i32_0 = arith.constant 0 : i32
    %c0_i32_1 = arith.constant 0 : i32
    return %arg0, %c0_i32, %c0_i32_0 : i32, i32, i32
  }
}

module attributes {stable_mosaic.version = 11 : i64} {
  func.func @_decoder_layer_kernel(%arg0: i32, %arg1: memref<1x8x64xf32, #tpu.memory_space<vmem>>, %arg2: memref<1x8x64xf32, #tpu.memory_space<vmem>>, %arg3: memref<1x8x8xf32, #tpu.memory_space<vmem>>, %arg4: memref<1x8x8xf32, #tpu.memory_space<vmem>>, %arg5: memref<64x192xf32, #tpu.memory_space<vmem>>, %arg6: memref<1x192xf32, #tpu.memory_space<vmem>>, %arg7: memref<64x64xf32, #tpu.memory_space<vmem>>, %arg8: memref<1x64xf32, #tpu.memory_space<vmem>>, %arg9: memref<64x64xf32, #tpu.memory_space<vmem>>, %arg10: memref<1x64xf32, #tpu.memory_space<vmem>>, %arg11: memref<64x128xf32, #tpu.memory_space<vmem>>, %arg12: memref<1x128xf32, #tpu.memory_space<vmem>>, %arg13: memref<64x64xf32, #tpu.memory_space<vmem>>, %arg14: memref<1x64xf32, #tpu.memory_space<vmem>>, %arg15: memref<64x128xf32, #tpu.memory_space<vmem>>, %arg16: memref<1x128xf32, #tpu.memory_space<vmem>>, %arg17: memref<128x64xf32, #tpu.memory_space<vmem>>, %arg18: memref<1x64xf32, #tpu.memory_space<vmem>>, %arg19: memref<1x64xf32, #tpu.memory_space<vmem>>, %arg20: memref<1x64xf32, #tpu.memory_space<vmem>>, %arg21: memref<1x64xf32, #tpu.memory_space<vmem>>, %arg22: memref<1x64xf32, #tpu.memory_space<vmem>>, %arg23: memref<1x64xf32, #tpu.memory_space<vmem>>, %arg24: memref<1x64xf32, #tpu.memory_space<vmem>>, %arg25: memref<1x8x64xf32, #tpu.memory_space<vmem>>) attributes {dimension_semantics = [#tpu.dimension_semantics<parallel>], iteration_bounds = array<i64: 2>, scalar_prefetch = 0 : i64, scratch_operands = 0 : i64, tpu.core_type = #tpu.core_type<tc>, window_params = [{transform_indices = @transform_0, window_bounds = array<i64: 1, 8, 64>}, {transform_indices = @transform_1, window_bounds = array<i64: 1, 8, 64>}, {transform_indices = @transform_2, window_bounds = array<i64: 1, 8, 8>}, {transform_indices = @transform_3, window_bounds = array<i64: 1, 8, 8>}, {pipeline_mode = #tpu.pipeline_mode<synchronous>, transform_indices = @transform_4, window_bounds = array<i64: 64, 192>}, {pipeline_mode = #tpu.pipeline_mode<synchronous>, transform_indices = @transform_5, window_bounds = array<i64: 1, 192>}, {pipeline_mode = #tpu.pipeline_mode<synchronous>, transform_indices = @transform_6, window_bounds = array<i64: 64, 64>}, {pipeline_mode = #tpu.pipeline_mode<synchronous>, transform_indices = @transform_7, window_bounds = array<i64: 1, 64>}, {pipeline_mode = #tpu.pipeline_mode<synchronous>, transform_indices = @transform_8, window_bounds = array<i64: 64, 64>}, {pipeline_mode = #tpu.pipeline_mode<synchronous>, transform_indices = @transform_9, window_bounds = array<i64: 1, 64>}, {pipeline_mode = #tpu.pipeline_mode<synchronous>, transform_indices = @transform_10, window_bounds = array<i64: 64, 128>}, {pipeline_mode = #tpu.pipeline_mode<synchronous>, transform_indices = @transform_11, window_bounds = array<i64: 1, 128>}, {pipeline_mode = #tpu.pipeline_mode<synchronous>, transform_indices = @transform_12, window_bounds = array<i64: 64, 64>}, {pipeline_mode = #tpu.pipeline_mode<synchronous>, transform_indices = @transform_13, window_bounds = array<i64: 1, 64>}, {pipeline_mode = #tpu.pipeline_mode<synchronous>, transform_indices = @transform_14, window_bounds = array<i64: 64, 128>}, {pipeline_mode = #tpu.pipeline_mode<synchronous>, transform_indices = @transform_15, window_bounds = array<i64: 1, 128>}, {pipeline_mode = #tpu.pipeline_mode<synchronous>, transform_indices = @transform_16, window_bounds = array<i64: 128, 64>}, {pipeline_mode = #tpu.pipeline_mode<synchronous>, transform_indices = @transform_17, window_bounds = array<i64: 1, 64>}, {pipeline_mode = #tpu.pipeline_mode<synchronous>, transform_indices = @transform_18, window_bounds = array<i64: 1, 64>}, {pipeline_mode = #tpu.pipeline_mode<synchronous>, transform_indices = @transform_19, window_bounds = array<i64: 1, 64>}, {pipeline_mode = #tpu.pipeline_mode<synchronous>, transform_indices = @transform_20, window_bounds = array<i64: 1, 64>}, {pipeline_mode = #tpu.pipeline_mode<synchronous>, transform_indices = @transform_21, window_bounds = array<i64: 1, 64>}, {pipeline_mode = #tpu.pipeline_mode<synchronous>, transform_indices = @transform_22, window_bounds = array<i64: 1, 64>}, {pipeline_mode = #tpu.pipeline_mode<synchronous>, transform_indices = @transform_23, window_bounds = array<i64: 1, 64>}, {transform_indices = @transform_24, window_bounds = array<i64: 1, 8, 64>}]} {
    %c0 = arith.constant 0 : index
    %c0_0 = arith.constant 0 : index
    %c0_1 = arith.constant 0 : index
    %0 = vector.load %arg1[%c0, %c0_0, %c0_1] : memref<1x8x64xf32, #tpu.memory_space<vmem>>, vector<1x8x64xf32>
    %1 = vector.shape_cast %0 : vector<1x8x64xf32> to vector<8x64xf32>
    %c0_2 = arith.constant 0 : index
    %c0_3 = arith.constant 0 : index
    %c0_4 = arith.constant 0 : index
    %2 = vector.load %arg2[%c0_2, %c0_3, %c0_4] : memref<1x8x64xf32, #tpu.memory_space<vmem>>, vector<1x8x64xf32>
    %3 = vector.shape_cast %2 : vector<1x8x64xf32> to vector<8x64xf32>
    %c0_5 = arith.constant 0 : index
    %c0_6 = arith.constant 0 : index
    %c0_7 = arith.constant 0 : index
    %4 = vector.load %arg3[%c0_5, %c0_6, %c0_7] : memref<1x8x8xf32, #tpu.memory_space<vmem>>, vector<1x8x8xf32>
    %5 = vector.shape_cast %4 : vector<1x8x8xf32> to vector<8x8xf32>
    %c0_8 = arith.constant 0 : index
    %c0_9 = arith.constant 0 : index
    %c0_10 = arith.constant 0 : index
    %6 = vector.load %arg4[%c0_8, %c0_9, %c0_10] : memref<1x8x8xf32, #tpu.memory_space<vmem>>, vector<1x8x8xf32>
    %7 = vector.shape_cast %6 : vector<1x8x8xf32> to vector<8x8xf32>
    %c0_11 = arith.constant 0 : index
    %c0_12 = arith.constant 0 : index
    %8 = vector.load %arg5[%c0_11, %c0_12] : memref<64x192xf32, #tpu.memory_space<vmem>>, vector<64x192xf32>
    %cst = arith.constant dense<0.000000e+00> : vector<8x192xf32>
    %9 = tpu.matmul %1, %8, %cst {dimension_numbers = #tpu.dot_dimension_numbers<[1], [0], [0], [1], [0, 0, 1, 1], [], []>} : vector<8x64xf32>, vector<64x192xf32>, vector<8x192xf32> -> vector<8x192xf32>
    %c0_13 = arith.constant 0 : index
    %c0_14 = arith.constant 0 : index
    %10 = vector.load %arg6[%c0_13, %c0_14] : memref<1x192xf32, #tpu.memory_space<vmem>>, vector<1x192xf32>
    %11 = vector.broadcast %10 : vector<1x192xf32> to vector<8x192xf32>
    %12 = arith.addf %9, %11 : vector<8x192xf32>
    %13 = vector.extract_strided_slice %12 {offsets = [0, 0], sizes = [8, 16], strides = [1, 1]} : vector<8x192xf32> to vector<8x16xf32>
    %14 = vector.extract_strided_slice %12 {offsets = [0, 64], sizes = [8, 16], strides = [1, 1]} : vector<8x192xf32> to vector<8x16xf32>
    %15 = vector.extract_strided_slice %12 {offsets = [0, 128], sizes = [8, 16], strides = [1, 1]} : vector<8x192xf32> to vector<8x16xf32>
    %16 = tpu.transpose %14, [1, 0] : vector<8x16xf32> -> vector<16x8xf32>
    %cst_15 = arith.constant dense<0.000000e+00> : vector<8x8xf32>
    %17 = tpu.matmul %13, %16, %cst_15 {dimension_numbers = #tpu.dot_dimension_numbers<[1], [0], [0], [1], [0, 0, 1, 1], [], []>} : vector<8x16xf32>, vector<16x8xf32>, vector<8x8xf32> -> vector<8x8xf32>
    %cst_16 = arith.constant 2.500000e-01 : f32
    %18 = vector.broadcast %cst_16 : f32 to vector<8x8xf32>
    %19 = arith.mulf %17, %18 : vector<8x8xf32>
    %20 = arith.addf %19, %5 : vector<8x8xf32>
    %cst_17 = arith.constant dense<0xFF800000> : vector<8xf32>
    %21 = vector.multi_reduction <maximumf>, %20, %cst_17 [1] : vector<8x8xf32> to vector<8xf32>
    %22 = vector.shape_cast %21 : vector<8xf32> to vector<8x1xf32>
    %23 = vector.broadcast %22 : vector<8x1xf32> to vector<8x8xf32>
    %24 = arith.subf %20, %23 : vector<8x8xf32>
    %25 = math.exp %24 : vector<8x8xf32>
    %cst_18 = arith.constant dense<0.000000e+00> : vector<8xf32>
    %26 = vector.multi_reduction <add>, %25, %cst_18 [1] : vector<8x8xf32> to vector<8xf32>
    %27 = vector.shape_cast %26 : vector<8xf32> to vector<8x1xf32>
    %28 = tpu.reciprocal %27 {approx = true} : vector<8x1xf32> -> vector<8x1xf32>
    %29 = vector.broadcast %28 : vector<8x1xf32> to vector<8x8xf32>
    %30 = arith.mulf %25, %29 : vector<8x8xf32>
    %cst_19 = arith.constant dense<0.000000e+00> : vector<8x16xf32>
    %31 = tpu.matmul %30, %15, %cst_19 {dimension_numbers = #tpu.dot_dimension_numbers<[1], [0], [0], [1], [0, 0, 1, 1], [], []>} : vector<8x8xf32>, vector<8x16xf32>, vector<8x16xf32> -> vector<8x16xf32>
    %c0_20 = arith.constant 0 : index
    %c0_21 = arith.constant 0 : index
    %32 = vector.load %arg7[%c0_20, %c0_21] : memref<64x64xf32, #tpu.memory_space<vmem>>, vector<16x64xf32>
    %cst_22 = arith.constant dense<0.000000e+00> : vector<8x64xf32>
    %33 = tpu.matmul %31, %32, %cst_22 {dimension_numbers = #tpu.dot_dimension_numbers<[1], [0], [0], [1], [0, 0, 1, 1], [], []>} : vector<8x16xf32>, vector<16x64xf32>, vector<8x64xf32> -> vector<8x64xf32>
    %34 = vector.extract_strided_slice %12 {offsets = [0, 16], sizes = [8, 16], strides = [1, 1]} : vector<8x192xf32> to vector<8x16xf32>
    %35 = vector.extract_strided_slice %12 {offsets = [0, 80], sizes = [8, 16], strides = [1, 1]} : vector<8x192xf32> to vector<8x16xf32>
    %36 = vector.extract_strided_slice %12 {offsets = [0, 144], sizes = [8, 16], strides = [1, 1]} : vector<8x192xf32> to vector<8x16xf32>
    %37 = tpu.transpose %35, [1, 0] : vector<8x16xf32> -> vector<16x8xf32>
    %cst_23 = arith.constant dense<0.000000e+00> : vector<8x8xf32>
    %38 = tpu.matmul %34, %37, %cst_23 {dimension_numbers = #tpu.dot_dimension_numbers<[1], [0], [0], [1], [0, 0, 1, 1], [], []>} : vector<8x16xf32>, vector<16x8xf32>, vector<8x8xf32> -> vector<8x8xf32>
    %cst_24 = arith.constant 2.500000e-01 : f32
    %39 = vector.broadcast %cst_24 : f32 to vector<8x8xf32>
    %40 = arith.mulf %38, %39 : vector<8x8xf32>
    %41 = arith.addf %40, %5 : vector<8x8xf32>
    %cst_25 = arith.constant dense<0xFF800000> : vector<8xf32>
    %42 = vector.multi_reduction <maximumf>, %41, %cst_25 [1] : vector<8x8xf32> to vector<8xf32>
    %43 = vector.shape_cast %42 : vector<8xf32> to vector<8x1xf32>
    %44 = vector.broadcast %43 : vector<8x1xf32> to vector<8x8xf32>
    %45 = arith.subf %41, %44 : vector<8x8xf32>
    %46 = math.exp %45 : vector<8x8xf32>
    %cst_26 = arith.constant dense<0.000000e+00> : vector<8xf32>
    %47 = vector.multi_reduction <add>, %46, %cst_26 [1] : vector<8x8xf32> to vector<8xf32>
    %48 = vector.shape_cast %47 : vector<8xf32> to vector<8x1xf32>
    %49 = tpu.reciprocal %48 {approx = true} : vector<8x1xf32> -> vector<8x1xf32>
    %50 = vector.broadcast %49 : vector<8x1xf32> to vector<8x8xf32>
    %51 = arith.mulf %46, %50 : vector<8x8xf32>
    %cst_27 = arith.constant dense<0.000000e+00> : vector<8x16xf32>
    %52 = tpu.matmul %51, %36, %cst_27 {dimension_numbers = #tpu.dot_dimension_numbers<[1], [0], [0], [1], [0, 0, 1, 1], [], []>} : vector<8x8xf32>, vector<8x16xf32>, vector<8x16xf32> -> vector<8x16xf32>
    %c16 = arith.constant 16 : index
    %c0_28 = arith.constant 0 : index
    %53 = vector.load %arg7[%c16, %c0_28] : memref<64x64xf32, #tpu.memory_space<vmem>>, vector<16x64xf32>
    %cst_29 = arith.constant dense<0.000000e+00> : vector<8x64xf32>
    %54 = tpu.matmul %52, %53, %cst_29 {dimension_numbers = #tpu.dot_dimension_numbers<[1], [0], [0], [1], [0, 0, 1, 1], [], []>} : vector<8x16xf32>, vector<16x64xf32>, vector<8x64xf32> -> vector<8x64xf32>
    %55 = arith.addf %33, %54 : vector<8x64xf32>
    %56 = vector.extract_strided_slice %12 {offsets = [0, 32], sizes = [8, 16], strides = [1, 1]} : vector<8x192xf32> to vector<8x16xf32>
    %57 = vector.extract_strided_slice %12 {offsets = [0, 96], sizes = [8, 16], strides = [1, 1]} : vector<8x192xf32> to vector<8x16xf32>
    %58 = vector.extract_strided_slice %12 {offsets = [0, 160], sizes = [8, 16], strides = [1, 1]} : vector<8x192xf32> to vector<8x16xf32>
    %59 = tpu.transpose %57, [1, 0] : vector<8x16xf32> -> vector<16x8xf32>
    %cst_30 = arith.constant dense<0.000000e+00> : vector<8x8xf32>
    %60 = tpu.matmul %56, %59, %cst_30 {dimension_numbers = #tpu.dot_dimension_numbers<[1], [0], [0], [1], [0, 0, 1, 1], [], []>} : vector<8x16xf32>, vector<16x8xf32>, vector<8x8xf32> -> vector<8x8xf32>
    %cst_31 = arith.constant 2.500000e-01 : f32
    %61 = vector.broadcast %cst_31 : f32 to vector<8x8xf32>
    %62 = arith.mulf %60, %61 : vector<8x8xf32>
    %63 = arith.addf %62, %5 : vector<8x8xf32>
    %cst_32 = arith.constant dense<0xFF800000> : vector<8xf32>
    %64 = vector.multi_reduction <maximumf>, %63, %cst_32 [1] : vector<8x8xf32> to vector<8xf32>
    %65 = vector.shape_cast %64 : vector<8xf32> to vector<8x1xf32>
    %66 = vector.broadcast %65 : vector<8x1xf32> to vector<8x8xf32>
    %67 = arith.subf %63, %66 : vector<8x8xf32>
    %68 = math.exp %67 : vector<8x8xf32>
    %cst_33 = arith.constant dense<0.000000e+00> : vector<8xf32>
    %69 = vector.multi_reduction <add>, %68, %cst_33 [1] : vector<8x8xf32> to vector<8xf32>
    %70 = vector.shape_cast %69 : vector<8xf32> to vector<8x1xf32>
    %71 = tpu.reciprocal %70 {approx = true} : vector<8x1xf32> -> vector<8x1xf32>
    %72 = vector.broadcast %71 : vector<8x1xf32> to vector<8x8xf32>
    %73 = arith.mulf %68, %72 : vector<8x8xf32>
    %cst_34 = arith.constant dense<0.000000e+00> : vector<8x16xf32>
    %74 = tpu.matmul %73, %58, %cst_34 {dimension_numbers = #tpu.dot_dimension_numbers<[1], [0], [0], [1], [0, 0, 1, 1], [], []>} : vector<8x8xf32>, vector<8x16xf32>, vector<8x16xf32> -> vector<8x16xf32>
    %c32 = arith.constant 32 : index
    %c0_35 = arith.constant 0 : index
    %75 = vector.load %arg7[%c32, %c0_35] : memref<64x64xf32, #tpu.memory_space<vmem>>, vector<16x64xf32>
    %cst_36 = arith.constant dense<0.000000e+00> : vector<8x64xf32>
    %76 = tpu.matmul %74, %75, %cst_36 {dimension_numbers = #tpu.dot_dimension_numbers<[1], [0], [0], [1], [0, 0, 1, 1], [], []>} : vector<8x16xf32>, vector<16x64xf32>, vector<8x64xf32> -> vector<8x64xf32>
    %77 = arith.addf %55, %76 : vector<8x64xf32>
    %78 = vector.extract_strided_slice %12 {offsets = [0, 48], sizes = [8, 16], strides = [1, 1]} : vector<8x192xf32> to vector<8x16xf32>
    %79 = vector.extract_strided_slice %12 {offsets = [0, 112], sizes = [8, 16], strides = [1, 1]} : vector<8x192xf32> to vector<8x16xf32>
    %80 = vector.extract_strided_slice %12 {offsets = [0, 176], sizes = [8, 16], strides = [1, 1]} : vector<8x192xf32> to vector<8x16xf32>
    %81 = tpu.transpose %79, [1, 0] : vector<8x16xf32> -> vector<16x8xf32>
    %cst_37 = arith.constant dense<0.000000e+00> : vector<8x8xf32>
    %82 = tpu.matmul %78, %81, %cst_37 {dimension_numbers = #tpu.dot_dimension_numbers<[1], [0], [0], [1], [0, 0, 1, 1], [], []>} : vector<8x16xf32>, vector<16x8xf32>, vector<8x8xf32> -> vector<8x8xf32>
    %cst_38 = arith.constant 2.500000e-01 : f32
    %83 = vector.broadcast %cst_38 : f32 to vector<8x8xf32>
    %84 = arith.mulf %82, %83 : vector<8x8xf32>
    %85 = arith.addf %84, %5 : vector<8x8xf32>
    %cst_39 = arith.constant dense<0xFF800000> : vector<8xf32>
    %86 = vector.multi_reduction <maximumf>, %85, %cst_39 [1] : vector<8x8xf32> to vector<8xf32>
    %87 = vector.shape_cast %86 : vector<8xf32> to vector<8x1xf32>
    %88 = vector.broadcast %87 : vector<8x1xf32> to vector<8x8xf32>
    %89 = arith.subf %85, %88 : vector<8x8xf32>
    %90 = math.exp %89 : vector<8x8xf32>
    %cst_40 = arith.constant dense<0.000000e+00> : vector<8xf32>
    %91 = vector.multi_reduction <add>, %90, %cst_40 [1] : vector<8x8xf32> to vector<8xf32>
    %92 = vector.shape_cast %91 : vector<8xf32> to vector<8x1xf32>
    %93 = tpu.reciprocal %92 {approx = true} : vector<8x1xf32> -> vector<8x1xf32>
    %94 = vector.broadcast %93 : vector<8x1xf32> to vector<8x8xf32>
    %95 = arith.mulf %90, %94 : vector<8x8xf32>
    %cst_41 = arith.constant dense<0.000000e+00> : vector<8x16xf32>
    %96 = tpu.matmul %95, %80, %cst_41 {dimension_numbers = #tpu.dot_dimension_numbers<[1], [0], [0], [1], [0, 0, 1, 1], [], []>} : vector<8x8xf32>, vector<8x16xf32>, vector<8x16xf32> -> vector<8x16xf32>
    %c48 = arith.constant 48 : index
    %c0_42 = arith.constant 0 : index
    %97 = vector.load %arg7[%c48, %c0_42] : memref<64x64xf32, #tpu.memory_space<vmem>>, vector<16x64xf32>
    %cst_43 = arith.constant dense<0.000000e+00> : vector<8x64xf32>
    %98 = tpu.matmul %96, %97, %cst_43 {dimension_numbers = #tpu.dot_dimension_numbers<[1], [0], [0], [1], [0, 0, 1, 1], [], []>} : vector<8x16xf32>, vector<16x64xf32>, vector<8x64xf32> -> vector<8x64xf32>
    %99 = arith.addf %77, %98 : vector<8x64xf32>
    %c0_44 = arith.constant 0 : index
    %c0_45 = arith.constant 0 : index
    %100 = vector.load %arg8[%c0_44, %c0_45] : memref<1x64xf32, #tpu.memory_space<vmem>>, vector<1x64xf32>
    %101 = vector.broadcast %100 : vector<1x64xf32> to vector<8x64xf32>
    %102 = arith.addf %99, %101 : vector<8x64xf32>
    %103 = arith.addf %1, %102 : vector<8x64xf32>
    %c0_46 = arith.constant 0 : index
    %c0_47 = arith.constant 0 : index
    %104 = vector.load %arg19[%c0_46, %c0_47] : memref<1x64xf32, #tpu.memory_space<vmem>>, vector<1x64xf32>
    %c0_48 = arith.constant 0 : index
    %c0_49 = arith.constant 0 : index
    %105 = vector.load %arg20[%c0_48, %c0_49] : memref<1x64xf32, #tpu.memory_space<vmem>>, vector<1x64xf32>
    %cst_50 = arith.constant dense<0.000000e+00> : vector<8xf32>
    %106 = vector.multi_reduction <add>, %103, %cst_50 [1] : vector<8x64xf32> to vector<8xf32>
    %107 = vector.shape_cast %106 : vector<8xf32> to vector<8x1xf32>
    %cst_51 = arith.constant 6.400000e+01 : f32
    %108 = vector.broadcast %cst_51 : f32 to vector<8x1xf32>
    %109 = arith.divf %107, %108 : vector<8x1xf32>
    %110 = vector.broadcast %109 : vector<8x1xf32> to vector<8x64xf32>
    %111 = arith.subf %103, %110 : vector<8x64xf32>
    %112 = arith.mulf %111, %111 : vector<8x64xf32>
    %cst_52 = arith.constant dense<0.000000e+00> : vector<8xf32>
    %113 = vector.multi_reduction <add>, %112, %cst_52 [1] : vector<8x64xf32> to vector<8xf32>
    %114 = vector.shape_cast %113 : vector<8xf32> to vector<8x1xf32>
    %cst_53 = arith.constant 6.400000e+01 : f32
    %115 = vector.broadcast %cst_53 : f32 to vector<8x1xf32>
    %116 = arith.divf %114, %115 : vector<8x1xf32>
    %cst_54 = arith.constant 9.99999974E-6 : f32
    %117 = vector.broadcast %cst_54 : f32 to vector<8x1xf32>
    %118 = arith.addf %116, %117 : vector<8x1xf32>
    %119 = math.rsqrt %118 : vector<8x1xf32>
    %120 = vector.broadcast %119 : vector<8x1xf32> to vector<8x64xf32>
    %121 = arith.mulf %111, %120 : vector<8x64xf32>
    %122 = vector.broadcast %104 : vector<1x64xf32> to vector<8x64xf32>
    %123 = arith.mulf %121, %122 : vector<8x64xf32>
    %124 = vector.broadcast %105 : vector<1x64xf32> to vector<8x64xf32>
    %125 = arith.addf %123, %124 : vector<8x64xf32>
    %c0_55 = arith.constant 0 : index
    %c0_56 = arith.constant 0 : index
    %126 = vector.load %arg9[%c0_55, %c0_56] : memref<64x64xf32, #tpu.memory_space<vmem>>, vector<64x64xf32>
    %cst_57 = arith.constant dense<0.000000e+00> : vector<8x64xf32>
    %127 = tpu.matmul %125, %126, %cst_57 {dimension_numbers = #tpu.dot_dimension_numbers<[1], [0], [0], [1], [0, 0, 1, 1], [], []>} : vector<8x64xf32>, vector<64x64xf32>, vector<8x64xf32> -> vector<8x64xf32>
    %c0_58 = arith.constant 0 : index
    %c0_59 = arith.constant 0 : index
    %128 = vector.load %arg10[%c0_58, %c0_59] : memref<1x64xf32, #tpu.memory_space<vmem>>, vector<1x64xf32>
    %129 = vector.broadcast %128 : vector<1x64xf32> to vector<8x64xf32>
    %130 = arith.addf %127, %129 : vector<8x64xf32>
    %c0_60 = arith.constant 0 : index
    %c0_61 = arith.constant 0 : index
    %131 = vector.load %arg11[%c0_60, %c0_61] : memref<64x128xf32, #tpu.memory_space<vmem>>, vector<64x128xf32>
    %cst_62 = arith.constant dense<0.000000e+00> : vector<8x128xf32>
    %132 = tpu.matmul %3, %131, %cst_62 {dimension_numbers = #tpu.dot_dimension_numbers<[1], [0], [0], [1], [0, 0, 1, 1], [], []>} : vector<8x64xf32>, vector<64x128xf32>, vector<8x128xf32> -> vector<8x128xf32>
    %c0_63 = arith.constant 0 : index
    %c0_64 = arith.constant 0 : index
    %133 = vector.load %arg12[%c0_63, %c0_64] : memref<1x128xf32, #tpu.memory_space<vmem>>, vector<1x128xf32>
    %134 = vector.broadcast %133 : vector<1x128xf32> to vector<8x128xf32>
    %135 = arith.addf %132, %134 : vector<8x128xf32>
    %136 = vector.extract_strided_slice %130 {offsets = [0, 0], sizes = [8, 16], strides = [1, 1]} : vector<8x64xf32> to vector<8x16xf32>
    %137 = vector.extract_strided_slice %135 {offsets = [0, 0], sizes = [8, 16], strides = [1, 1]} : vector<8x128xf32> to vector<8x16xf32>
    %138 = vector.extract_strided_slice %135 {offsets = [0, 64], sizes = [8, 16], strides = [1, 1]} : vector<8x128xf32> to vector<8x16xf32>
    %139 = tpu.transpose %137, [1, 0] : vector<8x16xf32> -> vector<16x8xf32>
    %cst_65 = arith.constant dense<0.000000e+00> : vector<8x8xf32>
    %140 = tpu.matmul %136, %139, %cst_65 {dimension_numbers = #tpu.dot_dimension_numbers<[1], [0], [0], [1], [0, 0, 1, 1], [], []>} : vector<8x16xf32>, vector<16x8xf32>, vector<8x8xf32> -> vector<8x8xf32>
    %cst_66 = arith.constant 2.500000e-01 : f32
    %141 = vector.broadcast %cst_66 : f32 to vector<8x8xf32>
    %142 = arith.mulf %140, %141 : vector<8x8xf32>
    %143 = arith.addf %142, %7 : vector<8x8xf32>
    %cst_67 = arith.constant dense<0xFF800000> : vector<8xf32>
    %144 = vector.multi_reduction <maximumf>, %143, %cst_67 [1] : vector<8x8xf32> to vector<8xf32>
    %145 = vector.shape_cast %144 : vector<8xf32> to vector<8x1xf32>
    %146 = vector.broadcast %145 : vector<8x1xf32> to vector<8x8xf32>
    %147 = arith.subf %143, %146 : vector<8x8xf32>
    %148 = math.exp %147 : vector<8x8xf32>
    %cst_68 = arith.constant dense<0.000000e+00> : vector<8xf32>
    %149 = vector.multi_reduction <add>, %148, %cst_68 [1] : vector<8x8xf32> to vector<8xf32>
    %150 = vector.shape_cast %149 : vector<8xf32> to vector<8x1xf32>
    %151 = tpu.reciprocal %150 {approx = true} : vector<8x1xf32> -> vector<8x1xf32>
    %152 = vector.broadcast %151 : vector<8x1xf32> to vector<8x8xf32>
    %153 = arith.mulf %148, %152 : vector<8x8xf32>
    %cst_69 = arith.constant dense<0.000000e+00> : vector<8x16xf32>
    %154 = tpu.matmul %153, %138, %cst_69 {dimension_numbers = #tpu.dot_dimension_numbers<[1], [0], [0], [1], [0, 0, 1, 1], [], []>} : vector<8x8xf32>, vector<8x16xf32>, vector<8x16xf32> -> vector<8x16xf32>
    %c0_70 = arith.constant 0 : index
    %c0_71 = arith.constant 0 : index
    %155 = vector.load %arg13[%c0_70, %c0_71] : memref<64x64xf32, #tpu.memory_space<vmem>>, vector<16x64xf32>
    %cst_72 = arith.constant dense<0.000000e+00> : vector<8x64xf32>
    %156 = tpu.matmul %154, %155, %cst_72 {dimension_numbers = #tpu.dot_dimension_numbers<[1], [0], [0], [1], [0, 0, 1, 1], [], []>} : vector<8x16xf32>, vector<16x64xf32>, vector<8x64xf32> -> vector<8x64xf32>
    %157 = vector.extract_strided_slice %130 {offsets = [0, 16], sizes = [8, 16], strides = [1, 1]} : vector<8x64xf32> to vector<8x16xf32>
    %158 = vector.extract_strided_slice %135 {offsets = [0, 16], sizes = [8, 16], strides = [1, 1]} : vector<8x128xf32> to vector<8x16xf32>
    %159 = vector.extract_strided_slice %135 {offsets = [0, 80], sizes = [8, 16], strides = [1, 1]} : vector<8x128xf32> to vector<8x16xf32>
    %160 = tpu.transpose %158, [1, 0] : vector<8x16xf32> -> vector<16x8xf32>
    %cst_73 = arith.constant dense<0.000000e+00> : vector<8x8xf32>
    %161 = tpu.matmul %157, %160, %cst_73 {dimension_numbers = #tpu.dot_dimension_numbers<[1], [0], [0], [1], [0, 0, 1, 1], [], []>} : vector<8x16xf32>, vector<16x8xf32>, vector<8x8xf32> -> vector<8x8xf32>
    %cst_74 = arith.constant 2.500000e-01 : f32
    %162 = vector.broadcast %cst_74 : f32 to vector<8x8xf32>
    %163 = arith.mulf %161, %162 : vector<8x8xf32>
    %164 = arith.addf %163, %7 : vector<8x8xf32>
    %cst_75 = arith.constant dense<0xFF800000> : vector<8xf32>
    %165 = vector.multi_reduction <maximumf>, %164, %cst_75 [1] : vector<8x8xf32> to vector<8xf32>
    %166 = vector.shape_cast %165 : vector<8xf32> to vector<8x1xf32>
    %167 = vector.broadcast %166 : vector<8x1xf32> to vector<8x8xf32>
    %168 = arith.subf %164, %167 : vector<8x8xf32>
    %169 = math.exp %168 : vector<8x8xf32>
    %cst_76 = arith.constant dense<0.000000e+00> : vector<8xf32>
    %170 = vector.multi_reduction <add>, %169, %cst_76 [1] : vector<8x8xf32> to vector<8xf32>
    %171 = vector.shape_cast %170 : vector<8xf32> to vector<8x1xf32>
    %172 = tpu.reciprocal %171 {approx = true} : vector<8x1xf32> -> vector<8x1xf32>
    %173 = vector.broadcast %172 : vector<8x1xf32> to vector<8x8xf32>
    %174 = arith.mulf %169, %173 : vector<8x8xf32>
    %cst_77 = arith.constant dense<0.000000e+00> : vector<8x16xf32>
    %175 = tpu.matmul %174, %159, %cst_77 {dimension_numbers = #tpu.dot_dimension_numbers<[1], [0], [0], [1], [0, 0, 1, 1], [], []>} : vector<8x8xf32>, vector<8x16xf32>, vector<8x16xf32> -> vector<8x16xf32>
    %c16_78 = arith.constant 16 : index
    %c0_79 = arith.constant 0 : index
    %176 = vector.load %arg13[%c16_78, %c0_79] : memref<64x64xf32, #tpu.memory_space<vmem>>, vector<16x64xf32>
    %cst_80 = arith.constant dense<0.000000e+00> : vector<8x64xf32>
    %177 = tpu.matmul %175, %176, %cst_80 {dimension_numbers = #tpu.dot_dimension_numbers<[1], [0], [0], [1], [0, 0, 1, 1], [], []>} : vector<8x16xf32>, vector<16x64xf32>, vector<8x64xf32> -> vector<8x64xf32>
    %178 = arith.addf %156, %177 : vector<8x64xf32>
    %179 = vector.extract_strided_slice %130 {offsets = [0, 32], sizes = [8, 16], strides = [1, 1]} : vector<8x64xf32> to vector<8x16xf32>
    %180 = vector.extract_strided_slice %135 {offsets = [0, 32], sizes = [8, 16], strides = [1, 1]} : vector<8x128xf32> to vector<8x16xf32>
    %181 = vector.extract_strided_slice %135 {offsets = [0, 96], sizes = [8, 16], strides = [1, 1]} : vector<8x128xf32> to vector<8x16xf32>
    %182 = tpu.transpose %180, [1, 0] : vector<8x16xf32> -> vector<16x8xf32>
    %cst_81 = arith.constant dense<0.000000e+00> : vector<8x8xf32>
    %183 = tpu.matmul %179, %182, %cst_81 {dimension_numbers = #tpu.dot_dimension_numbers<[1], [0], [0], [1], [0, 0, 1, 1], [], []>} : vector<8x16xf32>, vector<16x8xf32>, vector<8x8xf32> -> vector<8x8xf32>
    %cst_82 = arith.constant 2.500000e-01 : f32
    %184 = vector.broadcast %cst_82 : f32 to vector<8x8xf32>
    %185 = arith.mulf %183, %184 : vector<8x8xf32>
    %186 = arith.addf %185, %7 : vector<8x8xf32>
    %cst_83 = arith.constant dense<0xFF800000> : vector<8xf32>
    %187 = vector.multi_reduction <maximumf>, %186, %cst_83 [1] : vector<8x8xf32> to vector<8xf32>
    %188 = vector.shape_cast %187 : vector<8xf32> to vector<8x1xf32>
    %189 = vector.broadcast %188 : vector<8x1xf32> to vector<8x8xf32>
    %190 = arith.subf %186, %189 : vector<8x8xf32>
    %191 = math.exp %190 : vector<8x8xf32>
    %cst_84 = arith.constant dense<0.000000e+00> : vector<8xf32>
    %192 = vector.multi_reduction <add>, %191, %cst_84 [1] : vector<8x8xf32> to vector<8xf32>
    %193 = vector.shape_cast %192 : vector<8xf32> to vector<8x1xf32>
    %194 = tpu.reciprocal %193 {approx = true} : vector<8x1xf32> -> vector<8x1xf32>
    %195 = vector.broadcast %194 : vector<8x1xf32> to vector<8x8xf32>
    %196 = arith.mulf %191, %195 : vector<8x8xf32>
    %cst_85 = arith.constant dense<0.000000e+00> : vector<8x16xf32>
    %197 = tpu.matmul %196, %181, %cst_85 {dimension_numbers = #tpu.dot_dimension_numbers<[1], [0], [0], [1], [0, 0, 1, 1], [], []>} : vector<8x8xf32>, vector<8x16xf32>, vector<8x16xf32> -> vector<8x16xf32>
    %c32_86 = arith.constant 32 : index
    %c0_87 = arith.constant 0 : index
    %198 = vector.load %arg13[%c32_86, %c0_87] : memref<64x64xf32, #tpu.memory_space<vmem>>, vector<16x64xf32>
    %cst_88 = arith.constant dense<0.000000e+00> : vector<8x64xf32>
    %199 = tpu.matmul %197, %198, %cst_88 {dimension_numbers = #tpu.dot_dimension_numbers<[1], [0], [0], [1], [0, 0, 1, 1], [], []>} : vector<8x16xf32>, vector<16x64xf32>, vector<8x64xf32> -> vector<8x64xf32>
    %200 = arith.addf %178, %199 : vector<8x64xf32>
    %201 = vector.extract_strided_slice %130 {offsets = [0, 48], sizes = [8, 16], strides = [1, 1]} : vector<8x64xf32> to vector<8x16xf32>
    %202 = vector.extract_strided_slice %135 {offsets = [0, 48], sizes = [8, 16], strides = [1, 1]} : vector<8x128xf32> to vector<8x16xf32>
    %203 = vector.extract_strided_slice %135 {offsets = [0, 112], sizes = [8, 16], strides = [1, 1]} : vector<8x128xf32> to vector<8x16xf32>
    %204 = tpu.transpose %202, [1, 0] : vector<8x16xf32> -> vector<16x8xf32>
    %cst_89 = arith.constant dense<0.000000e+00> : vector<8x8xf32>
    %205 = tpu.matmul %201, %204, %cst_89 {dimension_numbers = #tpu.dot_dimension_numbers<[1], [0], [0], [1], [0, 0, 1, 1], [], []>} : vector<8x16xf32>, vector<16x8xf32>, vector<8x8xf32> -> vector<8x8xf32>
    %cst_90 = arith.constant 2.500000e-01 : f32
    %206 = vector.broadcast %cst_90 : f32 to vector<8x8xf32>
    %207 = arith.mulf %205, %206 : vector<8x8xf32>
    %208 = arith.addf %207, %7 : vector<8x8xf32>
    %cst_91 = arith.constant dense<0xFF800000> : vector<8xf32>
    %209 = vector.multi_reduction <maximumf>, %208, %cst_91 [1] : vector<8x8xf32> to vector<8xf32>
    %210 = vector.shape_cast %209 : vector<8xf32> to vector<8x1xf32>
    %211 = vector.broadcast %210 : vector<8x1xf32> to vector<8x8xf32>
    %212 = arith.subf %208, %211 : vector<8x8xf32>
    %213 = math.exp %212 : vector<8x8xf32>
    %cst_92 = arith.constant dense<0.000000e+00> : vector<8xf32>
    %214 = vector.multi_reduction <add>, %213, %cst_92 [1] : vector<8x8xf32> to vector<8xf32>
    %215 = vector.shape_cast %214 : vector<8xf32> to vector<8x1xf32>
    %216 = tpu.reciprocal %215 {approx = true} : vector<8x1xf32> -> vector<8x1xf32>
    %217 = vector.broadcast %216 : vector<8x1xf32> to vector<8x8xf32>
    %218 = arith.mulf %213, %217 : vector<8x8xf32>
    %cst_93 = arith.constant dense<0.000000e+00> : vector<8x16xf32>
    %219 = tpu.matmul %218, %203, %cst_93 {dimension_numbers = #tpu.dot_dimension_numbers<[1], [0], [0], [1], [0, 0, 1, 1], [], []>} : vector<8x8xf32>, vector<8x16xf32>, vector<8x16xf32> -> vector<8x16xf32>
    %c48_94 = arith.constant 48 : index
    %c0_95 = arith.constant 0 : index
    %220 = vector.load %arg13[%c48_94, %c0_95] : memref<64x64xf32, #tpu.memory_space<vmem>>, vector<16x64xf32>
    %cst_96 = arith.constant dense<0.000000e+00> : vector<8x64xf32>
    %221 = tpu.matmul %219, %220, %cst_96 {dimension_numbers = #tpu.dot_dimension_numbers<[1], [0], [0], [1], [0, 0, 1, 1], [], []>} : vector<8x16xf32>, vector<16x64xf32>, vector<8x64xf32> -> vector<8x64xf32>
    %222 = arith.addf %200, %221 : vector<8x64xf32>
    %c0_97 = arith.constant 0 : index
    %c0_98 = arith.constant 0 : index
    %223 = vector.load %arg14[%c0_97, %c0_98] : memref<1x64xf32, #tpu.memory_space<vmem>>, vector<1x64xf32>
    %224 = vector.broadcast %223 : vector<1x64xf32> to vector<8x64xf32>
    %225 = arith.addf %222, %224 : vector<8x64xf32>
    %226 = arith.addf %125, %225 : vector<8x64xf32>
    %c0_99 = arith.constant 0 : index
    %c0_100 = arith.constant 0 : index
    %227 = vector.load %arg21[%c0_99, %c0_100] : memref<1x64xf32, #tpu.memory_space<vmem>>, vector<1x64xf32>
    %c0_101 = arith.constant 0 : index
    %c0_102 = arith.constant 0 : index
    %228 = vector.load %arg22[%c0_101, %c0_102] : memref<1x64xf32, #tpu.memory_space<vmem>>, vector<1x64xf32>
    %cst_103 = arith.constant dense<0.000000e+00> : vector<8xf32>
    %229 = vector.multi_reduction <add>, %226, %cst_103 [1] : vector<8x64xf32> to vector<8xf32>
    %230 = vector.shape_cast %229 : vector<8xf32> to vector<8x1xf32>
    %cst_104 = arith.constant 6.400000e+01 : f32
    %231 = vector.broadcast %cst_104 : f32 to vector<8x1xf32>
    %232 = arith.divf %230, %231 : vector<8x1xf32>
    %233 = vector.broadcast %232 : vector<8x1xf32> to vector<8x64xf32>
    %234 = arith.subf %226, %233 : vector<8x64xf32>
    %235 = arith.mulf %234, %234 : vector<8x64xf32>
    %cst_105 = arith.constant dense<0.000000e+00> : vector<8xf32>
    %236 = vector.multi_reduction <add>, %235, %cst_105 [1] : vector<8x64xf32> to vector<8xf32>
    %237 = vector.shape_cast %236 : vector<8xf32> to vector<8x1xf32>
    %cst_106 = arith.constant 6.400000e+01 : f32
    %238 = vector.broadcast %cst_106 : f32 to vector<8x1xf32>
    %239 = arith.divf %237, %238 : vector<8x1xf32>
    %cst_107 = arith.constant 9.99999974E-6 : f32
    %240 = vector.broadcast %cst_107 : f32 to vector<8x1xf32>
    %241 = arith.addf %239, %240 : vector<8x1xf32>
    %242 = math.rsqrt %241 : vector<8x1xf32>
    %243 = vector.broadcast %242 : vector<8x1xf32> to vector<8x64xf32>
    %244 = arith.mulf %234, %243 : vector<8x64xf32>
    %245 = vector.broadcast %227 : vector<1x64xf32> to vector<8x64xf32>
    %246 = arith.mulf %244, %245 : vector<8x64xf32>
    %247 = vector.broadcast %228 : vector<1x64xf32> to vector<8x64xf32>
    %248 = arith.addf %246, %247 : vector<8x64xf32>
    %c0_108 = arith.constant 0 : index
    %c0_109 = arith.constant 0 : index
    %249 = vector.load %arg15[%c0_108, %c0_109] : memref<64x128xf32, #tpu.memory_space<vmem>>, vector<64x128xf32>
    %cst_110 = arith.constant dense<0.000000e+00> : vector<8x128xf32>
    %250 = tpu.matmul %248, %249, %cst_110 {dimension_numbers = #tpu.dot_dimension_numbers<[1], [0], [0], [1], [0, 0, 1, 1], [], []>} : vector<8x64xf32>, vector<64x128xf32>, vector<8x128xf32> -> vector<8x128xf32>
    %c0_111 = arith.constant 0 : index
    %c0_112 = arith.constant 0 : index
    %251 = vector.load %arg16[%c0_111, %c0_112] : memref<1x128xf32, #tpu.memory_space<vmem>>, vector<1x128xf32>
    %252 = vector.broadcast %251 : vector<1x128xf32> to vector<8x128xf32>
    %253 = arith.addf %250, %252 : vector<8x128xf32>
    %cst_113 = arith.constant 0.000000e+00 : f32
    %254 = vector.broadcast %cst_113 : f32 to vector<8x128xf32>
    %255 = arith.maximumf %253, %254 : vector<8x128xf32>
    %c0_114 = arith.constant 0 : index
    %c0_115 = arith.constant 0 : index
    %256 = vector.load %arg17[%c0_114, %c0_115] : memref<128x64xf32, #tpu.memory_space<vmem>>, vector<128x64xf32>
    %cst_116 = arith.constant dense<0.000000e+00> : vector<8x64xf32>
    %257 = tpu.matmul %255, %256, %cst_116 {dimension_numbers = #tpu.dot_dimension_numbers<[1], [0], [0], [1], [0, 0, 1, 1], [], []>} : vector<8x128xf32>, vector<128x64xf32>, vector<8x64xf32> -> vector<8x64xf32>
    %c0_117 = arith.constant 0 : index
    %c0_118 = arith.constant 0 : index
    %258 = vector.load %arg18[%c0_117, %c0_118] : memref<1x64xf32, #tpu.memory_space<vmem>>, vector<1x64xf32>
    %259 = vector.broadcast %258 : vector<1x64xf32> to vector<8x64xf32>
    %260 = arith.addf %257, %259 : vector<8x64xf32>
    %261 = arith.addf %248, %260 : vector<8x64xf32>
    %c0_119 = arith.constant 0 : index
    %c0_120 = arith.constant 0 : index
    %262 = vector.load %arg23[%c0_119, %c0_120] : memref<1x64xf32, #tpu.memory_space<vmem>>, vector<1x64xf32>
    %c0_121 = arith.constant 0 : index
    %c0_122 = arith.constant 0 : index
    %263 = vector.load %arg24[%c0_121, %c0_122] : memref<1x64xf32, #tpu.memory_space<vmem>>, vector<1x64xf32>
    %cst_123 = arith.constant dense<0.000000e+00> : vector<8xf32>
    %264 = vector.multi_reduction <add>, %261, %cst_123 [1] : vector<8x64xf32> to vector<8xf32>
    %265 = vector.shape_cast %264 : vector<8xf32> to vector<8x1xf32>
    %cst_124 = arith.constant 6.400000e+01 : f32
    %266 = vector.broadcast %cst_124 : f32 to vector<8x1xf32>
    %267 = arith.divf %265, %266 : vector<8x1xf32>
    %268 = vector.broadcast %267 : vector<8x1xf32> to vector<8x64xf32>
    %269 = arith.subf %261, %268 : vector<8x64xf32>
    %270 = arith.mulf %269, %269 : vector<8x64xf32>
    %cst_125 = arith.constant dense<0.000000e+00> : vector<8xf32>
    %271 = vector.multi_reduction <add>, %270, %cst_125 [1] : vector<8x64xf32> to vector<8xf32>
    %272 = vector.shape_cast %271 : vector<8xf32> to vector<8x1xf32>
    %cst_126 = arith.constant 6.400000e+01 : f32
    %273 = vector.broadcast %cst_126 : f32 to vector<8x1xf32>
    %274 = arith.divf %272, %273 : vector<8x1xf32>
    %cst_127 = arith.constant 9.99999974E-6 : f32
    %275 = vector.broadcast %cst_127 : f32 to vector<8x1xf32>
    %276 = arith.addf %274, %275 : vector<8x1xf32>
    %277 = math.rsqrt %276 : vector<8x1xf32>
    %278 = vector.broadcast %277 : vector<8x1xf32> to vector<8x64xf32>
    %279 = arith.mulf %269, %278 : vector<8x64xf32>
    %280 = vector.broadcast %262 : vector<1x64xf32> to vector<8x64xf32>
    %281 = arith.mulf %279, %280 : vector<8x64xf32>
    %282 = vector.broadcast %263 : vector<1x64xf32> to vector<8x64xf32>
    %283 = arith.addf %281, %282 : vector<8x64xf32>
    %c0_128 = arith.constant 0 : index
    %c0_129 = arith.constant 0 : index
    %c0_130 = arith.constant 0 : index
    %284 = vector.load %arg25[%c0_128, %c0_129, %c0_130] : memref<1x8x64xf32, #tpu.memory_space<vmem>>, vector<1x8x64xf32>
    %285 = vector.shape_cast %284 : vector<1x8x64xf32> to vector<8x64xf32>
    %286 = vector.shape_cast %283 : vector<8x64xf32> to vector<1x8x64xf32>
    tpu.vector_store %arg25[%c0_128, %c0_129, %c0_130], %286 {strides = array<i32>} : memref<1x8x64xf32, #tpu.memory_space<vmem>>, vector<1x8x64xf32>,
    return
  }
  func.func @transform_0(%arg0: i32) -> (i32, i32, i32) {
    %c0_i32 = arith.constant 0 : i32
    %c0_i32_0 = arith.constant 0 : i32
    %c0_i32_1 = arith.constant 0 : i32
    return %arg0, %c0_i32, %c0_i32_0 : i32, i32, i32
  }
  func.func @transform_1(%arg0: i32) -> (i32, i32, i32) {
    %c0_i32 = arith.constant 0 : i32
    %c0_i32_0 = arith.constant 0 : i32
    %c0_i32_1 = arith.constant 0 : i32
    return %arg0, %c0_i32, %c0_i32_0 : i32, i32, i32
  }
  func.func @transform_2(%arg0: i32) -> (i32, i32, i32) {
    %c0_i32 = arith.constant 0 : i32
    %c0_i32_0 = arith.constant 0 : i32
    %c0_i32_1 = arith.constant 0 : i32
    return %arg0, %c0_i32, %c0_i32_0 : i32, i32, i32
  }
  func.func @transform_3(%arg0: i32) -> (i32, i32, i32) {
    %c0_i32 = arith.constant 0 : i32
    %c0_i32_0 = arith.constant 0 : i32
    %c0_i32_1 = arith.constant 0 : i32
    return %arg0, %c0_i32, %c0_i32_0 : i32, i32, i32
  }
  func.func @transform_4(%arg0: i32) -> (i32, i32) {
    %c0_i32 = arith.constant 0 : i32
    %c0_i32_0 = arith.constant 0 : i32
    %c0_i32_1 = arith.constant 0 : i32
    return %c0_i32, %c0_i32_0 : i32, i32
  }
  func.func @transform_5(%arg0: i32) -> (i32, i32) {
    %c0_i32 = arith.constant 0 : i32
    %c0_i32_0 = arith.constant 0 : i32
    %c0_i32_1 = arith.constant 0 : i32
    return %c0_i32, %c0_i32_0 : i32, i32
  }
  func.func @transform_6(%arg0: i32) -> (i32, i32) {
    %c0_i32 = arith.constant 0 : i32
    %c0_i32_0 = arith.constant 0 : i32
    %c0_i32_1 = arith.constant 0 : i32
    return %c0_i32, %c0_i32_0 : i32, i32
  }
  func.func @transform_7(%arg0: i32) -> (i32, i32) {
    %c0_i32 = arith.constant 0 : i32
    %c0_i32_0 = arith.constant 0 : i32
    %c0_i32_1 = arith.constant 0 : i32
    return %c0_i32, %c0_i32_0 : i32, i32
  }
  func.func @transform_8(%arg0: i32) -> (i32, i32) {
    %c0_i32 = arith.constant 0 : i32
    %c0_i32_0 = arith.constant 0 : i32
    %c0_i32_1 = arith.constant 0 : i32
    return %c0_i32, %c0_i32_0 : i32, i32
  }
  func.func @transform_9(%arg0: i32) -> (i32, i32) {
    %c0_i32 = arith.constant 0 : i32
    %c0_i32_0 = arith.constant 0 : i32
    %c0_i32_1 = arith.constant 0 : i32
    return %c0_i32, %c0_i32_0 : i32, i32
  }
  func.func @transform_10(%arg0: i32) -> (i32, i32) {
    %c0_i32 = arith.constant 0 : i32
    %c0_i32_0 = arith.constant 0 : i32
    %c0_i32_1 = arith.constant 0 : i32
    return %c0_i32, %c0_i32_0 : i32, i32
  }
  func.func @transform_11(%arg0: i32) -> (i32, i32) {
    %c0_i32 = arith.constant 0 : i32
    %c0_i32_0 = arith.constant 0 : i32
    %c0_i32_1 = arith.constant 0 : i32
    return %c0_i32, %c0_i32_0 : i32, i32
  }
  func.func @transform_12(%arg0: i32) -> (i32, i32) {
    %c0_i32 = arith.constant 0 : i32
    %c0_i32_0 = arith.constant 0 : i32
    %c0_i32_1 = arith.constant 0 : i32
    return %c0_i32, %c0_i32_0 : i32, i32
  }
  func.func @transform_13(%arg0: i32) -> (i32, i32) {
    %c0_i32 = arith.constant 0 : i32
    %c0_i32_0 = arith.constant 0 : i32
    %c0_i32_1 = arith.constant 0 : i32
    return %c0_i32, %c0_i32_0 : i32, i32
  }
  func.func @transform_14(%arg0: i32) -> (i32, i32) {
    %c0_i32 = arith.constant 0 : i32
    %c0_i32_0 = arith.constant 0 : i32
    %c0_i32_1 = arith.constant 0 : i32
    return %c0_i32, %c0_i32_0 : i32, i32
  }
  func.func @transform_15(%arg0: i32) -> (i32, i32) {
    %c0_i32 = arith.constant 0 : i32
    %c0_i32_0 = arith.constant 0 : i32
    %c0_i32_1 = arith.constant 0 : i32
    return %c0_i32, %c0_i32_0 : i32, i32
  }
  func.func @transform_16(%arg0: i32) -> (i32, i32) {
    %c0_i32 = arith.constant 0 : i32
    %c0_i32_0 = arith.constant 0 : i32
    %c0_i32_1 = arith.constant 0 : i32
    return %c0_i32, %c0_i32_0 : i32, i32
  }
  func.func @transform_17(%arg0: i32) -> (i32, i32) {
    %c0_i32 = arith.constant 0 : i32
    %c0_i32_0 = arith.constant 0 : i32
    %c0_i32_1 = arith.constant 0 : i32
    return %c0_i32, %c0_i32_0 : i32, i32
  }
  func.func @transform_18(%arg0: i32) -> (i32, i32) {
    %c0_i32 = arith.constant 0 : i32
    %c0_i32_0 = arith.constant 0 : i32
    %c0_i32_1 = arith.constant 0 : i32
    return %c0_i32, %c0_i32_0 : i32, i32
  }
  func.func @transform_19(%arg0: i32) -> (i32, i32) {
    %c0_i32 = arith.constant 0 : i32
    %c0_i32_0 = arith.constant 0 : i32
    %c0_i32_1 = arith.constant 0 : i32
    return %c0_i32, %c0_i32_0 : i32, i32
  }
  func.func @transform_20(%arg0: i32) -> (i32, i32) {
    %c0_i32 = arith.constant 0 : i32
    %c0_i32_0 = arith.constant 0 : i32
    %c0_i32_1 = arith.constant 0 : i32
    return %c0_i32, %c0_i32_0 : i32, i32
  }
  func.func @transform_21(%arg0: i32) -> (i32, i32) {
    %c0_i32 = arith.constant 0 : i32
    %c0_i32_0 = arith.constant 0 : i32
    %c0_i32_1 = arith.constant 0 : i32
    return %c0_i32, %c0_i32_0 : i32, i32
  }
  func.func @transform_22(%arg0: i32) -> (i32, i32) {
    %c0_i32 = arith.constant 0 : i32
    %c0_i32_0 = arith.constant 0 : i32
    %c0_i32_1 = arith.constant 0 : i32
    return %c0_i32, %c0_i32_0 : i32, i32
  }
  func.func @transform_23(%arg0: i32) -> (i32, i32) {
    %c0_i32 = arith.constant 0 : i32
    %c0_i32_0 = arith.constant 0 : i32
    %c0_i32_1 = arith.constant 0 : i32
    return %c0_i32, %c0_i32_0 : i32, i32
  }
  func.func @transform_24(%arg0: i32) -> (i32, i32, i32) {
    %c0_i32 = arith.constant 0 : i32
    %c0_i32_0 = arith.constant 0 : i32
    %c0_i32_1 = arith.constant 0 : i32
    return %arg0, %c0_i32, %c0_i32_0 : i32, i32, i32
  }
}

module attributes {stable_mosaic.version = 11 : i64} {
  func.func @_proj_kernel(%arg0: memref<16x64xf32, #tpu.memory_space<vmem>>, %arg1: memref<64x128xf32, #tpu.memory_space<vmem>>, %arg2: memref<1x128xf32, #tpu.memory_space<vmem>>, %arg3: memref<16x128xf32, #tpu.memory_space<vmem>>) attributes {dimension_semantics = [], scalar_prefetch = 0 : i64, scratch_operands = 0 : i64, tpu.core_type = #tpu.core_type<tc>} {
    %c0 = arith.constant 0 : index
    %c0_0 = arith.constant 0 : index
    %0 = vector.load %arg0[%c0, %c0_0] : memref<16x64xf32, #tpu.memory_space<vmem>>, vector<16x64xf32>
    %c0_1 = arith.constant 0 : index
    %c0_2 = arith.constant 0 : index
    %1 = vector.load %arg1[%c0_1, %c0_2] : memref<64x128xf32, #tpu.memory_space<vmem>>, vector<64x128xf32>
    %cst = arith.constant dense<0.000000e+00> : vector<16x128xf32>
    %2 = tpu.matmul %0, %1, %cst {dimension_numbers = #tpu.dot_dimension_numbers<[1], [0], [0], [1], [0, 0, 1, 1], [], []>} : vector<16x64xf32>, vector<64x128xf32>, vector<16x128xf32> -> vector<16x128xf32>
    %c0_3 = arith.constant 0 : index
    %c0_4 = arith.constant 0 : index
    %3 = vector.load %arg2[%c0_3, %c0_4] : memref<1x128xf32, #tpu.memory_space<vmem>>, vector<1x128xf32>
    %4 = vector.broadcast %3 : vector<1x128xf32> to vector<16x128xf32>
    %5 = arith.addf %2, %4 : vector<16x128xf32>
    %c0_5 = arith.constant 0 : index
    %c0_6 = arith.constant 0 : index
    %6 = vector.load %arg3[%c0_5, %c0_6] : memref<16x128xf32, #tpu.memory_space<vmem>>, vector<16x128xf32>
    tpu.vector_store %arg3[%c0_5, %c0_6], %5 {strides = array<i32>} : memref<16x128xf32, #tpu.memory_space<vmem>>, vector<16x128xf32>,
    return
  }
}

</mosaic_0001>

<llo_original>
// kernel: trans_model_forward.9
$region0: #{trans_model_forward.9}
  #allocation0 [shape = 'u32[]', space=smem, size = 0x4, offset = 0x4, fixed_abs, tag = 'smem constant byte address 0x4 - core index']
  #allocation1 [shape = 'u32[144,128]{1,0:T(1,128)}', space=vmem, size = 0x12000, scoped, tag = 'internal scratch']
  %s0 = inlined_call_operand.vmem [shape: f32[16,64], index: 0, kind: input, shape index: {}]
  %s1 = inlined_call_operand.vmem [shape: f32[64,128], index: 1, kind: input, shape index: {}]
  %s2 = inlined_call_operand.vmem [shape: f32[1,128], index: 2, kind: input, shape index: {}]
  %s3 = inlined_call_operand.vmem [shape: f32[16,128], index: 3, kind: output, shape index: {}]
  %s4 = sld [smem:[#allocation0]]
  $region22: #{trans_model_forward.9} parent=0
    _
  %s6 = ssub.s32 1, %s4
  %s7 = scalar_select 0, %s6, %s4
  // Predicated region
  $region2: #{trans_model_forward.9} parent=0 // pred_check
    _
  $region3: #{trans_model_forward.9} parent=0 // pred_check_branch
    %9 = sbr.rel (0) target = $region5
  $region4: #{trans_model_forward.9} parent=0 // pred_region
    _
  $region5: #{trans_model_forward.9} parent=0 // pred_fallthru
    _
  // Predicated region
  $region6: #{trans_model_forward.9} parent=0 // pred_check
    _
  $region7: #{trans_model_forward.9} parent=0 // pred_check_branch
    %11 = sbr.rel (0) target = $region9
  $region8: #{trans_model_forward.9} parent=0 // pred_region
    _
  $region9: #{trans_model_forward.9} parent=0 // pred_fallthru
    _
  // Predicated region
  $region10: #{trans_model_forward.9} parent=0 // pred_check
    _
  $region11: #{trans_model_forward.9} parent=0 // pred_check_branch
    %13 = sbr.rel (0) target = $region13
  $region12: #{trans_model_forward.9} parent=0 // pred_region
    _
  $region13: #{trans_model_forward.9} parent=0 // pred_fallthru
    _
  %v14 = vld [vmem:[%s0] sm:$0xff]
  %v15 = vld [vmem:[%s0 + $0x8] sm:$0xff]
  %v16 = vld [vmem:[%s1] sm:$0xff]
  %v17 = vld [vmem:[%s1 + $0x8] sm:$0xff]
  %v18 = vld [vmem:[%s1 + $0x10] sm:$0xff]
  %v19 = vld [vmem:[%s1 + $0x18] sm:$0xff]
  %v20 = vld [vmem:[%s1 + $0x20] sm:$0xff]
  %v21 = vld [vmem:[%s1 + $0x28] sm:$0xff]
  %v22 = vld [vmem:[%s1 + $0x30] sm:$0xff]
  %v23 = vld [vmem:[%s1 + $0x38] sm:$0xff]
  %v24 = vld [vmem:[%s2] sm:$0x1]
  %v26 = vlaneseq
  %v27 = vshrl.u32 %v26, 7
  %v28 = vsub.s32 0, %v27
  %v29 = vrot.slane %v24, %v28
  %vm31 = vcmask 523264
  %v33 = vsel %vm31, %v14, 0
  %v36 = vsel %vm31, %v15, 0
  %38 = vmatprep.subr.mxu0 0.0
  %39 = vmatpush1.msra.mxu0 0.0
  %40 = vmatprep.subr.mxu0 0.0
  %41 = vmatpush1.msra.mxu0 0.0
  %42 = vmatprep.subr.mxu0 0.0
  %43 = vmatpush1.msra.mxu0 0.0
  %44 = vmatprep.subr.mxu0 0.0
  %45 = vmatpush1.msra.mxu0 0.0
  %46 = vmatprep.subr.mxu0 0.0
  %47 = vmatpush1.msra.mxu0 0.0
  %48 = vmatprep.subr.mxu0 0.0
  %49 = vmatpush1.msra.mxu0 0.0
  %50 = vmatprep.subr.mxu0 0.0
  %51 = vmatpush1.msra.mxu0 0.0
  %52 = vmatprep.subr.mxu0 0.0
  %53 = vmatpush1.msra.mxu0 0.0
  %54 = vmatprep.subr.mxu0 0.0
  %55 = vmatpush1.msra.mxu0 %v23
  %56 = vmatprep.subr.mxu0 0.0
  %57 = vmatpush1.msra.mxu0 %v22
  %58 = vmatprep.subr.mxu0 0.0
  %59 = vmatpush1.msra.mxu0 %v21
  %60 = vmatprep.subr.mxu0 0.0
  %61 = vmatpush1.msra.mxu0 %v20
  %62 = vmatprep.subr.mxu0 0.0
  %63 = vmatpush1.msra.mxu0 %v19
  %64 = vmatprep.subr.mxu0 0.0
  %65 = vmatpush1.msra.mxu0 %v18
  %66 = vmatprep.subr.mxu0 0.0
  %67 = vmatpush1.msra.mxu0 %v17
  %68 = vmatprep.subr.mxu0 0.0
  %69 = vmatpush1.msra.mxu0 %v16
  %70 = vmatprep.subr.mxu0 0.0
  %71 = vmatpush2.msra.mxu0 0.0
  %72 = vmatprep.subr.mxu0 0.0
  %73 = vmatpush2.msra.mxu0 0.0
  %74 = vmatprep.subr.mxu0 0.0
  %75 = vmatpush2.msra.mxu0 0.0
  %76 = vmatprep.subr.mxu0 0.0
  %77 = vmatpush2.msra.mxu0 0.0
  %78 = vmatprep.subr.mxu0 0.0
  %79 = vmatpush2.msra.mxu0 0.0
  %80 = vmatprep.subr.mxu0 0.0
  %81 = vmatpush2.msra.mxu0 0.0
  %82 = vmatprep.subr.mxu0 0.0
  %83 = vmatpush2.msra.mxu0 0.0
  %84 = vmatprep.subr.mxu0 0.0
  %85 = vmatpush2.msra.mxu0 0.0
  %86 = vmatprep.subr.mxu0 0.0
  %87 = vmatpush2.msra.mxu0 0.0
  %88 = vmatprep.subr.mxu0 0.0
  %89 = vmatpush2.msra.mxu0 0.0
  %90 = vmatprep.subr.mxu0 0.0
  %91 = vmatpush2.msra.mxu0 0.0
  %92 = vmatprep.subr.mxu0 0.0
  %93 = vmatpush2.msra.mxu0 0.0
  %94 = vmatprep.subr.mxu0 0.0
  %95 = vmatpush2.msra.mxu0 0.0
  %96 = vmatprep.subr.mxu0 0.0
  %97 = vmatpush2.msra.mxu0 0.0
  %98 = vmatprep.subr.mxu0 0.0
  %99 = vmatpush2.msra.mxu0 0.0
  %100 = vmatprep.subr.mxu0 0.0
  %101 = vmatpush2.msra.mxu0 0.0
  %102 = vmatprep.mubr.f32.mxu0 0.0
  %103 = vmatmul.mubr.f32.gmra.mxu0 %v33
  %v104 = vpop.f32.mrf.mxu0
  %v105 = vadd.f32 %v29, %v104
  %v106 = vpop.f32.mrf.mxu0
  %107 = vmatprep.mubr.f32.mxu0 0.0
  %108 = vmatmul.mubr.f32.gmra.mxu0 %v36
  %v109 = vpop.f32.mrf.mxu0
  %v110 = vadd.f32 %v29, %v109
  %v111 = vpop.f32.mrf.mxu0
  %112 = vdwg.mxu0
  %113 = vst [vmem:[%s3] sm:$0xff] %v105
  %114 = vst [vmem:[%s3 + $0x8] sm:$0xff] %v110
  // Predicated region
  $region14: #{trans_model_forward.9} parent=0 // pred_check
    _
  $region15: #{trans_model_forward.9} parent=0 // pred_check_branch
    %116 = sbr.rel (0) target = $region17
  $region16: #{trans_model_forward.9} parent=0 // pred_region
    _
  $region17: #{trans_model_forward.9} parent=0 // pred_fallthru
    _
  // Predicated region
  $region18: #{trans_model_forward.9} parent=0 // pred_check
    _
  $region19: #{trans_model_forward.9} parent=0 // pred_check_branch
    %118 = sbr.rel (0) target = $region21
  $region20: #{trans_model_forward.9} parent=0 // pred_region
    _
  $region21: #{trans_model_forward.9} parent=0 // pred_fallthru
    _

// kernel: trans_model_forward.5
$region0: #{trans_model_forward.5}
  #allocation0 [shape = 'u32[]', space=smem, size = 0x4, offset = 0x4, fixed_abs, tag = 'smem constant byte address 0x4 - core index']
  #allocation1 [shape = 'u32[144,128]{1,0:T(1,128)}', space=vmem, size = 0x12000, scoped, tag = 'internal scratch']
  %s0 = inlined_call_operand.vmem [shape: f32[2,8,64], index: 0, kind: input, shape index: {}]
  %s1 = inlined_call_operand.vmem [shape: f32[2,8,8], index: 1, kind: input, shape index: {}]
  %s2 = inlined_call_operand.vmem [shape: f32[64,192], index: 2, kind: input, shape index: {}]
  %s3 = inlined_call_operand.vmem [shape: f32[1,192], index: 3, kind: input, shape index: {}]
  %s4 = inlined_call_operand.vmem [shape: f32[64,64], index: 4, kind: input, shape index: {}]
  %s5 = inlined_call_operand.vmem [shape: f32[1,64], index: 5, kind: input, shape index: {}]
  %s6 = inlined_call_operand.vmem [shape: f32[1,64], index: 6, kind: input, shape index: {}]
  %s7 = inlined_call_operand.vmem [shape: f32[1,64], index: 7, kind: input, shape index: {}]
  %s8 = inlined_call_operand.vmem [shape: f32[64,128], index: 8, kind: input, shape index: {}]
  %s9 = inlined_call_operand.vmem [shape: f32[1,128], index: 9, kind: input, shape index: {}]
  %s10 = inlined_call_operand.vmem [shape: f32[128,64], index: 10, kind: input, shape index: {}]
  %s11 = inlined_call_operand.vmem [shape: f32[1,64], index: 11, kind: input, shape index: {}]
  %s12 = inlined_call_operand.vmem [shape: f32[1,64], index: 12, kind: input, shape index: {}]
  %s13 = inlined_call_operand.vmem [shape: f32[1,64], index: 13, kind: input, shape index: {}]
  %s14 = inlined_call_operand.vmem [shape: f32[2,8,64], index: 14, kind: output, shape index: {}]
  %s15 = sld [smem:[#allocation0]]
  $region89: #{trans_model_forward.5} parent=0
    _
  %s17 = ssub.s32 1, %s15
  %s18 = scalar_select 0, %s17, %s15
  loop: start=0, step=1, limit=4
  $region2: #{trans_model_forward.5} parent=0 // loop_pre_header
    _
  $region3: #{trans_model_forward.5} parent=0 // loop_header
    %s20 = sphi 0, %s24
    %p21 = scmp.ge.s32.totalorder %s20, 4
    %s30 = sphi 0, %s32
    %s33 = sphi 0, %s30
    %s34 = sphi 0, %s33
    %s50 = sphi 0, %s34
    %s56 = sphi 0, %s58
    %s59 = sphi 0, %s56
    %s60 = sphi 0, %s59
    %s76 = sphi 0, %s60
    %s80 = sphi 0, %s80
    %s82 = sphi 0, %s80
    %s83 = sphi 0, %s82
    %s97 = sphi 0, %s83
    %s101 = sphi 0, %s101
    %s103 = sphi 0, %s101
    %s104 = sphi 0, %s103
    %s118 = sphi 0, %s104
    %s122 = sphi 0, %s122
    %s124 = sphi 0, %s122
    %s125 = sphi 0, %s124
    %s139 = sphi 0, %s125
    %s143 = sphi 0, %s143
    %s145 = sphi 0, %s143
    %s146 = sphi 0, %s145
    %s160 = sphi 0, %s146
    %s164 = sphi 0, %s164
    %s166 = sphi 0, %s164
    %s167 = sphi 0, %s166
    %s181 = sphi 0, %s167
    %s185 = sphi 0, %s185
    %s187 = sphi 0, %s185
    %s188 = sphi 0, %s187
    %s202 = sphi 0, %s188
    %s206 = sphi 0, %s206
    %s208 = sphi 0, %s206
    %s209 = sphi 0, %s208
    %s223 = sphi 0, %s209
    %s227 = sphi 0, %s227
    %s229 = sphi 0, %s227
    %s230 = sphi 0, %s229
    %s244 = sphi 0, %s230
    %s248 = sphi 0, %s248
    %s250 = sphi 0, %s248
    %s251 = sphi 0, %s250
    %s265 = sphi 0, %s251
    %s269 = sphi 0, %s269
    %s271 = sphi 0, %s269
    %s272 = sphi 0, %s271
    %s286 = sphi 0, %s272
    %s290 = sphi 0, %s290
    %s292 = sphi 0, %s290
    %s293 = sphi 0, %s292
    %s307 = sphi 0, %s293
    %s311 = sphi 0, %s311
    %s313 = sphi 0, %s311
    %s314 = sphi 0, %s313
    %s328 = sphi 0, %s314
    %s334 = sphi 0, %s336
    %s337 = sphi 0, %s334
    %s338 = sphi 0, %s337
    %s354 = sphi 0, %s338
  $region4: #{trans_model_forward.5} parent=0 // loop_header_branch
    %23 = sbr.rel (%p21) target = $region8
  $region5: #{trans_model_forward.5} parent=0 // loop_body
    %s25 = ssub.s32 %s20, 1
    %s26 = ssub.s32 %s20, 2
    %s27 = sadd.s32 %s20, 1
    %s28 = ssub.s32 %s20, %s27
    %p29 = scmp.eq.s32.totalorder %s28, 0
    %s31 = sadd.s32 %s30, 1
    %s32 = scalar_select %p29, %s30, %s31
    %p35 = pneg %p29
    %p36 = scmp.eq.s32.totalorder %s20, 1
    %p37 = por %p35, %p36
    %p38 = scmp.ne.s32.totalorder %s30, %s33
    %p39 = scmp.eq.s32.totalorder %s20, 0
    %p40 = por %p38, %p39
    %p41 = scmp.ne.s32.totalorder %s30, %s33
    %p42 = scmp.eq.s32.totalorder %s25, 1
    %p43 = por %p41, %p42
    %p44 = scmp.ne.s32.totalorder %s33, %s34
    %p45 = scmp.eq.s32.totalorder %s25, 0
    %p46 = por %p44, %p45
    %p47 = scmp.ne.s32.totalorder %s33, %s34
    %p48 = scmp.eq.s32.totalorder %s26, 1
    %p49 = por %p47, %p48
    %p51 = scmp.ne.s32.totalorder %s34, %s50
    %p52 = scmp.eq.s32.totalorder %s26, 0
    %p53 = por %p51, %p52
    %s54 = ssub.s32 %s20, %s27
    %p55 = scmp.eq.s32.totalorder %s54, 0
    %s57 = sadd.s32 %s56, 1
    %s58 = scalar_select %p55, %s56, %s57
    %p61 = pneg %p55
    %p62 = scmp.eq.s32.totalorder %s20, 1
    %p63 = por %p61, %p62
    %p64 = scmp.ne.s32.totalorder %s56, %s59
    %p65 = scmp.eq.s32.totalorder %s20, 0
    %p66 = por %p64, %p65
    %p67 = scmp.ne.s32.totalorder %s56, %s59
    %p68 = scmp.eq.s32.totalorder %s25, 1
    %p69 = por %p67, %p68
    %p70 = scmp.ne.s32.totalorder %s59, %s60
    %p71 = scmp.eq.s32.totalorder %s25, 0
    %p72 = por %p70, %p71
    %p73 = scmp.ne.s32.totalorder %s59, %s60
    %p74 = scmp.eq.s32.totalorder %s26, 1
    %p75 = por %p73, %p74
    %p77 = scmp.ne.s32.totalorder %s60, %s76
    %p78 = scmp.eq.s32.totalorder %s26, 0
    %p79 = por %p77, %p78
    %s81 = sadd.s32 %s80, 1
    %p84 = scmp.eq.s32.totalorder %s20, 1
    %p85 = scmp.ne.s32.totalorder %s80, %s82
    %p86 = scmp.eq.s32.totalorder %s20, 0
    %p87 = por %p85, %p86
    %p88 = scmp.ne.s32.totalorder %s80, %s82
    %p89 = scmp.eq.s32.totalorder %s25, 1
    %p90 = por %p88, %p89
    %p91 = scmp.ne.s32.totalorder %s82, %s83
    %p92 = scmp.eq.s32.totalorder %s25, 0
    %p93 = por %p91, %p92
    %p94 = scmp.ne.s32.totalorder %s82, %s83
    %p95 = scmp.eq.s32.totalorder %s26, 1
    %p96 = por %p94, %p95
    %p98 = scmp.ne.s32.totalorder %s83, %s97
    %p99 = scmp.eq.s32.totalorder %s26, 0
    %p100 = por %p98, %p99
    %s102 = sadd.s32 %s101, 1
    %p105 = scmp.eq.s32.totalorder %s20, 1
    %p106 = scmp.ne.s32.totalorder %s101, %s103
    %p107 = scmp.eq.s32.totalorder %s20, 0
    %p108 = por %p106, %p107
    %p109 = scmp.ne.s32.totalorder %s101, %s103
    %p110 = scmp.eq.s32.totalorder %s25, 1
    %p111 = por %p109, %p110
    %p112 = scmp.ne.s32.totalorder %s103, %s104
    %p113 = scmp.eq.s32.totalorder %s25, 0
    %p114 = por %p112, %p113
    %p115 = scmp.ne.s32.totalorder %s103, %s104
    %p116 = scmp.eq.s32.totalorder %s26, 1
    %p117 = por %p115, %p116
    %p119 = scmp.ne.s32.totalorder %s104, %s118
    %p120 = scmp.eq.s32.totalorder %s26, 0
    %p121 = por %p119, %p120
    %s123 = sadd.s32 %s122, 1
    %p126 = scmp.eq.s32.totalorder %s20, 1
    %p127 = scmp.ne.s32.totalorder %s122, %s124
    %p128 = scmp.eq.s32.totalorder %s20, 0
    %p129 = por %p127, %p128
    %p130 = scmp.ne.s32.totalorder %s122, %s124
    %p131 = scmp.eq.s32.totalorder %s25, 1
    %p132 = por %p130, %p131
    %p133 = scmp.ne.s32.totalorder %s124, %s125
    %p134 = scmp.eq.s32.totalorder %s25, 0
    %p135 = por %p133, %p134
    %p136 = scmp.ne.s32.totalorder %s124, %s125
    %p137 = scmp.eq.s32.totalorder %s26, 1
    %p138 = por %p136, %p137
    %p140 = scmp.ne.s32.totalorder %s125, %s139
    %p141 = scmp.eq.s32.totalorder %s26, 0
    %p142 = por %p140, %p141
    %s144 = sadd.s32 %s143, 1
    %p147 = scmp.eq.s32.totalorder %s20, 1
    %p148 = scmp.ne.s32.totalorder %s143, %s145
    %p149 = scmp.eq.s32.totalorder %s20, 0
    %p150 = por %p148, %p149
    %p151 = scmp.ne.s32.totalorder %s143, %s145
    %p152 = scmp.eq.s32.totalorder %s25, 1
    %p153 = por %p151, %p152
    %p154 = scmp.ne.s32.totalorder %s145, %s146
    %p155 = scmp.eq.s32.totalorder %s25, 0
    %p156 = por %p154, %p155
    %p157 = scmp.ne.s32.totalorder %s145, %s146
    %p158 = scmp.eq.s32.totalorder %s26, 1
    %p159 = por %p157, %p158
    %p161 = scmp.ne.s32.totalorder %s146, %s160
    %p162 = scmp.eq.s32.totalorder %s26, 0
    %p163 = por %p161, %p162
    %s165 = sadd.s32 %s164, 1
    %p168 = scmp.eq.s32.totalorder %s20, 1
    %p169 = scmp.ne.s32.totalorder %s164, %s166
    %p170 = scmp.eq.s32.totalorder %s20, 0
    %p171 = por %p169, %p170
    %p172 = scmp.ne.s32.totalorder %s164, %s166
    %p173 = scmp.eq.s32.totalorder %s25, 1
    %p174 = por %p172, %p173
    %p175 = scmp.ne.s32.totalorder %s166, %s167
    %p176 = scmp.eq.s32.totalorder %s25, 0
    %p177 = por %p175, %p176
    %p178 = scmp.ne.s32.totalorder %s166, %s167
    %p179 = scmp.eq.s32.totalorder %s26, 1
    %p180 = por %p178, %p179
    %p182 = scmp.ne.s32.totalorder %s167, %s181
    %p183 = scmp.eq.s32.totalorder %s26, 0
    %p184 = por %p182, %p183
    %s186 = sadd.s32 %s185, 1
    %p189 = scmp.eq.s32.totalorder %s20, 1
    %p190 = scmp.ne.s32.totalorder %s185, %s187
    %p191 = scmp.eq.s32.totalorder %s20, 0
    %p192 = por %p190, %p191
    %p193 = scmp.ne.s32.totalorder %s185, %s187
    %p194 = scmp.eq.s32.totalorder %s25, 1
    %p195 = por %p193, %p194
    %p196 = scmp.ne.s32.totalorder %s187, %s188
    %p197 = scmp.eq.s32.totalorder %s25, 0
    %p198 = por %p196, %p197
    %p199 = scmp.ne.s32.totalorder %s187, %s188
    %p200 = scmp.eq.s32.totalorder %s26, 1
    %p201 = por %p199, %p200
    %p203 = scmp.ne.s32.totalorder %s188, %s202
    %p204 = scmp.eq.s32.totalorder %s26, 0
    %p205 = por %p203, %p204
    %s207 = sadd.s32 %s206, 1
    %p210 = scmp.eq.s32.totalorder %s20, 1
    %p211 = scmp.ne.s32.totalorder %s206, %s208
    %p212 = scmp.eq.s32.totalorder %s20, 0
    %p213 = por %p211, %p212
    %p214 = scmp.ne.s32.totalorder %s206, %s208
    %p215 = scmp.eq.s32.totalorder %s25, 1
    %p216 = por %p214, %p215
    %p217 = scmp.ne.s32.totalorder %s208, %s209
    %p218 = scmp.eq.s32.totalorder %s25, 0
    %p219 = por %p217, %p218
    %p220 = scmp.ne.s32.totalorder %s208, %s209
    %p221 = scmp.eq.s32.totalorder %s26, 1
    %p222 = por %p220, %p221
    %p224 = scmp.ne.s32.totalorder %s209, %s223
    %p225 = scmp.eq.s32.totalorder %s26, 0
    %p226 = por %p224, %p225
    %s228 = sadd.s32 %s227, 1
    %p231 = scmp.eq.s32.totalorder %s20, 1
    %p232 = scmp.ne.s32.totalorder %s227, %s229
    %p233 = scmp.eq.s32.totalorder %s20, 0
    %p234 = por %p232, %p233
    %p235 = scmp.ne.s32.totalorder %s227, %s229
    %p236 = scmp.eq.s32.totalorder %s25, 1
    %p237 = por %p235, %p236
    %p238 = scmp.ne.s32.totalorder %s229, %s230
    %p239 = scmp.eq.s32.totalorder %s25, 0
    %p240 = por %p238, %p239
    %p241 = scmp.ne.s32.totalorder %s229, %s230
    %p242 = scmp.eq.s32.totalorder %s26, 1
    %p243 = por %p241, %p242
    %p245 = scmp.ne.s32.totalorder %s230, %s244
    %p246 = scmp.eq.s32.totalorder %s26, 0
    %p247 = por %p245, %p246
    %s249 = sadd.s32 %s248, 1
    %p252 = scmp.eq.s32.totalorder %s20, 1
    %p253 = scmp.ne.s32.totalorder %s248, %s250
    %p254 = scmp.eq.s32.totalorder %s20, 0
    %p255 = por %p253, %p254
    %p256 = scmp.ne.s32.totalorder %s248, %s250
    %p257 = scmp.eq.s32.totalorder %s25, 1
    %p258 = por %p256, %p257
    %p259 = scmp.ne.s32.totalorder %s250, %s251
    %p260 = scmp.eq.s32.totalorder %s25, 0
    %p261 = por %p259, %p260
    %p262 = scmp.ne.s32.totalorder %s250, %s251
    %p263 = scmp.eq.s32.totalorder %s26, 1
    %p264 = por %p262, %p263
    %p266 = scmp.ne.s32.totalorder %s251, %s265
    %p267 = scmp.eq.s32.totalorder %s26, 0
    %p268 = por %p266, %p267
    %s270 = sadd.s32 %s269, 1
    %p273 = scmp.eq.s32.totalorder %s20, 1
    %p274 = scmp.ne.s32.totalorder %s269, %s271
    %p275 = scmp.eq.s32.totalorder %s20, 0
    %p276 = por %p274, %p275
    %p277 = scmp.ne.s32.totalorder %s269, %s271
    %p278 = scmp.eq.s32.totalorder %s25, 1
    %p279 = por %p277, %p278
    %p280 = scmp.ne.s32.totalorder %s271, %s272
    %p281 = scmp.eq.s32.totalorder %s25, 0
    %p282 = por %p280, %p281
    %p283 = scmp.ne.s32.totalorder %s271, %s272
    %p284 = scmp.eq.s32.totalorder %s26, 1
    %p285 = por %p283, %p284
    %p287 = scmp.ne.s32.totalorder %s272, %s286
    %p288 = scmp.eq.s32.totalorder %s26, 0
    %p289 = por %p287, %p288
    %s291 = sadd.s32 %s290, 1
    %p294 = scmp.eq.s32.totalorder %s20, 1
    %p295 = scmp.ne.s32.totalorder %s290, %s292
    %p296 = scmp.eq.s32.totalorder %s20, 0
    %p297 = por %p295, %p296
    %p298 = scmp.ne.s32.totalorder %s290, %s292
    %p299 = scmp.eq.s32.totalorder %s25, 1
    %p300 = por %p298, %p299
    %p301 = scmp.ne.s32.totalorder %s292, %s293
    %p302 = scmp.eq.s32.totalorder %s25, 0
    %p303 = por %p301, %p302
    %p304 = scmp.ne.s32.totalorder %s292, %s293
    %p305 = scmp.eq.s32.totalorder %s26, 1
    %p306 = por %p304, %p305
    %p308 = scmp.ne.s32.totalorder %s293, %s307
    %p309 = scmp.eq.s32.totalorder %s26, 0
    %p310 = por %p308, %p309
    %s312 = sadd.s32 %s311, 1
    %p315 = scmp.eq.s32.totalorder %s20, 1
    %p316 = scmp.ne.s32.totalorder %s311, %s313
    %p317 = scmp.eq.s32.totalorder %s20, 0
    %p318 = por %p316, %p317
    %p319 = scmp.ne.s32.totalorder %s311, %s313
    %p320 = scmp.eq.s32.totalorder %s25, 1
    %p321 = por %p319, %p320
    %p322 = scmp.ne.s32.totalorder %s313, %s314
    %p323 = scmp.eq.s32.totalorder %s25, 0
    %p324 = por %p322, %p323
    %p325 = scmp.ne.s32.totalorder %s313, %s314
    %p326 = scmp.eq.s32.totalorder %s26, 1
    %p327 = por %p325, %p326
    %p329 = scmp.ne.s32.totalorder %s314, %s328
    %p330 = scmp.eq.s32.totalorder %s26, 0
    %p331 = por %p329, %p330
    %s332 = ssub.s32 %s20, %s27
    %p333 = scmp.eq.s32.totalorder %s332, 0
    %s335 = sadd.s32 %s334, 1
    %s336 = scalar_select %p333, %s334, %s335
    %p339 = pneg %p333
    %p340 = scmp.eq.s32.totalorder %s20, 1
    %p341 = por %p339, %p340
    %p342 = scmp.ne.s32.totalorder %s334, %s337
    %p343 = scmp.eq.s32.totalorder %s20, 0
    %p344 = por %p342, %p343
    %p345 = scmp.ne.s32.totalorder %s334, %s337
    %p346 = scmp.eq.s32.totalorder %s25, 1
    %p347 = por %p345, %p346
    %p348 = scmp.ne.s32.totalorder %s337, %s338
    %p349 = scmp.eq.s32.totalorder %s25, 0
    %p350 = por %p348, %p349
    %p351 = scmp.ne.s32.totalorder %s337, %s338
    %p352 = scmp.eq.s32.totalorder %s26, 1
    %p353 = por %p351, %p352
    %p355 = scmp.ne.s32.totalorder %s338, %s354
    %p356 = scmp.eq.s32.totalorder %s26, 0
    %p357 = por %p355, %p356
    %p358 = scmp.le.s32.totalorder 1, %s20
    %p359 = scmp.lt.s32.totalorder %s20, 3
    %p360 = pnand %p358, %p359
    %p361 = pneg %p360
    // Predicated region
    $region9: #{trans_model_forward.5} parent=5 // pred_check
      _
    $region10: #{trans_model_forward.5} parent=5 // pred_check_branch
      %363 = sbr.rel (%p360) target = $region12
    $region11: #{trans_model_forward.5} parent=5 // pred_region
      %s364 = ssub.s32 %s20, 1
      // Predicated region
      $region13: #{trans_model_forward.5} parent=11 // pred_check
        %p365 = pneg %p93
      $region14: #{trans_model_forward.5} parent=11 // pred_check_branch
        %367 = sbr.rel (%p365) target = $region16
      $region15: #{trans_model_forward.5} parent=11 // pred_region
        _
      $region16: #{trans_model_forward.5} parent=11 // pred_fallthru
        _
      // Predicated region
      $region17: #{trans_model_forward.5} parent=11 // pred_check
        %p368 = pneg %p114
      $region18: #{trans_model_forward.5} parent=11 // pred_check_branch
        %370 = sbr.rel (%p368) target = $region20
      $region19: #{trans_model_forward.5} parent=11 // pred_region
        _
      $region20: #{trans_model_forward.5} parent=11 // pred_fallthru
        _
      // Predicated region
      $region21: #{trans_model_forward.5} parent=11 // pred_check
        %p371 = pneg %p135
      $region22: #{trans_model_forward.5} parent=11 // pred_check_branch
        %373 = sbr.rel (%p371) target = $region24
      $region23: #{trans_model_forward.5} parent=11 // pred_region
        _
      $region24: #{trans_model_forward.5} parent=11 // pred_fallthru
        _
      // Predicated region
      $region25: #{trans_model_forward.5} parent=11 // pred_check
        %p374 = pneg %p156
      $region26: #{trans_model_forward.5} parent=11 // pred_check_branch
        %376 = sbr.rel (%p374) target = $region28
      $region27: #{trans_model_forward.5} parent=11 // pred_region
        _
      $region28: #{trans_model_forward.5} parent=11 // pred_fallthru
        _
      // Predicated region
      $region29: #{trans_model_forward.5} parent=11 // pred_check
        %p377 = pneg %p177
      $region30: #{trans_model_forward.5} parent=11 // pred_check_branch
        %379 = sbr.rel (%p377) target = $region32
      $region31: #{trans_model_forward.5} parent=11 // pred_region
        _
      $region32: #{trans_model_forward.5} parent=11 // pred_fallthru
        _
      // Predicated region
      $region33: #{trans_model_forward.5} parent=11 // pred_check
        %p380 = pneg %p198
      $region34: #{trans_model_forward.5} parent=11 // pred_check_branch
        %382 = sbr.rel (%p380) target = $region36
      $region35: #{trans_model_forward.5} parent=11 // pred_region
        _
      $region36: #{trans_model_forward.5} parent=11 // pred_fallthru
        _
      // Predicated region
      $region37: #{trans_model_forward.5} parent=11 // pred_check
        %p383 = pneg %p219
      $region38: #{trans_model_forward.5} parent=11 // pred_check_branch
        %385 = sbr.rel (%p383) target = $region40
      $region39: #{trans_model_forward.5} parent=11 // pred_region
        _
      $region40: #{trans_model_forward.5} parent=11 // pred_fallthru
        _
      // Predicated region
      $region41: #{trans_model_forward.5} parent=11 // pred_check
        %p386 = pneg %p240
      $region42: #{trans_model_forward.5} parent=11 // pred_check_branch
        %388 = sbr.rel (%p386) target = $region44
      $region43: #{trans_model_forward.5} parent=11 // pred_region
        _
      $region44: #{trans_model_forward.5} parent=11 // pred_fallthru
        _
      // Predicated region
      $region45: #{trans_model_forward.5} parent=11 // pred_check
        %p389 = pneg %p261
      $region46: #{trans_model_forward.5} parent=11 // pred_check_branch
        %391 = sbr.rel (%p389) target = $region48
      $region47: #{trans_model_forward.5} parent=11 // pred_region
        _
      $region48: #{trans_model_forward.5} parent=11 // pred_fallthru
        _
      // Predicated region
      $region49: #{trans_model_forward.5} parent=11 // pred_check
        %p392 = pneg %p282
      $region50: #{trans_model_forward.5} parent=11 // pred_check_branch
        %394 = sbr.rel (%p392) target = $region52
      $region51: #{trans_model_forward.5} parent=11 // pred_region
        _
      $region52: #{trans_model_forward.5} parent=11 // pred_fallthru
        _
      // Predicated region
      $region53: #{trans_model_forward.5} parent=11 // pred_check
        %p395 = pneg %p303
      $region54: #{trans_model_forward.5} parent=11 // pred_check_branch
        %397 = sbr.rel (%p395) target = $region56
      $region55: #{trans_model_forward.5} parent=11 // pred_region
        _
      $region56: #{trans_model_forward.5} parent=11 // pred_fallthru
        _
      // Predicated region
      $region57: #{trans_model_forward.5} parent=11 // pred_check
        %p398 = pneg %p324
      $region58: #{trans_model_forward.5} parent=11 // pred_check_branch
        %400 = sbr.rel (%p398) target = $region60
      $region59: #{trans_model_forward.5} parent=11 // pred_region
        _
      $region60: #{trans_model_forward.5} parent=11 // pred_fallthru
        _
    $region12: #{trans_model_forward.5} parent=5 // pred_fallthru
      _
    %p401 = scmp.lt.s32.totalorder %s20, 2
    // Predicated region
    $region61: #{trans_model_forward.5} parent=5 // pred_check
      %p402 = pneg %p401
    $region62: #{trans_model_forward.5} parent=5 // pred_check_branch
      %404 = sbr.rel (%p402) target = $region64
    $region63: #{trans_model_forward.5} parent=5 // pred_region
      // Predicated region
      $region65: #{trans_model_forward.5} parent=63 // pred_check
        %p405 = pneg %p40
      $region66: #{trans_model_forward.5} parent=63 // pred_check_branch
        %407 = sbr.rel (%p405) target = $region68
      $region67: #{trans_model_forward.5} parent=63 // pred_region
        %p408 = scmp.lt.s32.totalorder %s20, 1
        %s409 = scalar_select %p408, %s20, 1
        %s410 = smul.addr %s409, 8
        %s411 = scalar_lea.vmem %s0, %s410
      $region68: #{trans_model_forward.5} parent=63 // pred_fallthru
        _
      // Predicated region
      $region69: #{trans_model_forward.5} parent=63 // pred_check
        %p412 = pneg %p66
      $region70: #{trans_model_forward.5} parent=63 // pred_check_branch
        %414 = sbr.rel (%p412) target = $region72
      $region71: #{trans_model_forward.5} parent=63 // pred_region
        %p415 = scmp.lt.s32.totalorder %s20, 1
        %s416 = scalar_select %p415, %s20, 1
        %s417 = smul.addr %s416, 8
        %s418 = scalar_lea.vmem %s1, %s417
      $region72: #{trans_model_forward.5} parent=63 // pred_fallthru
        _
    $region64: #{trans_model_forward.5} parent=5 // pred_fallthru
      _
    %p419 = scmp.le.s32.totalorder 1, %s20
    %p420 = scmp.lt.s32.totalorder %s20, 3
    %p421 = pnand %p419, %p420
    %p422 = pneg %p421
    // Predicated region
    $region73: #{trans_model_forward.5} parent=5 // pred_check
      _
    $region74: #{trans_model_forward.5} parent=5 // pred_check_branch
      %424 = sbr.rel (%p421) target = $region76
    $region75: #{trans_model_forward.5} parent=5 // pred_region
      %s425 = ssub.s32 %s20, 1
      %p426 = scmp.lt.s32.totalorder %s25, 1
      %s427 = scalar_select %p426, %s25, 1
      %s428 = smul.addr %s427, 8
      %s429 = scalar_lea.vmem %s0, %s428
      %p430 = pneg %p46
      %p431 = pneg %p43
      %p432 = scmp.lt.s32.totalorder %s25, 1
      %s433 = scalar_select %p432, %s25, 1
      %s434 = smul.addr %s433, 8
      %s435 = scalar_lea.vmem %s1, %s434
      %p436 = pneg %p72
      %p437 = pneg %p69
      %p438 = pneg %p93
      %p439 = pneg %p90
      %p440 = pneg %p114
      %p441 = pneg %p111
      %p442 = pneg %p135
      %p443 = pneg %p132
      %p444 = pneg %p156
      %p445 = pneg %p153
      %p446 = pneg %p177
      %p447 = pneg %p174
      %p448 = pneg %p198
      %p449 = pneg %p195
      %p450 = pneg %p219
      %p451 = pneg %p216
      %p452 = pneg %p240
      %p453 = pneg %p237
      %p454 = pneg %p261
      %p455 = pneg %p258
      %p456 = pneg %p282
      %p457 = pneg %p279
      %p458 = pneg %p303
      %p459 = pneg %p300
      %p460 = pneg %p324
      %p461 = pneg %p321
      %p462 = pneg %p350
      %p463 = pneg %p347
      %p464 = scmp.lt.s32.totalorder %s25, 1
      %s465 = scalar_select %p464, %s25, 1
      %s466 = smul.addr %s465, 8
      %s467 = scalar_lea.vmem %s14, %s466
      %p468 = scmp.lt.s32.totalorder %s25, 1
      %s469 = scalar_select %p468, %s25, 1
      %s470 = smul.addr %s469, 8
      %s471 = scalar_lea.vmem %s0, %s470
      %p472 = scmp.lt.s32.totalorder %s25, 1
      %s473 = scalar_select %p472, %s25, 1
      %s474 = smul.addr %s473, 8
      %s475 = scalar_lea.vmem %s1, %s474
      %p476 = scmp.lt.s32.totalorder %s25, 1
      %s477 = scalar_select %p476, %s25, 1
      %s478 = smul.addr %s477, 8
      %s479 = scalar_lea.vmem %s14, %s478
      %v480 = vld [vmem:[%s471] sm:$0xff]
      %v481 = vld [vmem:[%s475] sm:$0xff]
      %v482 = vld [vmem:[%s2] sm:$0xff]
      %v483 = vld [vmem:[%s2 + $0x8] sm:$0xff]
      %v484 = vld [vmem:[%s2 + $0x10] sm:$0xff]
      %v485 = vld [vmem:[%s2 + $0x18] sm:$0xff]
      %v486 = vld [vmem:[%s2 + $0x20] sm:$0xff]
      %v487 = vld [vmem:[%s2 + $0x28] sm:$0xff]
      %v488 = vld [vmem:[%s2 + $0x30] sm:$0xff]
      %v489 = vld [vmem:[%s2 + $0x38] sm:$0xff]
      %v490 = vld [vmem:[%s2 + $0x40] sm:$0xff]
      %v491 = vld [vmem:[%s2 + $0x48] sm:$0xff]
      %v492 = vld [vmem:[%s2 + $0x50] sm:$0xff]
      %v493 = vld [vmem:[%s2 + $0x58] sm:$0xff]
      %v494 = vld [vmem:[%s2 + $0x60] sm:$0xff]
      %v495 = vld [vmem:[%s2 + $0x68] sm:$0xff]
      %v496 = vld [vmem:[%s2 + $0x70] sm:$0xff]
      %v497 = vld [vmem:[%s2 + $0x78] sm:$0xff]
      %v498 = vld [vmem:[%s3] sm:$0x3]
      %v500 = vlaneseq
      %v501 = vshrl.u32 %v500, 7
      %v502 = vsub.s32 0, %v501
      %v503 = vrot.slane %v498, %v502
      %v504 = vlaneseq
      %v505 = vshrl.u32 %v504, 7
      %v506 = vsub.s32 1, %v505
      %v507 = vrot.slane %v498, %v506
      %vm510 = vcmask 523264
      %v512 = vsel %vm510, %v480, 0
      %514 = vmatprep.subr.mxu0 0.0
      %515 = vmatpush1.msra.mxu0 0.0
      %516 = vmatprep.subr.mxu0 0.0
      %517 = vmatpush1.msra.mxu0 0.0
      %518 = vmatprep.subr.mxu0 0.0
      %519 = vmatpush1.msra.mxu0 0.0
      %520 = vmatprep.subr.mxu0 0.0
      %521 = vmatpush1.msra.mxu0 0.0
      %522 = vmatprep.subr.mxu0 0.0
      %523 = vmatpush1.msra.mxu0 0.0
      %524 = vmatprep.subr.mxu0 0.0
      %525 = vmatpush1.msra.mxu0 0.0
      %526 = vmatprep.subr.mxu0 0.0
      %527 = vmatpush1.msra.mxu0 0.0
      %528 = vmatprep.subr.mxu0 0.0
      %529 = vmatpush1.msra.mxu0 0.0
      %530 = vmatprep.subr.mxu0 %v497
      %531 = vmatpush1.msra.mxu0 %v496
      %532 = vmatprep.subr.mxu0 %v495
      %533 = vmatpush1.msra.mxu0 %v494
      %534 = vmatprep.subr.mxu0 %v493
      %535 = vmatpush1.msra.mxu0 %v492
      %536 = vmatprep.subr.mxu0 %v491
      %537 = vmatpush1.msra.mxu0 %v490
      %538 = vmatprep.subr.mxu0 %v489
      %539 = vmatpush1.msra.mxu0 %v488
      %540 = vmatprep.subr.mxu0 %v487
      %541 = vmatpush1.msra.mxu0 %v486
      %542 = vmatprep.subr.mxu0 %v485
      %543 = vmatpush1.msra.mxu0 %v484
      %544 = vmatprep.subr.mxu0 %v483
      %545 = vmatpush1.msra.mxu0 %v482
      %546 = vmatprep.subr.mxu0 0.0
      %547 = vmatpush2.msra.mxu0 0.0
      %548 = vmatprep.subr.mxu0 0.0
      %549 = vmatpush2.msra.mxu0 0.0
      %550 = vmatprep.subr.mxu0 0.0
      %551 = vmatpush2.msra.mxu0 0.0
      %552 = vmatprep.subr.mxu0 0.0
      %553 = vmatpush2.msra.mxu0 0.0
      %554 = vmatprep.subr.mxu0 0.0
      %555 = vmatpush2.msra.mxu0 0.0
      %556 = vmatprep.subr.mxu0 0.0
      %557 = vmatpush2.msra.mxu0 0.0
      %558 = vmatprep.subr.mxu0 0.0
      %559 = vmatpush2.msra.mxu0 0.0
      %560 = vmatprep.subr.mxu0 0.0
      %561 = vmatpush2.msra.mxu0 0.0
      %562 = vmatprep.subr.mxu0 0.0
      %563 = vmatpush2.msra.mxu0 0.0
      %564 = vmatprep.subr.mxu0 0.0
      %565 = vmatpush2.msra.mxu0 0.0
      %566 = vmatprep.subr.mxu0 0.0
      %567 = vmatpush2.msra.mxu0 0.0
      %568 = vmatprep.subr.mxu0 0.0
      %569 = vmatpush2.msra.mxu0 0.0
      %570 = vmatprep.subr.mxu0 0.0
      %571 = vmatpush2.msra.mxu0 0.0
      %572 = vmatprep.subr.mxu0 0.0
      %573 = vmatpush2.msra.mxu0 0.0
      %574 = vmatprep.subr.mxu0 0.0
      %575 = vmatpush2.msra.mxu0 0.0
      %576 = vmatprep.subr.mxu0 0.0
      %577 = vmatpush2.msra.mxu0 0.0
      %578 = vmatprep.mubr.f32.mxu0 0.0
      %579 = vmatmul.mubr.f32.gmra.mxu0 %v512
      %v580 = vpop.f32.mrf.mxu0
      %v581 = vadd.f32 %v503, %v580
      %v582 = vpop.f32.mrf.mxu0
      %v583 = vadd.f32 %v507, %v582
      %584 = vdwg.mxu0
      %586 = vrot.lane.b32.xlu0 %v581, 64
      %v587 = vpop.permute.xlu0 %586
      %vm588 = vcmask 130048
      %v589 = vsel %vm588, %v581, 0
      %v591 = vsel %vm588, %v587, 0
      %593 = vmatprep.subr.mxu0 0.0
      %594 = vmatpush1.xpose.msra.mxu0 0.0
      %595 = vmatprep.subr.mxu0 0.0
      %596 = vmatpush1.xpose.msra.mxu0 0.0
      %597 = vmatprep.subr.mxu0 0.0
      %598 = vmatpush1.xpose.msra.mxu0 0.0
      %599 = vmatprep.subr.mxu0 0.0
      %600 = vmatpush1.xpose.msra.mxu0 0.0
      %601 = vmatprep.subr.mxu0 0.0
      %602 = vmatpush1.xpose.msra.mxu0 0.0
      %603 = vmatprep.subr.mxu0 0.0
      %604 = vmatpush1.xpose.msra.mxu0 0.0
      %605 = vmatprep.subr.mxu0 0.0
      %606 = vmatpush1.xpose.msra.mxu0 0.0
      %607 = vmatprep.subr.mxu0 0.0
      %608 = vmatpush1.xpose.msra.mxu0 0.0
      %609 = vmatprep.subr.mxu0 0.0
      %610 = vmatpush1.xpose.msra.mxu0 0.0
      %611 = vmatprep.subr.mxu0 0.0
      %612 = vmatpush1.xpose.msra.mxu0 0.0
      %613 = vmatprep.subr.mxu0 0.0
      %614 = vmatpush1.xpose.msra.mxu0 0.0
      %615 = vmatprep.subr.mxu0 0.0
      %616 = vmatpush1.xpose.msra.mxu0 0.0
      %617 = vmatprep.subr.mxu0 0.0
      %618 = vmatpush1.xpose.msra.mxu0 0.0
      %619 = vmatprep.subr.mxu0 0.0
      %620 = vmatpush1.xpose.msra.mxu0 0.0
      %621 = vmatprep.subr.mxu0 0.0
      %622 = vmatpush1.xpose.msra.mxu0 0.0
      %623 = vmatprep.subr.mxu0 0.0
      %624 = vmatpush1.xpose.msra.mxu0 %v591
      %625 = vmatprep.subr.mxu0 0.0
      %626 = vmatpush2.xpose.msra.mxu0 0.0
      %627 = vmatprep.subr.mxu0 0.0
      %628 = vmatpush2.xpose.msra.mxu0 0.0
      %629 = vmatprep.subr.mxu0 0.0
      %630 = vmatpush2.xpose.msra.mxu0 0.0
      %631 = vmatprep.subr.mxu0 0.0
      %632 = vmatpush2.xpose.msra.mxu0 0.0
      %633 = vmatprep.subr.mxu0 0.0
      %634 = vmatpush2.xpose.msra.mxu0 0.0
      %635 = vmatprep.subr.mxu0 0.0
      %636 = vmatpush2.xpose.msra.mxu0 0.0
      %637 = vmatprep.subr.mxu0 0.0
      %638 = vmatpush2.xpose.msra.mxu0 0.0
      %639 = vmatprep.subr.mxu0 0.0
      %640 = vmatpush2.xpose.msra.mxu0 0.0
      %641 = vmatprep.subr.mxu0 0.0
      %642 = vmatpush2.xpose.msra.mxu0 0.0
      %643 = vmatprep.subr.mxu0 0.0
      %644 = vmatpush2.xpose.msra.mxu0 0.0
      %645 = vmatprep.subr.mxu0 0.0
      %646 = vmatpush2.xpose.msra.mxu0 0.0
      %647 = vmatprep.subr.mxu0 0.0
      %648 = vmatpush2.xpose.msra.mxu0 0.0
      %649 = vmatprep.subr.mxu0 0.0
      %650 = vmatpush2.xpose.msra.mxu0 0.0
      %651 = vmatprep.subr.mxu0 0.0
      %652 = vmatpush2.xpose.msra.mxu0 0.0
      %653 = vmatprep.subr.mxu0 0.0
      %654 = vmatpush2.xpose.msra.mxu0 0.0
      %655 = vmatprep.subr.mxu0 0.0
      %656 = vmatpush2.xpose.msra.mxu0 0.0
      %657 = vmatprep.mubr.f32.mxu0 0.0
      %658 = vmatmul.mubr.f32.gmra.mxu0 %v589
      %v659 = vpop.f32.mrf.mxu0
      %v660 = vadd.f32 0.0, %v659
      %v661 = vpop.f32.mrf.mxu0
      %662 = vdwg.mxu0
      %v663 = vmul.f32 %v660, 0.25
      %v664 = vadd.f32 %v663, %v481
      %vm665 = vcmask 64512
      %v666 = vsel %vm665, %v664, -inf
      %667 = vmax.xlane.f32.xlu0 %v666
      %v668 = vpop.xlane.xlu0 %667
      %v669 = vsub.f32 %v664, %v668
      %v670 = vmul.f32 %v669, 1.442695
      %v671 = vpow.pop %v670
      %v672 = vsel %vm665, %v671, 0.0
      %673 = vadd.xlane.f32.xlu0 %v672
      %v674 = vpop.xlane.xlu0 %673
      %v675 = vrcp.pop %v674
      %v676 = vmul.f32 %v671, %v675
      %v678 = vsel %vm665, %v676, 0
      %680 = vmatprep.subr.mxu0 0.0
      %681 = vmatpush1.msra.mxu0 0.0
      %682 = vmatprep.subr.mxu0 0.0
      %683 = vmatpush1.msra.mxu0 0.0
      %684 = vmatprep.subr.mxu0 0.0
      %685 = vmatpush1.msra.mxu0 0.0
      %686 = vmatprep.subr.mxu0 0.0
      %687 = vmatpush1.msra.mxu0 0.0
      %688 = vmatprep.subr.mxu0 0.0
      %689 = vmatpush1.msra.mxu0 0.0
      %690 = vmatprep.subr.mxu0 0.0
      %691 = vmatpush1.msra.mxu0 0.0
      %692 = vmatprep.subr.mxu0 0.0
      %693 = vmatpush1.msra.mxu0 0.0
      %694 = vmatprep.subr.mxu0 0.0
      %695 = vmatpush1.msra.mxu0 0.0
      %696 = vmatprep.subr.mxu0 0.0
      %697 = vmatpush1.msra.mxu0 0.0
      %698 = vmatprep.subr.mxu0 0.0
      %699 = vmatpush1.msra.mxu0 0.0
      %700 = vmatprep.subr.mxu0 0.0
      %701 = vmatpush1.msra.mxu0 0.0
      %702 = vmatprep.subr.mxu0 0.0
      %703 = vmatpush1.msra.mxu0 0.0
      %704 = vmatprep.subr.mxu0 0.0
      %705 = vmatpush1.msra.mxu0 0.0
      %706 = vmatprep.subr.mxu0 0.0
      %707 = vmatpush1.msra.mxu0 0.0
      %708 = vmatprep.subr.mxu0 0.0
      %709 = vmatpush1.msra.mxu0 0.0
      %710 = vmatprep.subr.mxu0 0.0
      %711 = vmatpush1.msra.mxu0 %v583
      %712 = vmatprep.subr.mxu0 0.0
      %713 = vmatpush2.msra.mxu0 0.0
      %714 = vmatprep.subr.mxu0 0.0
      %715 = vmatpush2.msra.mxu0 0.0
      %716 = vmatprep.subr.mxu0 0.0
      %717 = vmatpush2.msra.mxu0 0.0
      %718 = vmatprep.subr.mxu0 0.0
      %719 = vmatpush2.msra.mxu0 0.0
      %720 = vmatprep.subr.mxu0 0.0
      %721 = vmatpush2.msra.mxu0 0.0
      %722 = vmatprep.subr.mxu0 0.0
      %723 = vmatpush2.msra.mxu0 0.0
      %724 = vmatprep.subr.mxu0 0.0
      %725 = vmatpush2.msra.mxu0 0.0
      %726 = vmatprep.subr.mxu0 0.0
      %727 = vmatpush2.msra.mxu0 0.0
      %728 = vmatprep.subr.mxu0 0.0
      %729 = vmatpush2.msra.mxu0 0.0
      %730 = vmatprep.subr.mxu0 0.0
      %731 = vmatpush2.msra.mxu0 0.0
      %732 = vmatprep.subr.mxu0 0.0
      %733 = vmatpush2.msra.mxu0 0.0
      %734 = vmatprep.subr.mxu0 0.0
      %735 = vmatpush2.msra.mxu0 0.0
      %736 = vmatprep.subr.mxu0 0.0
      %737 = vmatpush2.msra.mxu0 0.0
      %738 = vmatprep.subr.mxu0 0.0
      %739 = vmatpush2.msra.mxu0 0.0
      %740 = vmatprep.subr.mxu0 0.0
      %741 = vmatpush2.msra.mxu0 0.0
      %742 = vmatprep.subr.mxu0 0.0
      %743 = vmatpush2.msra.mxu0 0.0
      %744 = vmatprep.mubr.f32.mxu0 0.0
      %745 = vmatmul.mubr.f32.gmra.mxu0 %v678
      %v746 = vpop.f32.mrf.mxu0
      %v747 = vadd.f32 0.0, %v746
      %v748 = vpop.f32.mrf.mxu0
      %749 = vdwg.mxu0
      %v750 = vld [vmem:[%s4] sm:$0xff]
      %v751 = vld [vmem:[%s4 + $0x8] sm:$0xff]
      %752 = vrot.lane.b32.xlu0 %v581, 112
      %v753 = vpop.permute.xlu0 %752
      %754 = vrot.lane.b32.xlu0 %v581, 48
      %v755 = vpop.permute.xlu0 %754
      %v756 = vsel %vm588, %v753, 0
      %v758 = vsel %vm588, %v755, 0
      %760 = vmatprep.subr.mxu0 0.0
      %761 = vmatpush1.xpose.msra.mxu0 0.0
      %762 = vmatprep.subr.mxu0 0.0
      %763 = vmatpush1.xpose.msra.mxu0 0.0
      %764 = vmatprep.subr.mxu0 0.0
      %765 = vmatpush1.xpose.msra.mxu0 0.0
      %766 = vmatprep.subr.mxu0 0.0
      %767 = vmatpush1.xpose.msra.mxu0 0.0
      %768 = vmatprep.subr.mxu0 0.0
      %769 = vmatpush1.xpose.msra.mxu0 0.0
      %770 = vmatprep.subr.mxu0 0.0
      %771 = vmatpush1.xpose.msra.mxu0 0.0
      %772 = vmatprep.subr.mxu0 0.0
      %773 = vmatpush1.xpose.msra.mxu0 0.0
      %774 = vmatprep.subr.mxu0 0.0
      %775 = vmatpush1.xpose.msra.mxu0 0.0
      %776 = vmatprep.subr.mxu0 0.0
      %777 = vmatpush1.xpose.msra.mxu0 0.0
      %778 = vmatprep.subr.mxu0 0.0
      %779 = vmatpush1.xpose.msra.mxu0 0.0
      %780 = vmatprep.subr.mxu0 0.0
      %781 = vmatpush1.xpose.msra.mxu0 0.0
      %782 = vmatprep.subr.mxu0 0.0
      %783 = vmatpush1.xpose.msra.mxu0 0.0
      %784 = vmatprep.subr.mxu0 0.0
      %785 = vmatpush1.xpose.msra.mxu0 0.0
      %786 = vmatprep.subr.mxu0 0.0
      %787 = vmatpush1.xpose.msra.mxu0 0.0
      %788 = vmatprep.subr.mxu0 0.0
      %789 = vmatpush1.xpose.msra.mxu0 0.0
      %790 = vmatprep.subr.mxu0 0.0
      %791 = vmatpush1.xpose.msra.mxu0 %v758
      %792 = vmatprep.subr.mxu0 0.0
      %793 = vmatpush2.xpose.msra.mxu0 0.0
      %794 = vmatprep.subr.mxu0 0.0
      %795 = vmatpush2.xpose.msra.mxu0 0.0
      %796 = vmatprep.subr.mxu0 0.0
      %797 = vmatpush2.xpose.msra.mxu0 0.0
      %798 = vmatprep.subr.mxu0 0.0
      %799 = vmatpush2.xpose.msra.mxu0 0.0
      %800 = vmatprep.subr.mxu0 0.0
      %801 = vmatpush2.xpose.msra.mxu0 0.0
      %802 = vmatprep.subr.mxu0 0.0
      %803 = vmatpush2.xpose.msra.mxu0 0.0
      %804 = vmatprep.subr.mxu0 0.0
      %805 = vmatpush2.xpose.msra.mxu0 0.0
      %806 = vmatprep.subr.mxu0 0.0
      %807 = vmatpush2.xpose.msra.mxu0 0.0
      %808 = vmatprep.subr.mxu0 0.0
      %809 = vmatpush2.xpose.msra.mxu0 0.0
      %810 = vmatprep.subr.mxu0 0.0
      %811 = vmatpush2.xpose.msra.mxu0 0.0
      %812 = vmatprep.subr.mxu0 0.0
      %813 = vmatpush2.xpose.msra.mxu0 0.0
      %814 = vmatprep.subr.mxu0 0.0
      %815 = vmatpush2.xpose.msra.mxu0 0.0
      %816 = vmatprep.subr.mxu0 0.0
      %817 = vmatpush2.xpose.msra.mxu0 0.0
      %818 = vmatprep.subr.mxu0 0.0
      %819 = vmatpush2.xpose.msra.mxu0 0.0
      %820 = vmatprep.subr.mxu0 0.0
      %821 = vmatpush2.xpose.msra.mxu0 0.0
      %822 = vmatprep.subr.mxu0 0.0
      %823 = vmatpush2.xpose.msra.mxu0 0.0
      %824 = vmatprep.mubr.f32.mxu0 0.0
      %825 = vmatmul.mubr.f32.gmra.mxu0 %v756
      %v826 = vpop.f32.mrf.mxu0
      %v827 = vadd.f32 0.0, %v826
      %v828 = vpop.f32.mrf.mxu0
      %829 = vdwg.mxu0
      %v830 = vmul.f32 %v827, 0.25
      %v831 = vadd.f32 %v830, %v481
      %v832 = vsel %vm665, %v831, -inf
      %833 = vmax.xlane.f32.xlu0 %v832
      %v834 = vpop.xlane.xlu0 %833
      %v835 = vsub.f32 %v831, %v834
      %v836 = vmul.f32 %v835, 1.442695
      %v837 = vpow.pop %v836
      %v838 = vsel %vm665, %v837, 0.0
      %839 = vadd.xlane.f32.xlu0 %v838
      %v840 = vpop.xlane.xlu0 %839
      %v841 = vrcp.pop %v840
      %v842 = vmul.f32 %v837, %v841
      %844 = vrot.lane.b32.xlu0 %v583, 112
      %v845 = vpop.permute.xlu0 %844
      %v848 = vsel %vm665, %v842, 0
      %850 = vmatprep.subr.mxu0 0.0
      %851 = vmatpush1.msra.mxu0 0.0
      %852 = vmatprep.subr.mxu0 0.0
      %853 = vmatpush1.msra.mxu0 0.0
      %854 = vmatprep.subr.mxu0 0.0
      %855 = vmatpush1.msra.mxu0 0.0
      %856 = vmatprep.subr.mxu0 0.0
      %857 = vmatpush1.msra.mxu0 0.0
      %858 = vmatprep.subr.mxu0 0.0
      %859 = vmatpush1.msra.mxu0 0.0
      %860 = vmatprep.subr.mxu0 0.0
      %861 = vmatpush1.msra.mxu0 0.0
      %862 = vmatprep.subr.mxu0 0.0
      %863 = vmatpush1.msra.mxu0 0.0
      %864 = vmatprep.subr.mxu0 0.0
      %865 = vmatpush1.msra.mxu0 0.0
      %866 = vmatprep.subr.mxu0 0.0
      %867 = vmatpush1.msra.mxu0 0.0
      %868 = vmatprep.subr.mxu0 0.0
      %869 = vmatpush1.msra.mxu0 0.0
      %870 = vmatprep.subr.mxu0 0.0
      %871 = vmatpush1.msra.mxu0 0.0
      %872 = vmatprep.subr.mxu0 0.0
      %873 = vmatpush1.msra.mxu0 0.0
      %874 = vmatprep.subr.mxu0 0.0
      %875 = vmatpush1.msra.mxu0 0.0
      %876 = vmatprep.subr.mxu0 0.0
      %877 = vmatpush1.msra.mxu0 0.0
      %878 = vmatprep.subr.mxu0 0.0
      %879 = vmatpush1.msra.mxu0 0.0
      %880 = vmatprep.subr.mxu0 0.0
      %881 = vmatpush1.msra.mxu0 %v845
      %882 = vmatprep.subr.mxu0 0.0
      %883 = vmatpush2.msra.mxu0 0.0
      %884 = vmatprep.subr.mxu0 0.0
      %885 = vmatpush2.msra.mxu0 0.0
      %886 = vmatprep.subr.mxu0 0.0
      %887 = vmatpush2.msra.mxu0 0.0
      %888 = vmatprep.subr.mxu0 0.0
      %889 = vmatpush2.msra.mxu0 0.0
      %890 = vmatprep.subr.mxu0 0.0
      %891 = vmatpush2.msra.mxu0 0.0
      %892 = vmatprep.subr.mxu0 0.0
      %893 = vmatpush2.msra.mxu0 0.0
      %894 = vmatprep.subr.mxu0 0.0
      %895 = vmatpush2.msra.mxu0 0.0
      %896 = vmatprep.subr.mxu0 0.0
      %897 = vmatpush2.msra.mxu0 0.0
      %898 = vmatprep.subr.mxu0 0.0
      %899 = vmatpush2.msra.mxu0 0.0
      %900 = vmatprep.subr.mxu0 0.0
      %901 = vmatpush2.msra.mxu0 0.0
      %902 = vmatprep.subr.mxu0 0.0
      %903 = vmatpush2.msra.mxu0 0.0
      %904 = vmatprep.subr.mxu0 0.0
      %905 = vmatpush2.msra.mxu0 0.0
      %906 = vmatprep.subr.mxu0 0.0
      %907 = vmatpush2.msra.mxu0 0.0
      %908 = vmatprep.subr.mxu0 0.0
      %909 = vmatpush2.msra.mxu0 0.0
      %910 = vmatprep.subr.mxu0 0.0
      %911 = vmatpush2.msra.mxu0 0.0
      %912 = vmatprep.subr.mxu0 0.0
      %913 = vmatpush2.msra.mxu0 0.0
      %914 = vmatprep.mubr.f32.mxu0 0.0
      %915 = vmatmul.mubr.f32.gmra.mxu0 %v848
      %v916 = vpop.f32.mrf.mxu0
      %v917 = vadd.f32 0.0, %v916
      %v918 = vpop.f32.mrf.mxu0
      %919 = vdwg.mxu0
      %v920 = vld [vmem:[%s4 + $0x10] sm:$0xff]
      %v921 = vld [vmem:[%s4 + $0x18] sm:$0xff]
      %v923 = vsel %vm588, %v917, 0
      %925 = vmatprep.subr.mxu0 0.0
      %926 = vmatpush1.msra.mxu0 0.0
      %927 = vmatprep.subr.mxu0 0.0
      %928 = vmatpush1.msra.mxu0 0.0
      %929 = vmatprep.subr.mxu0 0.0
      %930 = vmatpush1.msra.mxu0 0.0
      %931 = vmatprep.subr.mxu0 0.0
      %932 = vmatpush1.msra.mxu0 0.0
      %933 = vmatprep.subr.mxu0 0.0
      %934 = vmatpush1.msra.mxu0 0.0
      %935 = vmatprep.subr.mxu0 0.0
      %936 = vmatpush1.msra.mxu0 0.0
      %937 = vmatprep.subr.mxu0 0.0
      %938 = vmatpush1.msra.mxu0 0.0
      %939 = vmatprep.subr.mxu0 0.0
      %940 = vmatpush1.msra.mxu0 0.0
      %941 = vmatprep.subr.mxu0 0.0
      %942 = vmatpush1.msra.mxu0 0.0
      %943 = vmatprep.subr.mxu0 0.0
      %944 = vmatpush1.msra.mxu0 0.0
      %945 = vmatprep.subr.mxu0 0.0
      %946 = vmatpush1.msra.mxu0 0.0
      %947 = vmatprep.subr.mxu0 0.0
      %948 = vmatpush1.msra.mxu0 0.0
      %949 = vmatprep.subr.mxu0 0.0
      %950 = vmatpush1.msra.mxu0 0.0
      %951 = vmatprep.subr.mxu0 0.0
      %952 = vmatpush1.msra.mxu0 0.0
      %953 = vmatprep.subr.mxu0 0.0
      %954 = vmatpush1.msra.mxu0 %v921
      %955 = vmatprep.subr.mxu0 0.0
      %956 = vmatpush1.msra.mxu0 %v920
      %957 = vmatprep.subr.mxu0 0.0
      %958 = vmatpush2.msra.mxu0 0.0
      %959 = vmatprep.subr.mxu0 0.0
      %960 = vmatpush2.msra.mxu0 0.0
      %961 = vmatprep.subr.mxu0 0.0
      %962 = vmatpush2.msra.mxu0 0.0
      %963 = vmatprep.subr.mxu0 0.0
      %964 = vmatpush2.msra.mxu0 0.0
      %965 = vmatprep.subr.mxu0 0.0
      %966 = vmatpush2.msra.mxu0 0.0
      %967 = vmatprep.subr.mxu0 0.0
      %968 = vmatpush2.msra.mxu0 0.0
      %969 = vmatprep.subr.mxu0 0.0
      %970 = vmatpush2.msra.mxu0 0.0
      %971 = vmatprep.subr.mxu0 0.0
      %972 = vmatpush2.msra.mxu0 0.0
      %973 = vmatprep.subr.mxu0 0.0
      %974 = vmatpush2.msra.mxu0 0.0
      %975 = vmatprep.subr.mxu0 0.0
      %976 = vmatpush2.msra.mxu0 0.0
      %977 = vmatprep.subr.mxu0 0.0
      %978 = vmatpush2.msra.mxu0 0.0
      %979 = vmatprep.subr.mxu0 0.0
      %980 = vmatpush2.msra.mxu0 0.0
      %981 = vmatprep.subr.mxu0 0.0
      %982 = vmatpush2.msra.mxu0 0.0
      %983 = vmatprep.subr.mxu0 0.0
      %984 = vmatpush2.msra.mxu0 0.0
      %985 = vmatprep.subr.mxu0 0.0
      %986 = vmatpush2.msra.mxu0 0.0
      %987 = vmatprep.subr.mxu0 0.0
      %988 = vmatpush2.msra.mxu0 0.0
      %989 = vmatprep.mubr.f32.mxu0 0.0
      %990 = vmatmul.mubr.f32.gmra.mxu0 %v923
      %v991 = vpop.f32.mrf.mxu0
      %v992 = vadd.f32 0.0, %v991
      %v993 = vpop.f32.mrf.mxu0
      %994 = vdwg.mxu0
      %v996 = vsel %vm588, %v747, 0
      %998 = vmatprep.subr.mxu0 0.0
      %999 = vmatpush1.msra.mxu0 0.0
      %1000 = vmatprep.subr.mxu0 0.0
      %1001 = vmatpush1.msra.mxu0 0.0
      %1002 = vmatprep.subr.mxu0 0.0
      %1003 = vmatpush1.msra.mxu0 0.0
      %1004 = vmatprep.subr.mxu0 0.0
      %1005 = vmatpush1.msra.mxu0 0.0
      %1006 = vmatprep.subr.mxu0 0.0
      %1007 = vmatpush1.msra.mxu0 0.0
      %1008 = vmatprep.subr.mxu0 0.0
      %1009 = vmatpush1.msra.mxu0 0.0
      %1010 = vmatprep.subr.mxu0 0.0
      %1011 = vmatpush1.msra.mxu0 0.0
      %1012 = vmatprep.subr.mxu0 0.0
      %1013 = vmatpush1.msra.mxu0 0.0
      %1014 = vmatprep.subr.mxu0 0.0
      %1015 = vmatpush1.msra.mxu0 0.0
      %1016 = vmatprep.subr.mxu0 0.0
      %1017 = vmatpush1.msra.mxu0 0.0
      %1018 = vmatprep.subr.mxu0 0.0
      %1019 = vmatpush1.msra.mxu0 0.0
      %1020 = vmatprep.subr.mxu0 0.0
      %1021 = vmatpush1.msra.mxu0 0.0
      %1022 = vmatprep.subr.mxu0 0.0
      %1023 = vmatpush1.msra.mxu0 0.0
      %1024 = vmatprep.subr.mxu0 0.0
      %1025 = vmatpush1.msra.mxu0 0.0
      %1026 = vmatprep.subr.mxu0 0.0
      %1027 = vmatpush1.msra.mxu0 %v751
      %1028 = vmatprep.subr.mxu0 0.0
      %1029 = vmatpush1.msra.mxu0 %v750
      %1030 = vmatprep.subr.mxu0 0.0
      %1031 = vmatpush2.msra.mxu0 0.0
      %1032 = vmatprep.subr.mxu0 0.0
      %1033 = vmatpush2.msra.mxu0 0.0
      %1034 = vmatprep.subr.mxu0 0.0
      %1035 = vmatpush2.msra.mxu0 0.0
      %1036 = vmatprep.subr.mxu0 0.0
      %1037 = vmatpush2.msra.mxu0 0.0
      %1038 = vmatprep.subr.mxu0 0.0
      %1039 = vmatpush2.msra.mxu0 0.0
      %1040 = vmatprep.subr.mxu0 0.0
      %1041 = vmatpush2.msra.mxu0 0.0
      %1042 = vmatprep.subr.mxu0 0.0
      %1043 = vmatpush2.msra.mxu0 0.0
      %1044 = vmatprep.subr.mxu0 0.0
      %1045 = vmatpush2.msra.mxu0 0.0
      %1046 = vmatprep.subr.mxu0 0.0
      %1047 = vmatpush2.msra.mxu0 0.0
      %1048 = vmatprep.subr.mxu0 0.0
      %1049 = vmatpush2.msra.mxu0 0.0
      %1050 = vmatprep.subr.mxu0 0.0
      %1051 = vmatpush2.msra.mxu0 0.0
      %1052 = vmatprep.subr.mxu0 0.0
      %1053 = vmatpush2.msra.mxu0 0.0
      %1054 = vmatprep.subr.mxu0 0.0
      %1055 = vmatpush2.msra.mxu0 0.0
      %1056 = vmatprep.subr.mxu0 0.0
      %1057 = vmatpush2.msra.mxu0 0.0
      %1058 = vmatprep.subr.mxu0 0.0
      %1059 = vmatpush2.msra.mxu0 0.0
      %1060 = vmatprep.subr.mxu0 0.0
      %1061 = vmatpush2.msra.mxu0 0.0
      %1062 = vmatprep.mubr.f32.mxu0 0.0
      %1063 = vmatmul.mubr.f32.gmra.mxu0 %v996
      %v1064 = vpop.f32.mrf.mxu0
      %v1065 = vadd.f32 %v992, %v1064
      %v1066 = vpop.f32.mrf.mxu0
      %1067 = vdwg.mxu0
      %1068 = vrot.lane.b32.xlu0 %v581, 96
      %v1069 = vpop.permute.xlu0 %1068
      %1070 = vrot.lane.b32.xlu0 %v581, 32
      %v1071 = vpop.permute.xlu0 %1070
      %v1072 = vsel %vm588, %v1069, 0
      %v1074 = vsel %vm588, %v1071, 0
      %1076 = vmatprep.subr.mxu0 0.0
      %1077 = vmatpush1.xpose.msra.mxu0 0.0
      %1078 = vmatprep.subr.mxu0 0.0
      %1079 = vmatpush1.xpose.msra.mxu0 0.0
      %1080 = vmatprep.subr.mxu0 0.0
      %1081 = vmatpush1.xpose.msra.mxu0 0.0
      %1082 = vmatprep.subr.mxu0 0.0
      %1083 = vmatpush1.xpose.msra.mxu0 0.0
      %1084 = vmatprep.subr.mxu0 0.0
      %1085 = vmatpush1.xpose.msra.mxu0 0.0
      %1086 = vmatprep.subr.mxu0 0.0
      %1087 = vmatpush1.xpose.msra.mxu0 0.0
      %1088 = vmatprep.subr.mxu0 0.0
      %1089 = vmatpush1.xpose.msra.mxu0 0.0
      %1090 = vmatprep.subr.mxu0 0.0
      %1091 = vmatpush1.xpose.msra.mxu0 0.0
      %1092 = vmatprep.subr.mxu0 0.0
      %1093 = vmatpush1.xpose.msra.mxu0 0.0
      %1094 = vmatprep.subr.mxu0 0.0
      %1095 = vmatpush1.xpose.msra.mxu0 0.0
      %1096 = vmatprep.subr.mxu0 0.0
      %1097 = vmatpush1.xpose.msra.mxu0 0.0
      %1098 = vmatprep.subr.mxu0 0.0
      %1099 = vmatpush1.xpose.msra.mxu0 0.0
      %1100 = vmatprep.subr.mxu0 0.0
      %1101 = vmatpush1.xpose.msra.mxu0 0.0
      %1102 = vmatprep.subr.mxu0 0.0
      %1103 = vmatpush1.xpose.msra.mxu0 0.0
      %1104 = vmatprep.subr.mxu0 0.0
      %1105 = vmatpush1.xpose.msra.mxu0 0.0
      %1106 = vmatprep.subr.mxu0 0.0
      %1107 = vmatpush1.xpose.msra.mxu0 %v1074
      %1108 = vmatprep.subr.mxu0 0.0
      %1109 = vmatpush2.xpose.msra.mxu0 0.0
      %1110 = vmatprep.subr.mxu0 0.0
      %1111 = vmatpush2.xpose.msra.mxu0 0.0
      %1112 = vmatprep.subr.mxu0 0.0
      %1113 = vmatpush2.xpose.msra.mxu0 0.0
      %1114 = vmatprep.subr.mxu0 0.0
      %1115 = vmatpush2.xpose.msra.mxu0 0.0
      %1116 = vmatprep.subr.mxu0 0.0
      %1117 = vmatpush2.xpose.msra.mxu0 0.0
      %1118 = vmatprep.subr.mxu0 0.0
      %1119 = vmatpush2.xpose.msra.mxu0 0.0
      %1120 = vmatprep.subr.mxu0 0.0
      %1121 = vmatpush2.xpose.msra.mxu0 0.0
      %1122 = vmatprep.subr.mxu0 0.0
      %1123 = vmatpush2.xpose.msra.mxu0 0.0
      %1124 = vmatprep.subr.mxu0 0.0
      %1125 = vmatpush2.xpose.msra.mxu0 0.0
      %1126 = vmatprep.subr.mxu0 0.0
      %1127 = vmatpush2.xpose.msra.mxu0 0.0
      %1128 = vmatprep.subr.mxu0 0.0
      %1129 = vmatpush2.xpose.msra.mxu0 0.0
      %1130 = vmatprep.subr.mxu0 0.0
      %1131 = vmatpush2.xpose.msra.mxu0 0.0
      %1132 = vmatprep.subr.mxu0 0.0
      %1133 = vmatpush2.xpose.msra.mxu0 0.0
      %1134 = vmatprep.subr.mxu0 0.0
      %1135 = vmatpush2.xpose.msra.mxu0 0.0
      %1136 = vmatprep.subr.mxu0 0.0
      %1137 = vmatpush2.xpose.msra.mxu0 0.0
      %1138 = vmatprep.subr.mxu0 0.0
      %1139 = vmatpush2.xpose.msra.mxu0 0.0
      %1140 = vmatprep.mubr.f32.mxu0 0.0
      %1141 = vmatmul.mubr.f32.gmra.mxu0 %v1072
      %v1142 = vpop.f32.mrf.mxu0
      %v1143 = vadd.f32 0.0, %v1142
      %v1144 = vpop.f32.mrf.mxu0
      %1145 = vdwg.mxu0
      %v1146 = vmul.f32 %v1143, 0.25
      %v1147 = vadd.f32 %v1146, %v481
      %v1148 = vsel %vm665, %v1147, -inf
      %1149 = vmax.xlane.f32.xlu0 %v1148
      %v1150 = vpop.xlane.xlu0 %1149
      %v1151 = vsub.f32 %v1147, %v1150
      %v1152 = vmul.f32 %v1151, 1.442695
      %v1153 = vpow.pop %v1152
      %v1154 = vsel %vm665, %v1153, 0.0
      %1155 = vadd.xlane.f32.xlu0 %v1154
      %v1156 = vpop.xlane.xlu0 %1155
      %v1157 = vrcp.pop %v1156
      %v1158 = vmul.f32 %v1153, %v1157
      %1159 = vrot.lane.b32.xlu0 %v583, 96
      %v1160 = vpop.permute.xlu0 %1159
      %v1163 = vsel %vm665, %v1158, 0
      %1165 = vmatprep.subr.mxu0 0.0
      %1166 = vmatpush1.msra.mxu0 0.0
      %1167 = vmatprep.subr.mxu0 0.0
      %1168 = vmatpush1.msra.mxu0 0.0
      %1169 = vmatprep.subr.mxu0 0.0
      %1170 = vmatpush1.msra.mxu0 0.0
      %1171 = vmatprep.subr.mxu0 0.0
      %1172 = vmatpush1.msra.mxu0 0.0
      %1173 = vmatprep.subr.mxu0 0.0
      %1174 = vmatpush1.msra.mxu0 0.0
      %1175 = vmatprep.subr.mxu0 0.0
      %1176 = vmatpush1.msra.mxu0 0.0
      %1177 = vmatprep.subr.mxu0 0.0
      %1178 = vmatpush1.msra.mxu0 0.0
      %1179 = vmatprep.subr.mxu0 0.0
      %1180 = vmatpush1.msra.mxu0 0.0
      %1181 = vmatprep.subr.mxu0 0.0
      %1182 = vmatpush1.msra.mxu0 0.0
      %1183 = vmatprep.subr.mxu0 0.0
      %1184 = vmatpush1.msra.mxu0 0.0
      %1185 = vmatprep.subr.mxu0 0.0
      %1186 = vmatpush1.msra.mxu0 0.0
      %1187 = vmatprep.subr.mxu0 0.0
      %1188 = vmatpush1.msra.mxu0 0.0
      %1189 = vmatprep.subr.mxu0 0.0
      %1190 = vmatpush1.msra.mxu0 0.0
      %1191 = vmatprep.subr.mxu0 0.0
      %1192 = vmatpush1.msra.mxu0 0.0
      %1193 = vmatprep.subr.mxu0 0.0
      %1194 = vmatpush1.msra.mxu0 0.0
      %1195 = vmatprep.subr.mxu0 0.0
      %1196 = vmatpush1.msra.mxu0 %v1160
      %1197 = vmatprep.subr.mxu0 0.0
      %1198 = vmatpush2.msra.mxu0 0.0
      %1199 = vmatprep.subr.mxu0 0.0
      %1200 = vmatpush2.msra.mxu0 0.0
      %1201 = vmatprep.subr.mxu0 0.0
      %1202 = vmatpush2.msra.mxu0 0.0
      %1203 = vmatprep.subr.mxu0 0.0
      %1204 = vmatpush2.msra.mxu0 0.0
      %1205 = vmatprep.subr.mxu0 0.0
      %1206 = vmatpush2.msra.mxu0 0.0
      %1207 = vmatprep.subr.mxu0 0.0
      %1208 = vmatpush2.msra.mxu0 0.0
      %1209 = vmatprep.subr.mxu0 0.0
      %1210 = vmatpush2.msra.mxu0 0.0
      %1211 = vmatprep.subr.mxu0 0.0
      %1212 = vmatpush2.msra.mxu0 0.0
      %1213 = vmatprep.subr.mxu0 0.0
      %1214 = vmatpush2.msra.mxu0 0.0
      %1215 = vmatprep.subr.mxu0 0.0
      %1216 = vmatpush2.msra.mxu0 0.0
      %1217 = vmatprep.subr.mxu0 0.0
      %1218 = vmatpush2.msra.mxu0 0.0
      %1219 = vmatprep.subr.mxu0 0.0
      %1220 = vmatpush2.msra.mxu0 0.0
      %1221 = vmatprep.subr.mxu0 0.0
      %1222 = vmatpush2.msra.mxu0 0.0
      %1223 = vmatprep.subr.mxu0 0.0
      %1224 = vmatpush2.msra.mxu0 0.0
      %1225 = vmatprep.subr.mxu0 0.0
      %1226 = vmatpush2.msra.mxu0 0.0
      %1227 = vmatprep.subr.mxu0 0.0
      %1228 = vmatpush2.msra.mxu0 0.0
      %1229 = vmatprep.mubr.f32.mxu0 0.0
      %1230 = vmatmul.mubr.f32.gmra.mxu0 %v1163
      %v1231 = vpop.f32.mrf.mxu0
      %v1232 = vadd.f32 0.0, %v1231
      %v1233 = vpop.f32.mrf.mxu0
      %1234 = vdwg.mxu0
      %v1235 = vld [vmem:[%s4 + $0x20] sm:$0xff]
      %v1236 = vld [vmem:[%s4 + $0x28] sm:$0xff]
      %v1238 = vsel %vm588, %v1232, 0
      %1240 = vmatprep.subr.mxu0 0.0
      %1241 = vmatpush1.msra.mxu0 0.0
      %1242 = vmatprep.subr.mxu0 0.0
      %1243 = vmatpush1.msra.mxu0 0.0
      %1244 = vmatprep.subr.mxu0 0.0
      %1245 = vmatpush1.msra.mxu0 0.0
      %1246 = vmatprep.subr.mxu0 0.0
      %1247 = vmatpush1.msra.mxu0 0.0
      %1248 = vmatprep.subr.mxu0 0.0
      %1249 = vmatpush1.msra.mxu0 0.0
      %1250 = vmatprep.subr.mxu0 0.0
      %1251 = vmatpush1.msra.mxu0 0.0
      %1252 = vmatprep.subr.mxu0 0.0
      %1253 = vmatpush1.msra.mxu0 0.0
      %1254 = vmatprep.subr.mxu0 0.0
      %1255 = vmatpush1.msra.mxu0 0.0
      %1256 = vmatprep.subr.mxu0 0.0
      %1257 = vmatpush1.msra.mxu0 0.0
      %1258 = vmatprep.subr.mxu0 0.0
      %1259 = vmatpush1.msra.mxu0 0.0
      %1260 = vmatprep.subr.mxu0 0.0
      %1261 = vmatpush1.msra.mxu0 0.0
      %1262 = vmatprep.subr.mxu0 0.0
      %1263 = vmatpush1.msra.mxu0 0.0
      %1264 = vmatprep.subr.mxu0 0.0
      %1265 = vmatpush1.msra.mxu0 0.0
      %1266 = vmatprep.subr.mxu0 0.0
      %1267 = vmatpush1.msra.mxu0 0.0
      %1268 = vmatprep.subr.mxu0 0.0
      %1269 = vmatpush1.msra.mxu0 %v1236
      %1270 = vmatprep.subr.mxu0 0.0
      %1271 = vmatpush1.msra.mxu0 %v1235
      %1272 = vmatprep.subr.mxu0 0.0
      %1273 = vmatpush2.msra.mxu0 0.0
      %1274 = vmatprep.subr.mxu0 0.0
      %1275 = vmatpush2.msra.mxu0 0.0
      %1276 = vmatprep.subr.mxu0 0.0
      %1277 = vmatpush2.msra.mxu0 0.0
      %1278 = vmatprep.subr.mxu0 0.0
      %1279 = vmatpush2.msra.mxu0 0.0
      %1280 = vmatprep.subr.mxu0 0.0
      %1281 = vmatpush2.msra.mxu0 0.0
      %1282 = vmatprep.subr.mxu0 0.0
      %1283 = vmatpush2.msra.mxu0 0.0
      %1284 = vmatprep.subr.mxu0 0.0
      %1285 = vmatpush2.msra.mxu0 0.0
      %1286 = vmatprep.subr.mxu0 0.0
      %1287 = vmatpush2.msra.mxu0 0.0
      %1288 = vmatprep.subr.mxu0 0.0
      %1289 = vmatpush2.msra.mxu0 0.0
      %1290 = vmatprep.subr.mxu0 0.0
      %1291 = vmatpush2.msra.mxu0 0.0
      %1292 = vmatprep.subr.mxu0 0.0
      %1293 = vmatpush2.msra.mxu0 0.0
      %1294 = vmatprep.subr.mxu0 0.0
      %1295 = vmatpush2.msra.mxu0 0.0
      %1296 = vmatprep.subr.mxu0 0.0
      %1297 = vmatpush2.msra.mxu0 0.0
      %1298 = vmatprep.subr.mxu0 0.0
      %1299 = vmatpush2.msra.mxu0 0.0
      %1300 = vmatprep.subr.mxu0 0.0
      %1301 = vmatpush2.msra.mxu0 0.0
      %1302 = vmatprep.subr.mxu0 0.0
      %1303 = vmatpush2.msra.mxu0 0.0
      %1304 = vmatprep.mubr.f32.mxu0 0.0
      %1305 = vmatmul.mubr.f32.gmra.mxu0 %v1238
      %v1306 = vpop.f32.mrf.mxu0
      %v1307 = vadd.f32 0.0, %v1306
      %v1308 = vpop.f32.mrf.mxu0
      %1309 = vdwg.mxu0
      %v1310 = vadd.f32 %v1065, %v1307
      %1311 = vrot.lane.b32.xlu0 %v581, 80
      %v1312 = vpop.permute.xlu0 %1311
      %1313 = vrot.lane.b32.xlu0 %v581, 16
      %v1314 = vpop.permute.xlu0 %1313
      %v1315 = vsel %vm588, %v1312, 0
      %v1317 = vsel %vm588, %v1314, 0
      %1319 = vmatprep.subr.mxu0 0.0
      %1320 = vmatpush1.xpose.msra.mxu0 0.0
      %1321 = vmatprep.subr.mxu0 0.0
      %1322 = vmatpush1.xpose.msra.mxu0 0.0
      %1323 = vmatprep.subr.mxu0 0.0
      %1324 = vmatpush1.xpose.msra.mxu0 0.0
      %1325 = vmatprep.subr.mxu0 0.0
      %1326 = vmatpush1.xpose.msra.mxu0 0.0
      %1327 = vmatprep.subr.mxu0 0.0
      %1328 = vmatpush1.xpose.msra.mxu0 0.0
      %1329 = vmatprep.subr.mxu0 0.0
      %1330 = vmatpush1.xpose.msra.mxu0 0.0
      %1331 = vmatprep.subr.mxu0 0.0
      %1332 = vmatpush1.xpose.msra.mxu0 0.0
      %1333 = vmatprep.subr.mxu0 0.0
      %1334 = vmatpush1.xpose.msra.mxu0 0.0
      %1335 = vmatprep.subr.mxu0 0.0
      %1336 = vmatpush1.xpose.msra.mxu0 0.0
      %1337 = vmatprep.subr.mxu0 0.0
      %1338 = vmatpush1.xpose.msra.mxu0 0.0
      %1339 = vmatprep.subr.mxu0 0.0
      %1340 = vmatpush1.xpose.msra.mxu0 0.0
      %1341 = vmatprep.subr.mxu0 0.0
      %1342 = vmatpush1.xpose.msra.mxu0 0.0
      %1343 = vmatprep.subr.mxu0 0.0
      %1344 = vmatpush1.xpose.msra.mxu0 0.0
      %1345 = vmatprep.subr.mxu0 0.0
      %1346 = vmatpush1.xpose.msra.mxu0 0.0
      %1347 = vmatprep.subr.mxu0 0.0
      %1348 = vmatpush1.xpose.msra.mxu0 0.0
      %1349 = vmatprep.subr.mxu0 0.0
      %1350 = vmatpush1.xpose.msra.mxu0 %v1317
      %1351 = vmatprep.subr.mxu0 0.0
      %1352 = vmatpush2.xpose.msra.mxu0 0.0
      %1353 = vmatprep.subr.mxu0 0.0
      %1354 = vmatpush2.xpose.msra.mxu0 0.0
      %1355 = vmatprep.subr.mxu0 0.0
      %1356 = vmatpush2.xpose.msra.mxu0 0.0
      %1357 = vmatprep.subr.mxu0 0.0
      %1358 = vmatpush2.xpose.msra.mxu0 0.0
      %1359 = vmatprep.subr.mxu0 0.0
      %1360 = vmatpush2.xpose.msra.mxu0 0.0
      %1361 = vmatprep.subr.mxu0 0.0
      %1362 = vmatpush2.xpose.msra.mxu0 0.0
      %1363 = vmatprep.subr.mxu0 0.0
      %1364 = vmatpush2.xpose.msra.mxu0 0.0
      %1365 = vmatprep.subr.mxu0 0.0
      %1366 = vmatpush2.xpose.msra.mxu0 0.0
      %1367 = vmatprep.subr.mxu0 0.0
      %1368 = vmatpush2.xpose.msra.mxu0 0.0
      %1369 = vmatprep.subr.mxu0 0.0
      %1370 = vmatpush2.xpose.msra.mxu0 0.0
      %1371 = vmatprep.subr.mxu0 0.0
      %1372 = vmatpush2.xpose.msra.mxu0 0.0
      %1373 = vmatprep.subr.mxu0 0.0
      %1374 = vmatpush2.xpose.msra.mxu0 0.0
      %1375 = vmatprep.subr.mxu0 0.0
      %1376 = vmatpush2.xpose.msra.mxu0 0.0
      %1377 = vmatprep.subr.mxu0 0.0
      %1378 = vmatpush2.xpose.msra.mxu0 0.0
      %1379 = vmatprep.subr.mxu0 0.0
      %1380 = vmatpush2.xpose.msra.mxu0 0.0
      %1381 = vmatprep.subr.mxu0 0.0
      %1382 = vmatpush2.xpose.msra.mxu0 0.0
      %1383 = vmatprep.mubr.f32.mxu0 0.0
      %1384 = vmatmul.mubr.f32.gmra.mxu0 %v1315
      %v1385 = vpop.f32.mrf.mxu0
      %v1386 = vadd.f32 0.0, %v1385
      %v1387 = vpop.f32.mrf.mxu0
      %1388 = vdwg.mxu0
      %v1389 = vmul.f32 %v1386, 0.25
      %v1390 = vadd.f32 %v1389, %v481
      %v1391 = vsel %vm665, %v1390, -inf
      %1392 = vmax.xlane.f32.xlu0 %v1391
      %v1393 = vpop.xlane.xlu0 %1392
      %v1394 = vsub.f32 %v1390, %v1393
      %v1395 = vmul.f32 %v1394, 1.442695
      %v1396 = vpow.pop %v1395
      %v1397 = vsel %vm665, %v1396, 0.0
      %1398 = vadd.xlane.f32.xlu0 %v1397
      %v1399 = vpop.xlane.xlu0 %1398
      %v1400 = vrcp.pop %v1399
      %v1401 = vmul.f32 %v1396, %v1400
      %1402 = vrot.lane.b32.xlu0 %v583, 80
      %v1403 = vpop.permute.xlu0 %1402
      %v1406 = vsel %vm665, %v1401, 0
      %1408 = vmatprep.subr.mxu0 0.0
      %1409 = vmatpush1.msra.mxu0 0.0
      %1410 = vmatprep.subr.mxu0 0.0
      %1411 = vmatpush1.msra.mxu0 0.0
      %1412 = vmatprep.subr.mxu0 0.0
      %1413 = vmatpush1.msra.mxu0 0.0
      %1414 = vmatprep.subr.mxu0 0.0
      %1415 = vmatpush1.msra.mxu0 0.0
      %1416 = vmatprep.subr.mxu0 0.0
      %1417 = vmatpush1.msra.mxu0 0.0
      %1418 = vmatprep.subr.mxu0 0.0
      %1419 = vmatpush1.msra.mxu0 0.0
      %1420 = vmatprep.subr.mxu0 0.0
      %1421 = vmatpush1.msra.mxu0 0.0
      %1422 = vmatprep.subr.mxu0 0.0
      %1423 = vmatpush1.msra.mxu0 0.0
      %1424 = vmatprep.subr.mxu0 0.0
      %1425 = vmatpush1.msra.mxu0 0.0
      %1426 = vmatprep.subr.mxu0 0.0
      %1427 = vmatpush1.msra.mxu0 0.0
      %1428 = vmatprep.subr.mxu0 0.0
      %1429 = vmatpush1.msra.mxu0 0.0
      %1430 = vmatprep.subr.mxu0 0.0
      %1431 = vmatpush1.msra.mxu0 0.0
      %1432 = vmatprep.subr.mxu0 0.0
      %1433 = vmatpush1.msra.mxu0 0.0
      %1434 = vmatprep.subr.mxu0 0.0
      %1435 = vmatpush1.msra.mxu0 0.0
      %1436 = vmatprep.subr.mxu0 0.0
      %1437 = vmatpush1.msra.mxu0 0.0
      %1438 = vmatprep.subr.mxu0 0.0
      %1439 = vmatpush1.msra.mxu0 %v1403
      %1440 = vmatprep.subr.mxu0 0.0
      %1441 = vmatpush2.msra.mxu0 0.0
      %1442 = vmatprep.subr.mxu0 0.0
      %1443 = vmatpush2.msra.mxu0 0.0
      %1444 = vmatprep.subr.mxu0 0.0
      %1445 = vmatpush2.msra.mxu0 0.0
      %1446 = vmatprep.subr.mxu0 0.0
      %1447 = vmatpush2.msra.mxu0 0.0
      %1448 = vmatprep.subr.mxu0 0.0
      %1449 = vmatpush2.msra.mxu0 0.0
      %1450 = vmatprep.subr.mxu0 0.0
      %1451 = vmatpush2.msra.mxu0 0.0
      %1452 = vmatprep.subr.mxu0 0.0
      %1453 = vmatpush2.msra.mxu0 0.0
      %1454 = vmatprep.subr.mxu0 0.0
      %1455 = vmatpush2.msra.mxu0 0.0
      %1456 = vmatprep.subr.mxu0 0.0
      %1457 = vmatpush2.msra.mxu0 0.0
      %1458 = vmatprep.subr.mxu0 0.0
      %1459 = vmatpush2.msra.mxu0 0.0
      %1460 = vmatprep.subr.mxu0 0.0
      %1461 = vmatpush2.msra.mxu0 0.0
      %1462 = vmatprep.subr.mxu0 0.0
      %1463 = vmatpush2.msra.mxu0 0.0
      %1464 = vmatprep.subr.mxu0 0.0
      %1465 = vmatpush2.msra.mxu0 0.0
      %1466 = vmatprep.subr.mxu0 0.0
      %1467 = vmatpush2.msra.mxu0 0.0
      %1468 = vmatprep.subr.mxu0 0.0
      %1469 = vmatpush2.msra.mxu0 0.0
      %1470 = vmatprep.subr.mxu0 0.0
      %1471 = vmatpush2.msra.mxu0 0.0
      %1472 = vmatprep.mubr.f32.mxu0 0.0
      %1473 = vmatmul.mubr.f32.gmra.mxu0 %v1406
      %v1474 = vpop.f32.mrf.mxu0
      %v1475 = vadd.f32 0.0, %v1474
      %v1476 = vpop.f32.mrf.mxu0
      %1477 = vdwg.mxu0
      %v1478 = vld [vmem:[%s4 + $0x30] sm:$0xff]
      %v1479 = vld [vmem:[%s4 + $0x38] sm:$0xff]
      %v1481 = vsel %vm588, %v1475, 0
      %1483 = vmatprep.subr.mxu0 0.0
      %1484 = vmatpush1.msra.mxu0 0.0
      %1485 = vmatprep.subr.mxu0 0.0
      %1486 = vmatpush1.msra.mxu0 0.0
      %1487 = vmatprep.subr.mxu0 0.0
      %1488 = vmatpush1.msra.mxu0 0.0
      %1489 = vmatprep.subr.mxu0 0.0
      %1490 = vmatpush1.msra.mxu0 0.0
      %1491 = vmatprep.subr.mxu0 0.0
      %1492 = vmatpush1.msra.mxu0 0.0
      %1493 = vmatprep.subr.mxu0 0.0
      %1494 = vmatpush1.msra.mxu0 0.0
      %1495 = vmatprep.subr.mxu0 0.0
      %1496 = vmatpush1.msra.mxu0 0.0
      %1497 = vmatprep.subr.mxu0 0.0
      %1498 = vmatpush1.msra.mxu0 0.0
      %1499 = vmatprep.subr.mxu0 0.0
      %1500 = vmatpush1.msra.mxu0 0.0
      %1501 = vmatprep.subr.mxu0 0.0
      %1502 = vmatpush1.msra.mxu0 0.0
      %1503 = vmatprep.subr.mxu0 0.0
      %1504 = vmatpush1.msra.mxu0 0.0
      %1505 = vmatprep.subr.mxu0 0.0
      %1506 = vmatpush1.msra.mxu0 0.0
      %1507 = vmatprep.subr.mxu0 0.0
      %1508 = vmatpush1.msra.mxu0 0.0
      %1509 = vmatprep.subr.mxu0 0.0
      %1510 = vmatpush1.msra.mxu0 0.0
      %1511 = vmatprep.subr.mxu0 0.0
      %1512 = vmatpush1.msra.mxu0 %v1479
      %1513 = vmatprep.subr.mxu0 0.0
      %1514 = vmatpush1.msra.mxu0 %v1478
      %1515 = vmatprep.subr.mxu0 0.0
      %1516 = vmatpush2.msra.mxu0 0.0
      %1517 = vmatprep.subr.mxu0 0.0
      %1518 = vmatpush2.msra.mxu0 0.0
      %1519 = vmatprep.subr.mxu0 0.0
      %1520 = vmatpush2.msra.mxu0 0.0
      %1521 = vmatprep.subr.mxu0 0.0
      %1522 = vmatpush2.msra.mxu0 0.0
      %1523 = vmatprep.subr.mxu0 0.0
      %1524 = vmatpush2.msra.mxu0 0.0
      %1525 = vmatprep.subr.mxu0 0.0
      %1526 = vmatpush2.msra.mxu0 0.0
      %1527 = vmatprep.subr.mxu0 0.0
      %1528 = vmatpush2.msra.mxu0 0.0
      %1529 = vmatprep.subr.mxu0 0.0
      %1530 = vmatpush2.msra.mxu0 0.0
      %1531 = vmatprep.subr.mxu0 0.0
      %1532 = vmatpush2.msra.mxu0 0.0
      %1533 = vmatprep.subr.mxu0 0.0
      %1534 = vmatpush2.msra.mxu0 0.0
      %1535 = vmatprep.subr.mxu0 0.0
      %1536 = vmatpush2.msra.mxu0 0.0
      %1537 = vmatprep.subr.mxu0 0.0
      %1538 = vmatpush2.msra.mxu0 0.0
      %1539 = vmatprep.subr.mxu0 0.0
      %1540 = vmatpush2.msra.mxu0 0.0
      %1541 = vmatprep.subr.mxu0 0.0
      %1542 = vmatpush2.msra.mxu0 0.0
      %1543 = vmatprep.subr.mxu0 0.0
      %1544 = vmatpush2.msra.mxu0 0.0
      %1545 = vmatprep.subr.mxu0 0.0
      %1546 = vmatpush2.msra.mxu0 0.0
      %1547 = vmatprep.mubr.f32.mxu0 0.0
      %1548 = vmatmul.mubr.f32.gmra.mxu0 %v1481
      %v1549 = vpop.f32.mrf.mxu0
      %v1550 = vadd.f32 0.0, %v1549
      %v1551 = vpop.f32.mrf.mxu0
      %1552 = vdwg.mxu0
      %v1553 = vadd.f32 %v1310, %v1550
      %v1554 = vld [vmem:[%s5] sm:$0x1]
      %v1556 = vlaneseq
      %v1557 = vshrl.u32 %v1556, 7
      %v1558 = vsub.s32 0, %v1557
      %v1559 = vrot.slane %v1554, %v1558
      %v1561 = vadd.f32 %v1553, %v1559
      %v1562 = vadd.f32 %v480, %v1561
      %v1563 = vld [vmem:[%s6] sm:$0x1]
      %v1564 = vld [vmem:[%s7] sm:$0x1]
      %v1565 = vsel %vm510, %v1562, 0.0
      %1566 = vadd.xlane.f32.xlu0 %v1565
      %v1567 = vpop.xlane.xlu0 %1566
      %v1568 = vrcp.pop 64.0
      %v1569 = vmul.f32 %v1567, %v1568
      %v1570 = vsub.f32 %v1562, %v1569
      %v1571 = vmul.f32 %v1570, %v1570
      %v1572 = vsel %vm510, %v1571, 0.0
      %1573 = vadd.xlane.f32.xlu0 %v1572
      %v1574 = vpop.xlane.xlu0 %1573
      %v1575 = vmul.f32 %v1574, %v1568
      %v1576 = vadd.f32 %v1575, 1e-05
      %v1577 = vrsqrt.pop %v1576
      %v1578 = vmul.f32 %v1570, %v1577
      %v1580 = vlaneseq
      %v1581 = vshrl.u32 %v1580, 7
      %v1582 = vsub.s32 0, %v1581
      %v1583 = vrot.slane %v1563, %v1582
      %v1585 = vmul.f32 %v1578, %v1583
      %v1587 = vlaneseq
      %v1588 = vshrl.u32 %v1587, 7
      %v1589 = vsub.s32 0, %v1588
      %v1590 = vrot.slane %v1564, %v1589
      %v1592 = vadd.f32 %v1585, %v1590
      %v1593 = vld [vmem:[%s8] sm:$0xff]
      %v1594 = vld [vmem:[%s8 + $0x8] sm:$0xff]
      %v1595 = vld [vmem:[%s8 + $0x10] sm:$0xff]
      %v1596 = vld [vmem:[%s8 + $0x18] sm:$0xff]
      %v1597 = vld [vmem:[%s8 + $0x20] sm:$0xff]
      %v1598 = vld [vmem:[%s8 + $0x28] sm:$0xff]
      %v1599 = vld [vmem:[%s8 + $0x30] sm:$0xff]
      %v1600 = vld [vmem:[%s8 + $0x38] sm:$0xff]
      %v1601 = vld [vmem:[%s9] sm:$0x1]
      %v1603 = vlaneseq
      %v1604 = vshrl.u32 %v1603, 7
      %v1605 = vsub.s32 0, %v1604
      %v1606 = vrot.slane %v1601, %v1605
      %v1609 = vsel %vm510, %v1592, 0
      %1611 = vmatprep.subr.mxu0 0.0
      %1612 = vmatpush1.msra.mxu0 0.0
      %1613 = vmatprep.subr.mxu0 0.0
      %1614 = vmatpush1.msra.mxu0 0.0
      %1615 = vmatprep.subr.mxu0 0.0
      %1616 = vmatpush1.msra.mxu0 0.0
      %1617 = vmatprep.subr.mxu0 0.0
      %1618 = vmatpush1.msra.mxu0 0.0
      %1619 = vmatprep.subr.mxu0 0.0
      %1620 = vmatpush1.msra.mxu0 0.0
      %1621 = vmatprep.subr.mxu0 0.0
      %1622 = vmatpush1.msra.mxu0 0.0
      %1623 = vmatprep.subr.mxu0 0.0
      %1624 = vmatpush1.msra.mxu0 0.0
      %1625 = vmatprep.subr.mxu0 0.0
      %1626 = vmatpush1.msra.mxu0 0.0
      %1627 = vmatprep.subr.mxu0 0.0
      %1628 = vmatpush1.msra.mxu0 %v1600
      %1629 = vmatprep.subr.mxu0 0.0
      %1630 = vmatpush1.msra.mxu0 %v1599
      %1631 = vmatprep.subr.mxu0 0.0
      %1632 = vmatpush1.msra.mxu0 %v1598
      %1633 = vmatprep.subr.mxu0 0.0
      %1634 = vmatpush1.msra.mxu0 %v1597
      %1635 = vmatprep.subr.mxu0 0.0
      %1636 = vmatpush1.msra.mxu0 %v1596
      %1637 = vmatprep.subr.mxu0 0.0
      %1638 = vmatpush1.msra.mxu0 %v1595
      %1639 = vmatprep.subr.mxu0 0.0
      %1640 = vmatpush1.msra.mxu0 %v1594
      %1641 = vmatprep.subr.mxu0 0.0
      %1642 = vmatpush1.msra.mxu0 %v1593
      %1643 = vmatprep.subr.mxu0 0.0
      %1644 = vmatpush2.msra.mxu0 0.0
      %1645 = vmatprep.subr.mxu0 0.0
      %1646 = vmatpush2.msra.mxu0 0.0
      %1647 = vmatprep.subr.mxu0 0.0
      %1648 = vmatpush2.msra.mxu0 0.0
      %1649 = vmatprep.subr.mxu0 0.0
      %1650 = vmatpush2.msra.mxu0 0.0
      %1651 = vmatprep.subr.mxu0 0.0
      %1652 = vmatpush2.msra.mxu0 0.0
      %1653 = vmatprep.subr.mxu0 0.0
      %1654 = vmatpush2.msra.mxu0 0.0
      %1655 = vmatprep.subr.mxu0 0.0
      %1656 = vmatpush2.msra.mxu0 0.0
      %1657 = vmatprep.subr.mxu0 0.0
      %1658 = vmatpush2.msra.mxu0 0.0
      %1659 = vmatprep.subr.mxu0 0.0
      %1660 = vmatpush2.msra.mxu0 0.0
      %1661 = vmatprep.subr.mxu0 0.0
      %1662 = vmatpush2.msra.mxu0 0.0
      %1663 = vmatprep.subr.mxu0 0.0
      %1664 = vmatpush2.msra.mxu0 0.0
      %1665 = vmatprep.subr.mxu0 0.0
      %1666 = vmatpush2.msra.mxu0 0.0
      %1667 = vmatprep.subr.mxu0 0.0
      %1668 = vmatpush2.msra.mxu0 0.0
      %1669 = vmatprep.subr.mxu0 0.0
      %1670 = vmatpush2.msra.mxu0 0.0
      %1671 = vmatprep.subr.mxu0 0.0
      %1672 = vmatpush2.msra.mxu0 0.0
      %1673 = vmatprep.subr.mxu0 0.0
      %1674 = vmatpush2.msra.mxu0 0.0
      %1675 = vmatprep.mubr.f32.mxu0 0.0
      %1676 = vmatmul.mubr.f32.gmra.mxu0 %v1609
      %v1677 = vpop.f32.mrf.mxu0
      %v1678 = vadd.f32 %v1606, %v1677
      %v1679 = vpop.f32.mrf.mxu0
      %1680 = vdwg.mxu0
      %v1681 = vmax.f32 %v1678, 0.0
      %v1682 = vld [vmem:[%s10] sm:$0xff]
      %v1683 = vld [vmem:[%s10 + $0x8] sm:$0xff]
      %v1684 = vld [vmem:[%s10 + $0x10] sm:$0xff]
      %v1685 = vld [vmem:[%s10 + $0x18] sm:$0xff]
      %v1686 = vld [vmem:[%s10 + $0x20] sm:$0xff]
      %v1687 = vld [vmem:[%s10 + $0x28] sm:$0xff]
      %v1688 = vld [vmem:[%s10 + $0x30] sm:$0xff]
      %v1689 = vld [vmem:[%s10 + $0x38] sm:$0xff]
      %v1690 = vld [vmem:[%s10 + $0x40] sm:$0xff]
      %v1691 = vld [vmem:[%s10 + $0x48] sm:$0xff]
      %v1692 = vld [vmem:[%s10 + $0x50] sm:$0xff]
      %v1693 = vld [vmem:[%s10 + $0x58] sm:$0xff]
      %v1694 = vld [vmem:[%s10 + $0x60] sm:$0xff]
      %v1695 = vld [vmem:[%s10 + $0x68] sm:$0xff]
      %v1696 = vld [vmem:[%s10 + $0x70] sm:$0xff]
      %v1697 = vld [vmem:[%s10 + $0x78] sm:$0xff]
      %v1698 = vld [vmem:[%s11] sm:$0x1]
      %v1700 = vlaneseq
      %v1701 = vshrl.u32 %v1700, 7
      %v1702 = vsub.s32 0, %v1701
      %v1703 = vrot.slane %v1698, %v1702
      %1705 = vmatprep.subr.mxu0 0.0
      %1706 = vmatpush1.msra.mxu0 %v1697
      %1707 = vmatprep.subr.mxu0 0.0
      %1708 = vmatpush1.msra.mxu0 %v1696
      %1709 = vmatprep.subr.mxu0 0.0
      %1710 = vmatpush1.msra.mxu0 %v1695
      %1711 = vmatprep.subr.mxu0 0.0
      %1712 = vmatpush1.msra.mxu0 %v1694
      %1713 = vmatprep.subr.mxu0 0.0
      %1714 = vmatpush1.msra.mxu0 %v1693
      %1715 = vmatprep.subr.mxu0 0.0
      %1716 = vmatpush1.msra.mxu0 %v1692
      %1717 = vmatprep.subr.mxu0 0.0
      %1718 = vmatpush1.msra.mxu0 %v1691
      %1719 = vmatprep.subr.mxu0 0.0
      %1720 = vmatpush1.msra.mxu0 %v1690
      %1721 = vmatprep.subr.mxu0 0.0
      %1722 = vmatpush1.msra.mxu0 %v1689
      %1723 = vmatprep.subr.mxu0 0.0
      %1724 = vmatpush1.msra.mxu0 %v1688
      %1725 = vmatprep.subr.mxu0 0.0
      %1726 = vmatpush1.msra.mxu0 %v1687
      %1727 = vmatprep.subr.mxu0 0.0
      %1728 = vmatpush1.msra.mxu0 %v1686
      %1729 = vmatprep.subr.mxu0 0.0
      %1730 = vmatpush1.msra.mxu0 %v1685
      %1731 = vmatprep.subr.mxu0 0.0
      %1732 = vmatpush1.msra.mxu0 %v1684
      %1733 = vmatprep.subr.mxu0 0.0
      %1734 = vmatpush1.msra.mxu0 %v1683
      %1735 = vmatprep.subr.mxu0 0.0
      %1736 = vmatpush1.msra.mxu0 %v1682
      %1737 = vmatprep.subr.mxu0 0.0
      %1738 = vmatpush2.msra.mxu0 0.0
      %1739 = vmatprep.subr.mxu0 0.0
      %1740 = vmatpush2.msra.mxu0 0.0
      %1741 = vmatprep.subr.mxu0 0.0
      %1742 = vmatpush2.msra.mxu0 0.0
      %1743 = vmatprep.subr.mxu0 0.0
      %1744 = vmatpush2.msra.mxu0 0.0
      %1745 = vmatprep.subr.mxu0 0.0
      %1746 = vmatpush2.msra.mxu0 0.0
      %1747 = vmatprep.subr.mxu0 0.0
      %1748 = vmatpush2.msra.mxu0 0.0
      %1749 = vmatprep.subr.mxu0 0.0
      %1750 = vmatpush2.msra.mxu0 0.0
      %1751 = vmatprep.subr.mxu0 0.0
      %1752 = vmatpush2.msra.mxu0 0.0
      %1753 = vmatprep.subr.mxu0 0.0
      %1754 = vmatpush2.msra.mxu0 0.0
      %1755 = vmatprep.subr.mxu0 0.0
      %1756 = vmatpush2.msra.mxu0 0.0
      %1757 = vmatprep.subr.mxu0 0.0
      %1758 = vmatpush2.msra.mxu0 0.0
      %1759 = vmatprep.subr.mxu0 0.0
      %1760 = vmatpush2.msra.mxu0 0.0
      %1761 = vmatprep.subr.mxu0 0.0
      %1762 = vmatpush2.msra.mxu0 0.0
      %1763 = vmatprep.subr.mxu0 0.0
      %1764 = vmatpush2.msra.mxu0 0.0
      %1765 = vmatprep.subr.mxu0 0.0
      %1766 = vmatpush2.msra.mxu0 0.0
      %1767 = vmatprep.subr.mxu0 0.0
      %1768 = vmatpush2.msra.mxu0 0.0
      %1769 = vmatprep.mubr.f32.mxu0 0.0
      %1770 = vmatmul.mubr.f32.gmra.mxu0 %v1681
      %v1771 = vpop.f32.mrf.mxu0
      %v1772 = vadd.f32 %v1703, %v1771
      %v1773 = vpop.f32.mrf.mxu0
      %1774 = vdwg.mxu0
      %v1775 = vadd.f32 %v1592, %v1772
      %v1776 = vld [vmem:[%s12] sm:$0x1]
      %v1777 = vld [vmem:[%s13] sm:$0x1]
      %v1778 = vsel %vm510, %v1775, 0.0
      %1779 = vadd.xlane.f32.xlu0 %v1778
      %v1780 = vpop.xlane.xlu0 %1779
      %v1781 = vmul.f32 %v1780, %v1568
      %v1782 = vsub.f32 %v1775, %v1781
      %v1783 = vmul.f32 %v1782, %v1782
      %v1784 = vsel %vm510, %v1783, 0.0
      %1785 = vadd.xlane.f32.xlu0 %v1784
      %v1786 = vpop.xlane.xlu0 %1785
      %v1787 = vmul.f32 %v1786, %v1568
      %v1788 = vadd.f32 %v1787, 1e-05
      %v1789 = vrsqrt.pop %v1788
      %v1790 = vmul.f32 %v1782, %v1789
      %v1792 = vlaneseq
      %v1793 = vshrl.u32 %v1792, 7
      %v1794 = vsub.s32 0, %v1793
      %v1795 = vrot.slane %v1776, %v1794
      %v1797 = vmul.f32 %v1790, %v1795
      %v1799 = vlaneseq
      %v1800 = vshrl.u32 %v1799, 7
      %v1801 = vsub.s32 0, %v1800
      %v1802 = vrot.slane %v1777, %v1801
      %v1804 = vadd.f32 %v1797, %v1802
      %1805 = vst.msk [vmem:[%s479] sm:$0xff] %vm510, %v1804
      %p1806 = scmp.lt.s32.totalorder %s25, 1
      %s1807 = scalar_select %p1806, %s25, 1
      %s1808 = smul.addr %s1807, 8
      %s1809 = scalar_lea.vmem %s14, %s1808
      // Predicated region
      $region77: #{trans_model_forward.5} parent=75 // pred_check
        %p1810 = pneg %p347
      $region78: #{trans_model_forward.5} parent=75 // pred_check_branch
        %1812 = sbr.rel (%p1810) target = $region80
      $region79: #{trans_model_forward.5} parent=75 // pred_region
        _
      $region80: #{trans_model_forward.5} parent=75 // pred_fallthru
        _
    $region76: #{trans_model_forward.5} parent=5 // pred_fallthru
      _
    %p1813 = scmp.le.s32.totalorder 2, %s20
    // Predicated region
    $region81: #{trans_model_forward.5} parent=5 // pred_check
      %p1814 = pneg %p1813
    $region82: #{trans_model_forward.5} parent=5 // pred_check_branch
      %1816 = sbr.rel (%p1814) target = $region84
    $region83: #{trans_model_forward.5} parent=5 // pred_region
      %s1817 = ssub.s32 %s20, 2
      // Predicated region
      $region85: #{trans_model_forward.5} parent=83 // pred_check
        %p1818 = pneg %p353
      $region86: #{trans_model_forward.5} parent=83 // pred_check_branch
        %1820 = sbr.rel (%p1818) target = $region88
      $region87: #{trans_model_forward.5} parent=83 // pred_region
        %p1821 = scmp.lt.s32.totalorder %s26, 1
        %s1822 = scalar_select %p1821, %s26, 1
        %s1823 = smul.addr %s1822, 8
        %s1824 = scalar_lea.vmem %s14, %s1823
      $region88: #{trans_model_forward.5} parent=83 // pred_fallthru
        _
    $region84: #{trans_model_forward.5} parent=5 // pred_fallthru
      _
  $region6: #{trans_model_forward.5} parent=0 // loop_footer
    %s24 = sadd.s32 1, %s20
  $region7: #{trans_model_forward.5} parent=0 // loop_footer_branch
    %19 = sbr.rel target = $region3
  $region8: #{trans_model_forward.5} parent=0 // loop_exit
    _

// kernel: trans_model_forward.8
$region0: #{trans_model_forward.8}
  #allocation0 [shape = 'u32[]', space=smem, size = 0x4, offset = 0x4, fixed_abs, tag = 'smem constant byte address 0x4 - core index']
  #allocation1 [shape = 'u32[144,128]{1,0:T(1,128)}', space=vmem, size = 0x12000, scoped, tag = 'internal scratch']
  %s0 = inlined_call_operand.vmem [shape: f32[2,8,64], index: 0, kind: input, shape index: {}]
  %s1 = inlined_call_operand.vmem [shape: f32[2,8,64], index: 1, kind: input, shape index: {}]
  %s2 = inlined_call_operand.vmem [shape: f32[2,8,8], index: 2, kind: input, shape index: {}]
  %s3 = inlined_call_operand.vmem [shape: f32[2,8,8], index: 3, kind: input, shape index: {}]
  %s4 = inlined_call_operand.vmem [shape: f32[64,192], index: 4, kind: input, shape index: {}]
  %s5 = inlined_call_operand.vmem [shape: f32[1,192], index: 5, kind: input, shape index: {}]
  %s6 = inlined_call_operand.vmem [shape: f32[64,64], index: 6, kind: input, shape index: {}]
  %s7 = inlined_call_operand.vmem [shape: f32[1,64], index: 7, kind: input, shape index: {}]
  %s8 = inlined_call_operand.vmem [shape: f32[64,64], index: 8, kind: input, shape index: {}]
  %s9 = inlined_call_operand.vmem [shape: f32[1,64], index: 9, kind: input, shape index: {}]
  %s10 = inlined_call_operand.vmem [shape: f32[64,128], index: 10, kind: input, shape index: {}]
  %s11 = inlined_call_operand.vmem [shape: f32[1,128], index: 11, kind: input, shape index: {}]
  %s12 = inlined_call_operand.vmem [shape: f32[64,64], index: 12, kind: input, shape index: {}]
  %s13 = inlined_call_operand.vmem [shape: f32[1,64], index: 13, kind: input, shape index: {}]
  %s14 = inlined_call_operand.vmem [shape: f32[64,128], index: 14, kind: input, shape index: {}]
  %s15 = inlined_call_operand.vmem [shape: f32[1,128], index: 15, kind: input, shape index: {}]
  %s16 = inlined_call_operand.vmem [shape: f32[128,64], index: 16, kind: input, shape index: {}]
  %s17 = inlined_call_operand.vmem [shape: f32[1,64], index: 17, kind: input, shape index: {}]
  %s18 = inlined_call_operand.vmem [shape: f32[1,64], index: 18, kind: input, shape index: {}]
  %s19 = inlined_call_operand.vmem [shape: f32[1,64], index: 19, kind: input, shape index: {}]
  %s20 = inlined_call_operand.vmem [shape: f32[1,64], index: 20, kind: input, shape index: {}]
  %s21 = inlined_call_operand.vmem [shape: f32[1,64], index: 21, kind: input, shape index: {}]
  %s22 = inlined_call_operand.vmem [shape: f32[1,64], index: 22, kind: input, shape index: {}]
  %s23 = inlined_call_operand.hbm [shape: f32[1,64], index: 23, kind: input, shape index: {}]
  %s24 = inlined_call_operand.vmem [shape: f32[2,8,64], index: 24, kind: output, shape index: {}]
  %s25 = sld [smem:[#allocation0]]
  $region133: #{trans_model_forward.8} parent=0
    _
  %s27 = ssub.s32 1, %s25
  %s28 = scalar_select 0, %s27, %s25
  $region1: #{trans_model_forward.8} parent=0
    #allocation2 [shape = 'u8[512]{0}', space=vmem, size = 0x400, scoped, tag = 'input window, operand 23, single buffered']
    #allocation3 [shape = 's32[2]{0}', space=sflag, size = 0x8, scoped, tag = 'scoped memory for trans_model_forward.8']
    %29 = vsyncpa [#allocation3], 0
    loop: start=0, step=1, limit=4
    $region2: #{trans_model_forward.8} parent=1 // loop_pre_header
      _
    $region3: #{trans_model_forward.8} parent=1 // loop_header
      %s31 = sphi 0, %s35
      %p32 = scmp.ge.s32.totalorder %s31, 4
      %s41 = sphi 0, %s43
      %s44 = sphi 0, %s41
      %s45 = sphi 0, %s44
      %s61 = sphi 0, %s45
      %s67 = sphi 0, %s69
      %s70 = sphi 0, %s67
      %s71 = sphi 0, %s70
      %s87 = sphi 0, %s71
      %s93 = sphi 0, %s95
      %s96 = sphi 0, %s93
      %s97 = sphi 0, %s96
      %s113 = sphi 0, %s97
      %s119 = sphi 0, %s121
      %s122 = sphi 0, %s119
      %s123 = sphi 0, %s122
      %s139 = sphi 0, %s123
      %s143 = sphi 0, %s143
      %s145 = sphi 0, %s143
      %s146 = sphi 0, %s145
      %s160 = sphi 0, %s146
      %s164 = sphi 0, %s164
      %s166 = sphi 0, %s164
      %s167 = sphi 0, %s166
      %s181 = sphi 0, %s167
      %s185 = sphi 0, %s185
      %s187 = sphi 0, %s185
      %s188 = sphi 0, %s187
      %s202 = sphi 0, %s188
      %s206 = sphi 0, %s206
      %s208 = sphi 0, %s206
      %s209 = sphi 0, %s208
      %s223 = sphi 0, %s209
      %s227 = sphi 0, %s227
      %s229 = sphi 0, %s227
      %s230 = sphi 0, %s229
      %s244 = sphi 0, %s230
      %s248 = sphi 0, %s248
      %s250 = sphi 0, %s248
      %s251 = sphi 0, %s250
      %s265 = sphi 0, %s251
      %s269 = sphi 0, %s269
      %s271 = sphi 0, %s269
      %s272 = sphi 0, %s271
      %s286 = sphi 0, %s272
      %s290 = sphi 0, %s290
      %s292 = sphi 0, %s290
      %s293 = sphi 0, %s292
      %s307 = sphi 0, %s293
      %s311 = sphi 0, %s311
      %s313 = sphi 0, %s311
      %s314 = sphi 0, %s313
      %s328 = sphi 0, %s314
      %s332 = sphi 0, %s332
      %s334 = sphi 0, %s332
      %s335 = sphi 0, %s334
      %s349 = sphi 0, %s335
      %s353 = sphi 0, %s353
      %s355 = sphi 0, %s353
      %s356 = sphi 0, %s355
      %s370 = sphi 0, %s356
      %s374 = sphi 0, %s374
      %s376 = sphi 0, %s374
      %s377 = sphi 0, %s376
      %s391 = sphi 0, %s377
      %s395 = sphi 0, %s395
      %s397 = sphi 0, %s395
      %s398 = sphi 0, %s397
      %s412 = sphi 0, %s398
      %s416 = sphi 0, %s416
      %s418 = sphi 0, %s416
      %s419 = sphi 0, %s418
      %s433 = sphi 0, %s419
      %s437 = sphi 0, %s437
      %s439 = sphi 0, %s437
      %s440 = sphi 0, %s439
      %s454 = sphi 0, %s440
      %s458 = sphi 0, %s458
      %s460 = sphi 0, %s458
      %s461 = sphi 0, %s460
      %s475 = sphi 0, %s461
      %s479 = sphi 0, %s479
      %s481 = sphi 0, %s479
      %s482 = sphi 0, %s481
      %s496 = sphi 0, %s482
      %s500 = sphi 0, %s500
      %s502 = sphi 0, %s500
      %s503 = sphi 0, %s502
      %s517 = sphi 0, %s503
      %s521 = sphi 0, %s521
      %s523 = sphi 0, %s521
      %s524 = sphi 0, %s523
      %s538 = sphi 0, %s524
      %s542 = sphi 0, %s542
      %s544 = sphi 0, %s542
      %s545 = sphi 0, %s544
      %s559 = sphi 0, %s545
      %s565 = sphi 0, %s567
      %s568 = sphi 0, %s565
      %s569 = sphi 0, %s568
      %s585 = sphi 0, %s569
    $region4: #{trans_model_forward.8} parent=1 // loop_header_branch
      %34 = sbr.rel (%p32) target = $region8
    $region5: #{trans_model_forward.8} parent=1 // loop_body
      %s36 = ssub.s32 %s31, 1
      %s37 = ssub.s32 %s31, 2
      %s38 = sadd.s32 %s31, 1
      %s39 = ssub.s32 %s31, %s38
      %p40 = scmp.eq.s32.totalorder %s39, 0
      %s42 = sadd.s32 %s41, 1
      %s43 = scalar_select %p40, %s41, %s42
      %p46 = pneg %p40
      %p47 = scmp.eq.s32.totalorder %s31, 1
      %p48 = por %p46, %p47
      %p49 = scmp.ne.s32.totalorder %s41, %s44
      %p50 = scmp.eq.s32.totalorder %s31, 0
      %p51 = por %p49, %p50
      %p52 = scmp.ne.s32.totalorder %s41, %s44
      %p53 = scmp.eq.s32.totalorder %s36, 1
      %p54 = por %p52, %p53
      %p55 = scmp.ne.s32.totalorder %s44, %s45
      %p56 = scmp.eq.s32.totalorder %s36, 0
      %p57 = por %p55, %p56
      %p58 = scmp.ne.s32.totalorder %s44, %s45
      %p59 = scmp.eq.s32.totalorder %s37, 1
      %p60 = por %p58, %p59
      %p62 = scmp.ne.s32.totalorder %s45, %s61
      %p63 = scmp.eq.s32.totalorder %s37, 0
      %p64 = por %p62, %p63
      %s65 = ssub.s32 %s31, %s38
      %p66 = scmp.eq.s32.totalorder %s65, 0
      %s68 = sadd.s32 %s67, 1
      %s69 = scalar_select %p66, %s67, %s68
      %p72 = pneg %p66
      %p73 = scmp.eq.s32.totalorder %s31, 1
      %p74 = por %p72, %p73
      %p75 = scmp.ne.s32.totalorder %s67, %s70
      %p76 = scmp.eq.s32.totalorder %s31, 0
      %p77 = por %p75, %p76
      %p78 = scmp.ne.s32.totalorder %s67, %s70
      %p79 = scmp.eq.s32.totalorder %s36, 1
      %p80 = por %p78, %p79
      %p81 = scmp.ne.s32.totalorder %s70, %s71
      %p82 = scmp.eq.s32.totalorder %s36, 0
      %p83 = por %p81, %p82
      %p84 = scmp.ne.s32.totalorder %s70, %s71
      %p85 = scmp.eq.s32.totalorder %s37, 1
      %p86 = por %p84, %p85
      %p88 = scmp.ne.s32.totalorder %s71, %s87
      %p89 = scmp.eq.s32.totalorder %s37, 0
      %p90 = por %p88, %p89
      %s91 = ssub.s32 %s31, %s38
      %p92 = scmp.eq.s32.totalorder %s91, 0
      %s94 = sadd.s32 %s93, 1
      %s95 = scalar_select %p92, %s93, %s94
      %p98 = pneg %p92
      %p99 = scmp.eq.s32.totalorder %s31, 1
      %p100 = por %p98, %p99
      %p101 = scmp.ne.s32.totalorder %s93, %s96
      %p102 = scmp.eq.s32.totalorder %s31, 0
      %p103 = por %p101, %p102
      %p104 = scmp.ne.s32.totalorder %s93, %s96
      %p105 = scmp.eq.s32.totalorder %s36, 1
      %p106 = por %p104, %p105
      %p107 = scmp.ne.s32.totalorder %s96, %s97
      %p108 = scmp.eq.s32.totalorder %s36, 0
      %p109 = por %p107, %p108
      %p110 = scmp.ne.s32.totalorder %s96, %s97
      %p111 = scmp.eq.s32.totalorder %s37, 1
      %p112 = por %p110, %p111
      %p114 = scmp.ne.s32.totalorder %s97, %s113
      %p115 = scmp.eq.s32.totalorder %s37, 0
      %p116 = por %p114, %p115
      %s117 = ssub.s32 %s31, %s38
      %p118 = scmp.eq.s32.totalorder %s117, 0
      %s120 = sadd.s32 %s119, 1
      %s121 = scalar_select %p118, %s119, %s120
      %p124 = pneg %p118
      %p125 = scmp.eq.s32.totalorder %s31, 1
      %p126 = por %p124, %p125
      %p127 = scmp.ne.s32.totalorder %s119, %s122
      %p128 = scmp.eq.s32.totalorder %s31, 0
      %p129 = por %p127, %p128
      %p130 = scmp.ne.s32.totalorder %s119, %s122
      %p131 = scmp.eq.s32.totalorder %s36, 1
      %p132 = por %p130, %p131
      %p133 = scmp.ne.s32.totalorder %s122, %s123
      %p134 = scmp.eq.s32.totalorder %s36, 0
      %p135 = por %p133, %p134
      %p136 = scmp.ne.s32.totalorder %s122, %s123
      %p137 = scmp.eq.s32.totalorder %s37, 1
      %p138 = por %p136, %p137
      %p140 = scmp.ne.s32.totalorder %s123, %s139
      %p141 = scmp.eq.s32.totalorder %s37, 0
      %p142 = por %p140, %p141
      %s144 = sadd.s32 %s143, 1
      %p147 = scmp.eq.s32.totalorder %s31, 1
      %p148 = scmp.ne.s32.totalorder %s143, %s145
      %p149 = scmp.eq.s32.totalorder %s31, 0
      %p150 = por %p148, %p149
      %p151 = scmp.ne.s32.totalorder %s143, %s145
      %p152 = scmp.eq.s32.totalorder %s36, 1
      %p153 = por %p151, %p152
      %p154 = scmp.ne.s32.totalorder %s145, %s146
      %p155 = scmp.eq.s32.totalorder %s36, 0
      %p156 = por %p154, %p155
      %p157 = scmp.ne.s32.totalorder %s145, %s146
      %p158 = scmp.eq.s32.totalorder %s37, 1
      %p159 = por %p157, %p158
      %p161 = scmp.ne.s32.totalorder %s146, %s160
      %p162 = scmp.eq.s32.totalorder %s37, 0
      %p163 = por %p161, %p162
      %s165 = sadd.s32 %s164, 1
      %p168 = scmp.eq.s32.totalorder %s31, 1
      %p169 = scmp.ne.s32.totalorder %s164, %s166
      %p170 = scmp.eq.s32.totalorder %s31, 0
      %p171 = por %p169, %p170
      %p172 = scmp.ne.s32.totalorder %s164, %s166
      %p173 = scmp.eq.s32.totalorder %s36, 1
      %p174 = por %p172, %p173
      %p175 = scmp.ne.s32.totalorder %s166, %s167
      %p176 = scmp.eq.s32.totalorder %s36, 0
      %p177 = por %p175, %p176
      %p178 = scmp.ne.s32.totalorder %s166, %s167
      %p179 = scmp.eq.s32.totalorder %s37, 1
      %p180 = por %p178, %p179
      %p182 = scmp.ne.s32.totalorder %s167, %s181
      %p183 = scmp.eq.s32.totalorder %s37, 0
      %p184 = por %p182, %p183
      %s186 = sadd.s32 %s185, 1
      %p189 = scmp.eq.s32.totalorder %s31, 1
      %p190 = scmp.ne.s32.totalorder %s185, %s187
      %p191 = scmp.eq.s32.totalorder %s31, 0
      %p192 = por %p190, %p191
      %p193 = scmp.ne.s32.totalorder %s185, %s187
      %p194 = scmp.eq.s32.totalorder %s36, 1
      %p195 = por %p193, %p194
      %p196 = scmp.ne.s32.totalorder %s187, %s188
      %p197 = scmp.eq.s32.totalorder %s36, 0
      %p198 = por %p196, %p197
      %p199 = scmp.ne.s32.totalorder %s187, %s188
      %p200 = scmp.eq.s32.totalorder %s37, 1
      %p201 = por %p199, %p200
      %p203 = scmp.ne.s32.totalorder %s188, %s202
      %p204 = scmp.eq.s32.totalorder %s37, 0
      %p205 = por %p203, %p204
      %s207 = sadd.s32 %s206, 1
      %p210 = scmp.eq.s32.totalorder %s31, 1
      %p211 = scmp.ne.s32.totalorder %s206, %s208
      %p212 = scmp.eq.s32.totalorder %s31, 0
      %p213 = por %p211, %p212
      %p214 = scmp.ne.s32.totalorder %s206, %s208
      %p215 = scmp.eq.s32.totalorder %s36, 1
      %p216 = por %p214, %p215
      %p217 = scmp.ne.s32.totalorder %s208, %s209
      %p218 = scmp.eq.s32.totalorder %s36, 0
      %p219 = por %p217, %p218
      %p220 = scmp.ne.s32.totalorder %s208, %s209
      %p221 = scmp.eq.s32.totalorder %s37, 1
      %p222 = por %p220, %p221
      %p224 = scmp.ne.s32.totalorder %s209, %s223
      %p225 = scmp.eq.s32.totalorder %s37, 0
      %p226 = por %p224, %p225
      %s228 = sadd.s32 %s227, 1
      %p231 = scmp.eq.s32.totalorder %s31, 1
      %p232 = scmp.ne.s32.totalorder %s227, %s229
      %p233 = scmp.eq.s32.totalorder %s31, 0
      %p234 = por %p232, %p233
      %p235 = scmp.ne.s32.totalorder %s227, %s229
      %p236 = scmp.eq.s32.totalorder %s36, 1
      %p237 = por %p235, %p236
      %p238 = scmp.ne.s32.totalorder %s229, %s230
      %p239 = scmp.eq.s32.totalorder %s36, 0
      %p240 = por %p238, %p239
      %p241 = scmp.ne.s32.totalorder %s229, %s230
      %p242 = scmp.eq.s32.totalorder %s37, 1
      %p243 = por %p241, %p242
      %p245 = scmp.ne.s32.totalorder %s230, %s244
      %p246 = scmp.eq.s32.totalorder %s37, 0
      %p247 = por %p245, %p246
      %s249 = sadd.s32 %s248, 1
      %p252 = scmp.eq.s32.totalorder %s31, 1
      %p253 = scmp.ne.s32.totalorder %s248, %s250
      %p254 = scmp.eq.s32.totalorder %s31, 0
      %p255 = por %p253, %p254
      %p256 = scmp.ne.s32.totalorder %s248, %s250
      %p257 = scmp.eq.s32.totalorder %s36, 1
      %p258 = por %p256, %p257
      %p259 = scmp.ne.s32.totalorder %s250, %s251
      %p260 = scmp.eq.s32.totalorder %s36, 0
      %p261 = por %p259, %p260
      %p262 = scmp.ne.s32.totalorder %s250, %s251
      %p263 = scmp.eq.s32.totalorder %s37, 1
      %p264 = por %p262, %p263
      %p266 = scmp.ne.s32.totalorder %s251, %s265
      %p267 = scmp.eq.s32.totalorder %s37, 0
      %p268 = por %p266, %p267
      %s270 = sadd.s32 %s269, 1
      %p273 = scmp.eq.s32.totalorder %s31, 1
      %p274 = scmp.ne.s32.totalorder %s269, %s271
      %p275 = scmp.eq.s32.totalorder %s31, 0
      %p276 = por %p274, %p275
      %p277 = scmp.ne.s32.totalorder %s269, %s271
      %p278 = scmp.eq.s32.totalorder %s36, 1
      %p279 = por %p277, %p278
      %p280 = scmp.ne.s32.totalorder %s271, %s272
      %p281 = scmp.eq.s32.totalorder %s36, 0
      %p282 = por %p280, %p281
      %p283 = scmp.ne.s32.totalorder %s271, %s272
      %p284 = scmp.eq.s32.totalorder %s37, 1
      %p285 = por %p283, %p284
      %p287 = scmp.ne.s32.totalorder %s272, %s286
      %p288 = scmp.eq.s32.totalorder %s37, 0
      %p289 = por %p287, %p288
      %s291 = sadd.s32 %s290, 1
      %p294 = scmp.eq.s32.totalorder %s31, 1
      %p295 = scmp.ne.s32.totalorder %s290, %s292
      %p296 = scmp.eq.s32.totalorder %s31, 0
      %p297 = por %p295, %p296
      %p298 = scmp.ne.s32.totalorder %s290, %s292
      %p299 = scmp.eq.s32.totalorder %s36, 1
      %p300 = por %p298, %p299
      %p301 = scmp.ne.s32.totalorder %s292, %s293
      %p302 = scmp.eq.s32.totalorder %s36, 0
      %p303 = por %p301, %p302
      %p304 = scmp.ne.s32.totalorder %s292, %s293
      %p305 = scmp.eq.s32.totalorder %s37, 1
      %p306 = por %p304, %p305
      %p308 = scmp.ne.s32.totalorder %s293, %s307
      %p309 = scmp.eq.s32.totalorder %s37, 0
      %p310 = por %p308, %p309
      %s312 = sadd.s32 %s311, 1
      %p315 = scmp.eq.s32.totalorder %s31, 1
      %p316 = scmp.ne.s32.totalorder %s311, %s313
      %p317 = scmp.eq.s32.totalorder %s31, 0
      %p318 = por %p316, %p317
      %p319 = scmp.ne.s32.totalorder %s311, %s313
      %p320 = scmp.eq.s32.totalorder %s36, 1
      %p321 = por %p319, %p320
      %p322 = scmp.ne.s32.totalorder %s313, %s314
      %p323 = scmp.eq.s32.totalorder %s36, 0
      %p324 = por %p322, %p323
      %p325 = scmp.ne.s32.totalorder %s313, %s314
      %p326 = scmp.eq.s32.totalorder %s37, 1
      %p327 = por %p325, %p326
      %p329 = scmp.ne.s32.totalorder %s314, %s328
      %p330 = scmp.eq.s32.totalorder %s37, 0
      %p331 = por %p329, %p330
      %s333 = sadd.s32 %s332, 1
      %p336 = scmp.eq.s32.totalorder %s31, 1
      %p337 = scmp.ne.s32.totalorder %s332, %s334
      %p338 = scmp.eq.s32.totalorder %s31, 0
      %p339 = por %p337, %p338
      %p340 = scmp.ne.s32.totalorder %s332, %s334
      %p341 = scmp.eq.s32.totalorder %s36, 1
      %p342 = por %p340, %p341
      %p343 = scmp.ne.s32.totalorder %s334, %s335
      %p344 = scmp.eq.s32.totalorder %s36, 0
      %p345 = por %p343, %p344
      %p346 = scmp.ne.s32.totalorder %s334, %s335
      %p347 = scmp.eq.s32.totalorder %s37, 1
      %p348 = por %p346, %p347
      %p350 = scmp.ne.s32.totalorder %s335, %s349
      %p351 = scmp.eq.s32.totalorder %s37, 0
      %p352 = por %p350, %p351
      %s354 = sadd.s32 %s353, 1
      %p357 = scmp.eq.s32.totalorder %s31, 1
      %p358 = scmp.ne.s32.totalorder %s353, %s355
      %p359 = scmp.eq.s32.totalorder %s31, 0
      %p360 = por %p358, %p359
      %p361 = scmp.ne.s32.totalorder %s353, %s355
      %p362 = scmp.eq.s32.totalorder %s36, 1
      %p363 = por %p361, %p362
      %p364 = scmp.ne.s32.totalorder %s355, %s356
      %p365 = scmp.eq.s32.totalorder %s36, 0
      %p366 = por %p364, %p365
      %p367 = scmp.ne.s32.totalorder %s355, %s356
      %p368 = scmp.eq.s32.totalorder %s37, 1
      %p369 = por %p367, %p368
      %p371 = scmp.ne.s32.totalorder %s356, %s370
      %p372 = scmp.eq.s32.totalorder %s37, 0
      %p373 = por %p371, %p372
      %s375 = sadd.s32 %s374, 1
      %p378 = scmp.eq.s32.totalorder %s31, 1
      %p379 = scmp.ne.s32.totalorder %s374, %s376
      %p380 = scmp.eq.s32.totalorder %s31, 0
      %p381 = por %p379, %p380
      %p382 = scmp.ne.s32.totalorder %s374, %s376
      %p383 = scmp.eq.s32.totalorder %s36, 1
      %p384 = por %p382, %p383
      %p385 = scmp.ne.s32.totalorder %s376, %s377
      %p386 = scmp.eq.s32.totalorder %s36, 0
      %p387 = por %p385, %p386
      %p388 = scmp.ne.s32.totalorder %s376, %s377
      %p389 = scmp.eq.s32.totalorder %s37, 1
      %p390 = por %p388, %p389
      %p392 = scmp.ne.s32.totalorder %s377, %s391
      %p393 = scmp.eq.s32.totalorder %s37, 0
      %p394 = por %p392, %p393
      %s396 = sadd.s32 %s395, 1
      %p399 = scmp.eq.s32.totalorder %s31, 1
      %p400 = scmp.ne.s32.totalorder %s395, %s397
      %p401 = scmp.eq.s32.totalorder %s31, 0
      %p402 = por %p400, %p401
      %p403 = scmp.ne.s32.totalorder %s395, %s397
      %p404 = scmp.eq.s32.totalorder %s36, 1
      %p405 = por %p403, %p404
      %p406 = scmp.ne.s32.totalorder %s397, %s398
      %p407 = scmp.eq.s32.totalorder %s36, 0
      %p408 = por %p406, %p407
      %p409 = scmp.ne.s32.totalorder %s397, %s398
      %p410 = scmp.eq.s32.totalorder %s37, 1
      %p411 = por %p409, %p410
      %p413 = scmp.ne.s32.totalorder %s398, %s412
      %p414 = scmp.eq.s32.totalorder %s37, 0
      %p415 = por %p413, %p414
      %s417 = sadd.s32 %s416, 1
      %p420 = scmp.eq.s32.totalorder %s31, 1
      %p421 = scmp.ne.s32.totalorder %s416, %s418
      %p422 = scmp.eq.s32.totalorder %s31, 0
      %p423 = por %p421, %p422
      %p424 = scmp.ne.s32.totalorder %s416, %s418
      %p425 = scmp.eq.s32.totalorder %s36, 1
      %p426 = por %p424, %p425
      %p427 = scmp.ne.s32.totalorder %s418, %s419
      %p428 = scmp.eq.s32.totalorder %s36, 0
      %p429 = por %p427, %p428
      %p430 = scmp.ne.s32.totalorder %s418, %s419
      %p431 = scmp.eq.s32.totalorder %s37, 1
      %p432 = por %p430, %p431
      %p434 = scmp.ne.s32.totalorder %s419, %s433
      %p435 = scmp.eq.s32.totalorder %s37, 0
      %p436 = por %p434, %p435
      %s438 = sadd.s32 %s437, 1
      %p441 = scmp.eq.s32.totalorder %s31, 1
      %p442 = scmp.ne.s32.totalorder %s437, %s439
      %p443 = scmp.eq.s32.totalorder %s31, 0
      %p444 = por %p442, %p443
      %p445 = scmp.ne.s32.totalorder %s437, %s439
      %p446 = scmp.eq.s32.totalorder %s36, 1
      %p447 = por %p445, %p446
      %p448 = scmp.ne.s32.totalorder %s439, %s440
      %p449 = scmp.eq.s32.totalorder %s36, 0
      %p450 = por %p448, %p449
      %p451 = scmp.ne.s32.totalorder %s439, %s440
      %p452 = scmp.eq.s32.totalorder %s37, 1
      %p453 = por %p451, %p452
      %p455 = scmp.ne.s32.totalorder %s440, %s454
      %p456 = scmp.eq.s32.totalorder %s37, 0
      %p457 = por %p455, %p456
      %s459 = sadd.s32 %s458, 1
      %p462 = scmp.eq.s32.totalorder %s31, 1
      %p463 = scmp.ne.s32.totalorder %s458, %s460
      %p464 = scmp.eq.s32.totalorder %s31, 0
      %p465 = por %p463, %p464
      %p466 = scmp.ne.s32.totalorder %s458, %s460
      %p467 = scmp.eq.s32.totalorder %s36, 1
      %p468 = por %p466, %p467
      %p469 = scmp.ne.s32.totalorder %s460, %s461
      %p470 = scmp.eq.s32.totalorder %s36, 0
      %p471 = por %p469, %p470
      %p472 = scmp.ne.s32.totalorder %s460, %s461
      %p473 = scmp.eq.s32.totalorder %s37, 1
      %p474 = por %p472, %p473
      %p476 = scmp.ne.s32.totalorder %s461, %s475
      %p477 = scmp.eq.s32.totalorder %s37, 0
      %p478 = por %p476, %p477
      %s480 = sadd.s32 %s479, 1
      %p483 = scmp.eq.s32.totalorder %s31, 1
      %p484 = scmp.ne.s32.totalorder %s479, %s481
      %p485 = scmp.eq.s32.totalorder %s31, 0
      %p486 = por %p484, %p485
      %p487 = scmp.ne.s32.totalorder %s479, %s481
      %p488 = scmp.eq.s32.totalorder %s36, 1
      %p489 = por %p487, %p488
      %p490 = scmp.ne.s32.totalorder %s481, %s482
      %p491 = scmp.eq.s32.totalorder %s36, 0
      %p492 = por %p490, %p491
      %p493 = scmp.ne.s32.totalorder %s481, %s482
      %p494 = scmp.eq.s32.totalorder %s37, 1
      %p495 = por %p493, %p494
      %p497 = scmp.ne.s32.totalorder %s482, %s496
      %p498 = scmp.eq.s32.totalorder %s37, 0
      %p499 = por %p497, %p498
      %s501 = sadd.s32 %s500, 1
      %p504 = scmp.eq.s32.totalorder %s31, 1
      %p505 = scmp.ne.s32.totalorder %s500, %s502
      %p506 = scmp.eq.s32.totalorder %s31, 0
      %p507 = por %p505, %p506
      %p508 = scmp.ne.s32.totalorder %s500, %s502
      %p509 = scmp.eq.s32.totalorder %s36, 1
      %p510 = por %p508, %p509
      %p511 = scmp.ne.s32.totalorder %s502, %s503
      %p512 = scmp.eq.s32.totalorder %s36, 0
      %p513 = por %p511, %p512
      %p514 = scmp.ne.s32.totalorder %s502, %s503
      %p515 = scmp.eq.s32.totalorder %s37, 1
      %p516 = por %p514, %p515
      %p518 = scmp.ne.s32.totalorder %s503, %s517
      %p519 = scmp.eq.s32.totalorder %s37, 0
      %p520 = por %p518, %p519
      %s522 = sadd.s32 %s521, 1
      %p525 = scmp.eq.s32.totalorder %s31, 1
      %p526 = scmp.ne.s32.totalorder %s521, %s523
      %p527 = scmp.eq.s32.totalorder %s31, 0
      %p528 = por %p526, %p527
      %p529 = scmp.ne.s32.totalorder %s521, %s523
      %p530 = scmp.eq.s32.totalorder %s36, 1
      %p531 = por %p529, %p530
      %p532 = scmp.ne.s32.totalorder %s523, %s524
      %p533 = scmp.eq.s32.totalorder %s36, 0
      %p534 = por %p532, %p533
      %p535 = scmp.ne.s32.totalorder %s523, %s524
      %p536 = scmp.eq.s32.totalorder %s37, 1
      %p537 = por %p535, %p536
      %p539 = scmp.ne.s32.totalorder %s524, %s538
      %p540 = scmp.eq.s32.totalorder %s37, 0
      %p541 = por %p539, %p540
      %s543 = sadd.s32 %s542, 1
      %p546 = scmp.eq.s32.totalorder %s31, 1
      %p547 = scmp.ne.s32.totalorder %s542, %s544
      %p548 = scmp.eq.s32.totalorder %s31, 0
      %p549 = por %p547, %p548
      %p550 = scmp.ne.s32.totalorder %s542, %s544
      %p551 = scmp.eq.s32.totalorder %s36, 1
      %p552 = por %p550, %p551
      %p553 = scmp.ne.s32.totalorder %s544, %s545
      %p554 = scmp.eq.s32.totalorder %s36, 0
      %p555 = por %p553, %p554
      %p556 = scmp.ne.s32.totalorder %s544, %s545
      %p557 = scmp.eq.s32.totalorder %s37, 1
      %p558 = por %p556, %p557
      %p560 = scmp.ne.s32.totalorder %s545, %s559
      %p561 = scmp.eq.s32.totalorder %s37, 0
      %p562 = por %p560, %p561
      %s563 = ssub.s32 %s31, %s38
      %p564 = scmp.eq.s32.totalorder %s563, 0
      %s566 = sadd.s32 %s565, 1
      %s567 = scalar_select %p564, %s565, %s566
      %p570 = pneg %p564
      %p571 = scmp.eq.s32.totalorder %s31, 1
      %p572 = por %p570, %p571
      %p573 = scmp.ne.s32.totalorder %s565, %s568
      %p574 = scmp.eq.s32.totalorder %s31, 0
      %p575 = por %p573, %p574
      %p576 = scmp.ne.s32.totalorder %s565, %s568
      %p577 = scmp.eq.s32.totalorder %s36, 1
      %p578 = por %p576, %p577
      %p579 = scmp.ne.s32.totalorder %s568, %s569
      %p580 = scmp.eq.s32.totalorder %s36, 0
      %p581 = por %p579, %p580
      %p582 = scmp.ne.s32.totalorder %s568, %s569
      %p583 = scmp.eq.s32.totalorder %s37, 1
      %p584 = por %p582, %p583
      %p586 = scmp.ne.s32.totalorder %s569, %s585
      %p587 = scmp.eq.s32.totalorder %s37, 0
      %p588 = por %p586, %p587
      %p589 = scmp.le.s32.totalorder 1, %s31
      %p590 = scmp.lt.s32.totalorder %s31, 3
      %p591 = pnand %p589, %p590
      %p592 = pneg %p591
      // Predicated region
      $region9: #{trans_model_forward.8} parent=5 // pred_check
        _
      $region10: #{trans_model_forward.8} parent=5 // pred_check_branch
        %594 = sbr.rel (%p591) target = $region12
      $region11: #{trans_model_forward.8} parent=5 // pred_region
        %s595 = ssub.s32 %s31, 1
        // Predicated region
        $region13: #{trans_model_forward.8} parent=11 // pred_check
          %p596 = pneg %p156
        $region14: #{trans_model_forward.8} parent=11 // pred_check_branch
          %598 = sbr.rel (%p596) target = $region16
        $region15: #{trans_model_forward.8} parent=11 // pred_region
          _
        $region16: #{trans_model_forward.8} parent=11 // pred_fallthru
          _
        // Predicated region
        $region17: #{trans_model_forward.8} parent=11 // pred_check
          %p599 = pneg %p177
        $region18: #{trans_model_forward.8} parent=11 // pred_check_branch
          %601 = sbr.rel (%p599) target = $region20
        $region19: #{trans_model_forward.8} parent=11 // pred_region
          _
        $region20: #{trans_model_forward.8} parent=11 // pred_fallthru
          _
        // Predicated region
        $region21: #{trans_model_forward.8} parent=11 // pred_check
          %p602 = pneg %p198
        $region22: #{trans_model_forward.8} parent=11 // pred_check_branch
          %604 = sbr.rel (%p602) target = $region24
        $region23: #{trans_model_forward.8} parent=11 // pred_region
          _
        $region24: #{trans_model_forward.8} parent=11 // pred_fallthru
          _
        // Predicated region
        $region25: #{trans_model_forward.8} parent=11 // pred_check
          %p605 = pneg %p219
        $region26: #{trans_model_forward.8} parent=11 // pred_check_branch
          %607 = sbr.rel (%p605) target = $region28
        $region27: #{trans_model_forward.8} parent=11 // pred_region
          _
        $region28: #{trans_model_forward.8} parent=11 // pred_fallthru
          _
        // Predicated region
        $region29: #{trans_model_forward.8} parent=11 // pred_check
          %p608 = pneg %p240
        $region30: #{trans_model_forward.8} parent=11 // pred_check_branch
          %610 = sbr.rel (%p608) target = $region32
        $region31: #{trans_model_forward.8} parent=11 // pred_region
          _
        $region32: #{trans_model_forward.8} parent=11 // pred_fallthru
          _
        // Predicated region
        $region33: #{trans_model_forward.8} parent=11 // pred_check
          %p611 = pneg %p261
        $region34: #{trans_model_forward.8} parent=11 // pred_check_branch
          %613 = sbr.rel (%p611) target = $region36
        $region35: #{trans_model_forward.8} parent=11 // pred_region
          _
        $region36: #{trans_model_forward.8} parent=11 // pred_fallthru
          _
        // Predicated region
        $region37: #{trans_model_forward.8} parent=11 // pred_check
          %p614 = pneg %p282
        $region38: #{trans_model_forward.8} parent=11 // pred_check_branch
          %616 = sbr.rel (%p614) target = $region40
        $region39: #{trans_model_forward.8} parent=11 // pred_region
          _
        $region40: #{trans_model_forward.8} parent=11 // pred_fallthru
          _
        // Predicated region
        $region41: #{trans_model_forward.8} parent=11 // pred_check
          %p617 = pneg %p303
        $region42: #{trans_model_forward.8} parent=11 // pred_check_branch
          %619 = sbr.rel (%p617) target = $region44
        $region43: #{trans_model_forward.8} parent=11 // pred_region
          _
        $region44: #{trans_model_forward.8} parent=11 // pred_fallthru
          _
        // Predicated region
        $region45: #{trans_model_forward.8} parent=11 // pred_check
          %p620 = pneg %p324
        $region46: #{trans_model_forward.8} parent=11 // pred_check_branch
          %622 = sbr.rel (%p620) target = $region48
        $region47: #{trans_model_forward.8} parent=11 // pred_region
          _
        $region48: #{trans_model_forward.8} parent=11 // pred_fallthru
          _
        // Predicated region
        $region49: #{trans_model_forward.8} parent=11 // pred_check
          %p623 = pneg %p345
        $region50: #{trans_model_forward.8} parent=11 // pred_check_branch
          %625 = sbr.rel (%p623) target = $region52
        $region51: #{trans_model_forward.8} parent=11 // pred_region
          _
        $region52: #{trans_model_forward.8} parent=11 // pred_fallthru
          _
        // Predicated region
        $region53: #{trans_model_forward.8} parent=11 // pred_check
          %p626 = pneg %p366
        $region54: #{trans_model_forward.8} parent=11 // pred_check_branch
          %628 = sbr.rel (%p626) target = $region56
        $region55: #{trans_model_forward.8} parent=11 // pred_region
          _
        $region56: #{trans_model_forward.8} parent=11 // pred_fallthru
          _
        // Predicated region
        $region57: #{trans_model_forward.8} parent=11 // pred_check
          %p629 = pneg %p387
        $region58: #{trans_model_forward.8} parent=11 // pred_check_branch
          %631 = sbr.rel (%p629) target = $region60
        $region59: #{trans_model_forward.8} parent=11 // pred_region
          _
        $region60: #{trans_model_forward.8} parent=11 // pred_fallthru
          _
        // Predicated region
        $region61: #{trans_model_forward.8} parent=11 // pred_check
          %p632 = pneg %p408
        $region62: #{trans_model_forward.8} parent=11 // pred_check_branch
          %634 = sbr.rel (%p632) target = $region64
        $region63: #{trans_model_forward.8} parent=11 // pred_region
          _
        $region64: #{trans_model_forward.8} parent=11 // pred_fallthru
          _
        // Predicated region
        $region65: #{trans_model_forward.8} parent=11 // pred_check
          %p635 = pneg %p429
        $region66: #{trans_model_forward.8} parent=11 // pred_check_branch
          %637 = sbr.rel (%p635) target = $region68
        $region67: #{trans_model_forward.8} parent=11 // pred_region
          _
        $region68: #{trans_model_forward.8} parent=11 // pred_fallthru
          _
        // Predicated region
        $region69: #{trans_model_forward.8} parent=11 // pred_check
          %p638 = pneg %p450
        $region70: #{trans_model_forward.8} parent=11 // pred_check_branch
          %640 = sbr.rel (%p638) target = $region72
        $region71: #{trans_model_forward.8} parent=11 // pred_region
          _
        $region72: #{trans_model_forward.8} parent=11 // pred_fallthru
          _
        // Predicated region
        $region73: #{trans_model_forward.8} parent=11 // pred_check
          %p641 = pneg %p471
        $region74: #{trans_model_forward.8} parent=11 // pred_check_branch
          %643 = sbr.rel (%p641) target = $region76
        $region75: #{trans_model_forward.8} parent=11 // pred_region
          _
        $region76: #{trans_model_forward.8} parent=11 // pred_fallthru
          _
        // Predicated region
        $region77: #{trans_model_forward.8} parent=11 // pred_check
          %p644 = pneg %p492
        $region78: #{trans_model_forward.8} parent=11 // pred_check_branch
          %646 = sbr.rel (%p644) target = $region80
        $region79: #{trans_model_forward.8} parent=11 // pred_region
          _
        $region80: #{trans_model_forward.8} parent=11 // pred_fallthru
          _
        // Predicated region
        $region81: #{trans_model_forward.8} parent=11 // pred_check
          %p647 = pneg %p513
        $region82: #{trans_model_forward.8} parent=11 // pred_check_branch
          %649 = sbr.rel (%p647) target = $region84
        $region83: #{trans_model_forward.8} parent=11 // pred_region
          _
        $region84: #{trans_model_forward.8} parent=11 // pred_fallthru
          _
        // Predicated region
        $region85: #{trans_model_forward.8} parent=11 // pred_check
          %p650 = pneg %p534
        $region86: #{trans_model_forward.8} parent=11 // pred_check_branch
          %652 = sbr.rel (%p650) target = $region88
        $region87: #{trans_model_forward.8} parent=11 // pred_region
          _
        $region88: #{trans_model_forward.8} parent=11 // pred_fallthru
          _
        // Predicated region
        $region89: #{trans_model_forward.8} parent=11 // pred_check
          %p653 = pneg %p555
        $region90: #{trans_model_forward.8} parent=11 // pred_check_branch
          %655 = sbr.rel (%p653) target = $region92
        $region91: #{trans_model_forward.8} parent=11 // pred_region
          %s657 = ssub.s32 16, 16
          %658 = vsyncadd [#allocation3], %s657
          %s660 = sshll.u32 [#allocation2], 4
          %s661 = int_to_ptr.vmem [resolvable:$true] %s660
          %663 = dma.hbm_to_vmem [thread:$0]  %s23, 16, %s661, [#allocation3]
        $region92: #{trans_model_forward.8} parent=11 // pred_fallthru
          _
      $region12: #{trans_model_forward.8} parent=5 // pred_fallthru
        _
      %p664 = scmp.lt.s32.totalorder %s31, 2
      // Predicated region
      $region93: #{trans_model_forward.8} parent=5 // pred_check
        %p665 = pneg %p664
      $region94: #{trans_model_forward.8} parent=5 // pred_check_branch
        %667 = sbr.rel (%p665) target = $region96
      $region95: #{trans_model_forward.8} parent=5 // pred_region
        // Predicated region
        $region97: #{trans_model_forward.8} parent=95 // pred_check
          %p668 = pneg %p51
        $region98: #{trans_model_forward.8} parent=95 // pred_check_branch
          %670 = sbr.rel (%p668) target = $region100
        $region99: #{trans_model_forward.8} parent=95 // pred_region
          %p671 = scmp.lt.s32.totalorder %s31, 1
          %s672 = scalar_select %p671, %s31, 1
          %s673 = smul.addr %s672, 8
          %s674 = scalar_lea.vmem %s0, %s673
        $region100: #{trans_model_forward.8} parent=95 // pred_fallthru
          _
        // Predicated region
        $region101: #{trans_model_forward.8} parent=95 // pred_check
          %p675 = pneg %p77
        $region102: #{trans_model_forward.8} parent=95 // pred_check_branch
          %677 = sbr.rel (%p675) target = $region104
        $region103: #{trans_model_forward.8} parent=95 // pred_region
          %p678 = scmp.lt.s32.totalorder %s31, 1
          %s679 = scalar_select %p678, %s31, 1
          %s680 = smul.addr %s679, 8
          %s681 = scalar_lea.vmem %s1, %s680
        $region104: #{trans_model_forward.8} parent=95 // pred_fallthru
          _
        // Predicated region
        $region105: #{trans_model_forward.8} parent=95 // pred_check
          %p682 = pneg %p103
        $region106: #{trans_model_forward.8} parent=95 // pred_check_branch
          %684 = sbr.rel (%p682) target = $region108
        $region107: #{trans_model_forward.8} parent=95 // pred_region
          %p685 = scmp.lt.s32.totalorder %s31, 1
          %s686 = scalar_select %p685, %s31, 1
          %s687 = smul.addr %s686, 8
          %s688 = scalar_lea.vmem %s2, %s687
        $region108: #{trans_model_forward.8} parent=95 // pred_fallthru
          _
        // Predicated region
        $region109: #{trans_model_forward.8} parent=95 // pred_check
          %p689 = pneg %p129
        $region110: #{trans_model_forward.8} parent=95 // pred_check_branch
          %691 = sbr.rel (%p689) target = $region112
        $region111: #{trans_model_forward.8} parent=95 // pred_region
          %p692 = scmp.lt.s32.totalorder %s31, 1
          %s693 = scalar_select %p692, %s31, 1
          %s694 = smul.addr %s693, 8
          %s695 = scalar_lea.vmem %s3, %s694
        $region112: #{trans_model_forward.8} parent=95 // pred_fallthru
          _
      $region96: #{trans_model_forward.8} parent=5 // pred_fallthru
        _
      %p696 = scmp.le.s32.totalorder 1, %s31
      %p697 = scmp.lt.s32.totalorder %s31, 3
      %p698 = pnand %p696, %p697
      %p699 = pneg %p698
      // Predicated region
      $region113: #{trans_model_forward.8} parent=5 // pred_check
        _
      $region114: #{trans_model_forward.8} parent=5 // pred_check_branch
        %701 = sbr.rel (%p698) target = $region116
      $region115: #{trans_model_forward.8} parent=5 // pred_region
        %s702 = ssub.s32 %s31, 1
        // Predicated region
        $region117: #{trans_model_forward.8} parent=115 // pred_check
          %p703 = pneg %p555
        $region118: #{trans_model_forward.8} parent=115 // pred_check_branch
          %705 = sbr.rel (%p703) target = $region120
        $region119: #{trans_model_forward.8} parent=115 // pred_region
          %706 = dma.done [#allocation3], 16
        $region120: #{trans_model_forward.8} parent=115 // pred_fallthru
          _
        %p707 = scmp.lt.s32.totalorder %s36, 1
        %s708 = scalar_select %p707, %s36, 1
        %s709 = smul.addr %s708, 8
        %s710 = scalar_lea.vmem %s0, %s709
        %p711 = pneg %p57
        %p712 = pneg %p54
        %p713 = scmp.lt.s32.totalorder %s36, 1
        %s714 = scalar_select %p713, %s36, 1
        %s715 = smul.addr %s714, 8
        %s716 = scalar_lea.vmem %s1, %s715
        %p717 = pneg %p83
        %p718 = pneg %p80
        %p719 = scmp.lt.s32.totalorder %s36, 1
        %s720 = scalar_select %p719, %s36, 1
        %s721 = smul.addr %s720, 8
        %s722 = scalar_lea.vmem %s2, %s721
        %p723 = pneg %p109
        %p724 = pneg %p106
        %p725 = scmp.lt.s32.totalorder %s36, 1
        %s726 = scalar_select %p725, %s36, 1
        %s727 = smul.addr %s726, 8
        %s728 = scalar_lea.vmem %s3, %s727
        %p729 = pneg %p135
        %p730 = pneg %p132
        %p731 = pneg %p156
        %p732 = pneg %p153
        %p733 = pneg %p177
        %p734 = pneg %p174
        %p735 = pneg %p198
        %p736 = pneg %p195
        %p737 = pneg %p219
        %p738 = pneg %p216
        %p739 = pneg %p240
        %p740 = pneg %p237
        %p741 = pneg %p261
        %p742 = pneg %p258
        %p743 = pneg %p282
        %p744 = pneg %p279
        %p745 = pneg %p303
        %p746 = pneg %p300
        %p747 = pneg %p324
        %p748 = pneg %p321
        %p749 = pneg %p345
        %p750 = pneg %p342
        %p751 = pneg %p366
        %p752 = pneg %p363
        %p753 = pneg %p387
        %p754 = pneg %p384
        %p755 = pneg %p408
        %p756 = pneg %p405
        %p757 = pneg %p429
        %p758 = pneg %p426
        %p759 = pneg %p450
        %p760 = pneg %p447
        %p761 = pneg %p471
        %p762 = pneg %p468
        %p763 = pneg %p492
        %p764 = pneg %p489
        %p765 = pneg %p513
        %p766 = pneg %p510
        %p767 = pneg %p534
        %p768 = pneg %p531
        %p769 = pneg %p555
        %p770 = pneg %p552
        %p771 = pneg %p581
        %p772 = pneg %p578
        %p773 = scmp.lt.s32.totalorder %s36, 1
        %s774 = scalar_select %p773, %s36, 1
        %s775 = smul.addr %s774, 8
        %s776 = scalar_lea.vmem %s24, %s775
        %p777 = scmp.lt.s32.totalorder %s36, 1
        %s778 = scalar_select %p777, %s36, 1
        %s779 = smul.addr %s778, 8
        %s780 = scalar_lea.vmem %s0, %s779
        %p781 = scmp.lt.s32.totalorder %s36, 1
        %s782 = scalar_select %p781, %s36, 1
        %s783 = smul.addr %s782, 8
        %s784 = scalar_lea.vmem %s1, %s783
        %p785 = scmp.lt.s32.totalorder %s36, 1
        %s786 = scalar_select %p785, %s36, 1
        %s787 = smul.addr %s786, 8
        %s788 = scalar_lea.vmem %s2, %s787
        %p789 = scmp.lt.s32.totalorder %s36, 1
        %s790 = scalar_select %p789, %s36, 1
        %s791 = smul.addr %s790, 8
        %s792 = scalar_lea.vmem %s3, %s791
        %p793 = scmp.lt.s32.totalorder %s36, 1
        %s794 = scalar_select %p793, %s36, 1
        %s795 = smul.addr %s794, 8
        %s796 = scalar_lea.vmem %s24, %s795
        %v797 = vld [vmem:[%s780] sm:$0xff]
        %v798 = vld [vmem:[%s784] sm:$0xff]
        %v799 = vld [vmem:[%s788] sm:$0xff]
        %v800 = vld [vmem:[%s792] sm:$0xff]
        %v801 = vld [vmem:[%s4] sm:$0xff]
        %v802 = vld [vmem:[%s4 + $0x8] sm:$0xff]
        %v803 = vld [vmem:[%s4 + $0x10] sm:$0xff]
        %v804 = vld [vmem:[%s4 + $0x18] sm:$0xff]
        %v805 = vld [vmem:[%s4 + $0x20] sm:$0xff]
        %v806 = vld [vmem:[%s4 + $0x28] sm:$0xff]
        %v807 = vld [vmem:[%s4 + $0x30] sm:$0xff]
        %v808 = vld [vmem:[%s4 + $0x38] sm:$0xff]
        %v809 = vld [vmem:[%s4 + $0x40] sm:$0xff]
        %v810 = vld [vmem:[%s4 + $0x48] sm:$0xff]
        %v811 = vld [vmem:[%s4 + $0x50] sm:$0xff]
        %v812 = vld [vmem:[%s4 + $0x58] sm:$0xff]
        %v813 = vld [vmem:[%s4 + $0x60] sm:$0xff]
        %v814 = vld [vmem:[%s4 + $0x68] sm:$0xff]
        %v815 = vld [vmem:[%s4 + $0x70] sm:$0xff]
        %v816 = vld [vmem:[%s4 + $0x78] sm:$0xff]
        %v817 = vld [vmem:[%s5] sm:$0x3]
        %v819 = vlaneseq
        %v820 = vshrl.u32 %v819, 7
        %v821 = vsub.s32 0, %v820
        %v822 = vrot.slane %v817, %v821
        %v823 = vlaneseq
        %v824 = vshrl.u32 %v823, 7
        %v825 = vsub.s32 1, %v824
        %v826 = vrot.slane %v817, %v825
        %vm829 = vcmask 523264
        %v831 = vsel %vm829, %v797, 0
        %833 = vmatprep.subr.mxu0 0.0
        %834 = vmatpush1.msra.mxu0 0.0
        %835 = vmatprep.subr.mxu0 0.0
        %836 = vmatpush1.msra.mxu0 0.0
        %837 = vmatprep.subr.mxu0 0.0
        %838 = vmatpush1.msra.mxu0 0.0
        %839 = vmatprep.subr.mxu0 0.0
        %840 = vmatpush1.msra.mxu0 0.0
        %841 = vmatprep.subr.mxu0 0.0
        %842 = vmatpush1.msra.mxu0 0.0
        %843 = vmatprep.subr.mxu0 0.0
        %844 = vmatpush1.msra.mxu0 0.0
        %845 = vmatprep.subr.mxu0 0.0
        %846 = vmatpush1.msra.mxu0 0.0
        %847 = vmatprep.subr.mxu0 0.0
        %848 = vmatpush1.msra.mxu0 0.0
        %849 = vmatprep.subr.mxu0 %v816
        %850 = vmatpush1.msra.mxu0 %v815
        %851 = vmatprep.subr.mxu0 %v814
        %852 = vmatpush1.msra.mxu0 %v813
        %853 = vmatprep.subr.mxu0 %v812
        %854 = vmatpush1.msra.mxu0 %v811
        %855 = vmatprep.subr.mxu0 %v810
        %856 = vmatpush1.msra.mxu0 %v809
        %857 = vmatprep.subr.mxu0 %v808
        %858 = vmatpush1.msra.mxu0 %v807
        %859 = vmatprep.subr.mxu0 %v806
        %860 = vmatpush1.msra.mxu0 %v805
        %861 = vmatprep.subr.mxu0 %v804
        %862 = vmatpush1.msra.mxu0 %v803
        %863 = vmatprep.subr.mxu0 %v802
        %864 = vmatpush1.msra.mxu0 %v801
        %865 = vmatprep.subr.mxu0 0.0
        %866 = vmatpush2.msra.mxu0 0.0
        %867 = vmatprep.subr.mxu0 0.0
        %868 = vmatpush2.msra.mxu0 0.0
        %869 = vmatprep.subr.mxu0 0.0
        %870 = vmatpush2.msra.mxu0 0.0
        %871 = vmatprep.subr.mxu0 0.0
        %872 = vmatpush2.msra.mxu0 0.0
        %873 = vmatprep.subr.mxu0 0.0
        %874 = vmatpush2.msra.mxu0 0.0
        %875 = vmatprep.subr.mxu0 0.0
        %876 = vmatpush2.msra.mxu0 0.0
        %877 = vmatprep.subr.mxu0 0.0
        %878 = vmatpush2.msra.mxu0 0.0
        %879 = vmatprep.subr.mxu0 0.0
        %880 = vmatpush2.msra.mxu0 0.0
        %881 = vmatprep.subr.mxu0 0.0
        %882 = vmatpush2.msra.mxu0 0.0
        %883 = vmatprep.subr.mxu0 0.0
        %884 = vmatpush2.msra.mxu0 0.0
        %885 = vmatprep.subr.mxu0 0.0
        %886 = vmatpush2.msra.mxu0 0.0
        %887 = vmatprep.subr.mxu0 0.0
        %888 = vmatpush2.msra.mxu0 0.0
        %889 = vmatprep.subr.mxu0 0.0
        %890 = vmatpush2.msra.mxu0 0.0
        %891 = vmatprep.subr.mxu0 0.0
        %892 = vmatpush2.msra.mxu0 0.0
        %893 = vmatprep.subr.mxu0 0.0
        %894 = vmatpush2.msra.mxu0 0.0
        %895 = vmatprep.subr.mxu0 0.0
        %896 = vmatpush2.msra.mxu0 0.0
        %897 = vmatprep.mubr.f32.mxu0 0.0
        %898 = vmatmul.mubr.f32.gmra.mxu0 %v831
        %v899 = vpop.f32.mrf.mxu0
        %v900 = vadd.f32 %v822, %v899
        %v901 = vpop.f32.mrf.mxu0
        %v902 = vadd.f32 %v826, %v901
        %903 = vdwg.mxu0
        %905 = vrot.lane.b32.xlu0 %v900, 64
        %v906 = vpop.permute.xlu0 %905
        %vm907 = vcmask 130048
        %v908 = vsel %vm907, %v900, 0
        %v910 = vsel %vm907, %v906, 0
        %912 = vmatprep.subr.mxu0 0.0
        %913 = vmatpush1.xpose.msra.mxu0 0.0
        %914 = vmatprep.subr.mxu0 0.0
        %915 = vmatpush1.xpose.msra.mxu0 0.0
        %916 = vmatprep.subr.mxu0 0.0
        %917 = vmatpush1.xpose.msra.mxu0 0.0
        %918 = vmatprep.subr.mxu0 0.0
        %919 = vmatpush1.xpose.msra.mxu0 0.0
        %920 = vmatprep.subr.mxu0 0.0
        %921 = vmatpush1.xpose.msra.mxu0 0.0
        %922 = vmatprep.subr.mxu0 0.0
        %923 = vmatpush1.xpose.msra.mxu0 0.0
        %924 = vmatprep.subr.mxu0 0.0
        %925 = vmatpush1.xpose.msra.mxu0 0.0
        %926 = vmatprep.subr.mxu0 0.0
        %927 = vmatpush1.xpose.msra.mxu0 0.0
        %928 = vmatprep.subr.mxu0 0.0
        %929 = vmatpush1.xpose.msra.mxu0 0.0
        %930 = vmatprep.subr.mxu0 0.0
        %931 = vmatpush1.xpose.msra.mxu0 0.0
        %932 = vmatprep.subr.mxu0 0.0
        %933 = vmatpush1.xpose.msra.mxu0 0.0
        %934 = vmatprep.subr.mxu0 0.0
        %935 = vmatpush1.xpose.msra.mxu0 0.0
        %936 = vmatprep.subr.mxu0 0.0
        %937 = vmatpush1.xpose.msra.mxu0 0.0
        %938 = vmatprep.subr.mxu0 0.0
        %939 = vmatpush1.xpose.msra.mxu0 0.0
        %940 = vmatprep.subr.mxu0 0.0
        %941 = vmatpush1.xpose.msra.mxu0 0.0
        %942 = vmatprep.subr.mxu0 0.0
        %943 = vmatpush1.xpose.msra.mxu0 %v910
        %944 = vmatprep.subr.mxu0 0.0
        %945 = vmatpush2.xpose.msra.mxu0 0.0
        %946 = vmatprep.subr.mxu0 0.0
        %947 = vmatpush2.xpose.msra.mxu0 0.0
        %948 = vmatprep.subr.mxu0 0.0
        %949 = vmatpush2.xpose.msra.mxu0 0.0
        %950 = vmatprep.subr.mxu0 0.0
        %951 = vmatpush2.xpose.msra.mxu0 0.0
        %952 = vmatprep.subr.mxu0 0.0
        %953 = vmatpush2.xpose.msra.mxu0 0.0
        %954 = vmatprep.subr.mxu0 0.0
        %955 = vmatpush2.xpose.msra.mxu0 0.0
        %956 = vmatprep.subr.mxu0 0.0
        %957 = vmatpush2.xpose.msra.mxu0 0.0
        %958 = vmatprep.subr.mxu0 0.0
        %959 = vmatpush2.xpose.msra.mxu0 0.0
        %960 = vmatprep.subr.mxu0 0.0
        %961 = vmatpush2.xpose.msra.mxu0 0.0
        %962 = vmatprep.subr.mxu0 0.0
        %963 = vmatpush2.xpose.msra.mxu0 0.0
        %964 = vmatprep.subr.mxu0 0.0
        %965 = vmatpush2.xpose.msra.mxu0 0.0
        %966 = vmatprep.subr.mxu0 0.0
        %967 = vmatpush2.xpose.msra.mxu0 0.0
        %968 = vmatprep.subr.mxu0 0.0
        %969 = vmatpush2.xpose.msra.mxu0 0.0
        %970 = vmatprep.subr.mxu0 0.0
        %971 = vmatpush2.xpose.msra.mxu0 0.0
        %972 = vmatprep.subr.mxu0 0.0
        %973 = vmatpush2.xpose.msra.mxu0 0.0
        %974 = vmatprep.subr.mxu0 0.0
        %975 = vmatpush2.xpose.msra.mxu0 0.0
        %976 = vmatprep.mubr.f32.mxu0 0.0
        %977 = vmatmul.mubr.f32.gmra.mxu0 %v908
        %v978 = vpop.f32.mrf.mxu0
        %v979 = vadd.f32 0.0, %v978
        %v980 = vpop.f32.mrf.mxu0
        %981 = vdwg.mxu0
        %v982 = vmul.f32 %v979, 0.25
        %v983 = vadd.f32 %v982, %v799
        %vm984 = vcmask 64512
        %v985 = vsel %vm984, %v983, -inf
        %986 = vmax.xlane.f32.xlu0 %v985
        %v987 = vpop.xlane.xlu0 %986
        %v988 = vsub.f32 %v983, %v987
        %v989 = vmul.f32 %v988, 1.442695
        %v990 = vpow.pop %v989
        %v991 = vsel %vm984, %v990, 0.0
        %992 = vadd.xlane.f32.xlu0 %v991
        %v993 = vpop.xlane.xlu0 %992
        %v994 = vrcp.pop %v993
        %v995 = vmul.f32 %v990, %v994
        %v997 = vsel %vm984, %v995, 0
        %999 = vmatprep.subr.mxu0 0.0
        %1000 = vmatpush1.msra.mxu0 0.0
        %1001 = vmatprep.subr.mxu0 0.0
        %1002 = vmatpush1.msra.mxu0 0.0
        %1003 = vmatprep.subr.mxu0 0.0
        %1004 = vmatpush1.msra.mxu0 0.0
        %1005 = vmatprep.subr.mxu0 0.0
        %1006 = vmatpush1.msra.mxu0 0.0
        %1007 = vmatprep.subr.mxu0 0.0
        %1008 = vmatpush1.msra.mxu0 0.0
        %1009 = vmatprep.subr.mxu0 0.0
        %1010 = vmatpush1.msra.mxu0 0.0
        %1011 = vmatprep.subr.mxu0 0.0
        %1012 = vmatpush1.msra.mxu0 0.0
        %1013 = vmatprep.subr.mxu0 0.0
        %1014 = vmatpush1.msra.mxu0 0.0
        %1015 = vmatprep.subr.mxu0 0.0
        %1016 = vmatpush1.msra.mxu0 0.0
        %1017 = vmatprep.subr.mxu0 0.0
        %1018 = vmatpush1.msra.mxu0 0.0
        %1019 = vmatprep.subr.mxu0 0.0
        %1020 = vmatpush1.msra.mxu0 0.0
        %1021 = vmatprep.subr.mxu0 0.0
        %1022 = vmatpush1.msra.mxu0 0.0
        %1023 = vmatprep.subr.mxu0 0.0
        %1024 = vmatpush1.msra.mxu0 0.0
        %1025 = vmatprep.subr.mxu0 0.0
        %1026 = vmatpush1.msra.mxu0 0.0
        %1027 = vmatprep.subr.mxu0 0.0
        %1028 = vmatpush1.msra.mxu0 0.0
        %1029 = vmatprep.subr.mxu0 0.0
        %1030 = vmatpush1.msra.mxu0 %v902
        %1031 = vmatprep.subr.mxu0 0.0
        %1032 = vmatpush2.msra.mxu0 0.0
        %1033 = vmatprep.subr.mxu0 0.0
        %1034 = vmatpush2.msra.mxu0 0.0
        %1035 = vmatprep.subr.mxu0 0.0
        %1036 = vmatpush2.msra.mxu0 0.0
        %1037 = vmatprep.subr.mxu0 0.0
        %1038 = vmatpush2.msra.mxu0 0.0
        %1039 = vmatprep.subr.mxu0 0.0
        %1040 = vmatpush2.msra.mxu0 0.0
        %1041 = vmatprep.subr.mxu0 0.0
        %1042 = vmatpush2.msra.mxu0 0.0
        %1043 = vmatprep.subr.mxu0 0.0
        %1044 = vmatpush2.msra.mxu0 0.0
        %1045 = vmatprep.subr.mxu0 0.0
        %1046 = vmatpush2.msra.mxu0 0.0
        %1047 = vmatprep.subr.mxu0 0.0
        %1048 = vmatpush2.msra.mxu0 0.0
        %1049 = vmatprep.subr.mxu0 0.0
        %1050 = vmatpush2.msra.mxu0 0.0
        %1051 = vmatprep.subr.mxu0 0.0
        %1052 = vmatpush2.msra.mxu0 0.0
        %1053 = vmatprep.subr.mxu0 0.0
        %1054 = vmatpush2.msra.mxu0 0.0
        %1055 = vmatprep.subr.mxu0 0.0
        %1056 = vmatpush2.msra.mxu0 0.0
        %1057 = vmatprep.subr.mxu0 0.0
        %1058 = vmatpush2.msra.mxu0 0.0
        %1059 = vmatprep.subr.mxu0 0.0
        %1060 = vmatpush2.msra.mxu0 0.0
        %1061 = vmatprep.subr.mxu0 0.0
        %1062 = vmatpush2.msra.mxu0 0.0
        %1063 = vmatprep.mubr.f32.mxu0 0.0
        %1064 = vmatmul.mubr.f32.gmra.mxu0 %v997
        %v1065 = vpop.f32.mrf.mxu0
        %v1066 = vadd.f32 0.0, %v1065
        %v1067 = vpop.f32.mrf.mxu0
        %1068 = vdwg.mxu0
        %v1069 = vld [vmem:[%s6] sm:$0xff]
        %v1070 = vld [vmem:[%s6 + $0x8] sm:$0xff]
        %1071 = vrot.lane.b32.xlu0 %v900, 112
        %v1072 = vpop.permute.xlu0 %1071
        %1073 = vrot.lane.b32.xlu0 %v900, 48
        %v1074 = vpop.permute.xlu0 %1073
        %v1075 = vsel %vm907, %v1072, 0
        %v1077 = vsel %vm907, %v1074, 0
        %1079 = vmatprep.subr.mxu0 0.0
        %1080 = vmatpush1.xpose.msra.mxu0 0.0
        %1081 = vmatprep.subr.mxu0 0.0
        %1082 = vmatpush1.xpose.msra.mxu0 0.0
        %1083 = vmatprep.subr.mxu0 0.0
        %1084 = vmatpush1.xpose.msra.mxu0 0.0
        %1085 = vmatprep.subr.mxu0 0.0
        %1086 = vmatpush1.xpose.msra.mxu0 0.0
        %1087 = vmatprep.subr.mxu0 0.0
        %1088 = vmatpush1.xpose.msra.mxu0 0.0
        %1089 = vmatprep.subr.mxu0 0.0
        %1090 = vmatpush1.xpose.msra.mxu0 0.0
        %1091 = vmatprep.subr.mxu0 0.0
        %1092 = vmatpush1.xpose.msra.mxu0 0.0
        %1093 = vmatprep.subr.mxu0 0.0
        %1094 = vmatpush1.xpose.msra.mxu0 0.0
        %1095 = vmatprep.subr.mxu0 0.0
        %1096 = vmatpush1.xpose.msra.mxu0 0.0
        %1097 = vmatprep.subr.mxu0 0.0
        %1098 = vmatpush1.xpose.msra.mxu0 0.0
        %1099 = vmatprep.subr.mxu0 0.0
        %1100 = vmatpush1.xpose.msra.mxu0 0.0
        %1101 = vmatprep.subr.mxu0 0.0
        %1102 = vmatpush1.xpose.msra.mxu0 0.0
        %1103 = vmatprep.subr.mxu0 0.0
        %1104 = vmatpush1.xpose.msra.mxu0 0.0
        %1105 = vmatprep.subr.mxu0 0.0
        %1106 = vmatpush1.xpose.msra.mxu0 0.0
        %1107 = vmatprep.subr.mxu0 0.0
        %1108 = vmatpush1.xpose.msra.mxu0 0.0
        %1109 = vmatprep.subr.mxu0 0.0
        %1110 = vmatpush1.xpose.msra.mxu0 %v1077
        %1111 = vmatprep.subr.mxu0 0.0
        %1112 = vmatpush2.xpose.msra.mxu0 0.0
        %1113 = vmatprep.subr.mxu0 0.0
        %1114 = vmatpush2.xpose.msra.mxu0 0.0
        %1115 = vmatprep.subr.mxu0 0.0
        %1116 = vmatpush2.xpose.msra.mxu0 0.0
        %1117 = vmatprep.subr.mxu0 0.0
        %1118 = vmatpush2.xpose.msra.mxu0 0.0
        %1119 = vmatprep.subr.mxu0 0.0
        %1120 = vmatpush2.xpose.msra.mxu0 0.0
        %1121 = vmatprep.subr.mxu0 0.0
        %1122 = vmatpush2.xpose.msra.mxu0 0.0
        %1123 = vmatprep.subr.mxu0 0.0
        %1124 = vmatpush2.xpose.msra.mxu0 0.0
        %1125 = vmatprep.subr.mxu0 0.0
        %1126 = vmatpush2.xpose.msra.mxu0 0.0
        %1127 = vmatprep.subr.mxu0 0.0
        %1128 = vmatpush2.xpose.msra.mxu0 0.0
        %1129 = vmatprep.subr.mxu0 0.0
        %1130 = vmatpush2.xpose.msra.mxu0 0.0
        %1131 = vmatprep.subr.mxu0 0.0
        %1132 = vmatpush2.xpose.msra.mxu0 0.0
        %1133 = vmatprep.subr.mxu0 0.0
        %1134 = vmatpush2.xpose.msra.mxu0 0.0
        %1135 = vmatprep.subr.mxu0 0.0
        %1136 = vmatpush2.xpose.msra.mxu0 0.0
        %1137 = vmatprep.subr.mxu0 0.0
        %1138 = vmatpush2.xpose.msra.mxu0 0.0
        %1139 = vmatprep.subr.mxu0 0.0
        %1140 = vmatpush2.xpose.msra.mxu0 0.0
        %1141 = vmatprep.subr.mxu0 0.0
        %1142 = vmatpush2.xpose.msra.mxu0 0.0
        %1143 = vmatprep.mubr.f32.mxu0 0.0
        %1144 = vmatmul.mubr.f32.gmra.mxu0 %v1075
        %v1145 = vpop.f32.mrf.mxu0
        %v1146 = vadd.f32 0.0, %v1145
        %v1147 = vpop.f32.mrf.mxu0
        %1148 = vdwg.mxu0
        %v1149 = vmul.f32 %v1146, 0.25
        %v1150 = vadd.f32 %v1149, %v799
        %v1151 = vsel %vm984, %v1150, -inf
        %1152 = vmax.xlane.f32.xlu0 %v1151
        %v1153 = vpop.xlane.xlu0 %1152
        %v1154 = vsub.f32 %v1150, %v1153
        %v1155 = vmul.f32 %v1154, 1.442695
        %v1156 = vpow.pop %v1155
        %v1157 = vsel %vm984, %v1156, 0.0
        %1158 = vadd.xlane.f32.xlu0 %v1157
        %v1159 = vpop.xlane.xlu0 %1158
        %v1160 = vrcp.pop %v1159
        %v1161 = vmul.f32 %v1156, %v1160
        %1163 = vrot.lane.b32.xlu0 %v902, 112
        %v1164 = vpop.permute.xlu0 %1163
        %v1167 = vsel %vm984, %v1161, 0
        %1169 = vmatprep.subr.mxu0 0.0
        %1170 = vmatpush1.msra.mxu0 0.0
        %1171 = vmatprep.subr.mxu0 0.0
        %1172 = vmatpush1.msra.mxu0 0.0
        %1173 = vmatprep.subr.mxu0 0.0
        %1174 = vmatpush1.msra.mxu0 0.0
        %1175 = vmatprep.subr.mxu0 0.0
        %1176 = vmatpush1.msra.mxu0 0.0
        %1177 = vmatprep.subr.mxu0 0.0
        %1178 = vmatpush1.msra.mxu0 0.0
        %1179 = vmatprep.subr.mxu0 0.0
        %1180 = vmatpush1.msra.mxu0 0.0
        %1181 = vmatprep.subr.mxu0 0.0
        %1182 = vmatpush1.msra.mxu0 0.0
        %1183 = vmatprep.subr.mxu0 0.0
        %1184 = vmatpush1.msra.mxu0 0.0
        %1185 = vmatprep.subr.mxu0 0.0
        %1186 = vmatpush1.msra.mxu0 0.0
        %1187 = vmatprep.subr.mxu0 0.0
        %1188 = vmatpush1.msra.mxu0 0.0
        %1189 = vmatprep.subr.mxu0 0.0
        %1190 = vmatpush1.msra.mxu0 0.0
        %1191 = vmatprep.subr.mxu0 0.0
        %1192 = vmatpush1.msra.mxu0 0.0
        %1193 = vmatprep.subr.mxu0 0.0
        %1194 = vmatpush1.msra.mxu0 0.0
        %1195 = vmatprep.subr.mxu0 0.0
        %1196 = vmatpush1.msra.mxu0 0.0
        %1197 = vmatprep.subr.mxu0 0.0
        %1198 = vmatpush1.msra.mxu0 0.0
        %1199 = vmatprep.subr.mxu0 0.0
        %1200 = vmatpush1.msra.mxu0 %v1164
        %1201 = vmatprep.subr.mxu0 0.0
        %1202 = vmatpush2.msra.mxu0 0.0
        %1203 = vmatprep.subr.mxu0 0.0
        %1204 = vmatpush2.msra.mxu0 0.0
        %1205 = vmatprep.subr.mxu0 0.0
        %1206 = vmatpush2.msra.mxu0 0.0
        %1207 = vmatprep.subr.mxu0 0.0
        %1208 = vmatpush2.msra.mxu0 0.0
        %1209 = vmatprep.subr.mxu0 0.0
        %1210 = vmatpush2.msra.mxu0 0.0
        %1211 = vmatprep.subr.mxu0 0.0
        %1212 = vmatpush2.msra.mxu0 0.0
        %1213 = vmatprep.subr.mxu0 0.0
        %1214 = vmatpush2.msra.mxu0 0.0
        %1215 = vmatprep.subr.mxu0 0.0
        %1216 = vmatpush2.msra.mxu0 0.0
        %1217 = vmatprep.subr.mxu0 0.0
        %1218 = vmatpush2.msra.mxu0 0.0
        %1219 = vmatprep.subr.mxu0 0.0
        %1220 = vmatpush2.msra.mxu0 0.0
        %1221 = vmatprep.subr.mxu0 0.0
        %1222 = vmatpush2.msra.mxu0 0.0
        %1223 = vmatprep.subr.mxu0 0.0
        %1224 = vmatpush2.msra.mxu0 0.0
        %1225 = vmatprep.subr.mxu0 0.0
        %1226 = vmatpush2.msra.mxu0 0.0
        %1227 = vmatprep.subr.mxu0 0.0
        %1228 = vmatpush2.msra.mxu0 0.0
        %1229 = vmatprep.subr.mxu0 0.0
        %1230 = vmatpush2.msra.mxu0 0.0
        %1231 = vmatprep.subr.mxu0 0.0
        %1232 = vmatpush2.msra.mxu0 0.0
        %1233 = vmatprep.mubr.f32.mxu0 0.0
        %1234 = vmatmul.mubr.f32.gmra.mxu0 %v1167
        %v1235 = vpop.f32.mrf.mxu0
        %v1236 = vadd.f32 0.0, %v1235
        %v1237 = vpop.f32.mrf.mxu0
        %1238 = vdwg.mxu0
        %v1239 = vld [vmem:[%s6 + $0x10] sm:$0xff]
        %v1240 = vld [vmem:[%s6 + $0x18] sm:$0xff]
        %v1242 = vsel %vm907, %v1236, 0
        %1244 = vmatprep.subr.mxu0 0.0
        %1245 = vmatpush1.msra.mxu0 0.0
        %1246 = vmatprep.subr.mxu0 0.0
        %1247 = vmatpush1.msra.mxu0 0.0
        %1248 = vmatprep.subr.mxu0 0.0
        %1249 = vmatpush1.msra.mxu0 0.0
        %1250 = vmatprep.subr.mxu0 0.0
        %1251 = vmatpush1.msra.mxu0 0.0
        %1252 = vmatprep.subr.mxu0 0.0
        %1253 = vmatpush1.msra.mxu0 0.0
        %1254 = vmatprep.subr.mxu0 0.0
        %1255 = vmatpush1.msra.mxu0 0.0
        %1256 = vmatprep.subr.mxu0 0.0
        %1257 = vmatpush1.msra.mxu0 0.0
        %1258 = vmatprep.subr.mxu0 0.0
        %1259 = vmatpush1.msra.mxu0 0.0
        %1260 = vmatprep.subr.mxu0 0.0
        %1261 = vmatpush1.msra.mxu0 0.0
        %1262 = vmatprep.subr.mxu0 0.0
        %1263 = vmatpush1.msra.mxu0 0.0
        %1264 = vmatprep.subr.mxu0 0.0
        %1265 = vmatpush1.msra.mxu0 0.0
        %1266 = vmatprep.subr.mxu0 0.0
        %1267 = vmatpush1.msra.mxu0 0.0
        %1268 = vmatprep.subr.mxu0 0.0
        %1269 = vmatpush1.msra.mxu0 0.0
        %1270 = vmatprep.subr.mxu0 0.0
        %1271 = vmatpush1.msra.mxu0 0.0
        %1272 = vmatprep.subr.mxu0 0.0
        %1273 = vmatpush1.msra.mxu0 %v1240
        %1274 = vmatprep.subr.mxu0 0.0
        %1275 = vmatpush1.msra.mxu0 %v1239
        %1276 = vmatprep.subr.mxu0 0.0
        %1277 = vmatpush2.msra.mxu0 0.0
        %1278 = vmatprep.subr.mxu0 0.0
        %1279 = vmatpush2.msra.mxu0 0.0
        %1280 = vmatprep.subr.mxu0 0.0
        %1281 = vmatpush2.msra.mxu0 0.0
        %1282 = vmatprep.subr.mxu0 0.0
        %1283 = vmatpush2.msra.mxu0 0.0
        %1284 = vmatprep.subr.mxu0 0.0
        %1285 = vmatpush2.msra.mxu0 0.0
        %1286 = vmatprep.subr.mxu0 0.0
        %1287 = vmatpush2.msra.mxu0 0.0
        %1288 = vmatprep.subr.mxu0 0.0
        %1289 = vmatpush2.msra.mxu0 0.0
        %1290 = vmatprep.subr.mxu0 0.0
        %1291 = vmatpush2.msra.mxu0 0.0
        %1292 = vmatprep.subr.mxu0 0.0
        %1293 = vmatpush2.msra.mxu0 0.0
        %1294 = vmatprep.subr.mxu0 0.0
        %1295 = vmatpush2.msra.mxu0 0.0
        %1296 = vmatprep.subr.mxu0 0.0
        %1297 = vmatpush2.msra.mxu0 0.0
        %1298 = vmatprep.subr.mxu0 0.0
        %1299 = vmatpush2.msra.mxu0 0.0
        %1300 = vmatprep.subr.mxu0 0.0
        %1301 = vmatpush2.msra.mxu0 0.0
        %1302 = vmatprep.subr.mxu0 0.0
        %1303 = vmatpush2.msra.mxu0 0.0
        %1304 = vmatprep.subr.mxu0 0.0
        %1305 = vmatpush2.msra.mxu0 0.0
        %1306 = vmatprep.subr.mxu0 0.0
        %1307 = vmatpush2.msra.mxu0 0.0
        %1308 = vmatprep.mubr.f32.mxu0 0.0
        %1309 = vmatmul.mubr.f32.gmra.mxu0 %v1242
        %v1310 = vpop.f32.mrf.mxu0
        %v1311 = vadd.f32 0.0, %v1310
        %v1312 = vpop.f32.mrf.mxu0
        %1313 = vdwg.mxu0
        %v1315 = vsel %vm907, %v1066, 0
        %1317 = vmatprep.subr.mxu0 0.0
        %1318 = vmatpush1.msra.mxu0 0.0
        %1319 = vmatprep.subr.mxu0 0.0
        %1320 = vmatpush1.msra.mxu0 0.0
        %1321 = vmatprep.subr.mxu0 0.0
        %1322 = vmatpush1.msra.mxu0 0.0
        %1323 = vmatprep.subr.mxu0 0.0
        %1324 = vmatpush1.msra.mxu0 0.0
        %1325 = vmatprep.subr.mxu0 0.0
        %1326 = vmatpush1.msra.mxu0 0.0
        %1327 = vmatprep.subr.mxu0 0.0
        %1328 = vmatpush1.msra.mxu0 0.0
        %1329 = vmatprep.subr.mxu0 0.0
        %1330 = vmatpush1.msra.mxu0 0.0
        %1331 = vmatprep.subr.mxu0 0.0
        %1332 = vmatpush1.msra.mxu0 0.0
        %1333 = vmatprep.subr.mxu0 0.0
        %1334 = vmatpush1.msra.mxu0 0.0
        %1335 = vmatprep.subr.mxu0 0.0
        %1336 = vmatpush1.msra.mxu0 0.0
        %1337 = vmatprep.subr.mxu0 0.0
        %1338 = vmatpush1.msra.mxu0 0.0
        %1339 = vmatprep.subr.mxu0 0.0
        %1340 = vmatpush1.msra.mxu0 0.0
        %1341 = vmatprep.subr.mxu0 0.0
        %1342 = vmatpush1.msra.mxu0 0.0
        %1343 = vmatprep.subr.mxu0 0.0
        %1344 = vmatpush1.msra.mxu0 0.0
        %1345 = vmatprep.subr.mxu0 0.0
        %1346 = vmatpush1.msra.mxu0 %v1070
        %1347 = vmatprep.subr.mxu0 0.0
        %1348 = vmatpush1.msra.mxu0 %v1069
        %1349 = vmatprep.subr.mxu0 0.0
        %1350 = vmatpush2.msra.mxu0 0.0
        %1351 = vmatprep.subr.mxu0 0.0
        %1352 = vmatpush2.msra.mxu0 0.0
        %1353 = vmatprep.subr.mxu0 0.0
        %1354 = vmatpush2.msra.mxu0 0.0
        %1355 = vmatprep.subr.mxu0 0.0
        %1356 = vmatpush2.msra.mxu0 0.0
        %1357 = vmatprep.subr.mxu0 0.0
        %1358 = vmatpush2.msra.mxu0 0.0
        %1359 = vmatprep.subr.mxu0 0.0
        %1360 = vmatpush2.msra.mxu0 0.0
        %1361 = vmatprep.subr.mxu0 0.0
        %1362 = vmatpush2.msra.mxu0 0.0
        %1363 = vmatprep.subr.mxu0 0.0
        %1364 = vmatpush2.msra.mxu0 0.0
        %1365 = vmatprep.subr.mxu0 0.0
        %1366 = vmatpush2.msra.mxu0 0.0
        %1367 = vmatprep.subr.mxu0 0.0
        %1368 = vmatpush2.msra.mxu0 0.0
        %1369 = vmatprep.subr.mxu0 0.0
        %1370 = vmatpush2.msra.mxu0 0.0
        %1371 = vmatprep.subr.mxu0 0.0
        %1372 = vmatpush2.msra.mxu0 0.0
        %1373 = vmatprep.subr.mxu0 0.0
        %1374 = vmatpush2.msra.mxu0 0.0
        %1375 = vmatprep.subr.mxu0 0.0
        %1376 = vmatpush2.msra.mxu0 0.0
        %1377 = vmatprep.subr.mxu0 0.0
        %1378 = vmatpush2.msra.mxu0 0.0
        %1379 = vmatprep.subr.mxu0 0.0
        %1380 = vmatpush2.msra.mxu0 0.0
        %1381 = vmatprep.mubr.f32.mxu0 0.0
        %1382 = vmatmul.mubr.f32.gmra.mxu0 %v1315
        %v1383 = vpop.f32.mrf.mxu0
        %v1384 = vadd.f32 %v1311, %v1383
        %v1385 = vpop.f32.mrf.mxu0
        %1386 = vdwg.mxu0
        %1387 = vrot.lane.b32.xlu0 %v900, 96
        %v1388 = vpop.permute.xlu0 %1387
        %1389 = vrot.lane.b32.xlu0 %v900, 32
        %v1390 = vpop.permute.xlu0 %1389
        %v1391 = vsel %vm907, %v1388, 0
        %v1393 = vsel %vm907, %v1390, 0
        %1395 = vmatprep.subr.mxu0 0.0
        %1396 = vmatpush1.xpose.msra.mxu0 0.0
        %1397 = vmatprep.subr.mxu0 0.0
        %1398 = vmatpush1.xpose.msra.mxu0 0.0
        %1399 = vmatprep.subr.mxu0 0.0
        %1400 = vmatpush1.xpose.msra.mxu0 0.0
        %1401 = vmatprep.subr.mxu0 0.0
        %1402 = vmatpush1.xpose.msra.mxu0 0.0
        %1403 = vmatprep.subr.mxu0 0.0
        %1404 = vmatpush1.xpose.msra.mxu0 0.0
        %1405 = vmatprep.subr.mxu0 0.0
        %1406 = vmatpush1.xpose.msra.mxu0 0.0
        %1407 = vmatprep.subr.mxu0 0.0
        %1408 = vmatpush1.xpose.msra.mxu0 0.0
        %1409 = vmatprep.subr.mxu0 0.0
        %1410 = vmatpush1.xpose.msra.mxu0 0.0
        %1411 = vmatprep.subr.mxu0 0.0
        %1412 = vmatpush1.xpose.msra.mxu0 0.0
        %1413 = vmatprep.subr.mxu0 0.0
        %1414 = vmatpush1.xpose.msra.mxu0 0.0
        %1415 = vmatprep.subr.mxu0 0.0
        %1416 = vmatpush1.xpose.msra.mxu0 0.0
        %1417 = vmatprep.subr.mxu0 0.0
        %1418 = vmatpush1.xpose.msra.mxu0 0.0
        %1419 = vmatprep.subr.mxu0 0.0
        %1420 = vmatpush1.xpose.msra.mxu0 0.0
        %1421 = vmatprep.subr.mxu0 0.0
        %1422 = vmatpush1.xpose.msra.mxu0 0.0
        %1423 = vmatprep.subr.mxu0 0.0
        %1424 = vmatpush1.xpose.msra.mxu0 0.0
        %1425 = vmatprep.subr.mxu0 0.0
        %1426 = vmatpush1.xpose.msra.mxu0 %v1393
        %1427 = vmatprep.subr.mxu0 0.0
        %1428 = vmatpush2.xpose.msra.mxu0 0.0
        %1429 = vmatprep.subr.mxu0 0.0
        %1430 = vmatpush2.xpose.msra.mxu0 0.0
        %1431 = vmatprep.subr.mxu0 0.0
        %1432 = vmatpush2.xpose.msra.mxu0 0.0
        %1433 = vmatprep.subr.mxu0 0.0
        %1434 = vmatpush2.xpose.msra.mxu0 0.0
        %1435 = vmatprep.subr.mxu0 0.0
        %1436 = vmatpush2.xpose.msra.mxu0 0.0
        %1437 = vmatprep.subr.mxu0 0.0
        %1438 = vmatpush2.xpose.msra.mxu0 0.0
        %1439 = vmatprep.subr.mxu0 0.0
        %1440 = vmatpush2.xpose.msra.mxu0 0.0
        %1441 = vmatprep.subr.mxu0 0.0
        %1442 = vmatpush2.xpose.msra.mxu0 0.0
        %1443 = vmatprep.subr.mxu0 0.0
        %1444 = vmatpush2.xpose.msra.mxu0 0.0
        %1445 = vmatprep.subr.mxu0 0.0
        %1446 = vmatpush2.xpose.msra.mxu0 0.0
        %1447 = vmatprep.subr.mxu0 0.0
        %1448 = vmatpush2.xpose.msra.mxu0 0.0
        %1449 = vmatprep.subr.mxu0 0.0
        %1450 = vmatpush2.xpose.msra.mxu0 0.0
        %1451 = vmatprep.subr.mxu0 0.0
        %1452 = vmatpush2.xpose.msra.mxu0 0.0
        %1453 = vmatprep.subr.mxu0 0.0
        %1454 = vmatpush2.xpose.msra.mxu0 0.0
        %1455 = vmatprep.subr.mxu0 0.0
        %1456 = vmatpush2.xpose.msra.mxu0 0.0
        %1457 = vmatprep.subr.mxu0 0.0
        %1458 = vmatpush2.xpose.msra.mxu0 0.0
        %1459 = vmatprep.mubr.f32.mxu0 0.0
        %1460 = vmatmul.mubr.f32.gmra.mxu0 %v1391
        %v1461 = vpop.f32.mrf.mxu0
        %v1462 = vadd.f32 0.0, %v1461
        %v1463 = vpop.f32.mrf.mxu0
        %1464 = vdwg.mxu0
        %v1465 = vmul.f32 %v1462, 0.25
        %v1466 = vadd.f32 %v1465, %v799
        %v1467 = vsel %vm984, %v1466, -inf
        %1468 = vmax.xlane.f32.xlu0 %v1467
        %v1469 = vpop.xlane.xlu0 %1468
        %v1470 = vsub.f32 %v1466, %v1469
        %v1471 = vmul.f32 %v1470, 1.442695
        %v1472 = vpow.pop %v1471
        %v1473 = vsel %vm984, %v1472, 0.0
        %1474 = vadd.xlane.f32.xlu0 %v1473
        %v1475 = vpop.xlane.xlu0 %1474
        %v1476 = vrcp.pop %v1475
        %v1477 = vmul.f32 %v1472, %v1476
        %1478 = vrot.lane.b32.xlu0 %v902, 96
        %v1479 = vpop.permute.xlu0 %1478
        %v1482 = vsel %vm984, %v1477, 0
        %1484 = vmatprep.subr.mxu0 0.0
        %1485 = vmatpush1.msra.mxu0 0.0
        %1486 = vmatprep.subr.mxu0 0.0
        %1487 = vmatpush1.msra.mxu0 0.0
        %1488 = vmatprep.subr.mxu0 0.0
        %1489 = vmatpush1.msra.mxu0 0.0
        %1490 = vmatprep.subr.mxu0 0.0
        %1491 = vmatpush1.msra.mxu0 0.0
        %1492 = vmatprep.subr.mxu0 0.0
        %1493 = vmatpush1.msra.mxu0 0.0
        %1494 = vmatprep.subr.mxu0 0.0
        %1495 = vmatpush1.msra.mxu0 0.0
        %1496 = vmatprep.subr.mxu0 0.0
        %1497 = vmatpush1.msra.mxu0 0.0
        %1498 = vmatprep.subr.mxu0 0.0
        %1499 = vmatpush1.msra.mxu0 0.0
        %1500 = vmatprep.subr.mxu0 0.0
        %1501 = vmatpush1.msra.mxu0 0.0
        %1502 = vmatprep.subr.mxu0 0.0
        %1503 = vmatpush1.msra.mxu0 0.0
        %1504 = vmatprep.subr.mxu0 0.0
        %1505 = vmatpush1.msra.mxu0 0.0
        %1506 = vmatprep.subr.mxu0 0.0
        %1507 = vmatpush1.msra.mxu0 0.0
        %1508 = vmatprep.subr.mxu0 0.0
        %1509 = vmatpush1.msra.mxu0 0.0
        %1510 = vmatprep.subr.mxu0 0.0
        %1511 = vmatpush1.msra.mxu0 0.0
        %1512 = vmatprep.subr.mxu0 0.0
        %1513 = vmatpush1.msra.mxu0 0.0
        %1514 = vmatprep.subr.mxu0 0.0
        %1515 = vmatpush1.msra.mxu0 %v1479
        %1516 = vmatprep.subr.mxu0 0.0
        %1517 = vmatpush2.msra.mxu0 0.0
        %1518 = vmatprep.subr.mxu0 0.0
        %1519 = vmatpush2.msra.mxu0 0.0
        %1520 = vmatprep.subr.mxu0 0.0
        %1521 = vmatpush2.msra.mxu0 0.0
        %1522 = vmatprep.subr.mxu0 0.0
        %1523 = vmatpush2.msra.mxu0 0.0
        %1524 = vmatprep.subr.mxu0 0.0
        %1525 = vmatpush2.msra.mxu0 0.0
        %1526 = vmatprep.subr.mxu0 0.0
        %1527 = vmatpush2.msra.mxu0 0.0
        %1528 = vmatprep.subr.mxu0 0.0
        %1529 = vmatpush2.msra.mxu0 0.0
        %1530 = vmatprep.subr.mxu0 0.0
        %1531 = vmatpush2.msra.mxu0 0.0
        %1532 = vmatprep.subr.mxu0 0.0
        %1533 = vmatpush2.msra.mxu0 0.0
        %1534 = vmatprep.subr.mxu0 0.0
        %1535 = vmatpush2.msra.mxu0 0.0
        %1536 = vmatprep.subr.mxu0 0.0
        %1537 = vmatpush2.msra.mxu0 0.0
        %1538 = vmatprep.subr.mxu0 0.0
        %1539 = vmatpush2.msra.mxu0 0.0
        %1540 = vmatprep.subr.mxu0 0.0
        %1541 = vmatpush2.msra.mxu0 0.0
        %1542 = vmatprep.subr.mxu0 0.0
        %1543 = vmatpush2.msra.mxu0 0.0
        %1544 = vmatprep.subr.mxu0 0.0
        %1545 = vmatpush2.msra.mxu0 0.0
        %1546 = vmatprep.subr.mxu0 0.0
        %1547 = vmatpush2.msra.mxu0 0.0
        %1548 = vmatprep.mubr.f32.mxu0 0.0
        %1549 = vmatmul.mubr.f32.gmra.mxu0 %v1482
        %v1550 = vpop.f32.mrf.mxu0
        %v1551 = vadd.f32 0.0, %v1550
        %v1552 = vpop.f32.mrf.mxu0
        %1553 = vdwg.mxu0
        %v1554 = vld [vmem:[%s6 + $0x20] sm:$0xff]
        %v1555 = vld [vmem:[%s6 + $0x28] sm:$0xff]
        %v1557 = vsel %vm907, %v1551, 0
        %1559 = vmatprep.subr.mxu0 0.0
        %1560 = vmatpush1.msra.mxu0 0.0
        %1561 = vmatprep.subr.mxu0 0.0
        %1562 = vmatpush1.msra.mxu0 0.0
        %1563 = vmatprep.subr.mxu0 0.0
        %1564 = vmatpush1.msra.mxu0 0.0
        %1565 = vmatprep.subr.mxu0 0.0
        %1566 = vmatpush1.msra.mxu0 0.0
        %1567 = vmatprep.subr.mxu0 0.0
        %1568 = vmatpush1.msra.mxu0 0.0
        %1569 = vmatprep.subr.mxu0 0.0
        %1570 = vmatpush1.msra.mxu0 0.0
        %1571 = vmatprep.subr.mxu0 0.0
        %1572 = vmatpush1.msra.mxu0 0.0
        %1573 = vmatprep.subr.mxu0 0.0
        %1574 = vmatpush1.msra.mxu0 0.0
        %1575 = vmatprep.subr.mxu0 0.0
        %1576 = vmatpush1.msra.mxu0 0.0
        %1577 = vmatprep.subr.mxu0 0.0
        %1578 = vmatpush1.msra.mxu0 0.0
        %1579 = vmatprep.subr.mxu0 0.0
        %1580 = vmatpush1.msra.mxu0 0.0
        %1581 = vmatprep.subr.mxu0 0.0
        %1582 = vmatpush1.msra.mxu0 0.0
        %1583 = vmatprep.subr.mxu0 0.0
        %1584 = vmatpush1.msra.mxu0 0.0
        %1585 = vmatprep.subr.mxu0 0.0
        %1586 = vmatpush1.msra.mxu0 0.0
        %1587 = vmatprep.subr.mxu0 0.0
        %1588 = vmatpush1.msra.mxu0 %v1555
        %1589 = vmatprep.subr.mxu0 0.0
        %1590 = vmatpush1.msra.mxu0 %v1554
        %1591 = vmatprep.subr.mxu0 0.0
        %1592 = vmatpush2.msra.mxu0 0.0
        %1593 = vmatprep.subr.mxu0 0.0
        %1594 = vmatpush2.msra.mxu0 0.0
        %1595 = vmatprep.subr.mxu0 0.0
        %1596 = vmatpush2.msra.mxu0 0.0
        %1597 = vmatprep.subr.mxu0 0.0
        %1598 = vmatpush2.msra.mxu0 0.0
        %1599 = vmatprep.subr.mxu0 0.0
        %1600 = vmatpush2.msra.mxu0 0.0
        %1601 = vmatprep.subr.mxu0 0.0
        %1602 = vmatpush2.msra.mxu0 0.0
        %1603 = vmatprep.subr.mxu0 0.0
        %1604 = vmatpush2.msra.mxu0 0.0
        %1605 = vmatprep.subr.mxu0 0.0
        %1606 = vmatpush2.msra.mxu0 0.0
        %1607 = vmatprep.subr.mxu0 0.0
        %1608 = vmatpush2.msra.mxu0 0.0
        %1609 = vmatprep.subr.mxu0 0.0
        %1610 = vmatpush2.msra.mxu0 0.0
        %1611 = vmatprep.subr.mxu0 0.0
        %1612 = vmatpush2.msra.mxu0 0.0
        %1613 = vmatprep.subr.mxu0 0.0
        %1614 = vmatpush2.msra.mxu0 0.0
        %1615 = vmatprep.subr.mxu0 0.0
        %1616 = vmatpush2.msra.mxu0 0.0
        %1617 = vmatprep.subr.mxu0 0.0
        %1618 = vmatpush2.msra.mxu0 0.0
        %1619 = vmatprep.subr.mxu0 0.0
        %1620 = vmatpush2.msra.mxu0 0.0
        %1621 = vmatprep.subr.mxu0 0.0
        %1622 = vmatpush2.msra.mxu0 0.0
        %1623 = vmatprep.mubr.f32.mxu0 0.0
        %1624 = vmatmul.mubr.f32.gmra.mxu0 %v1557
        %v1625 = vpop.f32.mrf.mxu0
        %v1626 = vadd.f32 0.0, %v1625
        %v1627 = vpop.f32.mrf.mxu0
        %1628 = vdwg.mxu0
        %v1629 = vadd.f32 %v1384, %v1626
        %1630 = vrot.lane.b32.xlu0 %v900, 80
        %v1631 = vpop.permute.xlu0 %1630
        %1632 = vrot.lane.b32.xlu0 %v900, 16
        %v1633 = vpop.permute.xlu0 %1632
        %v1634 = vsel %vm907, %v1631, 0
        %v1636 = vsel %vm907, %v1633, 0
        %1638 = vmatprep.subr.mxu0 0.0
        %1639 = vmatpush1.xpose.msra.mxu0 0.0
        %1640 = vmatprep.subr.mxu0 0.0
        %1641 = vmatpush1.xpose.msra.mxu0 0.0
        %1642 = vmatprep.subr.mxu0 0.0
        %1643 = vmatpush1.xpose.msra.mxu0 0.0
        %1644 = vmatprep.subr.mxu0 0.0
        %1645 = vmatpush1.xpose.msra.mxu0 0.0
        %1646 = vmatprep.subr.mxu0 0.0
        %1647 = vmatpush1.xpose.msra.mxu0 0.0
        %1648 = vmatprep.subr.mxu0 0.0
        %1649 = vmatpush1.xpose.msra.mxu0 0.0
        %1650 = vmatprep.subr.mxu0 0.0
        %1651 = vmatpush1.xpose.msra.mxu0 0.0
        %1652 = vmatprep.subr.mxu0 0.0
        %1653 = vmatpush1.xpose.msra.mxu0 0.0
        %1654 = vmatprep.subr.mxu0 0.0
        %1655 = vmatpush1.xpose.msra.mxu0 0.0
        %1656 = vmatprep.subr.mxu0 0.0
        %1657 = vmatpush1.xpose.msra.mxu0 0.0
        %1658 = vmatprep.subr.mxu0 0.0
        %1659 = vmatpush1.xpose.msra.mxu0 0.0
        %1660 = vmatprep.subr.mxu0 0.0
        %1661 = vmatpush1.xpose.msra.mxu0 0.0
        %1662 = vmatprep.subr.mxu0 0.0
        %1663 = vmatpush1.xpose.msra.mxu0 0.0
        %1664 = vmatprep.subr.mxu0 0.0
        %1665 = vmatpush1.xpose.msra.mxu0 0.0
        %1666 = vmatprep.subr.mxu0 0.0
        %1667 = vmatpush1.xpose.msra.mxu0 0.0
        %1668 = vmatprep.subr.mxu0 0.0
        %1669 = vmatpush1.xpose.msra.mxu0 %v1636
        %1670 = vmatprep.subr.mxu0 0.0
        %1671 = vmatpush2.xpose.msra.mxu0 0.0
        %1672 = vmatprep.subr.mxu0 0.0
        %1673 = vmatpush2.xpose.msra.mxu0 0.0
        %1674 = vmatprep.subr.mxu0 0.0
        %1675 = vmatpush2.xpose.msra.mxu0 0.0
        %1676 = vmatprep.subr.mxu0 0.0
        %1677 = vmatpush2.xpose.msra.mxu0 0.0
        %1678 = vmatprep.subr.mxu0 0.0
        %1679 = vmatpush2.xpose.msra.mxu0 0.0
        %1680 = vmatprep.subr.mxu0 0.0
        %1681 = vmatpush2.xpose.msra.mxu0 0.0
        %1682 = vmatprep.subr.mxu0 0.0
        %1683 = vmatpush2.xpose.msra.mxu0 0.0
        %1684 = vmatprep.subr.mxu0 0.0
        %1685 = vmatpush2.xpose.msra.mxu0 0.0
        %1686 = vmatprep.subr.mxu0 0.0
        %1687 = vmatpush2.xpose.msra.mxu0 0.0
        %1688 = vmatprep.subr.mxu0 0.0
        %1689 = vmatpush2.xpose.msra.mxu0 0.0
        %1690 = vmatprep.subr.mxu0 0.0
        %1691 = vmatpush2.xpose.msra.mxu0 0.0
        %1692 = vmatprep.subr.mxu0 0.0
        %1693 = vmatpush2.xpose.msra.mxu0 0.0
        %1694 = vmatprep.subr.mxu0 0.0
        %1695 = vmatpush2.xpose.msra.mxu0 0.0
        %1696 = vmatprep.subr.mxu0 0.0
        %1697 = vmatpush2.xpose.msra.mxu0 0.0
        %1698 = vmatprep.subr.mxu0 0.0
        %1699 = vmatpush2.xpose.msra.mxu0 0.0
        %1700 = vmatprep.subr.mxu0 0.0
        %1701 = vmatpush2.xpose.msra.mxu0 0.0
        %1702 = vmatprep.mubr.f32.mxu0 0.0
        %1703 = vmatmul.mubr.f32.gmra.mxu0 %v1634
        %v1704 = vpop.f32.mrf.mxu0
        %v1705 = vadd.f32 0.0, %v1704
        %v1706 = vpop.f32.mrf.mxu0
        %1707 = vdwg.mxu0
        %v1708 = vmul.f32 %v1705, 0.25
        %v1709 = vadd.f32 %v1708, %v799
        %v1710 = vsel %vm984, %v1709, -inf
        %1711 = vmax.xlane.f32.xlu0 %v1710
        %v1712 = vpop.xlane.xlu0 %1711
        %v1713 = vsub.f32 %v1709, %v1712
        %v1714 = vmul.f32 %v1713, 1.442695
        %v1715 = vpow.pop %v1714
        %v1716 = vsel %vm984, %v1715, 0.0
        %1717 = vadd.xlane.f32.xlu0 %v1716
        %v1718 = vpop.xlane.xlu0 %1717
        %v1719 = vrcp.pop %v1718
        %v1720 = vmul.f32 %v1715, %v1719
        %1721 = vrot.lane.b32.xlu0 %v902, 80
        %v1722 = vpop.permute.xlu0 %1721
        %v1725 = vsel %vm984, %v1720, 0
        %1727 = vmatprep.subr.mxu0 0.0
        %1728 = vmatpush1.msra.mxu0 0.0
        %1729 = vmatprep.subr.mxu0 0.0
        %1730 = vmatpush1.msra.mxu0 0.0
        %1731 = vmatprep.subr.mxu0 0.0
        %1732 = vmatpush1.msra.mxu0 0.0
        %1733 = vmatprep.subr.mxu0 0.0
        %1734 = vmatpush1.msra.mxu0 0.0
        %1735 = vmatprep.subr.mxu0 0.0
        %1736 = vmatpush1.msra.mxu0 0.0
        %1737 = vmatprep.subr.mxu0 0.0
        %1738 = vmatpush1.msra.mxu0 0.0
        %1739 = vmatprep.subr.mxu0 0.0
        %1740 = vmatpush1.msra.mxu0 0.0
        %1741 = vmatprep.subr.mxu0 0.0
        %1742 = vmatpush1.msra.mxu0 0.0
        %1743 = vmatprep.subr.mxu0 0.0
        %1744 = vmatpush1.msra.mxu0 0.0
        %1745 = vmatprep.subr.mxu0 0.0
        %1746 = vmatpush1.msra.mxu0 0.0
        %1747 = vmatprep.subr.mxu0 0.0
        %1748 = vmatpush1.msra.mxu0 0.0
        %1749 = vmatprep.subr.mxu0 0.0
        %1750 = vmatpush1.msra.mxu0 0.0
        %1751 = vmatprep.subr.mxu0 0.0
        %1752 = vmatpush1.msra.mxu0 0.0
        %1753 = vmatprep.subr.mxu0 0.0
        %1754 = vmatpush1.msra.mxu0 0.0
        %1755 = vmatprep.subr.mxu0 0.0
        %1756 = vmatpush1.msra.mxu0 0.0
        %1757 = vmatprep.subr.mxu0 0.0
        %1758 = vmatpush1.msra.mxu0 %v1722
        %1759 = vmatprep.subr.mxu0 0.0
        %1760 = vmatpush2.msra.mxu0 0.0
        %1761 = vmatprep.subr.mxu0 0.0
        %1762 = vmatpush2.msra.mxu0 0.0
        %1763 = vmatprep.subr.mxu0 0.0
        %1764 = vmatpush2.msra.mxu0 0.0
        %1765 = vmatprep.subr.mxu0 0.0
        %1766 = vmatpush2.msra.mxu0 0.0
        %1767 = vmatprep.subr.mxu0 0.0
        %1768 = vmatpush2.msra.mxu0 0.0
        %1769 = vmatprep.subr.mxu0 0.0
        %1770 = vmatpush2.msra.mxu0 0.0
        %1771 = vmatprep.subr.mxu0 0.0
        %1772 = vmatpush2.msra.mxu0 0.0
        %1773 = vmatprep.subr.mxu0 0.0
        %1774 = vmatpush2.msra.mxu0 0.0
        %1775 = vmatprep.subr.mxu0 0.0
        %1776 = vmatpush2.msra.mxu0 0.0
        %1777 = vmatprep.subr.mxu0 0.0
        %1778 = vmatpush2.msra.mxu0 0.0
        %1779 = vmatprep.subr.mxu0 0.0
        %1780 = vmatpush2.msra.mxu0 0.0
        %1781 = vmatprep.subr.mxu0 0.0
        %1782 = vmatpush2.msra.mxu0 0.0
        %1783 = vmatprep.subr.mxu0 0.0
        %1784 = vmatpush2.msra.mxu0 0.0
        %1785 = vmatprep.subr.mxu0 0.0
        %1786 = vmatpush2.msra.mxu0 0.0
        %1787 = vmatprep.subr.mxu0 0.0
        %1788 = vmatpush2.msra.mxu0 0.0
        %1789 = vmatprep.subr.mxu0 0.0
        %1790 = vmatpush2.msra.mxu0 0.0
        %1791 = vmatprep.mubr.f32.mxu0 0.0
        %1792 = vmatmul.mubr.f32.gmra.mxu0 %v1725
        %v1793 = vpop.f32.mrf.mxu0
        %v1794 = vadd.f32 0.0, %v1793
        %v1795 = vpop.f32.mrf.mxu0
        %1796 = vdwg.mxu0
        %v1797 = vld [vmem:[%s6 + $0x30] sm:$0xff]
        %v1798 = vld [vmem:[%s6 + $0x38] sm:$0xff]
        %v1800 = vsel %vm907, %v1794, 0
        %1802 = vmatprep.subr.mxu0 0.0
        %1803 = vmatpush1.msra.mxu0 0.0
        %1804 = vmatprep.subr.mxu0 0.0
        %1805 = vmatpush1.msra.mxu0 0.0
        %1806 = vmatprep.subr.mxu0 0.0
        %1807 = vmatpush1.msra.mxu0 0.0
        %1808 = vmatprep.subr.mxu0 0.0
        %1809 = vmatpush1.msra.mxu0 0.0
        %1810 = vmatprep.subr.mxu0 0.0
        %1811 = vmatpush1.msra.mxu0 0.0
        %1812 = vmatprep.subr.mxu0 0.0
        %1813 = vmatpush1.msra.mxu0 0.0
        %1814 = vmatprep.subr.mxu0 0.0
        %1815 = vmatpush1.msra.mxu0 0.0
        %1816 = vmatprep.subr.mxu0 0.0
        %1817 = vmatpush1.msra.mxu0 0.0
        %1818 = vmatprep.subr.mxu0 0.0
        %1819 = vmatpush1.msra.mxu0 0.0
        %1820 = vmatprep.subr.mxu0 0.0
        %1821 = vmatpush1.msra.mxu0 0.0
        %1822 = vmatprep.subr.mxu0 0.0
        %1823 = vmatpush1.msra.mxu0 0.0
        %1824 = vmatprep.subr.mxu0 0.0
        %1825 = vmatpush1.msra.mxu0 0.0
        %1826 = vmatprep.subr.mxu0 0.0
        %1827 = vmatpush1.msra.mxu0 0.0
        %1828 = vmatprep.subr.mxu0 0.0
        %1829 = vmatpush1.msra.mxu0 0.0
        %1830 = vmatprep.subr.mxu0 0.0
        %1831 = vmatpush1.msra.mxu0 %v1798
        %1832 = vmatprep.subr.mxu0 0.0
        %1833 = vmatpush1.msra.mxu0 %v1797
        %1834 = vmatprep.subr.mxu0 0.0
        %1835 = vmatpush2.msra.mxu0 0.0
        %1836 = vmatprep.subr.mxu0 0.0
        %1837 = vmatpush2.msra.mxu0 0.0
        %1838 = vmatprep.subr.mxu0 0.0
        %1839 = vmatpush2.msra.mxu0 0.0
        %1840 = vmatprep.subr.mxu0 0.0
        %1841 = vmatpush2.msra.mxu0 0.0
        %1842 = vmatprep.subr.mxu0 0.0
        %1843 = vmatpush2.msra.mxu0 0.0
        %1844 = vmatprep.subr.mxu0 0.0
        %1845 = vmatpush2.msra.mxu0 0.0
        %1846 = vmatprep.subr.mxu0 0.0
        %1847 = vmatpush2.msra.mxu0 0.0
        %1848 = vmatprep.subr.mxu0 0.0
        %1849 = vmatpush2.msra.mxu0 0.0
        %1850 = vmatprep.subr.mxu0 0.0
        %1851 = vmatpush2.msra.mxu0 0.0
        %1852 = vmatprep.subr.mxu0 0.0
        %1853 = vmatpush2.msra.mxu0 0.0
        %1854 = vmatprep.subr.mxu0 0.0
        %1855 = vmatpush2.msra.mxu0 0.0
        %1856 = vmatprep.subr.mxu0 0.0
        %1857 = vmatpush2.msra.mxu0 0.0
        %1858 = vmatprep.subr.mxu0 0.0
        %1859 = vmatpush2.msra.mxu0 0.0
        %1860 = vmatprep.subr.mxu0 0.0
        %1861 = vmatpush2.msra.mxu0 0.0
        %1862 = vmatprep.subr.mxu0 0.0
        %1863 = vmatpush2.msra.mxu0 0.0
        %1864 = vmatprep.subr.mxu0 0.0
        %1865 = vmatpush2.msra.mxu0 0.0
        %1866 = vmatprep.mubr.f32.mxu0 0.0
        %1867 = vmatmul.mubr.f32.gmra.mxu0 %v1800
        %v1868 = vpop.f32.mrf.mxu0
        %v1869 = vadd.f32 0.0, %v1868
        %v1870 = vpop.f32.mrf.mxu0
        %1871 = vdwg.mxu0
        %v1872 = vadd.f32 %v1629, %v1869
        %v1873 = vld [vmem:[%s7] sm:$0x1]
        %v1875 = vlaneseq
        %v1876 = vshrl.u32 %v1875, 7
        %v1877 = vsub.s32 0, %v1876
        %v1878 = vrot.slane %v1873, %v1877
        %v1880 = vadd.f32 %v1872, %v1878
        %v1881 = vadd.f32 %v797, %v1880
        %v1882 = vld [vmem:[%s18] sm:$0x1]
        %v1883 = vld [vmem:[%s19] sm:$0x1]
        %v1884 = vsel %vm829, %v1881, 0.0
        %1885 = vadd.xlane.f32.xlu0 %v1884
        %v1886 = vpop.xlane.xlu0 %1885
        %v1887 = vrcp.pop 64.0
        %v1888 = vmul.f32 %v1886, %v1887
        %v1889 = vsub.f32 %v1881, %v1888
        %v1890 = vmul.f32 %v1889, %v1889
        %v1891 = vsel %vm829, %v1890, 0.0
        %1892 = vadd.xlane.f32.xlu0 %v1891
        %v1893 = vpop.xlane.xlu0 %1892
        %v1894 = vmul.f32 %v1893, %v1887
        %v1895 = vadd.f32 %v1894, 1e-05
        %v1896 = vrsqrt.pop %v1895
        %v1897 = vmul.f32 %v1889, %v1896
        %v1899 = vlaneseq
        %v1900 = vshrl.u32 %v1899, 7
        %v1901 = vsub.s32 0, %v1900
        %v1902 = vrot.slane %v1882, %v1901
        %v1904 = vmul.f32 %v1897, %v1902
        %v1906 = vlaneseq
        %v1907 = vshrl.u32 %v1906, 7
        %v1908 = vsub.s32 0, %v1907
        %v1909 = vrot.slane %v1883, %v1908
        %v1911 = vadd.f32 %v1904, %v1909
        %v1912 = vld [vmem:[%s8] sm:$0xff]
        %v1913 = vld [vmem:[%s8 + $0x8] sm:$0xff]
        %v1914 = vld [vmem:[%s8 + $0x10] sm:$0xff]
        %v1915 = vld [vmem:[%s8 + $0x18] sm:$0xff]
        %v1916 = vld [vmem:[%s8 + $0x20] sm:$0xff]
        %v1917 = vld [vmem:[%s8 + $0x28] sm:$0xff]
        %v1918 = vld [vmem:[%s8 + $0x30] sm:$0xff]
        %v1919 = vld [vmem:[%s8 + $0x38] sm:$0xff]
        %v1920 = vld [vmem:[%s9] sm:$0x1]
        %v1922 = vlaneseq
        %v1923 = vshrl.u32 %v1922, 7
        %v1924 = vsub.s32 0, %v1923
        %v1925 = vrot.slane %v1920, %v1924
        %v1928 = vsel %vm829, %v1911, 0
        %1930 = vmatprep.subr.mxu0 0.0
        %1931 = vmatpush1.msra.mxu0 0.0
        %1932 = vmatprep.subr.mxu0 0.0
        %1933 = vmatpush1.msra.mxu0 0.0
        %1934 = vmatprep.subr.mxu0 0.0
        %1935 = vmatpush1.msra.mxu0 0.0
        %1936 = vmatprep.subr.mxu0 0.0
        %1937 = vmatpush1.msra.mxu0 0.0
        %1938 = vmatprep.subr.mxu0 0.0
        %1939 = vmatpush1.msra.mxu0 0.0
        %1940 = vmatprep.subr.mxu0 0.0
        %1941 = vmatpush1.msra.mxu0 0.0
        %1942 = vmatprep.subr.mxu0 0.0
        %1943 = vmatpush1.msra.mxu0 0.0
        %1944 = vmatprep.subr.mxu0 0.0
        %1945 = vmatpush1.msra.mxu0 0.0
        %1946 = vmatprep.subr.mxu0 0.0
        %1947 = vmatpush1.msra.mxu0 %v1919
        %1948 = vmatprep.subr.mxu0 0.0
        %1949 = vmatpush1.msra.mxu0 %v1918
        %1950 = vmatprep.subr.mxu0 0.0
        %1951 = vmatpush1.msra.mxu0 %v1917
        %1952 = vmatprep.subr.mxu0 0.0
        %1953 = vmatpush1.msra.mxu0 %v1916
        %1954 = vmatprep.subr.mxu0 0.0
        %1955 = vmatpush1.msra.mxu0 %v1915
        %1956 = vmatprep.subr.mxu0 0.0
        %1957 = vmatpush1.msra.mxu0 %v1914
        %1958 = vmatprep.subr.mxu0 0.0
        %1959 = vmatpush1.msra.mxu0 %v1913
        %1960 = vmatprep.subr.mxu0 0.0
        %1961 = vmatpush1.msra.mxu0 %v1912
        %1962 = vmatprep.subr.mxu0 0.0
        %1963 = vmatpush2.msra.mxu0 0.0
        %1964 = vmatprep.subr.mxu0 0.0
        %1965 = vmatpush2.msra.mxu0 0.0
        %1966 = vmatprep.subr.mxu0 0.0
        %1967 = vmatpush2.msra.mxu0 0.0
        %1968 = vmatprep.subr.mxu0 0.0
        %1969 = vmatpush2.msra.mxu0 0.0
        %1970 = vmatprep.subr.mxu0 0.0
        %1971 = vmatpush2.msra.mxu0 0.0
        %1972 = vmatprep.subr.mxu0 0.0
        %1973 = vmatpush2.msra.mxu0 0.0
        %1974 = vmatprep.subr.mxu0 0.0
        %1975 = vmatpush2.msra.mxu0 0.0
        %1976 = vmatprep.subr.mxu0 0.0
        %1977 = vmatpush2.msra.mxu0 0.0
        %1978 = vmatprep.subr.mxu0 0.0
        %1979 = vmatpush2.msra.mxu0 0.0
        %1980 = vmatprep.subr.mxu0 0.0
        %1981 = vmatpush2.msra.mxu0 0.0
        %1982 = vmatprep.subr.mxu0 0.0
        %1983 = vmatpush2.msra.mxu0 0.0
        %1984 = vmatprep.subr.mxu0 0.0
        %1985 = vmatpush2.msra.mxu0 0.0
        %1986 = vmatprep.subr.mxu0 0.0
        %1987 = vmatpush2.msra.mxu0 0.0
        %1988 = vmatprep.subr.mxu0 0.0
        %1989 = vmatpush2.msra.mxu0 0.0
        %1990 = vmatprep.subr.mxu0 0.0
        %1991 = vmatpush2.msra.mxu0 0.0
        %1992 = vmatprep.subr.mxu0 0.0
        %1993 = vmatpush2.msra.mxu0 0.0
        %1994 = vmatprep.mubr.f32.mxu0 0.0
        %1995 = vmatmul.mubr.f32.gmra.mxu0 %v1928
        %v1996 = vpop.f32.mrf.mxu0
        %v1997 = vadd.f32 %v1925, %v1996
        %v1998 = vpop.f32.mrf.mxu0
        %1999 = vdwg.mxu0
        %v2000 = vld [vmem:[%s10] sm:$0xff]
        %v2001 = vld [vmem:[%s10 + $0x8] sm:$0xff]
        %v2002 = vld [vmem:[%s10 + $0x10] sm:$0xff]
        %v2003 = vld [vmem:[%s10 + $0x18] sm:$0xff]
        %v2004 = vld [vmem:[%s10 + $0x20] sm:$0xff]
        %v2005 = vld [vmem:[%s10 + $0x28] sm:$0xff]
        %v2006 = vld [vmem:[%s10 + $0x30] sm:$0xff]
        %v2007 = vld [vmem:[%s10 + $0x38] sm:$0xff]
        %v2008 = vld [vmem:[%s11] sm:$0x1]
        %v2010 = vlaneseq
        %v2011 = vshrl.u32 %v2010, 7
        %v2012 = vsub.s32 0, %v2011
        %v2013 = vrot.slane %v2008, %v2012
        %v2016 = vsel %vm829, %v798, 0
        %2018 = vmatprep.subr.mxu0 0.0
        %2019 = vmatpush1.msra.mxu0 0.0
        %2020 = vmatprep.subr.mxu0 0.0
        %2021 = vmatpush1.msra.mxu0 0.0
        %2022 = vmatprep.subr.mxu0 0.0
        %2023 = vmatpush1.msra.mxu0 0.0
        %2024 = vmatprep.subr.mxu0 0.0
        %2025 = vmatpush1.msra.mxu0 0.0
        %2026 = vmatprep.subr.mxu0 0.0
        %2027 = vmatpush1.msra.mxu0 0.0
        %2028 = vmatprep.subr.mxu0 0.0
        %2029 = vmatpush1.msra.mxu0 0.0
        %2030 = vmatprep.subr.mxu0 0.0
        %2031 = vmatpush1.msra.mxu0 0.0
        %2032 = vmatprep.subr.mxu0 0.0
        %2033 = vmatpush1.msra.mxu0 0.0
        %2034 = vmatprep.subr.mxu0 0.0
        %2035 = vmatpush1.msra.mxu0 %v2007
        %2036 = vmatprep.subr.mxu0 0.0
        %2037 = vmatpush1.msra.mxu0 %v2006
        %2038 = vmatprep.subr.mxu0 0.0
        %2039 = vmatpush1.msra.mxu0 %v2005
        %2040 = vmatprep.subr.mxu0 0.0
        %2041 = vmatpush1.msra.mxu0 %v2004
        %2042 = vmatprep.subr.mxu0 0.0
        %2043 = vmatpush1.msra.mxu0 %v2003
        %2044 = vmatprep.subr.mxu0 0.0
        %2045 = vmatpush1.msra.mxu0 %v2002
        %2046 = vmatprep.subr.mxu0 0.0
        %2047 = vmatpush1.msra.mxu0 %v2001
        %2048 = vmatprep.subr.mxu0 0.0
        %2049 = vmatpush1.msra.mxu0 %v2000
        %2050 = vmatprep.subr.mxu0 0.0
        %2051 = vmatpush2.msra.mxu0 0.0
        %2052 = vmatprep.subr.mxu0 0.0
        %2053 = vmatpush2.msra.mxu0 0.0
        %2054 = vmatprep.subr.mxu0 0.0
        %2055 = vmatpush2.msra.mxu0 0.0
        %2056 = vmatprep.subr.mxu0 0.0
        %2057 = vmatpush2.msra.mxu0 0.0
        %2058 = vmatprep.subr.mxu0 0.0
        %2059 = vmatpush2.msra.mxu0 0.0
        %2060 = vmatprep.subr.mxu0 0.0
        %2061 = vmatpush2.msra.mxu0 0.0
        %2062 = vmatprep.subr.mxu0 0.0
        %2063 = vmatpush2.msra.mxu0 0.0
        %2064 = vmatprep.subr.mxu0 0.0
        %2065 = vmatpush2.msra.mxu0 0.0
        %2066 = vmatprep.subr.mxu0 0.0
        %2067 = vmatpush2.msra.mxu0 0.0
        %2068 = vmatprep.subr.mxu0 0.0
        %2069 = vmatpush2.msra.mxu0 0.0
        %2070 = vmatprep.subr.mxu0 0.0
        %2071 = vmatpush2.msra.mxu0 0.0
        %2072 = vmatprep.subr.mxu0 0.0
        %2073 = vmatpush2.msra.mxu0 0.0
        %2074 = vmatprep.subr.mxu0 0.0
        %2075 = vmatpush2.msra.mxu0 0.0
        %2076 = vmatprep.subr.mxu0 0.0
        %2077 = vmatpush2.msra.mxu0 0.0
        %2078 = vmatprep.subr.mxu0 0.0
        %2079 = vmatpush2.msra.mxu0 0.0
        %2080 = vmatprep.subr.mxu0 0.0
        %2081 = vmatpush2.msra.mxu0 0.0
        %2082 = vmatprep.mubr.f32.mxu0 0.0
        %2083 = vmatmul.mubr.f32.gmra.mxu0 %v2016
        %v2084 = vpop.f32.mrf.mxu0
        %v2085 = vadd.f32 %v2013, %v2084
        %v2086 = vpop.f32.mrf.mxu0
        %2087 = vdwg.mxu0
        %v2089 = vsel %vm907, %v1997, 0
        %v2092 = vsel %vm907, %v2085, 0
        %2094 = vmatprep.subr.mxu0 0.0
        %2095 = vmatpush1.xpose.msra.mxu0 0.0
        %2096 = vmatprep.subr.mxu0 0.0
        %2097 = vmatpush1.xpose.msra.mxu0 0.0
        %2098 = vmatprep.subr.mxu0 0.0
        %2099 = vmatpush1.xpose.msra.mxu0 0.0
        %2100 = vmatprep.subr.mxu0 0.0
        %2101 = vmatpush1.xpose.msra.mxu0 0.0
        %2102 = vmatprep.subr.mxu0 0.0
        %2103 = vmatpush1.xpose.msra.mxu0 0.0
        %2104 = vmatprep.subr.mxu0 0.0
        %2105 = vmatpush1.xpose.msra.mxu0 0.0
        %2106 = vmatprep.subr.mxu0 0.0
        %2107 = vmatpush1.xpose.msra.mxu0 0.0
        %2108 = vmatprep.subr.mxu0 0.0
        %2109 = vmatpush1.xpose.msra.mxu0 0.0
        %2110 = vmatprep.subr.mxu0 0.0
        %2111 = vmatpush1.xpose.msra.mxu0 0.0
        %2112 = vmatprep.subr.mxu0 0.0
        %2113 = vmatpush1.xpose.msra.mxu0 0.0
        %2114 = vmatprep.subr.mxu0 0.0
        %2115 = vmatpush1.xpose.msra.mxu0 0.0
        %2116 = vmatprep.subr.mxu0 0.0
        %2117 = vmatpush1.xpose.msra.mxu0 0.0
        %2118 = vmatprep.subr.mxu0 0.0
        %2119 = vmatpush1.xpose.msra.mxu0 0.0
        %2120 = vmatprep.subr.mxu0 0.0
        %2121 = vmatpush1.xpose.msra.mxu0 0.0
        %2122 = vmatprep.subr.mxu0 0.0
        %2123 = vmatpush1.xpose.msra.mxu0 0.0
        %2124 = vmatprep.subr.mxu0 0.0
        %2125 = vmatpush1.xpose.msra.mxu0 %v2092
        %2126 = vmatprep.subr.mxu0 0.0
        %2127 = vmatpush2.xpose.msra.mxu0 0.0
        %2128 = vmatprep.subr.mxu0 0.0
        %2129 = vmatpush2.xpose.msra.mxu0 0.0
        %2130 = vmatprep.subr.mxu0 0.0
        %2131 = vmatpush2.xpose.msra.mxu0 0.0
        %2132 = vmatprep.subr.mxu0 0.0
        %2133 = vmatpush2.xpose.msra.mxu0 0.0
        %2134 = vmatprep.subr.mxu0 0.0
        %2135 = vmatpush2.xpose.msra.mxu0 0.0
        %2136 = vmatprep.subr.mxu0 0.0
        %2137 = vmatpush2.xpose.msra.mxu0 0.0
        %2138 = vmatprep.subr.mxu0 0.0
        %2139 = vmatpush2.xpose.msra.mxu0 0.0
        %2140 = vmatprep.subr.mxu0 0.0
        %2141 = vmatpush2.xpose.msra.mxu0 0.0
        %2142 = vmatprep.subr.mxu0 0.0
        %2143 = vmatpush2.xpose.msra.mxu0 0.0
        %2144 = vmatprep.subr.mxu0 0.0
        %2145 = vmatpush2.xpose.msra.mxu0 0.0
        %2146 = vmatprep.subr.mxu0 0.0
        %2147 = vmatpush2.xpose.msra.mxu0 0.0
        %2148 = vmatprep.subr.mxu0 0.0
        %2149 = vmatpush2.xpose.msra.mxu0 0.0
        %2150 = vmatprep.subr.mxu0 0.0
        %2151 = vmatpush2.xpose.msra.mxu0 0.0
        %2152 = vmatprep.subr.mxu0 0.0
        %2153 = vmatpush2.xpose.msra.mxu0 0.0
        %2154 = vmatprep.subr.mxu0 0.0
        %2155 = vmatpush2.xpose.msra.mxu0 0.0
        %2156 = vmatprep.subr.mxu0 0.0
        %2157 = vmatpush2.xpose.msra.mxu0 0.0
        %2158 = vmatprep.mubr.f32.mxu0 0.0
        %2159 = vmatmul.mubr.f32.gmra.mxu0 %v2089
        %v2160 = vpop.f32.mrf.mxu0
        %v2161 = vadd.f32 0.0, %v2160
        %v2162 = vpop.f32.mrf.mxu0
        %2163 = vdwg.mxu0
        %v2164 = vmul.f32 %v2161, 0.25
        %v2165 = vadd.f32 %v2164, %v800
        %v2166 = vsel %vm984, %v2165, -inf
        %2167 = vmax.xlane.f32.xlu0 %v2166
        %v2168 = vpop.xlane.xlu0 %2167
        %v2169 = vsub.f32 %v2165, %v2168
        %v2170 = vmul.f32 %v2169, 1.442695
        %v2171 = vpow.pop %v2170
        %v2172 = vsel %vm984, %v2171, 0.0
        %2173 = vadd.xlane.f32.xlu0 %v2172
        %v2174 = vpop.xlane.xlu0 %2173
        %v2175 = vrcp.pop %v2174
        %v2176 = vmul.f32 %v2171, %v2175
        %2177 = vrot.lane.b32.xlu0 %v2085, 64
        %v2178 = vpop.permute.xlu0 %2177
        %v2181 = vsel %vm984, %v2176, 0
        %2183 = vmatprep.subr.mxu0 0.0
        %2184 = vmatpush1.msra.mxu0 0.0
        %2185 = vmatprep.subr.mxu0 0.0
        %2186 = vmatpush1.msra.mxu0 0.0
        %2187 = vmatprep.subr.mxu0 0.0
        %2188 = vmatpush1.msra.mxu0 0.0
        %2189 = vmatprep.subr.mxu0 0.0
        %2190 = vmatpush1.msra.mxu0 0.0
        %2191 = vmatprep.subr.mxu0 0.0
        %2192 = vmatpush1.msra.mxu0 0.0
        %2193 = vmatprep.subr.mxu0 0.0
        %2194 = vmatpush1.msra.mxu0 0.0
        %2195 = vmatprep.subr.mxu0 0.0
        %2196 = vmatpush1.msra.mxu0 0.0
        %2197 = vmatprep.subr.mxu0 0.0
        %2198 = vmatpush1.msra.mxu0 0.0
        %2199 = vmatprep.subr.mxu0 0.0
        %2200 = vmatpush1.msra.mxu0 0.0
        %2201 = vmatprep.subr.mxu0 0.0
        %2202 = vmatpush1.msra.mxu0 0.0
        %2203 = vmatprep.subr.mxu0 0.0
        %2204 = vmatpush1.msra.mxu0 0.0
        %2205 = vmatprep.subr.mxu0 0.0
        %2206 = vmatpush1.msra.mxu0 0.0
        %2207 = vmatprep.subr.mxu0 0.0
        %2208 = vmatpush1.msra.mxu0 0.0
        %2209 = vmatprep.subr.mxu0 0.0
        %2210 = vmatpush1.msra.mxu0 0.0
        %2211 = vmatprep.subr.mxu0 0.0
        %2212 = vmatpush1.msra.mxu0 0.0
        %2213 = vmatprep.subr.mxu0 0.0
        %2214 = vmatpush1.msra.mxu0 %v2178
        %2215 = vmatprep.subr.mxu0 0.0
        %2216 = vmatpush2.msra.mxu0 0.0
        %2217 = vmatprep.subr.mxu0 0.0
        %2218 = vmatpush2.msra.mxu0 0.0
        %2219 = vmatprep.subr.mxu0 0.0
        %2220 = vmatpush2.msra.mxu0 0.0
        %2221 = vmatprep.subr.mxu0 0.0
        %2222 = vmatpush2.msra.mxu0 0.0
        %2223 = vmatprep.subr.mxu0 0.0
        %2224 = vmatpush2.msra.mxu0 0.0
        %2225 = vmatprep.subr.mxu0 0.0
        %2226 = vmatpush2.msra.mxu0 0.0
        %2227 = vmatprep.subr.mxu0 0.0
        %2228 = vmatpush2.msra.mxu0 0.0
        %2229 = vmatprep.subr.mxu0 0.0
        %2230 = vmatpush2.msra.mxu0 0.0
        %2231 = vmatprep.subr.mxu0 0.0
        %2232 = vmatpush2.msra.mxu0 0.0
        %2233 = vmatprep.subr.mxu0 0.0
        %2234 = vmatpush2.msra.mxu0 0.0
        %2235 = vmatprep.subr.mxu0 0.0
        %2236 = vmatpush2.msra.mxu0 0.0
        %2237 = vmatprep.subr.mxu0 0.0
        %2238 = vmatpush2.msra.mxu0 0.0
        %2239 = vmatprep.subr.mxu0 0.0
        %2240 = vmatpush2.msra.mxu0 0.0
        %2241 = vmatprep.subr.mxu0 0.0
        %2242 = vmatpush2.msra.mxu0 0.0
        %2243 = vmatprep.subr.mxu0 0.0
        %2244 = vmatpush2.msra.mxu0 0.0
        %2245 = vmatprep.subr.mxu0 0.0
        %2246 = vmatpush2.msra.mxu0 0.0
        %2247 = vmatprep.mubr.f32.mxu0 0.0
        %2248 = vmatmul.mubr.f32.gmra.mxu0 %v2181
        %v2249 = vpop.f32.mrf.mxu0
        %v2250 = vadd.f32 0.0, %v2249
        %v2251 = vpop.f32.mrf.mxu0
        %2252 = vdwg.mxu0
        %v2253 = vld [vmem:[%s12] sm:$0xff]
        %v2254 = vld [vmem:[%s12 + $0x8] sm:$0xff]
        %2255 = vrot.lane.b32.xlu0 %v1997, 112
        %v2256 = vpop.permute.xlu0 %2255
        %2257 = vrot.lane.b32.xlu0 %v2085, 112
        %v2258 = vpop.permute.xlu0 %2257
        %v2259 = vsel %vm907, %v2256, 0
        %v2261 = vsel %vm907, %v2258, 0
        %2263 = vmatprep.subr.mxu0 0.0
        %2264 = vmatpush1.xpose.msra.mxu0 0.0
        %2265 = vmatprep.subr.mxu0 0.0
        %2266 = vmatpush1.xpose.msra.mxu0 0.0
        %2267 = vmatprep.subr.mxu0 0.0
        %2268 = vmatpush1.xpose.msra.mxu0 0.0
        %2269 = vmatprep.subr.mxu0 0.0
        %2270 = vmatpush1.xpose.msra.mxu0 0.0
        %2271 = vmatprep.subr.mxu0 0.0
        %2272 = vmatpush1.xpose.msra.mxu0 0.0
        %2273 = vmatprep.subr.mxu0 0.0
        %2274 = vmatpush1.xpose.msra.mxu0 0.0
        %2275 = vmatprep.subr.mxu0 0.0
        %2276 = vmatpush1.xpose.msra.mxu0 0.0
        %2277 = vmatprep.subr.mxu0 0.0
        %2278 = vmatpush1.xpose.msra.mxu0 0.0
        %2279 = vmatprep.subr.mxu0 0.0
        %2280 = vmatpush1.xpose.msra.mxu0 0.0
        %2281 = vmatprep.subr.mxu0 0.0
        %2282 = vmatpush1.xpose.msra.mxu0 0.0
        %2283 = vmatprep.subr.mxu0 0.0
        %2284 = vmatpush1.xpose.msra.mxu0 0.0
        %2285 = vmatprep.subr.mxu0 0.0
        %2286 = vmatpush1.xpose.msra.mxu0 0.0
        %2287 = vmatprep.subr.mxu0 0.0
        %2288 = vmatpush1.xpose.msra.mxu0 0.0
        %2289 = vmatprep.subr.mxu0 0.0
        %2290 = vmatpush1.xpose.msra.mxu0 0.0
        %2291 = vmatprep.subr.mxu0 0.0
        %2292 = vmatpush1.xpose.msra.mxu0 0.0
        %2293 = vmatprep.subr.mxu0 0.0
        %2294 = vmatpush1.xpose.msra.mxu0 %v2261
        %2295 = vmatprep.subr.mxu0 0.0
        %2296 = vmatpush2.xpose.msra.mxu0 0.0
        %2297 = vmatprep.subr.mxu0 0.0
        %2298 = vmatpush2.xpose.msra.mxu0 0.0
        %2299 = vmatprep.subr.mxu0 0.0
        %2300 = vmatpush2.xpose.msra.mxu0 0.0
        %2301 = vmatprep.subr.mxu0 0.0
        %2302 = vmatpush2.xpose.msra.mxu0 0.0
        %2303 = vmatprep.subr.mxu0 0.0
        %2304 = vmatpush2.xpose.msra.mxu0 0.0
        %2305 = vmatprep.subr.mxu0 0.0
        %2306 = vmatpush2.xpose.msra.mxu0 0.0
        %2307 = vmatprep.subr.mxu0 0.0
        %2308 = vmatpush2.xpose.msra.mxu0 0.0
        %2309 = vmatprep.subr.mxu0 0.0
        %2310 = vmatpush2.xpose.msra.mxu0 0.0
        %2311 = vmatprep.subr.mxu0 0.0
        %2312 = vmatpush2.xpose.msra.mxu0 0.0
        %2313 = vmatprep.subr.mxu0 0.0
        %2314 = vmatpush2.xpose.msra.mxu0 0.0
        %2315 = vmatprep.subr.mxu0 0.0
        %2316 = vmatpush2.xpose.msra.mxu0 0.0
        %2317 = vmatprep.subr.mxu0 0.0
        %2318 = vmatpush2.xpose.msra.mxu0 0.0
        %2319 = vmatprep.subr.mxu0 0.0
        %2320 = vmatpush2.xpose.msra.mxu0 0.0
        %2321 = vmatprep.subr.mxu0 0.0
        %2322 = vmatpush2.xpose.msra.mxu0 0.0
        %2323 = vmatprep.subr.mxu0 0.0
        %2324 = vmatpush2.xpose.msra.mxu0 0.0
        %2325 = vmatprep.subr.mxu0 0.0
        %2326 = vmatpush2.xpose.msra.mxu0 0.0
        %2327 = vmatprep.mubr.f32.mxu0 0.0
        %2328 = vmatmul.mubr.f32.gmra.mxu0 %v2259
        %v2329 = vpop.f32.mrf.mxu0
        %v2330 = vadd.f32 0.0, %v2329
        %v2331 = vpop.f32.mrf.mxu0
        %2332 = vdwg.mxu0
        %v2333 = vmul.f32 %v2330, 0.25
        %v2334 = vadd.f32 %v2333, %v800
        %v2335 = vsel %vm984, %v2334, -inf
        %2336 = vmax.xlane.f32.xlu0 %v2335
        %v2337 = vpop.xlane.xlu0 %2336
        %v2338 = vsub.f32 %v2334, %v2337
        %v2339 = vmul.f32 %v2338, 1.442695
        %v2340 = vpow.pop %v2339
        %v2341 = vsel %vm984, %v2340, 0.0
        %2342 = vadd.xlane.f32.xlu0 %v2341
        %v2343 = vpop.xlane.xlu0 %2342
        %v2344 = vrcp.pop %v2343
        %v2345 = vmul.f32 %v2340, %v2344
        %2346 = vrot.lane.b32.xlu0 %v2085, 48
        %v2347 = vpop.permute.xlu0 %2346
        %v2350 = vsel %vm984, %v2345, 0
        %2352 = vmatprep.subr.mxu0 0.0
        %2353 = vmatpush1.msra.mxu0 0.0
        %2354 = vmatprep.subr.mxu0 0.0
        %2355 = vmatpush1.msra.mxu0 0.0
        %2356 = vmatprep.subr.mxu0 0.0
        %2357 = vmatpush1.msra.mxu0 0.0
        %2358 = vmatprep.subr.mxu0 0.0
        %2359 = vmatpush1.msra.mxu0 0.0
        %2360 = vmatprep.subr.mxu0 0.0
        %2361 = vmatpush1.msra.mxu0 0.0
        %2362 = vmatprep.subr.mxu0 0.0
        %2363 = vmatpush1.msra.mxu0 0.0
        %2364 = vmatprep.subr.mxu0 0.0
        %2365 = vmatpush1.msra.mxu0 0.0
        %2366 = vmatprep.subr.mxu0 0.0
        %2367 = vmatpush1.msra.mxu0 0.0
        %2368 = vmatprep.subr.mxu0 0.0
        %2369 = vmatpush1.msra.mxu0 0.0
        %2370 = vmatprep.subr.mxu0 0.0
        %2371 = vmatpush1.msra.mxu0 0.0
        %2372 = vmatprep.subr.mxu0 0.0
        %2373 = vmatpush1.msra.mxu0 0.0
        %2374 = vmatprep.subr.mxu0 0.0
        %2375 = vmatpush1.msra.mxu0 0.0
        %2376 = vmatprep.subr.mxu0 0.0
        %2377 = vmatpush1.msra.mxu0 0.0
        %2378 = vmatprep.subr.mxu0 0.0
        %2379 = vmatpush1.msra.mxu0 0.0
        %2380 = vmatprep.subr.mxu0 0.0
        %2381 = vmatpush1.msra.mxu0 0.0
        %2382 = vmatprep.subr.mxu0 0.0
        %2383 = vmatpush1.msra.mxu0 %v2347
        %2384 = vmatprep.subr.mxu0 0.0
        %2385 = vmatpush2.msra.mxu0 0.0
        %2386 = vmatprep.subr.mxu0 0.0
        %2387 = vmatpush2.msra.mxu0 0.0
        %2388 = vmatprep.subr.mxu0 0.0
        %2389 = vmatpush2.msra.mxu0 0.0
        %2390 = vmatprep.subr.mxu0 0.0
        %2391 = vmatpush2.msra.mxu0 0.0
        %2392 = vmatprep.subr.mxu0 0.0
        %2393 = vmatpush2.msra.mxu0 0.0
        %2394 = vmatprep.subr.mxu0 0.0
        %2395 = vmatpush2.msra.mxu0 0.0
        %2396 = vmatprep.subr.mxu0 0.0
        %2397 = vmatpush2.msra.mxu0 0.0
        %2398 = vmatprep.subr.mxu0 0.0
        %2399 = vmatpush2.msra.mxu0 0.0
        %2400 = vmatprep.subr.mxu0 0.0
        %2401 = vmatpush2.msra.mxu0 0.0
        %2402 = vmatprep.subr.mxu0 0.0
        %2403 = vmatpush2.msra.mxu0 0.0
        %2404 = vmatprep.subr.mxu0 0.0
        %2405 = vmatpush2.msra.mxu0 0.0
        %2406 = vmatprep.subr.mxu0 0.0
        %2407 = vmatpush2.msra.mxu0 0.0
        %2408 = vmatprep.subr.mxu0 0.0
        %2409 = vmatpush2.msra.mxu0 0.0
        %2410 = vmatprep.subr.mxu0 0.0
        %2411 = vmatpush2.msra.mxu0 0.0
        %2412 = vmatprep.subr.mxu0 0.0
        %2413 = vmatpush2.msra.mxu0 0.0
        %2414 = vmatprep.subr.mxu0 0.0
        %2415 = vmatpush2.msra.mxu0 0.0
        %2416 = vmatprep.mubr.f32.mxu0 0.0
        %2417 = vmatmul.mubr.f32.gmra.mxu0 %v2350
        %v2418 = vpop.f32.mrf.mxu0
        %v2419 = vadd.f32 0.0, %v2418
        %v2420 = vpop.f32.mrf.mxu0
        %2421 = vdwg.mxu0
        %v2422 = vld [vmem:[%s12 + $0x10] sm:$0xff]
        %v2423 = vld [vmem:[%s12 + $0x18] sm:$0xff]
        %v2425 = vsel %vm907, %v2419, 0
        %2427 = vmatprep.subr.mxu0 0.0
        %2428 = vmatpush1.msra.mxu0 0.0
        %2429 = vmatprep.subr.mxu0 0.0
        %2430 = vmatpush1.msra.mxu0 0.0
        %2431 = vmatprep.subr.mxu0 0.0
        %2432 = vmatpush1.msra.mxu0 0.0
        %2433 = vmatprep.subr.mxu0 0.0
        %2434 = vmatpush1.msra.mxu0 0.0
        %2435 = vmatprep.subr.mxu0 0.0
        %2436 = vmatpush1.msra.mxu0 0.0
        %2437 = vmatprep.subr.mxu0 0.0
        %2438 = vmatpush1.msra.mxu0 0.0
        %2439 = vmatprep.subr.mxu0 0.0
        %2440 = vmatpush1.msra.mxu0 0.0
        %2441 = vmatprep.subr.mxu0 0.0
        %2442 = vmatpush1.msra.mxu0 0.0
        %2443 = vmatprep.subr.mxu0 0.0
        %2444 = vmatpush1.msra.mxu0 0.0
        %2445 = vmatprep.subr.mxu0 0.0
        %2446 = vmatpush1.msra.mxu0 0.0
        %2447 = vmatprep.subr.mxu0 0.0
        %2448 = vmatpush1.msra.mxu0 0.0
        %2449 = vmatprep.subr.mxu0 0.0
        %2450 = vmatpush1.msra.mxu0 0.0
        %2451 = vmatprep.subr.mxu0 0.0
        %2452 = vmatpush1.msra.mxu0 0.0
        %2453 = vmatprep.subr.mxu0 0.0
        %2454 = vmatpush1.msra.mxu0 0.0
        %2455 = vmatprep.subr.mxu0 0.0
        %2456 = vmatpush1.msra.mxu0 %v2423
        %2457 = vmatprep.subr.mxu0 0.0
        %2458 = vmatpush1.msra.mxu0 %v2422
        %2459 = vmatprep.subr.mxu0 0.0
        %2460 = vmatpush2.msra.mxu0 0.0
        %2461 = vmatprep.subr.mxu0 0.0
        %2462 = vmatpush2.msra.mxu0 0.0
        %2463 = vmatprep.subr.mxu0 0.0
        %2464 = vmatpush2.msra.mxu0 0.0
        %2465 = vmatprep.subr.mxu0 0.0
        %2466 = vmatpush2.msra.mxu0 0.0
        %2467 = vmatprep.subr.mxu0 0.0
        %2468 = vmatpush2.msra.mxu0 0.0
        %2469 = vmatprep.subr.mxu0 0.0
        %2470 = vmatpush2.msra.mxu0 0.0
        %2471 = vmatprep.subr.mxu0 0.0
        %2472 = vmatpush2.msra.mxu0 0.0
        %2473 = vmatprep.subr.mxu0 0.0
        %2474 = vmatpush2.msra.mxu0 0.0
        %2475 = vmatprep.subr.mxu0 0.0
        %2476 = vmatpush2.msra.mxu0 0.0
        %2477 = vmatprep.subr.mxu0 0.0
        %2478 = vmatpush2.msra.mxu0 0.0
        %2479 = vmatprep.subr.mxu0 0.0
        %2480 = vmatpush2.msra.mxu0 0.0
        %2481 = vmatprep.subr.mxu0 0.0
        %2482 = vmatpush2.msra.mxu0 0.0
        %2483 = vmatprep.subr.mxu0 0.0
        %2484 = vmatpush2.msra.mxu0 0.0
        %2485 = vmatprep.subr.mxu0 0.0
        %2486 = vmatpush2.msra.mxu0 0.0
        %2487 = vmatprep.subr.mxu0 0.0
        %2488 = vmatpush2.msra.mxu0 0.0
        %2489 = vmatprep.subr.mxu0 0.0
        %2490 = vmatpush2.msra.mxu0 0.0
        %2491 = vmatprep.mubr.f32.mxu0 0.0
        %2492 = vmatmul.mubr.f32.gmra.mxu0 %v2425
        %v2493 = vpop.f32.mrf.mxu0
        %v2494 = vadd.f32 0.0, %v2493
        %v2495 = vpop.f32.mrf.mxu0
        %2496 = vdwg.mxu0
        %v2498 = vsel %vm907, %v2250, 0
        %2500 = vmatprep.subr.mxu0 0.0
        %2501 = vmatpush1.msra.mxu0 0.0
        %2502 = vmatprep.subr.mxu0 0.0
        %2503 = vmatpush1.msra.mxu0 0.0
        %2504 = vmatprep.subr.mxu0 0.0
        %2505 = vmatpush1.msra.mxu0 0.0
        %2506 = vmatprep.subr.mxu0 0.0
        %2507 = vmatpush1.msra.mxu0 0.0
        %2508 = vmatprep.subr.mxu0 0.0
        %2509 = vmatpush1.msra.mxu0 0.0
        %2510 = vmatprep.subr.mxu0 0.0
        %2511 = vmatpush1.msra.mxu0 0.0
        %2512 = vmatprep.subr.mxu0 0.0
        %2513 = vmatpush1.msra.mxu0 0.0
        %2514 = vmatprep.subr.mxu0 0.0
        %2515 = vmatpush1.msra.mxu0 0.0
        %2516 = vmatprep.subr.mxu0 0.0
        %2517 = vmatpush1.msra.mxu0 0.0
        %2518 = vmatprep.subr.mxu0 0.0
        %2519 = vmatpush1.msra.mxu0 0.0
        %2520 = vmatprep.subr.mxu0 0.0
        %2521 = vmatpush1.msra.mxu0 0.0
        %2522 = vmatprep.subr.mxu0 0.0
        %2523 = vmatpush1.msra.mxu0 0.0
        %2524 = vmatprep.subr.mxu0 0.0
        %2525 = vmatpush1.msra.mxu0 0.0
        %2526 = vmatprep.subr.mxu0 0.0
        %2527 = vmatpush1.msra.mxu0 0.0
        %2528 = vmatprep.subr.mxu0 0.0
        %2529 = vmatpush1.msra.mxu0 %v2254
        %2530 = vmatprep.subr.mxu0 0.0
        %2531 = vmatpush1.msra.mxu0 %v2253
        %2532 = vmatprep.subr.mxu0 0.0
        %2533 = vmatpush2.msra.mxu0 0.0
        %2534 = vmatprep.subr.mxu0 0.0
        %2535 = vmatpush2.msra.mxu0 0.0
        %2536 = vmatprep.subr.mxu0 0.0
        %2537 = vmatpush2.msra.mxu0 0.0
        %2538 = vmatprep.subr.mxu0 0.0
        %2539 = vmatpush2.msra.mxu0 0.0
        %2540 = vmatprep.subr.mxu0 0.0
        %2541 = vmatpush2.msra.mxu0 0.0
        %2542 = vmatprep.subr.mxu0 0.0
        %2543 = vmatpush2.msra.mxu0 0.0
        %2544 = vmatprep.subr.mxu0 0.0
        %2545 = vmatpush2.msra.mxu0 0.0
        %2546 = vmatprep.subr.mxu0 0.0
        %2547 = vmatpush2.msra.mxu0 0.0
        %2548 = vmatprep.subr.mxu0 0.0
        %2549 = vmatpush2.msra.mxu0 0.0
        %2550 = vmatprep.subr.mxu0 0.0
        %2551 = vmatpush2.msra.mxu0 0.0
        %2552 = vmatprep.subr.mxu0 0.0
        %2553 = vmatpush2.msra.mxu0 0.0
        %2554 = vmatprep.subr.mxu0 0.0
        %2555 = vmatpush2.msra.mxu0 0.0
        %2556 = vmatprep.subr.mxu0 0.0
        %2557 = vmatpush2.msra.mxu0 0.0
        %2558 = vmatprep.subr.mxu0 0.0
        %2559 = vmatpush2.msra.mxu0 0.0
        %2560 = vmatprep.subr.mxu0 0.0
        %2561 = vmatpush2.msra.mxu0 0.0
        %2562 = vmatprep.subr.mxu0 0.0
        %2563 = vmatpush2.msra.mxu0 0.0
        %2564 = vmatprep.mubr.f32.mxu0 0.0
        %2565 = vmatmul.mubr.f32.gmra.mxu0 %v2498
        %v2566 = vpop.f32.mrf.mxu0
        %v2567 = vadd.f32 %v2494, %v2566
        %v2568 = vpop.f32.mrf.mxu0
        %2569 = vdwg.mxu0
        %2570 = vrot.lane.b32.xlu0 %v1997, 96
        %v2571 = vpop.permute.xlu0 %2570
        %2572 = vrot.lane.b32.xlu0 %v2085, 96
        %v2573 = vpop.permute.xlu0 %2572
        %v2574 = vsel %vm907, %v2571, 0
        %v2576 = vsel %vm907, %v2573, 0
        %2578 = vmatprep.subr.mxu0 0.0
        %2579 = vmatpush1.xpose.msra.mxu0 0.0
        %2580 = vmatprep.subr.mxu0 0.0
        %2581 = vmatpush1.xpose.msra.mxu0 0.0
        %2582 = vmatprep.subr.mxu0 0.0
        %2583 = vmatpush1.xpose.msra.mxu0 0.0
        %2584 = vmatprep.subr.mxu0 0.0
        %2585 = vmatpush1.xpose.msra.mxu0 0.0
        %2586 = vmatprep.subr.mxu0 0.0
        %2587 = vmatpush1.xpose.msra.mxu0 0.0
        %2588 = vmatprep.subr.mxu0 0.0
        %2589 = vmatpush1.xpose.msra.mxu0 0.0
        %2590 = vmatprep.subr.mxu0 0.0
        %2591 = vmatpush1.xpose.msra.mxu0 0.0
        %2592 = vmatprep.subr.mxu0 0.0
        %2593 = vmatpush1.xpose.msra.mxu0 0.0
        %2594 = vmatprep.subr.mxu0 0.0
        %2595 = vmatpush1.xpose.msra.mxu0 0.0
        %2596 = vmatprep.subr.mxu0 0.0
        %2597 = vmatpush1.xpose.msra.mxu0 0.0
        %2598 = vmatprep.subr.mxu0 0.0
        %2599 = vmatpush1.xpose.msra.mxu0 0.0
        %2600 = vmatprep.subr.mxu0 0.0
        %2601 = vmatpush1.xpose.msra.mxu0 0.0
        %2602 = vmatprep.subr.mxu0 0.0
        %2603 = vmatpush1.xpose.msra.mxu0 0.0
        %2604 = vmatprep.subr.mxu0 0.0
        %2605 = vmatpush1.xpose.msra.mxu0 0.0
        %2606 = vmatprep.subr.mxu0 0.0
        %2607 = vmatpush1.xpose.msra.mxu0 0.0
        %2608 = vmatprep.subr.mxu0 0.0
        %2609 = vmatpush1.xpose.msra.mxu0 %v2576
        %2610 = vmatprep.subr.mxu0 0.0
        %2611 = vmatpush2.xpose.msra.mxu0 0.0
        %2612 = vmatprep.subr.mxu0 0.0
        %2613 = vmatpush2.xpose.msra.mxu0 0.0
        %2614 = vmatprep.subr.mxu0 0.0
        %2615 = vmatpush2.xpose.msra.mxu0 0.0
        %2616 = vmatprep.subr.mxu0 0.0
        %2617 = vmatpush2.xpose.msra.mxu0 0.0
        %2618 = vmatprep.subr.mxu0 0.0
        %2619 = vmatpush2.xpose.msra.mxu0 0.0
        %2620 = vmatprep.subr.mxu0 0.0
        %2621 = vmatpush2.xpose.msra.mxu0 0.0
        %2622 = vmatprep.subr.mxu0 0.0
        %2623 = vmatpush2.xpose.msra.mxu0 0.0
        %2624 = vmatprep.subr.mxu0 0.0
        %2625 = vmatpush2.xpose.msra.mxu0 0.0
        %2626 = vmatprep.subr.mxu0 0.0
        %2627 = vmatpush2.xpose.msra.mxu0 0.0
        %2628 = vmatprep.subr.mxu0 0.0
        %2629 = vmatpush2.xpose.msra.mxu0 0.0
        %2630 = vmatprep.subr.mxu0 0.0
        %2631 = vmatpush2.xpose.msra.mxu0 0.0
        %2632 = vmatprep.subr.mxu0 0.0
        %2633 = vmatpush2.xpose.msra.mxu0 0.0
        %2634 = vmatprep.subr.mxu0 0.0
        %2635 = vmatpush2.xpose.msra.mxu0 0.0
        %2636 = vmatprep.subr.mxu0 0.0
        %2637 = vmatpush2.xpose.msra.mxu0 0.0
        %2638 = vmatprep.subr.mxu0 0.0
        %2639 = vmatpush2.xpose.msra.mxu0 0.0
        %2640 = vmatprep.subr.mxu0 0.0
        %2641 = vmatpush2.xpose.msra.mxu0 0.0
        %2642 = vmatprep.mubr.f32.mxu0 0.0
        %2643 = vmatmul.mubr.f32.gmra.mxu0 %v2574
        %v2644 = vpop.f32.mrf.mxu0
        %v2645 = vadd.f32 0.0, %v2644
        %v2646 = vpop.f32.mrf.mxu0
        %2647 = vdwg.mxu0
        %v2648 = vmul.f32 %v2645, 0.25
        %v2649 = vadd.f32 %v2648, %v800
        %v2650 = vsel %vm984, %v2649, -inf
        %2651 = vmax.xlane.f32.xlu0 %v2650
        %v2652 = vpop.xlane.xlu0 %2651
        %v2653 = vsub.f32 %v2649, %v2652
        %v2654 = vmul.f32 %v2653, 1.442695
        %v2655 = vpow.pop %v2654
        %v2656 = vsel %vm984, %v2655, 0.0
        %2657 = vadd.xlane.f32.xlu0 %v2656
        %v2658 = vpop.xlane.xlu0 %2657
        %v2659 = vrcp.pop %v2658
        %v2660 = vmul.f32 %v2655, %v2659
        %2661 = vrot.lane.b32.xlu0 %v2085, 32
        %v2662 = vpop.permute.xlu0 %2661
        %v2665 = vsel %vm984, %v2660, 0
        %2667 = vmatprep.subr.mxu0 0.0
        %2668 = vmatpush1.msra.mxu0 0.0
        %2669 = vmatprep.subr.mxu0 0.0
        %2670 = vmatpush1.msra.mxu0 0.0
        %2671 = vmatprep.subr.mxu0 0.0
        %2672 = vmatpush1.msra.mxu0 0.0
        %2673 = vmatprep.subr.mxu0 0.0
        %2674 = vmatpush1.msra.mxu0 0.0
        %2675 = vmatprep.subr.mxu0 0.0
        %2676 = vmatpush1.msra.mxu0 0.0
        %2677 = vmatprep.subr.mxu0 0.0
        %2678 = vmatpush1.msra.mxu0 0.0
        %2679 = vmatprep.subr.mxu0 0.0
        %2680 = vmatpush1.msra.mxu0 0.0
        %2681 = vmatprep.subr.mxu0 0.0
        %2682 = vmatpush1.msra.mxu0 0.0
        %2683 = vmatprep.subr.mxu0 0.0
        %2684 = vmatpush1.msra.mxu0 0.0
        %2685 = vmatprep.subr.mxu0 0.0
        %2686 = vmatpush1.msra.mxu0 0.0
        %2687 = vmatprep.subr.mxu0 0.0
        %2688 = vmatpush1.msra.mxu0 0.0
        %2689 = vmatprep.subr.mxu0 0.0
        %2690 = vmatpush1.msra.mxu0 0.0
        %2691 = vmatprep.subr.mxu0 0.0
        %2692 = vmatpush1.msra.mxu0 0.0
        %2693 = vmatprep.subr.mxu0 0.0
        %2694 = vmatpush1.msra.mxu0 0.0
        %2695 = vmatprep.subr.mxu0 0.0
        %2696 = vmatpush1.msra.mxu0 0.0
        %2697 = vmatprep.subr.mxu0 0.0
        %2698 = vmatpush1.msra.mxu0 %v2662
        %2699 = vmatprep.subr.mxu0 0.0
        %2700 = vmatpush2.msra.mxu0 0.0
        %2701 = vmatprep.subr.mxu0 0.0
        %2702 = vmatpush2.msra.mxu0 0.0
        %2703 = vmatprep.subr.mxu0 0.0
        %2704 = vmatpush2.msra.mxu0 0.0
        %2705 = vmatprep.subr.mxu0 0.0
        %2706 = vmatpush2.msra.mxu0 0.0
        %2707 = vmatprep.subr.mxu0 0.0
        %2708 = vmatpush2.msra.mxu0 0.0
        %2709 = vmatprep.subr.mxu0 0.0
        %2710 = vmatpush2.msra.mxu0 0.0
        %2711 = vmatprep.subr.mxu0 0.0
        %2712 = vmatpush2.msra.mxu0 0.0
        %2713 = vmatprep.subr.mxu0 0.0
        %2714 = vmatpush2.msra.mxu0 0.0
        %2715 = vmatprep.subr.mxu0 0.0
        %2716 = vmatpush2.msra.mxu0 0.0
        %2717 = vmatprep.subr.mxu0 0.0
        %2718 = vmatpush2.msra.mxu0 0.0
        %2719 = vmatprep.subr.mxu0 0.0
        %2720 = vmatpush2.msra.mxu0 0.0
        %2721 = vmatprep.subr.mxu0 0.0
        %2722 = vmatpush2.msra.mxu0 0.0
        %2723 = vmatprep.subr.mxu0 0.0
        %2724 = vmatpush2.msra.mxu0 0.0
        %2725 = vmatprep.subr.mxu0 0.0
        %2726 = vmatpush2.msra.mxu0 0.0
        %2727 = vmatprep.subr.mxu0 0.0
        %2728 = vmatpush2.msra.mxu0 0.0
        %2729 = vmatprep.subr.mxu0 0.0
        %2730 = vmatpush2.msra.mxu0 0.0
        %2731 = vmatprep.mubr.f32.mxu0 0.0
        %2732 = vmatmul.mubr.f32.gmra.mxu0 %v2665
        %v2733 = vpop.f32.mrf.mxu0
        %v2734 = vadd.f32 0.0, %v2733
        %v2735 = vpop.f32.mrf.mxu0
        %2736 = vdwg.mxu0
        %v2737 = vld [vmem:[%s12 + $0x20] sm:$0xff]
        %v2738 = vld [vmem:[%s12 + $0x28] sm:$0xff]
        %v2740 = vsel %vm907, %v2734, 0
        %2742 = vmatprep.subr.mxu0 0.0
        %2743 = vmatpush1.msra.mxu0 0.0
        %2744 = vmatprep.subr.mxu0 0.0
        %2745 = vmatpush1.msra.mxu0 0.0
        %2746 = vmatprep.subr.mxu0 0.0
        %2747 = vmatpush1.msra.mxu0 0.0
        %2748 = vmatprep.subr.mxu0 0.0
        %2749 = vmatpush1.msra.mxu0 0.0
        %2750 = vmatprep.subr.mxu0 0.0
        %2751 = vmatpush1.msra.mxu0 0.0
        %2752 = vmatprep.subr.mxu0 0.0
        %2753 = vmatpush1.msra.mxu0 0.0
        %2754 = vmatprep.subr.mxu0 0.0
        %2755 = vmatpush1.msra.mxu0 0.0
        %2756 = vmatprep.subr.mxu0 0.0
        %2757 = vmatpush1.msra.mxu0 0.0
        %2758 = vmatprep.subr.mxu0 0.0
        %2759 = vmatpush1.msra.mxu0 0.0
        %2760 = vmatprep.subr.mxu0 0.0
        %2761 = vmatpush1.msra.mxu0 0.0
        %2762 = vmatprep.subr.mxu0 0.0
        %2763 = vmatpush1.msra.mxu0 0.0
        %2764 = vmatprep.subr.mxu0 0.0
        %2765 = vmatpush1.msra.mxu0 0.0
        %2766 = vmatprep.subr.mxu0 0.0
        %2767 = vmatpush1.msra.mxu0 0.0
        %2768 = vmatprep.subr.mxu0 0.0
        %2769 = vmatpush1.msra.mxu0 0.0
        %2770 = vmatprep.subr.mxu0 0.0
        %2771 = vmatpush1.msra.mxu0 %v2738
        %2772 = vmatprep.subr.mxu0 0.0
        %2773 = vmatpush1.msra.mxu0 %v2737
        %2774 = vmatprep.subr.mxu0 0.0
        %2775 = vmatpush2.msra.mxu0 0.0
        %2776 = vmatprep.subr.mxu0 0.0
        %2777 = vmatpush2.msra.mxu0 0.0
        %2778 = vmatprep.subr.mxu0 0.0
        %2779 = vmatpush2.msra.mxu0 0.0
        %2780 = vmatprep.subr.mxu0 0.0
        %2781 = vmatpush2.msra.mxu0 0.0
        %2782 = vmatprep.subr.mxu0 0.0
        %2783 = vmatpush2.msra.mxu0 0.0
        %2784 = vmatprep.subr.mxu0 0.0
        %2785 = vmatpush2.msra.mxu0 0.0
        %2786 = vmatprep.subr.mxu0 0.0
        %2787 = vmatpush2.msra.mxu0 0.0
        %2788 = vmatprep.subr.mxu0 0.0
        %2789 = vmatpush2.msra.mxu0 0.0
        %2790 = vmatprep.subr.mxu0 0.0
        %2791 = vmatpush2.msra.mxu0 0.0
        %2792 = vmatprep.subr.mxu0 0.0
        %2793 = vmatpush2.msra.mxu0 0.0
        %2794 = vmatprep.subr.mxu0 0.0
        %2795 = vmatpush2.msra.mxu0 0.0
        %2796 = vmatprep.subr.mxu0 0.0
        %2797 = vmatpush2.msra.mxu0 0.0
        %2798 = vmatprep.subr.mxu0 0.0
        %2799 = vmatpush2.msra.mxu0 0.0
        %2800 = vmatprep.subr.mxu0 0.0
        %2801 = vmatpush2.msra.mxu0 0.0
        %2802 = vmatprep.subr.mxu0 0.0
        %2803 = vmatpush2.msra.mxu0 0.0
        %2804 = vmatprep.subr.mxu0 0.0
        %2805 = vmatpush2.msra.mxu0 0.0
        %2806 = vmatprep.mubr.f32.mxu0 0.0
        %2807 = vmatmul.mubr.f32.gmra.mxu0 %v2740
        %v2808 = vpop.f32.mrf.mxu0
        %v2809 = vadd.f32 0.0, %v2808
        %v2810 = vpop.f32.mrf.mxu0
        %2811 = vdwg.mxu0
        %v2812 = vadd.f32 %v2567, %v2809
        %2813 = vrot.lane.b32.xlu0 %v1997, 80
        %v2814 = vpop.permute.xlu0 %2813
        %2815 = vrot.lane.b32.xlu0 %v2085, 80
        %v2816 = vpop.permute.xlu0 %2815
        %v2817 = vsel %vm907, %v2814, 0
        %v2819 = vsel %vm907, %v2816, 0
        %2821 = vmatprep.subr.mxu0 0.0
        %2822 = vmatpush1.xpose.msra.mxu0 0.0
        %2823 = vmatprep.subr.mxu0 0.0
        %2824 = vmatpush1.xpose.msra.mxu0 0.0
        %2825 = vmatprep.subr.mxu0 0.0
        %2826 = vmatpush1.xpose.msra.mxu0 0.0
        %2827 = vmatprep.subr.mxu0 0.0
        %2828 = vmatpush1.xpose.msra.mxu0 0.0
        %2829 = vmatprep.subr.mxu0 0.0
        %2830 = vmatpush1.xpose.msra.mxu0 0.0
        %2831 = vmatprep.subr.mxu0 0.0
        %2832 = vmatpush1.xpose.msra.mxu0 0.0
        %2833 = vmatprep.subr.mxu0 0.0
        %2834 = vmatpush1.xpose.msra.mxu0 0.0
        %2835 = vmatprep.subr.mxu0 0.0
        %2836 = vmatpush1.xpose.msra.mxu0 0.0
        %2837 = vmatprep.subr.mxu0 0.0
        %2838 = vmatpush1.xpose.msra.mxu0 0.0
        %2839 = vmatprep.subr.mxu0 0.0
        %2840 = vmatpush1.xpose.msra.mxu0 0.0
        %2841 = vmatprep.subr.mxu0 0.0
        %2842 = vmatpush1.xpose.msra.mxu0 0.0
        %2843 = vmatprep.subr.mxu0 0.0
        %2844 = vmatpush1.xpose.msra.mxu0 0.0
        %2845 = vmatprep.subr.mxu0 0.0
        %2846 = vmatpush1.xpose.msra.mxu0 0.0
        %2847 = vmatprep.subr.mxu0 0.0
        %2848 = vmatpush1.xpose.msra.mxu0 0.0
        %2849 = vmatprep.subr.mxu0 0.0
        %2850 = vmatpush1.xpose.msra.mxu0 0.0
        %2851 = vmatprep.subr.mxu0 0.0
        %2852 = vmatpush1.xpose.msra.mxu0 %v2819
        %2853 = vmatprep.subr.mxu0 0.0
        %2854 = vmatpush2.xpose.msra.mxu0 0.0
        %2855 = vmatprep.subr.mxu0 0.0
        %2856 = vmatpush2.xpose.msra.mxu0 0.0
        %2857 = vmatprep.subr.mxu0 0.0
        %2858 = vmatpush2.xpose.msra.mxu0 0.0
        %2859 = vmatprep.subr.mxu0 0.0
        %2860 = vmatpush2.xpose.msra.mxu0 0.0
        %2861 = vmatprep.subr.mxu0 0.0
        %2862 = vmatpush2.xpose.msra.mxu0 0.0
        %2863 = vmatprep.subr.mxu0 0.0
        %2864 = vmatpush2.xpose.msra.mxu0 0.0
        %2865 = vmatprep.subr.mxu0 0.0
        %2866 = vmatpush2.xpose.msra.mxu0 0.0
        %2867 = vmatprep.subr.mxu0 0.0
        %2868 = vmatpush2.xpose.msra.mxu0 0.0
        %2869 = vmatprep.subr.mxu0 0.0
        %2870 = vmatpush2.xpose.msra.mxu0 0.0
        %2871 = vmatprep.subr.mxu0 0.0
        %2872 = vmatpush2.xpose.msra.mxu0 0.0
        %2873 = vmatprep.subr.mxu0 0.0
        %2874 = vmatpush2.xpose.msra.mxu0 0.0
        %2875 = vmatprep.subr.mxu0 0.0
        %2876 = vmatpush2.xpose.msra.mxu0 0.0
        %2877 = vmatprep.subr.mxu0 0.0
        %2878 = vmatpush2.xpose.msra.mxu0 0.0
        %2879 = vmatprep.subr.mxu0 0.0
        %2880 = vmatpush2.xpose.msra.mxu0 0.0
        %2881 = vmatprep.subr.mxu0 0.0
        %2882 = vmatpush2.xpose.msra.mxu0 0.0
        %2883 = vmatprep.subr.mxu0 0.0
        %2884 = vmatpush2.xpose.msra.mxu0 0.0
        %2885 = vmatprep.mubr.f32.mxu0 0.0
        %2886 = vmatmul.mubr.f32.gmra.mxu0 %v2817
        %v2887 = vpop.f32.mrf.mxu0
        %v2888 = vadd.f32 0.0, %v2887
        %v2889 = vpop.f32.mrf.mxu0
        %2890 = vdwg.mxu0
        %v2891 = vmul.f32 %v2888, 0.25
        %v2892 = vadd.f32 %v2891, %v800
        %v2893 = vsel %vm984, %v2892, -inf
        %2894 = vmax.xlane.f32.xlu0 %v2893
        %v2895 = vpop.xlane.xlu0 %2894
        %v2896 = vsub.f32 %v2892, %v2895
        %v2897 = vmul.f32 %v2896, 1.442695
        %v2898 = vpow.pop %v2897
        %v2899 = vsel %vm984, %v2898, 0.0
        %2900 = vadd.xlane.f32.xlu0 %v2899
        %v2901 = vpop.xlane.xlu0 %2900
        %v2902 = vrcp.pop %v2901
        %v2903 = vmul.f32 %v2898, %v2902
        %2904 = vrot.lane.b32.xlu0 %v2085, 16
        %v2905 = vpop.permute.xlu0 %2904
        %v2908 = vsel %vm984, %v2903, 0
        %2910 = vmatprep.subr.mxu0 0.0
        %2911 = vmatpush1.msra.mxu0 0.0
        %2912 = vmatprep.subr.mxu0 0.0
        %2913 = vmatpush1.msra.mxu0 0.0
        %2914 = vmatprep.subr.mxu0 0.0
        %2915 = vmatpush1.msra.mxu0 0.0
        %2916 = vmatprep.subr.mxu0 0.0
        %2917 = vmatpush1.msra.mxu0 0.0
        %2918 = vmatprep.subr.mxu0 0.0
        %2919 = vmatpush1.msra.mxu0 0.0
        %2920 = vmatprep.subr.mxu0 0.0
        %2921 = vmatpush1.msra.mxu0 0.0
        %2922 = vmatprep.subr.mxu0 0.0
        %2923 = vmatpush1.msra.mxu0 0.0
        %2924 = vmatprep.subr.mxu0 0.0
        %2925 = vmatpush1.msra.mxu0 0.0
        %2926 = vmatprep.subr.mxu0 0.0
        %2927 = vmatpush1.msra.mxu0 0.0
        %2928 = vmatprep.subr.mxu0 0.0
        %2929 = vmatpush1.msra.mxu0 0.0
        %2930 = vmatprep.subr.mxu0 0.0
        %2931 = vmatpush1.msra.mxu0 0.0
        %2932 = vmatprep.subr.mxu0 0.0
        %2933 = vmatpush1.msra.mxu0 0.0
        %2934 = vmatprep.subr.mxu0 0.0
        %2935 = vmatpush1.msra.mxu0 0.0
        %2936 = vmatprep.subr.mxu0 0.0
        %2937 = vmatpush1.msra.mxu0 0.0
        %2938 = vmatprep.subr.mxu0 0.0
        %2939 = vmatpush1.msra.mxu0 0.0
        %2940 = vmatprep.subr.mxu0 0.0
        %2941 = vmatpush1.msra.mxu0 %v2905
        %2942 = vmatprep.subr.mxu0 0.0
        %2943 = vmatpush2.msra.mxu0 0.0
        %2944 = vmatprep.subr.mxu0 0.0
        %2945 = vmatpush2.msra.mxu0 0.0
        %2946 = vmatprep.subr.mxu0 0.0
        %2947 = vmatpush2.msra.mxu0 0.0
        %2948 = vmatprep.subr.mxu0 0.0
        %2949 = vmatpush2.msra.mxu0 0.0
        %2950 = vmatprep.subr.mxu0 0.0
        %2951 = vmatpush2.msra.mxu0 0.0
        %2952 = vmatprep.subr.mxu0 0.0
        %2953 = vmatpush2.msra.mxu0 0.0
        %2954 = vmatprep.subr.mxu0 0.0
        %2955 = vmatpush2.msra.mxu0 0.0
        %2956 = vmatprep.subr.mxu0 0.0
        %2957 = vmatpush2.msra.mxu0 0.0
        %2958 = vmatprep.subr.mxu0 0.0
        %2959 = vmatpush2.msra.mxu0 0.0
        %2960 = vmatprep.subr.mxu0 0.0
        %2961 = vmatpush2.msra.mxu0 0.0
        %2962 = vmatprep.subr.mxu0 0.0
        %2963 = vmatpush2.msra.mxu0 0.0
        %2964 = vmatprep.subr.mxu0 0.0
        %2965 = vmatpush2.msra.mxu0 0.0
        %2966 = vmatprep.subr.mxu0 0.0
        %2967 = vmatpush2.msra.mxu0 0.0
        %2968 = vmatprep.subr.mxu0 0.0
        %2969 = vmatpush2.msra.mxu0 0.0
        %2970 = vmatprep.subr.mxu0 0.0
        %2971 = vmatpush2.msra.mxu0 0.0
        %2972 = vmatprep.subr.mxu0 0.0
        %2973 = vmatpush2.msra.mxu0 0.0
        %2974 = vmatprep.mubr.f32.mxu0 0.0
        %2975 = vmatmul.mubr.f32.gmra.mxu0 %v2908
        %v2976 = vpop.f32.mrf.mxu0
        %v2977 = vadd.f32 0.0, %v2976
        %v2978 = vpop.f32.mrf.mxu0
        %2979 = vdwg.mxu0
        %v2980 = vld [vmem:[%s12 + $0x30] sm:$0xff]
        %v2981 = vld [vmem:[%s12 + $0x38] sm:$0xff]
        %v2983 = vsel %vm907, %v2977, 0
        %2985 = vmatprep.subr.mxu0 0.0
        %2986 = vmatpush1.msra.mxu0 0.0
        %2987 = vmatprep.subr.mxu0 0.0
        %2988 = vmatpush1.msra.mxu0 0.0
        %2989 = vmatprep.subr.mxu0 0.0
        %2990 = vmatpush1.msra.mxu0 0.0
        %2991 = vmatprep.subr.mxu0 0.0
        %2992 = vmatpush1.msra.mxu0 0.0
        %2993 = vmatprep.subr.mxu0 0.0
        %2994 = vmatpush1.msra.mxu0 0.0
        %2995 = vmatprep.subr.mxu0 0.0
        %2996 = vmatpush1.msra.mxu0 0.0
        %2997 = vmatprep.subr.mxu0 0.0
        %2998 = vmatpush1.msra.mxu0 0.0
        %2999 = vmatprep.subr.mxu0 0.0
        %3000 = vmatpush1.msra.mxu0 0.0
        %3001 = vmatprep.subr.mxu0 0.0
        %3002 = vmatpush1.msra.mxu0 0.0
        %3003 = vmatprep.subr.mxu0 0.0
        %3004 = vmatpush1.msra.mxu0 0.0
        %3005 = vmatprep.subr.mxu0 0.0
        %3006 = vmatpush1.msra.mxu0 0.0
        %3007 = vmatprep.subr.mxu0 0.0
        %3008 = vmatpush1.msra.mxu0 0.0
        %3009 = vmatprep.subr.mxu0 0.0
        %3010 = vmatpush1.msra.mxu0 0.0
        %3011 = vmatprep.subr.mxu0 0.0
        %3012 = vmatpush1.msra.mxu0 0.0
        %3013 = vmatprep.subr.mxu0 0.0
        %3014 = vmatpush1.msra.mxu0 %v2981
        %3015 = vmatprep.subr.mxu0 0.0
        %3016 = vmatpush1.msra.mxu0 %v2980
        %3017 = vmatprep.subr.mxu0 0.0
        %3018 = vmatpush2.msra.mxu0 0.0
        %3019 = vmatprep.subr.mxu0 0.0
        %3020 = vmatpush2.msra.mxu0 0.0
        %3021 = vmatprep.subr.mxu0 0.0
        %3022 = vmatpush2.msra.mxu0 0.0
        %3023 = vmatprep.subr.mxu0 0.0
        %3024 = vmatpush2.msra.mxu0 0.0
        %3025 = vmatprep.subr.mxu0 0.0
        %3026 = vmatpush2.msra.mxu0 0.0
        %3027 = vmatprep.subr.mxu0 0.0
        %3028 = vmatpush2.msra.mxu0 0.0
        %3029 = vmatprep.subr.mxu0 0.0
        %3030 = vmatpush2.msra.mxu0 0.0
        %3031 = vmatprep.subr.mxu0 0.0
        %3032 = vmatpush2.msra.mxu0 0.0
        %3033 = vmatprep.subr.mxu0 0.0
        %3034 = vmatpush2.msra.mxu0 0.0
        %3035 = vmatprep.subr.mxu0 0.0
        %3036 = vmatpush2.msra.mxu0 0.0
        %3037 = vmatprep.subr.mxu0 0.0
        %3038 = vmatpush2.msra.mxu0 0.0
        %3039 = vmatprep.subr.mxu0 0.0
        %3040 = vmatpush2.msra.mxu0 0.0
        %3041 = vmatprep.subr.mxu0 0.0
        %3042 = vmatpush2.msra.mxu0 0.0
        %3043 = vmatprep.subr.mxu0 0.0
        %3044 = vmatpush2.msra.mxu0 0.0
        %3045 = vmatprep.subr.mxu0 0.0
        %3046 = vmatpush2.msra.mxu0 0.0
        %3047 = vmatprep.subr.mxu0 0.0
        %3048 = vmatpush2.msra.mxu0 0.0
        %3049 = vmatprep.mubr.f32.mxu0 0.0
        %3050 = vmatmul.mubr.f32.gmra.mxu0 %v2983
        %v3051 = vpop.f32.mrf.mxu0
        %v3052 = vadd.f32 0.0, %v3051
        %v3053 = vpop.f32.mrf.mxu0
        %3054 = vdwg.mxu0
        %v3055 = vadd.f32 %v2812, %v3052
        %v3056 = vld [vmem:[%s13] sm:$0x1]
        %v3058 = vlaneseq
        %v3059 = vshrl.u32 %v3058, 7
        %v3060 = vsub.s32 0, %v3059
        %v3061 = vrot.slane %v3056, %v3060
        %v3063 = vadd.f32 %v3055, %v3061
        %v3064 = vadd.f32 %v1911, %v3063
        %v3065 = vld [vmem:[%s20] sm:$0x1]
        %v3066 = vld [vmem:[%s21] sm:$0x1]
        %v3067 = vsel %vm829, %v3064, 0.0
        %3068 = vadd.xlane.f32.xlu0 %v3067
        %v3069 = vpop.xlane.xlu0 %3068
        %v3070 = vmul.f32 %v3069, %v1887
        %v3071 = vsub.f32 %v3064, %v3070
        %v3072 = vmul.f32 %v3071, %v3071
        %v3073 = vsel %vm829, %v3072, 0.0
        %3074 = vadd.xlane.f32.xlu0 %v3073
        %v3075 = vpop.xlane.xlu0 %3074
        %v3076 = vmul.f32 %v3075, %v1887
        %v3077 = vadd.f32 %v3076, 1e-05
        %v3078 = vrsqrt.pop %v3077
        %v3079 = vmul.f32 %v3071, %v3078
        %v3081 = vlaneseq
        %v3082 = vshrl.u32 %v3081, 7
        %v3083 = vsub.s32 0, %v3082
        %v3084 = vrot.slane %v3065, %v3083
        %v3086 = vmul.f32 %v3079, %v3084
        %v3088 = vlaneseq
        %v3089 = vshrl.u32 %v3088, 7
        %v3090 = vsub.s32 0, %v3089
        %v3091 = vrot.slane %v3066, %v3090
        %v3093 = vadd.f32 %v3086, %v3091
        %v3094 = vld [vmem:[%s14] sm:$0xff]
        %v3095 = vld [vmem:[%s14 + $0x8] sm:$0xff]
        %v3096 = vld [vmem:[%s14 + $0x10] sm:$0xff]
        %v3097 = vld [vmem:[%s14 + $0x18] sm:$0xff]
        %v3098 = vld [vmem:[%s14 + $0x20] sm:$0xff]
        %v3099 = vld [vmem:[%s14 + $0x28] sm:$0xff]
        %v3100 = vld [vmem:[%s14 + $0x30] sm:$0xff]
        %v3101 = vld [vmem:[%s14 + $0x38] sm:$0xff]
        %v3102 = vld [vmem:[%s15] sm:$0x1]
        %v3104 = vlaneseq
        %v3105 = vshrl.u32 %v3104, 7
        %v3106 = vsub.s32 0, %v3105
        %v3107 = vrot.slane %v3102, %v3106
        %v3110 = vsel %vm829, %v3093, 0
        %3112 = vmatprep.subr.mxu0 0.0
        %3113 = vmatpush1.msra.mxu0 0.0
        %3114 = vmatprep.subr.mxu0 0.0
        %3115 = vmatpush1.msra.mxu0 0.0
        %3116 = vmatprep.subr.mxu0 0.0
        %3117 = vmatpush1.msra.mxu0 0.0
        %3118 = vmatprep.subr.mxu0 0.0
        %3119 = vmatpush1.msra.mxu0 0.0
        %3120 = vmatprep.subr.mxu0 0.0
        %3121 = vmatpush1.msra.mxu0 0.0
        %3122 = vmatprep.subr.mxu0 0.0
        %3123 = vmatpush1.msra.mxu0 0.0
        %3124 = vmatprep.subr.mxu0 0.0
        %3125 = vmatpush1.msra.mxu0 0.0
        %3126 = vmatprep.subr.mxu0 0.0
        %3127 = vmatpush1.msra.mxu0 0.0
        %3128 = vmatprep.subr.mxu0 0.0
        %3129 = vmatpush1.msra.mxu0 %v3101
        %3130 = vmatprep.subr.mxu0 0.0
        %3131 = vmatpush1.msra.mxu0 %v3100
        %3132 = vmatprep.subr.mxu0 0.0
        %3133 = vmatpush1.msra.mxu0 %v3099
        %3134 = vmatprep.subr.mxu0 0.0
        %3135 = vmatpush1.msra.mxu0 %v3098
        %3136 = vmatprep.subr.mxu0 0.0
        %3137 = vmatpush1.msra.mxu0 %v3097
        %3138 = vmatprep.subr.mxu0 0.0
        %3139 = vmatpush1.msra.mxu0 %v3096
        %3140 = vmatprep.subr.mxu0 0.0
        %3141 = vmatpush1.msra.mxu0 %v3095
        %3142 = vmatprep.subr.mxu0 0.0
        %3143 = vmatpush1.msra.mxu0 %v3094
        %3144 = vmatprep.subr.mxu0 0.0
        %3145 = vmatpush2.msra.mxu0 0.0
        %3146 = vmatprep.subr.mxu0 0.0
        %3147 = vmatpush2.msra.mxu0 0.0
        %3148 = vmatprep.subr.mxu0 0.0
        %3149 = vmatpush2.msra.mxu0 0.0
        %3150 = vmatprep.subr.mxu0 0.0
        %3151 = vmatpush2.msra.mxu0 0.0
        %3152 = vmatprep.subr.mxu0 0.0
        %3153 = vmatpush2.msra.mxu0 0.0
        %3154 = vmatprep.subr.mxu0 0.0
        %3155 = vmatpush2.msra.mxu0 0.0
        %3156 = vmatprep.subr.mxu0 0.0
        %3157 = vmatpush2.msra.mxu0 0.0
        %3158 = vmatprep.subr.mxu0 0.0
        %3159 = vmatpush2.msra.mxu0 0.0
        %3160 = vmatprep.subr.mxu0 0.0
        %3161 = vmatpush2.msra.mxu0 0.0
        %3162 = vmatprep.subr.mxu0 0.0
        %3163 = vmatpush2.msra.mxu0 0.0
        %3164 = vmatprep.subr.mxu0 0.0
        %3165 = vmatpush2.msra.mxu0 0.0
        %3166 = vmatprep.subr.mxu0 0.0
        %3167 = vmatpush2.msra.mxu0 0.0
        %3168 = vmatprep.subr.mxu0 0.0
        %3169 = vmatpush2.msra.mxu0 0.0
        %3170 = vmatprep.subr.mxu0 0.0
        %3171 = vmatpush2.msra.mxu0 0.0
        %3172 = vmatprep.subr.mxu0 0.0
        %3173 = vmatpush2.msra.mxu0 0.0
        %3174 = vmatprep.subr.mxu0 0.0
        %3175 = vmatpush2.msra.mxu0 0.0
        %3176 = vmatprep.mubr.f32.mxu0 0.0
        %3177 = vmatmul.mubr.f32.gmra.mxu0 %v3110
        %v3178 = vpop.f32.mrf.mxu0
        %v3179 = vadd.f32 %v3107, %v3178
        %v3180 = vpop.f32.mrf.mxu0
        %3181 = vdwg.mxu0
        %v3182 = vmax.f32 %v3179, 0.0
        %v3183 = vld [vmem:[%s16] sm:$0xff]
        %v3184 = vld [vmem:[%s16 + $0x8] sm:$0xff]
        %v3185 = vld [vmem:[%s16 + $0x10] sm:$0xff]
        %v3186 = vld [vmem:[%s16 + $0x18] sm:$0xff]
        %v3187 = vld [vmem:[%s16 + $0x20] sm:$0xff]
        %v3188 = vld [vmem:[%s16 + $0x28] sm:$0xff]
        %v3189 = vld [vmem:[%s16 + $0x30] sm:$0xff]
        %v3190 = vld [vmem:[%s16 + $0x38] sm:$0xff]
        %v3191 = vld [vmem:[%s16 + $0x40] sm:$0xff]
        %v3192 = vld [vmem:[%s16 + $0x48] sm:$0xff]
        %v3193 = vld [vmem:[%s16 + $0x50] sm:$0xff]
        %v3194 = vld [vmem:[%s16 + $0x58] sm:$0xff]
        %v3195 = vld [vmem:[%s16 + $0x60] sm:$0xff]
        %v3196 = vld [vmem:[%s16 + $0x68] sm:$0xff]
        %v3197 = vld [vmem:[%s16 + $0x70] sm:$0xff]
        %v3198 = vld [vmem:[%s16 + $0x78] sm:$0xff]
        %v3199 = vld [vmem:[%s17] sm:$0x1]
        %v3201 = vlaneseq
        %v3202 = vshrl.u32 %v3201, 7
        %v3203 = vsub.s32 0, %v3202
        %v3204 = vrot.slane %v3199, %v3203
        %3206 = vmatprep.subr.mxu0 0.0
        %3207 = vmatpush1.msra.mxu0 %v3198
        %3208 = vmatprep.subr.mxu0 0.0
        %3209 = vmatpush1.msra.mxu0 %v3197
        %3210 = vmatprep.subr.mxu0 0.0
        %3211 = vmatpush1.msra.mxu0 %v3196
        %3212 = vmatprep.subr.mxu0 0.0
        %3213 = vmatpush1.msra.mxu0 %v3195
        %3214 = vmatprep.subr.mxu0 0.0
        %3215 = vmatpush1.msra.mxu0 %v3194
        %3216 = vmatprep.subr.mxu0 0.0
        %3217 = vmatpush1.msra.mxu0 %v3193
        %3218 = vmatprep.subr.mxu0 0.0
        %3219 = vmatpush1.msra.mxu0 %v3192
        %3220 = vmatprep.subr.mxu0 0.0
        %3221 = vmatpush1.msra.mxu0 %v3191
        %3222 = vmatprep.subr.mxu0 0.0
        %3223 = vmatpush1.msra.mxu0 %v3190
        %3224 = vmatprep.subr.mxu0 0.0
        %3225 = vmatpush1.msra.mxu0 %v3189
        %3226 = vmatprep.subr.mxu0 0.0
        %3227 = vmatpush1.msra.mxu0 %v3188
        %3228 = vmatprep.subr.mxu0 0.0
        %3229 = vmatpush1.msra.mxu0 %v3187
        %3230 = vmatprep.subr.mxu0 0.0
        %3231 = vmatpush1.msra.mxu0 %v3186
        %3232 = vmatprep.subr.mxu0 0.0
        %3233 = vmatpush1.msra.mxu0 %v3185
        %3234 = vmatprep.subr.mxu0 0.0
        %3235 = vmatpush1.msra.mxu0 %v3184
        %3236 = vmatprep.subr.mxu0 0.0
        %3237 = vmatpush1.msra.mxu0 %v3183
        %3238 = vmatprep.subr.mxu0 0.0
        %3239 = vmatpush2.msra.mxu0 0.0
        %3240 = vmatprep.subr.mxu0 0.0
        %3241 = vmatpush2.msra.mxu0 0.0
        %3242 = vmatprep.subr.mxu0 0.0
        %3243 = vmatpush2.msra.mxu0 0.0
        %3244 = vmatprep.subr.mxu0 0.0
        %3245 = vmatpush2.msra.mxu0 0.0
        %3246 = vmatprep.subr.mxu0 0.0
        %3247 = vmatpush2.msra.mxu0 0.0
        %3248 = vmatprep.subr.mxu0 0.0
        %3249 = vmatpush2.msra.mxu0 0.0
        %3250 = vmatprep.subr.mxu0 0.0
        %3251 = vmatpush2.msra.mxu0 0.0
        %3252 = vmatprep.subr.mxu0 0.0
        %3253 = vmatpush2.msra.mxu0 0.0
        %3254 = vmatprep.subr.mxu0 0.0
        %3255 = vmatpush2.msra.mxu0 0.0
        %3256 = vmatprep.subr.mxu0 0.0
        %3257 = vmatpush2.msra.mxu0 0.0
        %3258 = vmatprep.subr.mxu0 0.0
        %3259 = vmatpush2.msra.mxu0 0.0
        %3260 = vmatprep.subr.mxu0 0.0
        %3261 = vmatpush2.msra.mxu0 0.0
        %3262 = vmatprep.subr.mxu0 0.0
        %3263 = vmatpush2.msra.mxu0 0.0
        %3264 = vmatprep.subr.mxu0 0.0
        %3265 = vmatpush2.msra.mxu0 0.0
        %3266 = vmatprep.subr.mxu0 0.0
        %3267 = vmatpush2.msra.mxu0 0.0
        %3268 = vmatprep.subr.mxu0 0.0
        %3269 = vmatpush2.msra.mxu0 0.0
        %3270 = vmatprep.mubr.f32.mxu0 0.0
        %3271 = vmatmul.mubr.f32.gmra.mxu0 %v3182
        %v3272 = vpop.f32.mrf.mxu0
        %v3273 = vadd.f32 %v3204, %v3272
        %v3274 = vpop.f32.mrf.mxu0
        %3275 = vdwg.mxu0
        %v3276 = vadd.f32 %v3093, %v3273
        %v3277 = vld [vmem:[%s22] sm:$0x1]
        %v3278 = vld [vmem:[#allocation2] sm:$0x1]
        %v3279 = vsel %vm829, %v3276, 0.0
        %3280 = vadd.xlane.f32.xlu0 %v3279
        %v3281 = vpop.xlane.xlu0 %3280
        %v3282 = vmul.f32 %v3281, %v1887
        %v3283 = vsub.f32 %v3276, %v3282
        %v3284 = vmul.f32 %v3283, %v3283
        %v3285 = vsel %vm829, %v3284, 0.0
        %3286 = vadd.xlane.f32.xlu0 %v3285
        %v3287 = vpop.xlane.xlu0 %3286
        %v3288 = vmul.f32 %v3287, %v1887
        %v3289 = vadd.f32 %v3288, 1e-05
        %v3290 = vrsqrt.pop %v3289
        %v3291 = vmul.f32 %v3283, %v3290
        %v3293 = vlaneseq
        %v3294 = vshrl.u32 %v3293, 7
        %v3295 = vsub.s32 0, %v3294
        %v3296 = vrot.slane %v3277, %v3295
        %v3298 = vmul.f32 %v3291, %v3296
        %v3300 = vlaneseq
        %v3301 = vshrl.u32 %v3300, 7
        %v3302 = vsub.s32 0, %v3301
        %v3303 = vrot.slane %v3278, %v3302
        %v3305 = vadd.f32 %v3298, %v3303
        %3306 = vst.msk [vmem:[%s796] sm:$0xff] %vm829, %v3305
        %p3307 = scmp.lt.s32.totalorder %s36, 1
        %s3308 = scalar_select %p3307, %s36, 1
        %s3309 = smul.addr %s3308, 8
        %s3310 = scalar_lea.vmem %s24, %s3309
        // Predicated region
        $region121: #{trans_model_forward.8} parent=115 // pred_check
          %p3311 = pneg %p578
        $region122: #{trans_model_forward.8} parent=115 // pred_check_branch
          %3313 = sbr.rel (%p3311) target = $region124
        $region123: #{trans_model_forward.8} parent=115 // pred_region
          _
        $region124: #{trans_model_forward.8} parent=115 // pred_fallthru
          _
      $region116: #{trans_model_forward.8} parent=5 // pred_fallthru
        _
      %p3314 = scmp.le.s32.totalorder 2, %s31
      // Predicated region
      $region125: #{trans_model_forward.8} parent=5 // pred_check
        %p3315 = pneg %p3314
      $region126: #{trans_model_forward.8} parent=5 // pred_check_branch
        %3317 = sbr.rel (%p3315) target = $region128
      $region127: #{trans_model_forward.8} parent=5 // pred_region
        %s3318 = ssub.s32 %s31, 2
        // Predicated region
        $region129: #{trans_model_forward.8} parent=127 // pred_check
          %p3319 = pneg %p584
        $region130: #{trans_model_forward.8} parent=127 // pred_check_branch
          %3321 = sbr.rel (%p3319) target = $region132
        $region131: #{trans_model_forward.8} parent=127 // pred_region
          %p3322 = scmp.lt.s32.totalorder %s37, 1
          %s3323 = scalar_select %p3322, %s37, 1
          %s3324 = smul.addr %s3323, 8
          %s3325 = scalar_lea.vmem %s24, %s3324
        $region132: #{trans_model_forward.8} parent=127 // pred_fallthru
          _
      $region128: #{trans_model_forward.8} parent=5 // pred_fallthru
        _
    $region6: #{trans_model_forward.8} parent=1 // loop_footer
      %s35 = sadd.s32 1, %s31
    $region7: #{trans_model_forward.8} parent=1 // loop_footer_branch
      %30 = sbr.rel target = $region3
    $region8: #{trans_model_forward.8} parent=1 // loop_exit
      _
    %3326 = vsyncpa [#allocation3], 1
    %s3327 = scalar_lea.sflag [#allocation3], 1
    %3328 = vsyncpa %s3327, 1

// kernel: trans_model_forward.7
$region0: #{trans_model_forward.7}
  #allocation0 [shape = 'u32[]', space=smem, size = 0x4, offset = 0x4, fixed_abs, tag = 'smem constant byte address 0x4 - core index']
  #allocation1 [shape = 'u32[144,128]{1,0:T(1,128)}', space=vmem, size = 0x12000, scoped, tag = 'internal scratch']
  %s0 = inlined_call_operand.vmem [shape: f32[2,8,64], index: 0, kind: input, shape index: {}]
  %s1 = inlined_call_operand.vmem [shape: f32[2,8,64], index: 1, kind: input, shape index: {}]
  %s2 = inlined_call_operand.vmem [shape: f32[2,8,8], index: 2, kind: input, shape index: {}]
  %s3 = inlined_call_operand.vmem [shape: f32[2,8,8], index: 3, kind: input, shape index: {}]
  %s4 = inlined_call_operand.vmem [shape: f32[64,192], index: 4, kind: input, shape index: {}]
  %s5 = inlined_call_operand.vmem [shape: f32[1,192], index: 5, kind: input, shape index: {}]
  %s6 = inlined_call_operand.vmem [shape: f32[64,64], index: 6, kind: input, shape index: {}]
  %s7 = inlined_call_operand.vmem [shape: f32[1,64], index: 7, kind: input, shape index: {}]
  %s8 = inlined_call_operand.vmem [shape: f32[64,64], index: 8, kind: input, shape index: {}]
  %s9 = inlined_call_operand.vmem [shape: f32[1,64], index: 9, kind: input, shape index: {}]
  %s10 = inlined_call_operand.vmem [shape: f32[64,128], index: 10, kind: input, shape index: {}]
  %s11 = inlined_call_operand.vmem [shape: f32[1,128], index: 11, kind: input, shape index: {}]
  %s12 = inlined_call_operand.vmem [shape: f32[64,64], index: 12, kind: input, shape index: {}]
  %s13 = inlined_call_operand.vmem [shape: f32[1,64], index: 13, kind: input, shape index: {}]
  %s14 = inlined_call_operand.vmem [shape: f32[64,128], index: 14, kind: input, shape index: {}]
  %s15 = inlined_call_operand.vmem [shape: f32[1,128], index: 15, kind: input, shape index: {}]
  %s16 = inlined_call_operand.vmem [shape: f32[128,64], index: 16, kind: input, shape index: {}]
  %s17 = inlined_call_operand.vmem [shape: f32[1,64], index: 17, kind: input, shape index: {}]
  %s18 = inlined_call_operand.vmem [shape: f32[1,64], index: 18, kind: input, shape index: {}]
  %s19 = inlined_call_operand.vmem [shape: f32[1,64], index: 19, kind: input, shape index: {}]
  %s20 = inlined_call_operand.vmem [shape: f32[1,64], index: 20, kind: input, shape index: {}]
  %s21 = inlined_call_operand.vmem [shape: f32[1,64], index: 21, kind: input, shape index: {}]
  %s22 = inlined_call_operand.vmem [shape: f32[1,64], index: 22, kind: input, shape index: {}]
  %s23 = inlined_call_operand.vmem [shape: f32[1,64], index: 23, kind: input, shape index: {}]
  %s24 = inlined_call_operand.vmem [shape: f32[2,8,64], index: 24, kind: output, shape index: {}]
  %s25 = sld [smem:[#allocation0]]
  $region129: #{trans_model_forward.7} parent=0
    _
  %s27 = ssub.s32 1, %s25
  %s28 = scalar_select 0, %s27, %s25
  loop: start=0, step=1, limit=4
  $region2: #{trans_model_forward.7} parent=0 // loop_pre_header
    _
  $region3: #{trans_model_forward.7} parent=0 // loop_header
    %s30 = sphi 0, %s34
    %p31 = scmp.ge.s32.totalorder %s30, 4
    %s40 = sphi 0, %s42
    %s43 = sphi 0, %s40
    %s44 = sphi 0, %s43
    %s60 = sphi 0, %s44
    %s66 = sphi 0, %s68
    %s69 = sphi 0, %s66
    %s70 = sphi 0, %s69
    %s86 = sphi 0, %s70
    %s92 = sphi 0, %s94
    %s95 = sphi 0, %s92
    %s96 = sphi 0, %s95
    %s112 = sphi 0, %s96
    %s118 = sphi 0, %s120
    %s121 = sphi 0, %s118
    %s122 = sphi 0, %s121
    %s138 = sphi 0, %s122
    %s142 = sphi 0, %s142
    %s144 = sphi 0, %s142
    %s145 = sphi 0, %s144
    %s159 = sphi 0, %s145
    %s163 = sphi 0, %s163
    %s165 = sphi 0, %s163
    %s166 = sphi 0, %s165
    %s180 = sphi 0, %s166
    %s184 = sphi 0, %s184
    %s186 = sphi 0, %s184
    %s187 = sphi 0, %s186
    %s201 = sphi 0, %s187
    %s205 = sphi 0, %s205
    %s207 = sphi 0, %s205
    %s208 = sphi 0, %s207
    %s222 = sphi 0, %s208
    %s226 = sphi 0, %s226
    %s228 = sphi 0, %s226
    %s229 = sphi 0, %s228
    %s243 = sphi 0, %s229
    %s247 = sphi 0, %s247
    %s249 = sphi 0, %s247
    %s250 = sphi 0, %s249
    %s264 = sphi 0, %s250
    %s268 = sphi 0, %s268
    %s270 = sphi 0, %s268
    %s271 = sphi 0, %s270
    %s285 = sphi 0, %s271
    %s289 = sphi 0, %s289
    %s291 = sphi 0, %s289
    %s292 = sphi 0, %s291
    %s306 = sphi 0, %s292
    %s310 = sphi 0, %s310
    %s312 = sphi 0, %s310
    %s313 = sphi 0, %s312
    %s327 = sphi 0, %s313
    %s331 = sphi 0, %s331
    %s333 = sphi 0, %s331
    %s334 = sphi 0, %s333
    %s348 = sphi 0, %s334
    %s352 = sphi 0, %s352
    %s354 = sphi 0, %s352
    %s355 = sphi 0, %s354
    %s369 = sphi 0, %s355
    %s373 = sphi 0, %s373
    %s375 = sphi 0, %s373
    %s376 = sphi 0, %s375
    %s390 = sphi 0, %s376
    %s394 = sphi 0, %s394
    %s396 = sphi 0, %s394
    %s397 = sphi 0, %s396
    %s411 = sphi 0, %s397
    %s415 = sphi 0, %s415
    %s417 = sphi 0, %s415
    %s418 = sphi 0, %s417
    %s432 = sphi 0, %s418
    %s436 = sphi 0, %s436
    %s438 = sphi 0, %s436
    %s439 = sphi 0, %s438
    %s453 = sphi 0, %s439
    %s457 = sphi 0, %s457
    %s459 = sphi 0, %s457
    %s460 = sphi 0, %s459
    %s474 = sphi 0, %s460
    %s478 = sphi 0, %s478
    %s480 = sphi 0, %s478
    %s481 = sphi 0, %s480
    %s495 = sphi 0, %s481
    %s499 = sphi 0, %s499
    %s501 = sphi 0, %s499
    %s502 = sphi 0, %s501
    %s516 = sphi 0, %s502
    %s520 = sphi 0, %s520
    %s522 = sphi 0, %s520
    %s523 = sphi 0, %s522
    %s537 = sphi 0, %s523
    %s541 = sphi 0, %s541
    %s543 = sphi 0, %s541
    %s544 = sphi 0, %s543
    %s558 = sphi 0, %s544
    %s564 = sphi 0, %s566
    %s567 = sphi 0, %s564
    %s568 = sphi 0, %s567
    %s584 = sphi 0, %s568
  $region4: #{trans_model_forward.7} parent=0 // loop_header_branch
    %33 = sbr.rel (%p31) target = $region8
  $region5: #{trans_model_forward.7} parent=0 // loop_body
    %s35 = ssub.s32 %s30, 1
    %s36 = ssub.s32 %s30, 2
    %s37 = sadd.s32 %s30, 1
    %s38 = ssub.s32 %s30, %s37
    %p39 = scmp.eq.s32.totalorder %s38, 0
    %s41 = sadd.s32 %s40, 1
    %s42 = scalar_select %p39, %s40, %s41
    %p45 = pneg %p39
    %p46 = scmp.eq.s32.totalorder %s30, 1
    %p47 = por %p45, %p46
    %p48 = scmp.ne.s32.totalorder %s40, %s43
    %p49 = scmp.eq.s32.totalorder %s30, 0
    %p50 = por %p48, %p49
    %p51 = scmp.ne.s32.totalorder %s40, %s43
    %p52 = scmp.eq.s32.totalorder %s35, 1
    %p53 = por %p51, %p52
    %p54 = scmp.ne.s32.totalorder %s43, %s44
    %p55 = scmp.eq.s32.totalorder %s35, 0
    %p56 = por %p54, %p55
    %p57 = scmp.ne.s32.totalorder %s43, %s44
    %p58 = scmp.eq.s32.totalorder %s36, 1
    %p59 = por %p57, %p58
    %p61 = scmp.ne.s32.totalorder %s44, %s60
    %p62 = scmp.eq.s32.totalorder %s36, 0
    %p63 = por %p61, %p62
    %s64 = ssub.s32 %s30, %s37
    %p65 = scmp.eq.s32.totalorder %s64, 0
    %s67 = sadd.s32 %s66, 1
    %s68 = scalar_select %p65, %s66, %s67
    %p71 = pneg %p65
    %p72 = scmp.eq.s32.totalorder %s30, 1
    %p73 = por %p71, %p72
    %p74 = scmp.ne.s32.totalorder %s66, %s69
    %p75 = scmp.eq.s32.totalorder %s30, 0
    %p76 = por %p74, %p75
    %p77 = scmp.ne.s32.totalorder %s66, %s69
    %p78 = scmp.eq.s32.totalorder %s35, 1
    %p79 = por %p77, %p78
    %p80 = scmp.ne.s32.totalorder %s69, %s70
    %p81 = scmp.eq.s32.totalorder %s35, 0
    %p82 = por %p80, %p81
    %p83 = scmp.ne.s32.totalorder %s69, %s70
    %p84 = scmp.eq.s32.totalorder %s36, 1
    %p85 = por %p83, %p84
    %p87 = scmp.ne.s32.totalorder %s70, %s86
    %p88 = scmp.eq.s32.totalorder %s36, 0
    %p89 = por %p87, %p88
    %s90 = ssub.s32 %s30, %s37
    %p91 = scmp.eq.s32.totalorder %s90, 0
    %s93 = sadd.s32 %s92, 1
    %s94 = scalar_select %p91, %s92, %s93
    %p97 = pneg %p91
    %p98 = scmp.eq.s32.totalorder %s30, 1
    %p99 = por %p97, %p98
    %p100 = scmp.ne.s32.totalorder %s92, %s95
    %p101 = scmp.eq.s32.totalorder %s30, 0
    %p102 = por %p100, %p101
    %p103 = scmp.ne.s32.totalorder %s92, %s95
    %p104 = scmp.eq.s32.totalorder %s35, 1
    %p105 = por %p103, %p104
    %p106 = scmp.ne.s32.totalorder %s95, %s96
    %p107 = scmp.eq.s32.totalorder %s35, 0
    %p108 = por %p106, %p107
    %p109 = scmp.ne.s32.totalorder %s95, %s96
    %p110 = scmp.eq.s32.totalorder %s36, 1
    %p111 = por %p109, %p110
    %p113 = scmp.ne.s32.totalorder %s96, %s112
    %p114 = scmp.eq.s32.totalorder %s36, 0
    %p115 = por %p113, %p114
    %s116 = ssub.s32 %s30, %s37
    %p117 = scmp.eq.s32.totalorder %s116, 0
    %s119 = sadd.s32 %s118, 1
    %s120 = scalar_select %p117, %s118, %s119
    %p123 = pneg %p117
    %p124 = scmp.eq.s32.totalorder %s30, 1
    %p125 = por %p123, %p124
    %p126 = scmp.ne.s32.totalorder %s118, %s121
    %p127 = scmp.eq.s32.totalorder %s30, 0
    %p128 = por %p126, %p127
    %p129 = scmp.ne.s32.totalorder %s118, %s121
    %p130 = scmp.eq.s32.totalorder %s35, 1
    %p131 = por %p129, %p130
    %p132 = scmp.ne.s32.totalorder %s121, %s122
    %p133 = scmp.eq.s32.totalorder %s35, 0
    %p134 = por %p132, %p133
    %p135 = scmp.ne.s32.totalorder %s121, %s122
    %p136 = scmp.eq.s32.totalorder %s36, 1
    %p137 = por %p135, %p136
    %p139 = scmp.ne.s32.totalorder %s122, %s138
    %p140 = scmp.eq.s32.totalorder %s36, 0
    %p141 = por %p139, %p140
    %s143 = sadd.s32 %s142, 1
    %p146 = scmp.eq.s32.totalorder %s30, 1
    %p147 = scmp.ne.s32.totalorder %s142, %s144
    %p148 = scmp.eq.s32.totalorder %s30, 0
    %p149 = por %p147, %p148
    %p150 = scmp.ne.s32.totalorder %s142, %s144
    %p151 = scmp.eq.s32.totalorder %s35, 1
    %p152 = por %p150, %p151
    %p153 = scmp.ne.s32.totalorder %s144, %s145
    %p154 = scmp.eq.s32.totalorder %s35, 0
    %p155 = por %p153, %p154
    %p156 = scmp.ne.s32.totalorder %s144, %s145
    %p157 = scmp.eq.s32.totalorder %s36, 1
    %p158 = por %p156, %p157
    %p160 = scmp.ne.s32.totalorder %s145, %s159
    %p161 = scmp.eq.s32.totalorder %s36, 0
    %p162 = por %p160, %p161
    %s164 = sadd.s32 %s163, 1
    %p167 = scmp.eq.s32.totalorder %s30, 1
    %p168 = scmp.ne.s32.totalorder %s163, %s165
    %p169 = scmp.eq.s32.totalorder %s30, 0
    %p170 = por %p168, %p169
    %p171 = scmp.ne.s32.totalorder %s163, %s165
    %p172 = scmp.eq.s32.totalorder %s35, 1
    %p173 = por %p171, %p172
    %p174 = scmp.ne.s32.totalorder %s165, %s166
    %p175 = scmp.eq.s32.totalorder %s35, 0
    %p176 = por %p174, %p175
    %p177 = scmp.ne.s32.totalorder %s165, %s166
    %p178 = scmp.eq.s32.totalorder %s36, 1
    %p179 = por %p177, %p178
    %p181 = scmp.ne.s32.totalorder %s166, %s180
    %p182 = scmp.eq.s32.totalorder %s36, 0
    %p183 = por %p181, %p182
    %s185 = sadd.s32 %s184, 1
    %p188 = scmp.eq.s32.totalorder %s30, 1
    %p189 = scmp.ne.s32.totalorder %s184, %s186
    %p190 = scmp.eq.s32.totalorder %s30, 0
    %p191 = por %p189, %p190
    %p192 = scmp.ne.s32.totalorder %s184, %s186
    %p193 = scmp.eq.s32.totalorder %s35, 1
    %p194 = por %p192, %p193
    %p195 = scmp.ne.s32.totalorder %s186, %s187
    %p196 = scmp.eq.s32.totalorder %s35, 0
    %p197 = por %p195, %p196
    %p198 = scmp.ne.s32.totalorder %s186, %s187
    %p199 = scmp.eq.s32.totalorder %s36, 1
    %p200 = por %p198, %p199
    %p202 = scmp.ne.s32.totalorder %s187, %s201
    %p203 = scmp.eq.s32.totalorder %s36, 0
    %p204 = por %p202, %p203
    %s206 = sadd.s32 %s205, 1
    %p209 = scmp.eq.s32.totalorder %s30, 1
    %p210 = scmp.ne.s32.totalorder %s205, %s207
    %p211 = scmp.eq.s32.totalorder %s30, 0
    %p212 = por %p210, %p211
    %p213 = scmp.ne.s32.totalorder %s205, %s207
    %p214 = scmp.eq.s32.totalorder %s35, 1
    %p215 = por %p213, %p214
    %p216 = scmp.ne.s32.totalorder %s207, %s208
    %p217 = scmp.eq.s32.totalorder %s35, 0
    %p218 = por %p216, %p217
    %p219 = scmp.ne.s32.totalorder %s207, %s208
    %p220 = scmp.eq.s32.totalorder %s36, 1
    %p221 = por %p219, %p220
    %p223 = scmp.ne.s32.totalorder %s208, %s222
    %p224 = scmp.eq.s32.totalorder %s36, 0
    %p225 = por %p223, %p224
    %s227 = sadd.s32 %s226, 1
    %p230 = scmp.eq.s32.totalorder %s30, 1
    %p231 = scmp.ne.s32.totalorder %s226, %s228
    %p232 = scmp.eq.s32.totalorder %s30, 0
    %p233 = por %p231, %p232
    %p234 = scmp.ne.s32.totalorder %s226, %s228
    %p235 = scmp.eq.s32.totalorder %s35, 1
    %p236 = por %p234, %p235
    %p237 = scmp.ne.s32.totalorder %s228, %s229
    %p238 = scmp.eq.s32.totalorder %s35, 0
    %p239 = por %p237, %p238
    %p240 = scmp.ne.s32.totalorder %s228, %s229
    %p241 = scmp.eq.s32.totalorder %s36, 1
    %p242 = por %p240, %p241
    %p244 = scmp.ne.s32.totalorder %s229, %s243
    %p245 = scmp.eq.s32.totalorder %s36, 0
    %p246 = por %p244, %p245
    %s248 = sadd.s32 %s247, 1
    %p251 = scmp.eq.s32.totalorder %s30, 1
    %p252 = scmp.ne.s32.totalorder %s247, %s249
    %p253 = scmp.eq.s32.totalorder %s30, 0
    %p254 = por %p252, %p253
    %p255 = scmp.ne.s32.totalorder %s247, %s249
    %p256 = scmp.eq.s32.totalorder %s35, 1
    %p257 = por %p255, %p256
    %p258 = scmp.ne.s32.totalorder %s249, %s250
    %p259 = scmp.eq.s32.totalorder %s35, 0
    %p260 = por %p258, %p259
    %p261 = scmp.ne.s32.totalorder %s249, %s250
    %p262 = scmp.eq.s32.totalorder %s36, 1
    %p263 = por %p261, %p262
    %p265 = scmp.ne.s32.totalorder %s250, %s264
    %p266 = scmp.eq.s32.totalorder %s36, 0
    %p267 = por %p265, %p266
    %s269 = sadd.s32 %s268, 1
    %p272 = scmp.eq.s32.totalorder %s30, 1
    %p273 = scmp.ne.s32.totalorder %s268, %s270
    %p274 = scmp.eq.s32.totalorder %s30, 0
    %p275 = por %p273, %p274
    %p276 = scmp.ne.s32.totalorder %s268, %s270
    %p277 = scmp.eq.s32.totalorder %s35, 1
    %p278 = por %p276, %p277
    %p279 = scmp.ne.s32.totalorder %s270, %s271
    %p280 = scmp.eq.s32.totalorder %s35, 0
    %p281 = por %p279, %p280
    %p282 = scmp.ne.s32.totalorder %s270, %s271
    %p283 = scmp.eq.s32.totalorder %s36, 1
    %p284 = por %p282, %p283
    %p286 = scmp.ne.s32.totalorder %s271, %s285
    %p287 = scmp.eq.s32.totalorder %s36, 0
    %p288 = por %p286, %p287
    %s290 = sadd.s32 %s289, 1
    %p293 = scmp.eq.s32.totalorder %s30, 1
    %p294 = scmp.ne.s32.totalorder %s289, %s291
    %p295 = scmp.eq.s32.totalorder %s30, 0
    %p296 = por %p294, %p295
    %p297 = scmp.ne.s32.totalorder %s289, %s291
    %p298 = scmp.eq.s32.totalorder %s35, 1
    %p299 = por %p297, %p298
    %p300 = scmp.ne.s32.totalorder %s291, %s292
    %p301 = scmp.eq.s32.totalorder %s35, 0
    %p302 = por %p300, %p301
    %p303 = scmp.ne.s32.totalorder %s291, %s292
    %p304 = scmp.eq.s32.totalorder %s36, 1
    %p305 = por %p303, %p304
    %p307 = scmp.ne.s32.totalorder %s292, %s306
    %p308 = scmp.eq.s32.totalorder %s36, 0
    %p309 = por %p307, %p308
    %s311 = sadd.s32 %s310, 1
    %p314 = scmp.eq.s32.totalorder %s30, 1
    %p315 = scmp.ne.s32.totalorder %s310, %s312
    %p316 = scmp.eq.s32.totalorder %s30, 0
    %p317 = por %p315, %p316
    %p318 = scmp.ne.s32.totalorder %s310, %s312
    %p319 = scmp.eq.s32.totalorder %s35, 1
    %p320 = por %p318, %p319
    %p321 = scmp.ne.s32.totalorder %s312, %s313
    %p322 = scmp.eq.s32.totalorder %s35, 0
    %p323 = por %p321, %p322
    %p324 = scmp.ne.s32.totalorder %s312, %s313
    %p325 = scmp.eq.s32.totalorder %s36, 1
    %p326 = por %p324, %p325
    %p328 = scmp.ne.s32.totalorder %s313, %s327
    %p329 = scmp.eq.s32.totalorder %s36, 0
    %p330 = por %p328, %p329
    %s332 = sadd.s32 %s331, 1
    %p335 = scmp.eq.s32.totalorder %s30, 1
    %p336 = scmp.ne.s32.totalorder %s331, %s333
    %p337 = scmp.eq.s32.totalorder %s30, 0
    %p338 = por %p336, %p337
    %p339 = scmp.ne.s32.totalorder %s331, %s333
    %p340 = scmp.eq.s32.totalorder %s35, 1
    %p341 = por %p339, %p340
    %p342 = scmp.ne.s32.totalorder %s333, %s334
    %p343 = scmp.eq.s32.totalorder %s35, 0
    %p344 = por %p342, %p343
    %p345 = scmp.ne.s32.totalorder %s333, %s334
    %p346 = scmp.eq.s32.totalorder %s36, 1
    %p347 = por %p345, %p346
    %p349 = scmp.ne.s32.totalorder %s334, %s348
    %p350 = scmp.eq.s32.totalorder %s36, 0
    %p351 = por %p349, %p350
    %s353 = sadd.s32 %s352, 1
    %p356 = scmp.eq.s32.totalorder %s30, 1
    %p357 = scmp.ne.s32.totalorder %s352, %s354
    %p358 = scmp.eq.s32.totalorder %s30, 0
    %p359 = por %p357, %p358
    %p360 = scmp.ne.s32.totalorder %s352, %s354
    %p361 = scmp.eq.s32.totalorder %s35, 1
    %p362 = por %p360, %p361
    %p363 = scmp.ne.s32.totalorder %s354, %s355
    %p364 = scmp.eq.s32.totalorder %s35, 0
    %p365 = por %p363, %p364
    %p366 = scmp.ne.s32.totalorder %s354, %s355
    %p367 = scmp.eq.s32.totalorder %s36, 1
    %p368 = por %p366, %p367
    %p370 = scmp.ne.s32.totalorder %s355, %s369
    %p371 = scmp.eq.s32.totalorder %s36, 0
    %p372 = por %p370, %p371
    %s374 = sadd.s32 %s373, 1
    %p377 = scmp.eq.s32.totalorder %s30, 1
    %p378 = scmp.ne.s32.totalorder %s373, %s375
    %p379 = scmp.eq.s32.totalorder %s30, 0
    %p380 = por %p378, %p379
    %p381 = scmp.ne.s32.totalorder %s373, %s375
    %p382 = scmp.eq.s32.totalorder %s35, 1
    %p383 = por %p381, %p382
    %p384 = scmp.ne.s32.totalorder %s375, %s376
    %p385 = scmp.eq.s32.totalorder %s35, 0
    %p386 = por %p384, %p385
    %p387 = scmp.ne.s32.totalorder %s375, %s376
    %p388 = scmp.eq.s32.totalorder %s36, 1
    %p389 = por %p387, %p388
    %p391 = scmp.ne.s32.totalorder %s376, %s390
    %p392 = scmp.eq.s32.totalorder %s36, 0
    %p393 = por %p391, %p392
    %s395 = sadd.s32 %s394, 1
    %p398 = scmp.eq.s32.totalorder %s30, 1
    %p399 = scmp.ne.s32.totalorder %s394, %s396
    %p400 = scmp.eq.s32.totalorder %s30, 0
    %p401 = por %p399, %p400
    %p402 = scmp.ne.s32.totalorder %s394, %s396
    %p403 = scmp.eq.s32.totalorder %s35, 1
    %p404 = por %p402, %p403
    %p405 = scmp.ne.s32.totalorder %s396, %s397
    %p406 = scmp.eq.s32.totalorder %s35, 0
    %p407 = por %p405, %p406
    %p408 = scmp.ne.s32.totalorder %s396, %s397
    %p409 = scmp.eq.s32.totalorder %s36, 1
    %p410 = por %p408, %p409
    %p412 = scmp.ne.s32.totalorder %s397, %s411
    %p413 = scmp.eq.s32.totalorder %s36, 0
    %p414 = por %p412, %p413
    %s416 = sadd.s32 %s415, 1
    %p419 = scmp.eq.s32.totalorder %s30, 1
    %p420 = scmp.ne.s32.totalorder %s415, %s417
    %p421 = scmp.eq.s32.totalorder %s30, 0
    %p422 = por %p420, %p421
    %p423 = scmp.ne.s32.totalorder %s415, %s417
    %p424 = scmp.eq.s32.totalorder %s35, 1
    %p425 = por %p423, %p424
    %p426 = scmp.ne.s32.totalorder %s417, %s418
    %p427 = scmp.eq.s32.totalorder %s35, 0
    %p428 = por %p426, %p427
    %p429 = scmp.ne.s32.totalorder %s417, %s418
    %p430 = scmp.eq.s32.totalorder %s36, 1
    %p431 = por %p429, %p430
    %p433 = scmp.ne.s32.totalorder %s418, %s432
    %p434 = scmp.eq.s32.totalorder %s36, 0
    %p435 = por %p433, %p434
    %s437 = sadd.s32 %s436, 1
    %p440 = scmp.eq.s32.totalorder %s30, 1
    %p441 = scmp.ne.s32.totalorder %s436, %s438
    %p442 = scmp.eq.s32.totalorder %s30, 0
    %p443 = por %p441, %p442
    %p444 = scmp.ne.s32.totalorder %s436, %s438
    %p445 = scmp.eq.s32.totalorder %s35, 1
    %p446 = por %p444, %p445
    %p447 = scmp.ne.s32.totalorder %s438, %s439
    %p448 = scmp.eq.s32.totalorder %s35, 0
    %p449 = por %p447, %p448
    %p450 = scmp.ne.s32.totalorder %s438, %s439
    %p451 = scmp.eq.s32.totalorder %s36, 1
    %p452 = por %p450, %p451
    %p454 = scmp.ne.s32.totalorder %s439, %s453
    %p455 = scmp.eq.s32.totalorder %s36, 0
    %p456 = por %p454, %p455
    %s458 = sadd.s32 %s457, 1
    %p461 = scmp.eq.s32.totalorder %s30, 1
    %p462 = scmp.ne.s32.totalorder %s457, %s459
    %p463 = scmp.eq.s32.totalorder %s30, 0
    %p464 = por %p462, %p463
    %p465 = scmp.ne.s32.totalorder %s457, %s459
    %p466 = scmp.eq.s32.totalorder %s35, 1
    %p467 = por %p465, %p466
    %p468 = scmp.ne.s32.totalorder %s459, %s460
    %p469 = scmp.eq.s32.totalorder %s35, 0
    %p470 = por %p468, %p469
    %p471 = scmp.ne.s32.totalorder %s459, %s460
    %p472 = scmp.eq.s32.totalorder %s36, 1
    %p473 = por %p471, %p472
    %p475 = scmp.ne.s32.totalorder %s460, %s474
    %p476 = scmp.eq.s32.totalorder %s36, 0
    %p477 = por %p475, %p476
    %s479 = sadd.s32 %s478, 1
    %p482 = scmp.eq.s32.totalorder %s30, 1
    %p483 = scmp.ne.s32.totalorder %s478, %s480
    %p484 = scmp.eq.s32.totalorder %s30, 0
    %p485 = por %p483, %p484
    %p486 = scmp.ne.s32.totalorder %s478, %s480
    %p487 = scmp.eq.s32.totalorder %s35, 1
    %p488 = por %p486, %p487
    %p489 = scmp.ne.s32.totalorder %s480, %s481
    %p490 = scmp.eq.s32.totalorder %s35, 0
    %p491 = por %p489, %p490
    %p492 = scmp.ne.s32.totalorder %s480, %s481
    %p493 = scmp.eq.s32.totalorder %s36, 1
    %p494 = por %p492, %p493
    %p496 = scmp.ne.s32.totalorder %s481, %s495
    %p497 = scmp.eq.s32.totalorder %s36, 0
    %p498 = por %p496, %p497
    %s500 = sadd.s32 %s499, 1
    %p503 = scmp.eq.s32.totalorder %s30, 1
    %p504 = scmp.ne.s32.totalorder %s499, %s501
    %p505 = scmp.eq.s32.totalorder %s30, 0
    %p506 = por %p504, %p505
    %p507 = scmp.ne.s32.totalorder %s499, %s501
    %p508 = scmp.eq.s32.totalorder %s35, 1
    %p509 = por %p507, %p508
    %p510 = scmp.ne.s32.totalorder %s501, %s502
    %p511 = scmp.eq.s32.totalorder %s35, 0
    %p512 = por %p510, %p511
    %p513 = scmp.ne.s32.totalorder %s501, %s502
    %p514 = scmp.eq.s32.totalorder %s36, 1
    %p515 = por %p513, %p514
    %p517 = scmp.ne.s32.totalorder %s502, %s516
    %p518 = scmp.eq.s32.totalorder %s36, 0
    %p519 = por %p517, %p518
    %s521 = sadd.s32 %s520, 1
    %p524 = scmp.eq.s32.totalorder %s30, 1
    %p525 = scmp.ne.s32.totalorder %s520, %s522
    %p526 = scmp.eq.s32.totalorder %s30, 0
    %p527 = por %p525, %p526
    %p528 = scmp.ne.s32.totalorder %s520, %s522
    %p529 = scmp.eq.s32.totalorder %s35, 1
    %p530 = por %p528, %p529
    %p531 = scmp.ne.s32.totalorder %s522, %s523
    %p532 = scmp.eq.s32.totalorder %s35, 0
    %p533 = por %p531, %p532
    %p534 = scmp.ne.s32.totalorder %s522, %s523
    %p535 = scmp.eq.s32.totalorder %s36, 1
    %p536 = por %p534, %p535
    %p538 = scmp.ne.s32.totalorder %s523, %s537
    %p539 = scmp.eq.s32.totalorder %s36, 0
    %p540 = por %p538, %p539
    %s542 = sadd.s32 %s541, 1
    %p545 = scmp.eq.s32.totalorder %s30, 1
    %p546 = scmp.ne.s32.totalorder %s541, %s543
    %p547 = scmp.eq.s32.totalorder %s30, 0
    %p548 = por %p546, %p547
    %p549 = scmp.ne.s32.totalorder %s541, %s543
    %p550 = scmp.eq.s32.totalorder %s35, 1
    %p551 = por %p549, %p550
    %p552 = scmp.ne.s32.totalorder %s543, %s544
    %p553 = scmp.eq.s32.totalorder %s35, 0
    %p554 = por %p552, %p553
    %p555 = scmp.ne.s32.totalorder %s543, %s544
    %p556 = scmp.eq.s32.totalorder %s36, 1
    %p557 = por %p555, %p556
    %p559 = scmp.ne.s32.totalorder %s544, %s558
    %p560 = scmp.eq.s32.totalorder %s36, 0
    %p561 = por %p559, %p560
    %s562 = ssub.s32 %s30, %s37
    %p563 = scmp.eq.s32.totalorder %s562, 0
    %s565 = sadd.s32 %s564, 1
    %s566 = scalar_select %p563, %s564, %s565
    %p569 = pneg %p563
    %p570 = scmp.eq.s32.totalorder %s30, 1
    %p571 = por %p569, %p570
    %p572 = scmp.ne.s32.totalorder %s564, %s567
    %p573 = scmp.eq.s32.totalorder %s30, 0
    %p574 = por %p572, %p573
    %p575 = scmp.ne.s32.totalorder %s564, %s567
    %p576 = scmp.eq.s32.totalorder %s35, 1
    %p577 = por %p575, %p576
    %p578 = scmp.ne.s32.totalorder %s567, %s568
    %p579 = scmp.eq.s32.totalorder %s35, 0
    %p580 = por %p578, %p579
    %p581 = scmp.ne.s32.totalorder %s567, %s568
    %p582 = scmp.eq.s32.totalorder %s36, 1
    %p583 = por %p581, %p582
    %p585 = scmp.ne.s32.totalorder %s568, %s584
    %p586 = scmp.eq.s32.totalorder %s36, 0
    %p587 = por %p585, %p586
    %p588 = scmp.le.s32.totalorder 1, %s30
    %p589 = scmp.lt.s32.totalorder %s30, 3
    %p590 = pnand %p588, %p589
    %p591 = pneg %p590
    // Predicated region
    $region9: #{trans_model_forward.7} parent=5 // pred_check
      _
    $region10: #{trans_model_forward.7} parent=5 // pred_check_branch
      %593 = sbr.rel (%p590) target = $region12
    $region11: #{trans_model_forward.7} parent=5 // pred_region
      %s594 = ssub.s32 %s30, 1
      // Predicated region
      $region13: #{trans_model_forward.7} parent=11 // pred_check
        %p595 = pneg %p155
      $region14: #{trans_model_forward.7} parent=11 // pred_check_branch
        %597 = sbr.rel (%p595) target = $region16
      $region15: #{trans_model_forward.7} parent=11 // pred_region
        _
      $region16: #{trans_model_forward.7} parent=11 // pred_fallthru
        _
      // Predicated region
      $region17: #{trans_model_forward.7} parent=11 // pred_check
        %p598 = pneg %p176
      $region18: #{trans_model_forward.7} parent=11 // pred_check_branch
        %600 = sbr.rel (%p598) target = $region20
      $region19: #{trans_model_forward.7} parent=11 // pred_region
        _
      $region20: #{trans_model_forward.7} parent=11 // pred_fallthru
        _
      // Predicated region
      $region21: #{trans_model_forward.7} parent=11 // pred_check
        %p601 = pneg %p197
      $region22: #{trans_model_forward.7} parent=11 // pred_check_branch
        %603 = sbr.rel (%p601) target = $region24
      $region23: #{trans_model_forward.7} parent=11 // pred_region
        _
      $region24: #{trans_model_forward.7} parent=11 // pred_fallthru
        _
      // Predicated region
      $region25: #{trans_model_forward.7} parent=11 // pred_check
        %p604 = pneg %p218
      $region26: #{trans_model_forward.7} parent=11 // pred_check_branch
        %606 = sbr.rel (%p604) target = $region28
      $region27: #{trans_model_forward.7} parent=11 // pred_region
        _
      $region28: #{trans_model_forward.7} parent=11 // pred_fallthru
        _
      // Predicated region
      $region29: #{trans_model_forward.7} parent=11 // pred_check
        %p607 = pneg %p239
      $region30: #{trans_model_forward.7} parent=11 // pred_check_branch
        %609 = sbr.rel (%p607) target = $region32
      $region31: #{trans_model_forward.7} parent=11 // pred_region
        _
      $region32: #{trans_model_forward.7} parent=11 // pred_fallthru
        _
      // Predicated region
      $region33: #{trans_model_forward.7} parent=11 // pred_check
        %p610 = pneg %p260
      $region34: #{trans_model_forward.7} parent=11 // pred_check_branch
        %612 = sbr.rel (%p610) target = $region36
      $region35: #{trans_model_forward.7} parent=11 // pred_region
        _
      $region36: #{trans_model_forward.7} parent=11 // pred_fallthru
        _
      // Predicated region
      $region37: #{trans_model_forward.7} parent=11 // pred_check
        %p613 = pneg %p281
      $region38: #{trans_model_forward.7} parent=11 // pred_check_branch
        %615 = sbr.rel (%p613) target = $region40
      $region39: #{trans_model_forward.7} parent=11 // pred_region
        _
      $region40: #{trans_model_forward.7} parent=11 // pred_fallthru
        _
      // Predicated region
      $region41: #{trans_model_forward.7} parent=11 // pred_check
        %p616 = pneg %p302
      $region42: #{trans_model_forward.7} parent=11 // pred_check_branch
        %618 = sbr.rel (%p616) target = $region44
      $region43: #{trans_model_forward.7} parent=11 // pred_region
        _
      $region44: #{trans_model_forward.7} parent=11 // pred_fallthru
        _
      // Predicated region
      $region45: #{trans_model_forward.7} parent=11 // pred_check
        %p619 = pneg %p323
      $region46: #{trans_model_forward.7} parent=11 // pred_check_branch
        %621 = sbr.rel (%p619) target = $region48
      $region47: #{trans_model_forward.7} parent=11 // pred_region
        _
      $region48: #{trans_model_forward.7} parent=11 // pred_fallthru
        _
      // Predicated region
      $region49: #{trans_model_forward.7} parent=11 // pred_check
        %p622 = pneg %p344
      $region50: #{trans_model_forward.7} parent=11 // pred_check_branch
        %624 = sbr.rel (%p622) target = $region52
      $region51: #{trans_model_forward.7} parent=11 // pred_region
        _
      $region52: #{trans_model_forward.7} parent=11 // pred_fallthru
        _
      // Predicated region
      $region53: #{trans_model_forward.7} parent=11 // pred_check
        %p625 = pneg %p365
      $region54: #{trans_model_forward.7} parent=11 // pred_check_branch
        %627 = sbr.rel (%p625) target = $region56
      $region55: #{trans_model_forward.7} parent=11 // pred_region
        _
      $region56: #{trans_model_forward.7} parent=11 // pred_fallthru
        _
      // Predicated region
      $region57: #{trans_model_forward.7} parent=11 // pred_check
        %p628 = pneg %p386
      $region58: #{trans_model_forward.7} parent=11 // pred_check_branch
        %630 = sbr.rel (%p628) target = $region60
      $region59: #{trans_model_forward.7} parent=11 // pred_region
        _
      $region60: #{trans_model_forward.7} parent=11 // pred_fallthru
        _
      // Predicated region
      $region61: #{trans_model_forward.7} parent=11 // pred_check
        %p631 = pneg %p407
      $region62: #{trans_model_forward.7} parent=11 // pred_check_branch
        %633 = sbr.rel (%p631) target = $region64
      $region63: #{trans_model_forward.7} parent=11 // pred_region
        _
      $region64: #{trans_model_forward.7} parent=11 // pred_fallthru
        _
      // Predicated region
      $region65: #{trans_model_forward.7} parent=11 // pred_check
        %p634 = pneg %p428
      $region66: #{trans_model_forward.7} parent=11 // pred_check_branch
        %636 = sbr.rel (%p634) target = $region68
      $region67: #{trans_model_forward.7} parent=11 // pred_region
        _
      $region68: #{trans_model_forward.7} parent=11 // pred_fallthru
        _
      // Predicated region
      $region69: #{trans_model_forward.7} parent=11 // pred_check
        %p637 = pneg %p449
      $region70: #{trans_model_forward.7} parent=11 // pred_check_branch
        %639 = sbr.rel (%p637) target = $region72
      $region71: #{trans_model_forward.7} parent=11 // pred_region
        _
      $region72: #{trans_model_forward.7} parent=11 // pred_fallthru
        _
      // Predicated region
      $region73: #{trans_model_forward.7} parent=11 // pred_check
        %p640 = pneg %p470
      $region74: #{trans_model_forward.7} parent=11 // pred_check_branch
        %642 = sbr.rel (%p640) target = $region76
      $region75: #{trans_model_forward.7} parent=11 // pred_region
        _
      $region76: #{trans_model_forward.7} parent=11 // pred_fallthru
        _
      // Predicated region
      $region77: #{trans_model_forward.7} parent=11 // pred_check
        %p643 = pneg %p491
      $region78: #{trans_model_forward.7} parent=11 // pred_check_branch
        %645 = sbr.rel (%p643) target = $region80
      $region79: #{trans_model_forward.7} parent=11 // pred_region
        _
      $region80: #{trans_model_forward.7} parent=11 // pred_fallthru
        _
      // Predicated region
      $region81: #{trans_model_forward.7} parent=11 // pred_check
        %p646 = pneg %p512
      $region82: #{trans_model_forward.7} parent=11 // pred_check_branch
        %648 = sbr.rel (%p646) target = $region84
      $region83: #{trans_model_forward.7} parent=11 // pred_region
        _
      $region84: #{trans_model_forward.7} parent=11 // pred_fallthru
        _
      // Predicated region
      $region85: #{trans_model_forward.7} parent=11 // pred_check
        %p649 = pneg %p533
      $region86: #{trans_model_forward.7} parent=11 // pred_check_branch
        %651 = sbr.rel (%p649) target = $region88
      $region87: #{trans_model_forward.7} parent=11 // pred_region
        _
      $region88: #{trans_model_forward.7} parent=11 // pred_fallthru
        _
      // Predicated region
      $region89: #{trans_model_forward.7} parent=11 // pred_check
        %p652 = pneg %p554
      $region90: #{trans_model_forward.7} parent=11 // pred_check_branch
        %654 = sbr.rel (%p652) target = $region92
      $region91: #{trans_model_forward.7} parent=11 // pred_region
        _
      $region92: #{trans_model_forward.7} parent=11 // pred_fallthru
        _
    $region12: #{trans_model_forward.7} parent=5 // pred_fallthru
      _
    %p655 = scmp.lt.s32.totalorder %s30, 2
    // Predicated region
    $region93: #{trans_model_forward.7} parent=5 // pred_check
      %p656 = pneg %p655
    $region94: #{trans_model_forward.7} parent=5 // pred_check_branch
      %658 = sbr.rel (%p656) target = $region96
    $region95: #{trans_model_forward.7} parent=5 // pred_region
      // Predicated region
      $region97: #{trans_model_forward.7} parent=95 // pred_check
        %p659 = pneg %p50
      $region98: #{trans_model_forward.7} parent=95 // pred_check_branch
        %661 = sbr.rel (%p659) target = $region100
      $region99: #{trans_model_forward.7} parent=95 // pred_region
        %p662 = scmp.lt.s32.totalorder %s30, 1
        %s663 = scalar_select %p662, %s30, 1
        %s664 = smul.addr %s663, 8
        %s665 = scalar_lea.vmem %s0, %s664
      $region100: #{trans_model_forward.7} parent=95 // pred_fallthru
        _
      // Predicated region
      $region101: #{trans_model_forward.7} parent=95 // pred_check
        %p666 = pneg %p76
      $region102: #{trans_model_forward.7} parent=95 // pred_check_branch
        %668 = sbr.rel (%p666) target = $region104
      $region103: #{trans_model_forward.7} parent=95 // pred_region
        %p669 = scmp.lt.s32.totalorder %s30, 1
        %s670 = scalar_select %p669, %s30, 1
        %s671 = smul.addr %s670, 8
        %s672 = scalar_lea.vmem %s1, %s671
      $region104: #{trans_model_forward.7} parent=95 // pred_fallthru
        _
      // Predicated region
      $region105: #{trans_model_forward.7} parent=95 // pred_check
        %p673 = pneg %p102
      $region106: #{trans_model_forward.7} parent=95 // pred_check_branch
        %675 = sbr.rel (%p673) target = $region108
      $region107: #{trans_model_forward.7} parent=95 // pred_region
        %p676 = scmp.lt.s32.totalorder %s30, 1
        %s677 = scalar_select %p676, %s30, 1
        %s678 = smul.addr %s677, 8
        %s679 = scalar_lea.vmem %s2, %s678
      $region108: #{trans_model_forward.7} parent=95 // pred_fallthru
        _
      // Predicated region
      $region109: #{trans_model_forward.7} parent=95 // pred_check
        %p680 = pneg %p128
      $region110: #{trans_model_forward.7} parent=95 // pred_check_branch
        %682 = sbr.rel (%p680) target = $region112
      $region111: #{trans_model_forward.7} parent=95 // pred_region
        %p683 = scmp.lt.s32.totalorder %s30, 1
        %s684 = scalar_select %p683, %s30, 1
        %s685 = smul.addr %s684, 8
        %s686 = scalar_lea.vmem %s3, %s685
      $region112: #{trans_model_forward.7} parent=95 // pred_fallthru
        _
    $region96: #{trans_model_forward.7} parent=5 // pred_fallthru
      _
    %p687 = scmp.le.s32.totalorder 1, %s30
    %p688 = scmp.lt.s32.totalorder %s30, 3
    %p689 = pnand %p687, %p688
    %p690 = pneg %p689
    // Predicated region
    $region113: #{trans_model_forward.7} parent=5 // pred_check
      _
    $region114: #{trans_model_forward.7} parent=5 // pred_check_branch
      %692 = sbr.rel (%p689) target = $region116
    $region115: #{trans_model_forward.7} parent=5 // pred_region
      %s693 = ssub.s32 %s30, 1
      %p694 = scmp.lt.s32.totalorder %s35, 1
      %s695 = scalar_select %p694, %s35, 1
      %s696 = smul.addr %s695, 8
      %s697 = scalar_lea.vmem %s0, %s696
      %p698 = pneg %p56
      %p699 = pneg %p53
      %p700 = scmp.lt.s32.totalorder %s35, 1
      %s701 = scalar_select %p700, %s35, 1
      %s702 = smul.addr %s701, 8
      %s703 = scalar_lea.vmem %s1, %s702
      %p704 = pneg %p82
      %p705 = pneg %p79
      %p706 = scmp.lt.s32.totalorder %s35, 1
      %s707 = scalar_select %p706, %s35, 1
      %s708 = smul.addr %s707, 8
      %s709 = scalar_lea.vmem %s2, %s708
      %p710 = pneg %p108
      %p711 = pneg %p105
      %p712 = scmp.lt.s32.totalorder %s35, 1
      %s713 = scalar_select %p712, %s35, 1
      %s714 = smul.addr %s713, 8
      %s715 = scalar_lea.vmem %s3, %s714
      %p716 = pneg %p134
      %p717 = pneg %p131
      %p718 = pneg %p155
      %p719 = pneg %p152
      %p720 = pneg %p176
      %p721 = pneg %p173
      %p722 = pneg %p197
      %p723 = pneg %p194
      %p724 = pneg %p218
      %p725 = pneg %p215
      %p726 = pneg %p239
      %p727 = pneg %p236
      %p728 = pneg %p260
      %p729 = pneg %p257
      %p730 = pneg %p281
      %p731 = pneg %p278
      %p732 = pneg %p302
      %p733 = pneg %p299
      %p734 = pneg %p323
      %p735 = pneg %p320
      %p736 = pneg %p344
      %p737 = pneg %p341
      %p738 = pneg %p365
      %p739 = pneg %p362
      %p740 = pneg %p386
      %p741 = pneg %p383
      %p742 = pneg %p407
      %p743 = pneg %p404
      %p744 = pneg %p428
      %p745 = pneg %p425
      %p746 = pneg %p449
      %p747 = pneg %p446
      %p748 = pneg %p470
      %p749 = pneg %p467
      %p750 = pneg %p491
      %p751 = pneg %p488
      %p752 = pneg %p512
      %p753 = pneg %p509
      %p754 = pneg %p533
      %p755 = pneg %p530
      %p756 = pneg %p554
      %p757 = pneg %p551
      %p758 = pneg %p580
      %p759 = pneg %p577
      %p760 = scmp.lt.s32.totalorder %s35, 1
      %s761 = scalar_select %p760, %s35, 1
      %s762 = smul.addr %s761, 8
      %s763 = scalar_lea.vmem %s24, %s762
      %p764 = scmp.lt.s32.totalorder %s35, 1
      %s765 = scalar_select %p764, %s35, 1
      %s766 = smul.addr %s765, 8
      %s767 = scalar_lea.vmem %s0, %s766
      %p768 = scmp.lt.s32.totalorder %s35, 1
      %s769 = scalar_select %p768, %s35, 1
      %s770 = smul.addr %s769, 8
      %s771 = scalar_lea.vmem %s1, %s770
      %p772 = scmp.lt.s32.totalorder %s35, 1
      %s773 = scalar_select %p772, %s35, 1
      %s774 = smul.addr %s773, 8
      %s775 = scalar_lea.vmem %s2, %s774
      %p776 = scmp.lt.s32.totalorder %s35, 1
      %s777 = scalar_select %p776, %s35, 1
      %s778 = smul.addr %s777, 8
      %s779 = scalar_lea.vmem %s3, %s778
      %p780 = scmp.lt.s32.totalorder %s35, 1
      %s781 = scalar_select %p780, %s35, 1
      %s782 = smul.addr %s781, 8
      %s783 = scalar_lea.vmem %s24, %s782
      %v784 = vld [vmem:[%s767] sm:$0xff]
      %v785 = vld [vmem:[%s771] sm:$0xff]
      %v786 = vld [vmem:[%s775] sm:$0xff]
      %v787 = vld [vmem:[%s779] sm:$0xff]
      %v788 = vld [vmem:[%s4] sm:$0xff]
      %v789 = vld [vmem:[%s4 + $0x8] sm:$0xff]
      %v790 = vld [vmem:[%s4 + $0x10] sm:$0xff]
      %v791 = vld [vmem:[%s4 + $0x18] sm:$0xff]
      %v792 = vld [vmem:[%s4 + $0x20] sm:$0xff]
      %v793 = vld [vmem:[%s4 + $0x28] sm:$0xff]
      %v794 = vld [vmem:[%s4 + $0x30] sm:$0xff]
      %v795 = vld [vmem:[%s4 + $0x38] sm:$0xff]
      %v796 = vld [vmem:[%s4 + $0x40] sm:$0xff]
      %v797 = vld [vmem:[%s4 + $0x48] sm:$0xff]
      %v798 = vld [vmem:[%s4 + $0x50] sm:$0xff]
      %v799 = vld [vmem:[%s4 + $0x58] sm:$0xff]
      %v800 = vld [vmem:[%s4 + $0x60] sm:$0xff]
      %v801 = vld [vmem:[%s4 + $0x68] sm:$0xff]
      %v802 = vld [vmem:[%s4 + $0x70] sm:$0xff]
      %v803 = vld [vmem:[%s4 + $0x78] sm:$0xff]
      %v804 = vld [vmem:[%s5] sm:$0x3]
      %v806 = vlaneseq
      %v807 = vshrl.u32 %v806, 7
      %v808 = vsub.s32 0, %v807
      %v809 = vrot.slane %v804, %v808
      %v810 = vlaneseq
      %v811 = vshrl.u32 %v810, 7
      %v812 = vsub.s32 1, %v811
      %v813 = vrot.slane %v804, %v812
      %vm816 = vcmask 523264
      %v818 = vsel %vm816, %v784, 0
      %820 = vmatprep.subr.mxu0 0.0
      %821 = vmatpush1.msra.mxu0 0.0
      %822 = vmatprep.subr.mxu0 0.0
      %823 = vmatpush1.msra.mxu0 0.0
      %824 = vmatprep.subr.mxu0 0.0
      %825 = vmatpush1.msra.mxu0 0.0
      %826 = vmatprep.subr.mxu0 0.0
      %827 = vmatpush1.msra.mxu0 0.0
      %828 = vmatprep.subr.mxu0 0.0
      %829 = vmatpush1.msra.mxu0 0.0
      %830 = vmatprep.subr.mxu0 0.0
      %831 = vmatpush1.msra.mxu0 0.0
      %832 = vmatprep.subr.mxu0 0.0
      %833 = vmatpush1.msra.mxu0 0.0
      %834 = vmatprep.subr.mxu0 0.0
      %835 = vmatpush1.msra.mxu0 0.0
      %836 = vmatprep.subr.mxu0 %v803
      %837 = vmatpush1.msra.mxu0 %v802
      %838 = vmatprep.subr.mxu0 %v801
      %839 = vmatpush1.msra.mxu0 %v800
      %840 = vmatprep.subr.mxu0 %v799
      %841 = vmatpush1.msra.mxu0 %v798
      %842 = vmatprep.subr.mxu0 %v797
      %843 = vmatpush1.msra.mxu0 %v796
      %844 = vmatprep.subr.mxu0 %v795
      %845 = vmatpush1.msra.mxu0 %v794
      %846 = vmatprep.subr.mxu0 %v793
      %847 = vmatpush1.msra.mxu0 %v792
      %848 = vmatprep.subr.mxu0 %v791
      %849 = vmatpush1.msra.mxu0 %v790
      %850 = vmatprep.subr.mxu0 %v789
      %851 = vmatpush1.msra.mxu0 %v788
      %852 = vmatprep.subr.mxu0 0.0
      %853 = vmatpush2.msra.mxu0 0.0
      %854 = vmatprep.subr.mxu0 0.0
      %855 = vmatpush2.msra.mxu0 0.0
      %856 = vmatprep.subr.mxu0 0.0
      %857 = vmatpush2.msra.mxu0 0.0
      %858 = vmatprep.subr.mxu0 0.0
      %859 = vmatpush2.msra.mxu0 0.0
      %860 = vmatprep.subr.mxu0 0.0
      %861 = vmatpush2.msra.mxu0 0.0
      %862 = vmatprep.subr.mxu0 0.0
      %863 = vmatpush2.msra.mxu0 0.0
      %864 = vmatprep.subr.mxu0 0.0
      %865 = vmatpush2.msra.mxu0 0.0
      %866 = vmatprep.subr.mxu0 0.0
      %867 = vmatpush2.msra.mxu0 0.0
      %868 = vmatprep.subr.mxu0 0.0
      %869 = vmatpush2.msra.mxu0 0.0
      %870 = vmatprep.subr.mxu0 0.0
      %871 = vmatpush2.msra.mxu0 0.0
      %872 = vmatprep.subr.mxu0 0.0
      %873 = vmatpush2.msra.mxu0 0.0
      %874 = vmatprep.subr.mxu0 0.0
      %875 = vmatpush2.msra.mxu0 0.0
      %876 = vmatprep.subr.mxu0 0.0
      %877 = vmatpush2.msra.mxu0 0.0
      %878 = vmatprep.subr.mxu0 0.0
      %879 = vmatpush2.msra.mxu0 0.0
      %880 = vmatprep.subr.mxu0 0.0
      %881 = vmatpush2.msra.mxu0 0.0
      %882 = vmatprep.subr.mxu0 0.0
      %883 = vmatpush2.msra.mxu0 0.0
      %884 = vmatprep.mubr.f32.mxu0 0.0
      %885 = vmatmul.mubr.f32.gmra.mxu0 %v818
      %v886 = vpop.f32.mrf.mxu0
      %v887 = vadd.f32 %v809, %v886
      %v888 = vpop.f32.mrf.mxu0
      %v889 = vadd.f32 %v813, %v888
      %890 = vdwg.mxu0
      %892 = vrot.lane.b32.xlu0 %v887, 64
      %v893 = vpop.permute.xlu0 %892
      %vm894 = vcmask 130048
      %v895 = vsel %vm894, %v887, 0
      %v897 = vsel %vm894, %v893, 0
      %899 = vmatprep.subr.mxu0 0.0
      %900 = vmatpush1.xpose.msra.mxu0 0.0
      %901 = vmatprep.subr.mxu0 0.0
      %902 = vmatpush1.xpose.msra.mxu0 0.0
      %903 = vmatprep.subr.mxu0 0.0
      %904 = vmatpush1.xpose.msra.mxu0 0.0
      %905 = vmatprep.subr.mxu0 0.0
      %906 = vmatpush1.xpose.msra.mxu0 0.0
      %907 = vmatprep.subr.mxu0 0.0
      %908 = vmatpush1.xpose.msra.mxu0 0.0
      %909 = vmatprep.subr.mxu0 0.0
      %910 = vmatpush1.xpose.msra.mxu0 0.0
      %911 = vmatprep.subr.mxu0 0.0
      %912 = vmatpush1.xpose.msra.mxu0 0.0
      %913 = vmatprep.subr.mxu0 0.0
      %914 = vmatpush1.xpose.msra.mxu0 0.0
      %915 = vmatprep.subr.mxu0 0.0
      %916 = vmatpush1.xpose.msra.mxu0 0.0
      %917 = vmatprep.subr.mxu0 0.0
      %918 = vmatpush1.xpose.msra.mxu0 0.0
      %919 = vmatprep.subr.mxu0 0.0
      %920 = vmatpush1.xpose.msra.mxu0 0.0
      %921 = vmatprep.subr.mxu0 0.0
      %922 = vmatpush1.xpose.msra.mxu0 0.0
      %923 = vmatprep.subr.mxu0 0.0
      %924 = vmatpush1.xpose.msra.mxu0 0.0
      %925 = vmatprep.subr.mxu0 0.0
      %926 = vmatpush1.xpose.msra.mxu0 0.0
      %927 = vmatprep.subr.mxu0 0.0
      %928 = vmatpush1.xpose.msra.mxu0 0.0
      %929 = vmatprep.subr.mxu0 0.0
      %930 = vmatpush1.xpose.msra.mxu0 %v897
      %931 = vmatprep.subr.mxu0 0.0
      %932 = vmatpush2.xpose.msra.mxu0 0.0
      %933 = vmatprep.subr.mxu0 0.0
      %934 = vmatpush2.xpose.msra.mxu0 0.0
      %935 = vmatprep.subr.mxu0 0.0
      %936 = vmatpush2.xpose.msra.mxu0 0.0
      %937 = vmatprep.subr.mxu0 0.0
      %938 = vmatpush2.xpose.msra.mxu0 0.0
      %939 = vmatprep.subr.mxu0 0.0
      %940 = vmatpush2.xpose.msra.mxu0 0.0
      %941 = vmatprep.subr.mxu0 0.0
      %942 = vmatpush2.xpose.msra.mxu0 0.0
      %943 = vmatprep.subr.mxu0 0.0
      %944 = vmatpush2.xpose.msra.mxu0 0.0
      %945 = vmatprep.subr.mxu0 0.0
      %946 = vmatpush2.xpose.msra.mxu0 0.0
      %947 = vmatprep.subr.mxu0 0.0
      %948 = vmatpush2.xpose.msra.mxu0 0.0
      %949 = vmatprep.subr.mxu0 0.0
      %950 = vmatpush2.xpose.msra.mxu0 0.0
      %951 = vmatprep.subr.mxu0 0.0
      %952 = vmatpush2.xpose.msra.mxu0 0.0
      %953 = vmatprep.subr.mxu0 0.0
      %954 = vmatpush2.xpose.msra.mxu0 0.0
      %955 = vmatprep.subr.mxu0 0.0
      %956 = vmatpush2.xpose.msra.mxu0 0.0
      %957 = vmatprep.subr.mxu0 0.0
      %958 = vmatpush2.xpose.msra.mxu0 0.0
      %959 = vmatprep.subr.mxu0 0.0
      %960 = vmatpush2.xpose.msra.mxu0 0.0
      %961 = vmatprep.subr.mxu0 0.0
      %962 = vmatpush2.xpose.msra.mxu0 0.0
      %963 = vmatprep.mubr.f32.mxu0 0.0
      %964 = vmatmul.mubr.f32.gmra.mxu0 %v895
      %v965 = vpop.f32.mrf.mxu0
      %v966 = vadd.f32 0.0, %v965
      %v967 = vpop.f32.mrf.mxu0
      %968 = vdwg.mxu0
      %v969 = vmul.f32 %v966, 0.25
      %v970 = vadd.f32 %v969, %v786
      %vm971 = vcmask 64512
      %v972 = vsel %vm971, %v970, -inf
      %973 = vmax.xlane.f32.xlu0 %v972
      %v974 = vpop.xlane.xlu0 %973
      %v975 = vsub.f32 %v970, %v974
      %v976 = vmul.f32 %v975, 1.442695
      %v977 = vpow.pop %v976
      %v978 = vsel %vm971, %v977, 0.0
      %979 = vadd.xlane.f32.xlu0 %v978
      %v980 = vpop.xlane.xlu0 %979
      %v981 = vrcp.pop %v980
      %v982 = vmul.f32 %v977, %v981
      %v984 = vsel %vm971, %v982, 0
      %986 = vmatprep.subr.mxu0 0.0
      %987 = vmatpush1.msra.mxu0 0.0
      %988 = vmatprep.subr.mxu0 0.0
      %989 = vmatpush1.msra.mxu0 0.0
      %990 = vmatprep.subr.mxu0 0.0
      %991 = vmatpush1.msra.mxu0 0.0
      %992 = vmatprep.subr.mxu0 0.0
      %993 = vmatpush1.msra.mxu0 0.0
      %994 = vmatprep.subr.mxu0 0.0
      %995 = vmatpush1.msra.mxu0 0.0
      %996 = vmatprep.subr.mxu0 0.0
      %997 = vmatpush1.msra.mxu0 0.0
      %998 = vmatprep.subr.mxu0 0.0
      %999 = vmatpush1.msra.mxu0 0.0
      %1000 = vmatprep.subr.mxu0 0.0
      %1001 = vmatpush1.msra.mxu0 0.0
      %1002 = vmatprep.subr.mxu0 0.0
      %1003 = vmatpush1.msra.mxu0 0.0
      %1004 = vmatprep.subr.mxu0 0.0
      %1005 = vmatpush1.msra.mxu0 0.0
      %1006 = vmatprep.subr.mxu0 0.0
      %1007 = vmatpush1.msra.mxu0 0.0
      %1008 = vmatprep.subr.mxu0 0.0
      %1009 = vmatpush1.msra.mxu0 0.0
      %1010 = vmatprep.subr.mxu0 0.0
      %1011 = vmatpush1.msra.mxu0 0.0
      %1012 = vmatprep.subr.mxu0 0.0
      %1013 = vmatpush1.msra.mxu0 0.0
      %1014 = vmatprep.subr.mxu0 0.0
      %1015 = vmatpush1.msra.mxu0 0.0
      %1016 = vmatprep.subr.mxu0 0.0
      %1017 = vmatpush1.msra.mxu0 %v889
      %1018 = vmatprep.subr.mxu0 0.0
      %1019 = vmatpush2.msra.mxu0 0.0
      %1020 = vmatprep.subr.mxu0 0.0
      %1021 = vmatpush2.msra.mxu0 0.0
      %1022 = vmatprep.subr.mxu0 0.0
      %1023 = vmatpush2.msra.mxu0 0.0
      %1024 = vmatprep.subr.mxu0 0.0
      %1025 = vmatpush2.msra.mxu0 0.0
      %1026 = vmatprep.subr.mxu0 0.0
      %1027 = vmatpush2.msra.mxu0 0.0
      %1028 = vmatprep.subr.mxu0 0.0
      %1029 = vmatpush2.msra.mxu0 0.0
      %1030 = vmatprep.subr.mxu0 0.0
      %1031 = vmatpush2.msra.mxu0 0.0
      %1032 = vmatprep.subr.mxu0 0.0
      %1033 = vmatpush2.msra.mxu0 0.0
      %1034 = vmatprep.subr.mxu0 0.0
      %1035 = vmatpush2.msra.mxu0 0.0
      %1036 = vmatprep.subr.mxu0 0.0
      %1037 = vmatpush2.msra.mxu0 0.0
      %1038 = vmatprep.subr.mxu0 0.0
      %1039 = vmatpush2.msra.mxu0 0.0
      %1040 = vmatprep.subr.mxu0 0.0
      %1041 = vmatpush2.msra.mxu0 0.0
      %1042 = vmatprep.subr.mxu0 0.0
      %1043 = vmatpush2.msra.mxu0 0.0
      %1044 = vmatprep.subr.mxu0 0.0
      %1045 = vmatpush2.msra.mxu0 0.0
      %1046 = vmatprep.subr.mxu0 0.0
      %1047 = vmatpush2.msra.mxu0 0.0
      %1048 = vmatprep.subr.mxu0 0.0
      %1049 = vmatpush2.msra.mxu0 0.0
      %1050 = vmatprep.mubr.f32.mxu0 0.0
      %1051 = vmatmul.mubr.f32.gmra.mxu0 %v984
      %v1052 = vpop.f32.mrf.mxu0
      %v1053 = vadd.f32 0.0, %v1052
      %v1054 = vpop.f32.mrf.mxu0
      %1055 = vdwg.mxu0
      %v1056 = vld [vmem:[%s6] sm:$0xff]
      %v1057 = vld [vmem:[%s6 + $0x8] sm:$0xff]
      %1058 = vrot.lane.b32.xlu0 %v887, 112
      %v1059 = vpop.permute.xlu0 %1058
      %1060 = vrot.lane.b32.xlu0 %v887, 48
      %v1061 = vpop.permute.xlu0 %1060
      %v1062 = vsel %vm894, %v1059, 0
      %v1064 = vsel %vm894, %v1061, 0
      %1066 = vmatprep.subr.mxu0 0.0
      %1067 = vmatpush1.xpose.msra.mxu0 0.0
      %1068 = vmatprep.subr.mxu0 0.0
      %1069 = vmatpush1.xpose.msra.mxu0 0.0
      %1070 = vmatprep.subr.mxu0 0.0
      %1071 = vmatpush1.xpose.msra.mxu0 0.0
      %1072 = vmatprep.subr.mxu0 0.0
      %1073 = vmatpush1.xpose.msra.mxu0 0.0
      %1074 = vmatprep.subr.mxu0 0.0
      %1075 = vmatpush1.xpose.msra.mxu0 0.0
      %1076 = vmatprep.subr.mxu0 0.0
      %1077 = vmatpush1.xpose.msra.mxu0 0.0
      %1078 = vmatprep.subr.mxu0 0.0
      %1079 = vmatpush1.xpose.msra.mxu0 0.0
      %1080 = vmatprep.subr.mxu0 0.0
      %1081 = vmatpush1.xpose.msra.mxu0 0.0
      %1082 = vmatprep.subr.mxu0 0.0
      %1083 = vmatpush1.xpose.msra.mxu0 0.0
      %1084 = vmatprep.subr.mxu0 0.0
      %1085 = vmatpush1.xpose.msra.mxu0 0.0
      %1086 = vmatprep.subr.mxu0 0.0
      %1087 = vmatpush1.xpose.msra.mxu0 0.0
      %1088 = vmatprep.subr.mxu0 0.0
      %1089 = vmatpush1.xpose.msra.mxu0 0.0
      %1090 = vmatprep.subr.mxu0 0.0
      %1091 = vmatpush1.xpose.msra.mxu0 0.0
      %1092 = vmatprep.subr.mxu0 0.0
      %1093 = vmatpush1.xpose.msra.mxu0 0.0
      %1094 = vmatprep.subr.mxu0 0.0
      %1095 = vmatpush1.xpose.msra.mxu0 0.0
      %1096 = vmatprep.subr.mxu0 0.0
      %1097 = vmatpush1.xpose.msra.mxu0 %v1064
      %1098 = vmatprep.subr.mxu0 0.0
      %1099 = vmatpush2.xpose.msra.mxu0 0.0
      %1100 = vmatprep.subr.mxu0 0.0
      %1101 = vmatpush2.xpose.msra.mxu0 0.0
      %1102 = vmatprep.subr.mxu0 0.0
      %1103 = vmatpush2.xpose.msra.mxu0 0.0
      %1104 = vmatprep.subr.mxu0 0.0
      %1105 = vmatpush2.xpose.msra.mxu0 0.0
      %1106 = vmatprep.subr.mxu0 0.0
      %1107 = vmatpush2.xpose.msra.mxu0 0.0
      %1108 = vmatprep.subr.mxu0 0.0
      %1109 = vmatpush2.xpose.msra.mxu0 0.0
      %1110 = vmatprep.subr.mxu0 0.0
      %1111 = vmatpush2.xpose.msra.mxu0 0.0
      %1112 = vmatprep.subr.mxu0 0.0
      %1113 = vmatpush2.xpose.msra.mxu0 0.0
      %1114 = vmatprep.subr.mxu0 0.0
      %1115 = vmatpush2.xpose.msra.mxu0 0.0
      %1116 = vmatprep.subr.mxu0 0.0
      %1117 = vmatpush2.xpose.msra.mxu0 0.0
      %1118 = vmatprep.subr.mxu0 0.0
      %1119 = vmatpush2.xpose.msra.mxu0 0.0
      %1120 = vmatprep.subr.mxu0 0.0
      %1121 = vmatpush2.xpose.msra.mxu0 0.0
      %1122 = vmatprep.subr.mxu0 0.0
      %1123 = vmatpush2.xpose.msra.mxu0 0.0
      %1124 = vmatprep.subr.mxu0 0.0
      %1125 = vmatpush2.xpose.msra.mxu0 0.0
      %1126 = vmatprep.subr.mxu0 0.0
      %1127 = vmatpush2.xpose.msra.mxu0 0.0
      %1128 = vmatprep.subr.mxu0 0.0
      %1129 = vmatpush2.xpose.msra.mxu0 0.0
      %1130 = vmatprep.mubr.f32.mxu0 0.0
      %1131 = vmatmul.mubr.f32.gmra.mxu0 %v1062
      %v1132 = vpop.f32.mrf.mxu0
      %v1133 = vadd.f32 0.0, %v1132
      %v1134 = vpop.f32.mrf.mxu0
      %1135 = vdwg.mxu0
      %v1136 = vmul.f32 %v1133, 0.25
      %v1137 = vadd.f32 %v1136, %v786
      %v1138 = vsel %vm971, %v1137, -inf
      %1139 = vmax.xlane.f32.xlu0 %v1138
      %v1140 = vpop.xlane.xlu0 %1139
      %v1141 = vsub.f32 %v1137, %v1140
      %v1142 = vmul.f32 %v1141, 1.442695
      %v1143 = vpow.pop %v1142
      %v1144 = vsel %vm971, %v1143, 0.0
      %1145 = vadd.xlane.f32.xlu0 %v1144
      %v1146 = vpop.xlane.xlu0 %1145
      %v1147 = vrcp.pop %v1146
      %v1148 = vmul.f32 %v1143, %v1147
      %1150 = vrot.lane.b32.xlu0 %v889, 112
      %v1151 = vpop.permute.xlu0 %1150
      %v1154 = vsel %vm971, %v1148, 0
      %1156 = vmatprep.subr.mxu0 0.0
      %1157 = vmatpush1.msra.mxu0 0.0
      %1158 = vmatprep.subr.mxu0 0.0
      %1159 = vmatpush1.msra.mxu0 0.0
      %1160 = vmatprep.subr.mxu0 0.0
      %1161 = vmatpush1.msra.mxu0 0.0
      %1162 = vmatprep.subr.mxu0 0.0
      %1163 = vmatpush1.msra.mxu0 0.0
      %1164 = vmatprep.subr.mxu0 0.0
      %1165 = vmatpush1.msra.mxu0 0.0
      %1166 = vmatprep.subr.mxu0 0.0
      %1167 = vmatpush1.msra.mxu0 0.0
      %1168 = vmatprep.subr.mxu0 0.0
      %1169 = vmatpush1.msra.mxu0 0.0
      %1170 = vmatprep.subr.mxu0 0.0
      %1171 = vmatpush1.msra.mxu0 0.0
      %1172 = vmatprep.subr.mxu0 0.0
      %1173 = vmatpush1.msra.mxu0 0.0
      %1174 = vmatprep.subr.mxu0 0.0
      %1175 = vmatpush1.msra.mxu0 0.0
      %1176 = vmatprep.subr.mxu0 0.0
      %1177 = vmatpush1.msra.mxu0 0.0
      %1178 = vmatprep.subr.mxu0 0.0
      %1179 = vmatpush1.msra.mxu0 0.0
      %1180 = vmatprep.subr.mxu0 0.0
      %1181 = vmatpush1.msra.mxu0 0.0
      %1182 = vmatprep.subr.mxu0 0.0
      %1183 = vmatpush1.msra.mxu0 0.0
      %1184 = vmatprep.subr.mxu0 0.0
      %1185 = vmatpush1.msra.mxu0 0.0
      %1186 = vmatprep.subr.mxu0 0.0
      %1187 = vmatpush1.msra.mxu0 %v1151
      %1188 = vmatprep.subr.mxu0 0.0
      %1189 = vmatpush2.msra.mxu0 0.0
      %1190 = vmatprep.subr.mxu0 0.0
      %1191 = vmatpush2.msra.mxu0 0.0
      %1192 = vmatprep.subr.mxu0 0.0
      %1193 = vmatpush2.msra.mxu0 0.0
      %1194 = vmatprep.subr.mxu0 0.0
      %1195 = vmatpush2.msra.mxu0 0.0
      %1196 = vmatprep.subr.mxu0 0.0
      %1197 = vmatpush2.msra.mxu0 0.0
      %1198 = vmatprep.subr.mxu0 0.0
      %1199 = vmatpush2.msra.mxu0 0.0
      %1200 = vmatprep.subr.mxu0 0.0
      %1201 = vmatpush2.msra.mxu0 0.0
      %1202 = vmatprep.subr.mxu0 0.0
      %1203 = vmatpush2.msra.mxu0 0.0
      %1204 = vmatprep.subr.mxu0 0.0
      %1205 = vmatpush2.msra.mxu0 0.0
      %1206 = vmatprep.subr.mxu0 0.0
      %1207 = vmatpush2.msra.mxu0 0.0
      %1208 = vmatprep.subr.mxu0 0.0
      %1209 = vmatpush2.msra.mxu0 0.0
      %1210 = vmatprep.subr.mxu0 0.0
      %1211 = vmatpush2.msra.mxu0 0.0
      %1212 = vmatprep.subr.mxu0 0.0
      %1213 = vmatpush2.msra.mxu0 0.0
      %1214 = vmatprep.subr.mxu0 0.0
      %1215 = vmatpush2.msra.mxu0 0.0
      %1216 = vmatprep.subr.mxu0 0.0
      %1217 = vmatpush2.msra.mxu0 0.0
      %1218 = vmatprep.subr.mxu0 0.0
      %1219 = vmatpush2.msra.mxu0 0.0
      %1220 = vmatprep.mubr.f32.mxu0 0.0
      %1221 = vmatmul.mubr.f32.gmra.mxu0 %v1154
      %v1222 = vpop.f32.mrf.mxu0
      %v1223 = vadd.f32 0.0, %v1222
      %v1224 = vpop.f32.mrf.mxu0
      %1225 = vdwg.mxu0
      %v1226 = vld [vmem:[%s6 + $0x10] sm:$0xff]
      %v1227 = vld [vmem:[%s6 + $0x18] sm:$0xff]
      %v1229 = vsel %vm894, %v1223, 0
      %1231 = vmatprep.subr.mxu0 0.0
      %1232 = vmatpush1.msra.mxu0 0.0
      %1233 = vmatprep.subr.mxu0 0.0
      %1234 = vmatpush1.msra.mxu0 0.0
      %1235 = vmatprep.subr.mxu0 0.0
      %1236 = vmatpush1.msra.mxu0 0.0
      %1237 = vmatprep.subr.mxu0 0.0
      %1238 = vmatpush1.msra.mxu0 0.0
      %1239 = vmatprep.subr.mxu0 0.0
      %1240 = vmatpush1.msra.mxu0 0.0
      %1241 = vmatprep.subr.mxu0 0.0
      %1242 = vmatpush1.msra.mxu0 0.0
      %1243 = vmatprep.subr.mxu0 0.0
      %1244 = vmatpush1.msra.mxu0 0.0
      %1245 = vmatprep.subr.mxu0 0.0
      %1246 = vmatpush1.msra.mxu0 0.0
      %1247 = vmatprep.subr.mxu0 0.0
      %1248 = vmatpush1.msra.mxu0 0.0
      %1249 = vmatprep.subr.mxu0 0.0
      %1250 = vmatpush1.msra.mxu0 0.0
      %1251 = vmatprep.subr.mxu0 0.0
      %1252 = vmatpush1.msra.mxu0 0.0
      %1253 = vmatprep.subr.mxu0 0.0
      %1254 = vmatpush1.msra.mxu0 0.0
      %1255 = vmatprep.subr.mxu0 0.0
      %1256 = vmatpush1.msra.mxu0 0.0
      %1257 = vmatprep.subr.mxu0 0.0
      %1258 = vmatpush1.msra.mxu0 0.0
      %1259 = vmatprep.subr.mxu0 0.0
      %1260 = vmatpush1.msra.mxu0 %v1227
      %1261 = vmatprep.subr.mxu0 0.0
      %1262 = vmatpush1.msra.mxu0 %v1226
      %1263 = vmatprep.subr.mxu0 0.0
      %1264 = vmatpush2.msra.mxu0 0.0
      %1265 = vmatprep.subr.mxu0 0.0
      %1266 = vmatpush2.msra.mxu0 0.0
      %1267 = vmatprep.subr.mxu0 0.0
      %1268 = vmatpush2.msra.mxu0 0.0
      %1269 = vmatprep.subr.mxu0 0.0
      %1270 = vmatpush2.msra.mxu0 0.0
      %1271 = vmatprep.subr.mxu0 0.0
      %1272 = vmatpush2.msra.mxu0 0.0
      %1273 = vmatprep.subr.mxu0 0.0
      %1274 = vmatpush2.msra.mxu0 0.0
      %1275 = vmatprep.subr.mxu0 0.0
      %1276 = vmatpush2.msra.mxu0 0.0
      %1277 = vmatprep.subr.mxu0 0.0
      %1278 = vmatpush2.msra.mxu0 0.0
      %1279 = vmatprep.subr.mxu0 0.0
      %1280 = vmatpush2.msra.mxu0 0.0
      %1281 = vmatprep.subr.mxu0 0.0
      %1282 = vmatpush2.msra.mxu0 0.0
      %1283 = vmatprep.subr.mxu0 0.0
      %1284 = vmatpush2.msra.mxu0 0.0
      %1285 = vmatprep.subr.mxu0 0.0
      %1286 = vmatpush2.msra.mxu0 0.0
      %1287 = vmatprep.subr.mxu0 0.0
      %1288 = vmatpush2.msra.mxu0 0.0
      %1289 = vmatprep.subr.mxu0 0.0
      %1290 = vmatpush2.msra.mxu0 0.0
      %1291 = vmatprep.subr.mxu0 0.0
      %1292 = vmatpush2.msra.mxu0 0.0
      %1293 = vmatprep.subr.mxu0 0.0
      %1294 = vmatpush2.msra.mxu0 0.0
      %1295 = vmatprep.mubr.f32.mxu0 0.0
      %1296 = vmatmul.mubr.f32.gmra.mxu0 %v1229
      %v1297 = vpop.f32.mrf.mxu0
      %v1298 = vadd.f32 0.0, %v1297
      %v1299 = vpop.f32.mrf.mxu0
      %1300 = vdwg.mxu0
      %v1302 = vsel %vm894, %v1053, 0
      %1304 = vmatprep.subr.mxu0 0.0
      %1305 = vmatpush1.msra.mxu0 0.0
      %1306 = vmatprep.subr.mxu0 0.0
      %1307 = vmatpush1.msra.mxu0 0.0
      %1308 = vmatprep.subr.mxu0 0.0
      %1309 = vmatpush1.msra.mxu0 0.0
      %1310 = vmatprep.subr.mxu0 0.0
      %1311 = vmatpush1.msra.mxu0 0.0
      %1312 = vmatprep.subr.mxu0 0.0
      %1313 = vmatpush1.msra.mxu0 0.0
      %1314 = vmatprep.subr.mxu0 0.0
      %1315 = vmatpush1.msra.mxu0 0.0
      %1316 = vmatprep.subr.mxu0 0.0
      %1317 = vmatpush1.msra.mxu0 0.0
      %1318 = vmatprep.subr.mxu0 0.0
      %1319 = vmatpush1.msra.mxu0 0.0
      %1320 = vmatprep.subr.mxu0 0.0
      %1321 = vmatpush1.msra.mxu0 0.0
      %1322 = vmatprep.subr.mxu0 0.0
      %1323 = vmatpush1.msra.mxu0 0.0
      %1324 = vmatprep.subr.mxu0 0.0
      %1325 = vmatpush1.msra.mxu0 0.0
      %1326 = vmatprep.subr.mxu0 0.0
      %1327 = vmatpush1.msra.mxu0 0.0
      %1328 = vmatprep.subr.mxu0 0.0
      %1329 = vmatpush1.msra.mxu0 0.0
      %1330 = vmatprep.subr.mxu0 0.0
      %1331 = vmatpush1.msra.mxu0 0.0
      %1332 = vmatprep.subr.mxu0 0.0
      %1333 = vmatpush1.msra.mxu0 %v1057
      %1334 = vmatprep.subr.mxu0 0.0
      %1335 = vmatpush1.msra.mxu0 %v1056
      %1336 = vmatprep.subr.mxu0 0.0
      %1337 = vmatpush2.msra.mxu0 0.0
      %1338 = vmatprep.subr.mxu0 0.0
      %1339 = vmatpush2.msra.mxu0 0.0
      %1340 = vmatprep.subr.mxu0 0.0
      %1341 = vmatpush2.msra.mxu0 0.0
      %1342 = vmatprep.subr.mxu0 0.0
      %1343 = vmatpush2.msra.mxu0 0.0
      %1344 = vmatprep.subr.mxu0 0.0
      %1345 = vmatpush2.msra.mxu0 0.0
      %1346 = vmatprep.subr.mxu0 0.0
      %1347 = vmatpush2.msra.mxu0 0.0
      %1348 = vmatprep.subr.mxu0 0.0
      %1349 = vmatpush2.msra.mxu0 0.0
      %1350 = vmatprep.subr.mxu0 0.0
      %1351 = vmatpush2.msra.mxu0 0.0
      %1352 = vmatprep.subr.mxu0 0.0
      %1353 = vmatpush2.msra.mxu0 0.0
      %1354 = vmatprep.subr.mxu0 0.0
      %1355 = vmatpush2.msra.mxu0 0.0
      %1356 = vmatprep.subr.mxu0 0.0
      %1357 = vmatpush2.msra.mxu0 0.0
      %1358 = vmatprep.subr.mxu0 0.0
      %1359 = vmatpush2.msra.mxu0 0.0
      %1360 = vmatprep.subr.mxu0 0.0
      %1361 = vmatpush2.msra.mxu0 0.0
      %1362 = vmatprep.subr.mxu0 0.0
      %1363 = vmatpush2.msra.mxu0 0.0
      %1364 = vmatprep.subr.mxu0 0.0
      %1365 = vmatpush2.msra.mxu0 0.0
      %1366 = vmatprep.subr.mxu0 0.0
      %1367 = vmatpush2.msra.mxu0 0.0
      %1368 = vmatprep.mubr.f32.mxu0 0.0
      %1369 = vmatmul.mubr.f32.gmra.mxu0 %v1302
      %v1370 = vpop.f32.mrf.mxu0
      %v1371 = vadd.f32 %v1298, %v1370
      %v1372 = vpop.f32.mrf.mxu0
      %1373 = vdwg.mxu0
      %1374 = vrot.lane.b32.xlu0 %v887, 96
      %v1375 = vpop.permute.xlu0 %1374
      %1376 = vrot.lane.b32.xlu0 %v887, 32
      %v1377 = vpop.permute.xlu0 %1376
      %v1378 = vsel %vm894, %v1375, 0
      %v1380 = vsel %vm894, %v1377, 0
      %1382 = vmatprep.subr.mxu0 0.0
      %1383 = vmatpush1.xpose.msra.mxu0 0.0
      %1384 = vmatprep.subr.mxu0 0.0
      %1385 = vmatpush1.xpose.msra.mxu0 0.0
      %1386 = vmatprep.subr.mxu0 0.0
      %1387 = vmatpush1.xpose.msra.mxu0 0.0
      %1388 = vmatprep.subr.mxu0 0.0
      %1389 = vmatpush1.xpose.msra.mxu0 0.0
      %1390 = vmatprep.subr.mxu0 0.0
      %1391 = vmatpush1.xpose.msra.mxu0 0.0
      %1392 = vmatprep.subr.mxu0 0.0
      %1393 = vmatpush1.xpose.msra.mxu0 0.0
      %1394 = vmatprep.subr.mxu0 0.0
      %1395 = vmatpush1.xpose.msra.mxu0 0.0
      %1396 = vmatprep.subr.mxu0 0.0
      %1397 = vmatpush1.xpose.msra.mxu0 0.0
      %1398 = vmatprep.subr.mxu0 0.0
      %1399 = vmatpush1.xpose.msra.mxu0 0.0
      %1400 = vmatprep.subr.mxu0 0.0
      %1401 = vmatpush1.xpose.msra.mxu0 0.0
      %1402 = vmatprep.subr.mxu0 0.0
      %1403 = vmatpush1.xpose.msra.mxu0 0.0
      %1404 = vmatprep.subr.mxu0 0.0
      %1405 = vmatpush1.xpose.msra.mxu0 0.0
      %1406 = vmatprep.subr.mxu0 0.0
      %1407 = vmatpush1.xpose.msra.mxu0 0.0
      %1408 = vmatprep.subr.mxu0 0.0
      %1409 = vmatpush1.xpose.msra.mxu0 0.0
      %1410 = vmatprep.subr.mxu0 0.0
      %1411 = vmatpush1.xpose.msra.mxu0 0.0
      %1412 = vmatprep.subr.mxu0 0.0
      %1413 = vmatpush1.xpose.msra.mxu0 %v1380
      %1414 = vmatprep.subr.mxu0 0.0
      %1415 = vmatpush2.xpose.msra.mxu0 0.0
      %1416 = vmatprep.subr.mxu0 0.0
      %1417 = vmatpush2.xpose.msra.mxu0 0.0
      %1418 = vmatprep.subr.mxu0 0.0
      %1419 = vmatpush2.xpose.msra.mxu0 0.0
      %1420 = vmatprep.subr.mxu0 0.0
      %1421 = vmatpush2.xpose.msra.mxu0 0.0
      %1422 = vmatprep.subr.mxu0 0.0
      %1423 = vmatpush2.xpose.msra.mxu0 0.0
      %1424 = vmatprep.subr.mxu0 0.0
      %1425 = vmatpush2.xpose.msra.mxu0 0.0
      %1426 = vmatprep.subr.mxu0 0.0
      %1427 = vmatpush2.xpose.msra.mxu0 0.0
      %1428 = vmatprep.subr.mxu0 0.0
      %1429 = vmatpush2.xpose.msra.mxu0 0.0
      %1430 = vmatprep.subr.mxu0 0.0
      %1431 = vmatpush2.xpose.msra.mxu0 0.0
      %1432 = vmatprep.subr.mxu0 0.0
      %1433 = vmatpush2.xpose.msra.mxu0 0.0
      %1434 = vmatprep.subr.mxu0 0.0
      %1435 = vmatpush2.xpose.msra.mxu0 0.0
      %1436 = vmatprep.subr.mxu0 0.0
      %1437 = vmatpush2.xpose.msra.mxu0 0.0
      %1438 = vmatprep.subr.mxu0 0.0
      %1439 = vmatpush2.xpose.msra.mxu0 0.0
      %1440 = vmatprep.subr.mxu0 0.0
      %1441 = vmatpush2.xpose.msra.mxu0 0.0
      %1442 = vmatprep.subr.mxu0 0.0
      %1443 = vmatpush2.xpose.msra.mxu0 0.0
      %1444 = vmatprep.subr.mxu0 0.0
      %1445 = vmatpush2.xpose.msra.mxu0 0.0
      %1446 = vmatprep.mubr.f32.mxu0 0.0
      %1447 = vmatmul.mubr.f32.gmra.mxu0 %v1378
      %v1448 = vpop.f32.mrf.mxu0
      %v1449 = vadd.f32 0.0, %v1448
      %v1450 = vpop.f32.mrf.mxu0
      %1451 = vdwg.mxu0
      %v1452 = vmul.f32 %v1449, 0.25
      %v1453 = vadd.f32 %v1452, %v786
      %v1454 = vsel %vm971, %v1453, -inf
      %1455 = vmax.xlane.f32.xlu0 %v1454
      %v1456 = vpop.xlane.xlu0 %1455
      %v1457 = vsub.f32 %v1453, %v1456
      %v1458 = vmul.f32 %v1457, 1.442695
      %v1459 = vpow.pop %v1458
      %v1460 = vsel %vm971, %v1459, 0.0
      %1461 = vadd.xlane.f32.xlu0 %v1460
      %v1462 = vpop.xlane.xlu0 %1461
      %v1463 = vrcp.pop %v1462
      %v1464 = vmul.f32 %v1459, %v1463
      %1465 = vrot.lane.b32.xlu0 %v889, 96
      %v1466 = vpop.permute.xlu0 %1465
      %v1469 = vsel %vm971, %v1464, 0
      %1471 = vmatprep.subr.mxu0 0.0
      %1472 = vmatpush1.msra.mxu0 0.0
      %1473 = vmatprep.subr.mxu0 0.0
      %1474 = vmatpush1.msra.mxu0 0.0
      %1475 = vmatprep.subr.mxu0 0.0
      %1476 = vmatpush1.msra.mxu0 0.0
      %1477 = vmatprep.subr.mxu0 0.0
      %1478 = vmatpush1.msra.mxu0 0.0
      %1479 = vmatprep.subr.mxu0 0.0
      %1480 = vmatpush1.msra.mxu0 0.0
      %1481 = vmatprep.subr.mxu0 0.0
      %1482 = vmatpush1.msra.mxu0 0.0
      %1483 = vmatprep.subr.mxu0 0.0
      %1484 = vmatpush1.msra.mxu0 0.0
      %1485 = vmatprep.subr.mxu0 0.0
      %1486 = vmatpush1.msra.mxu0 0.0
      %1487 = vmatprep.subr.mxu0 0.0
      %1488 = vmatpush1.msra.mxu0 0.0
      %1489 = vmatprep.subr.mxu0 0.0
      %1490 = vmatpush1.msra.mxu0 0.0
      %1491 = vmatprep.subr.mxu0 0.0
      %1492 = vmatpush1.msra.mxu0 0.0
      %1493 = vmatprep.subr.mxu0 0.0
      %1494 = vmatpush1.msra.mxu0 0.0
      %1495 = vmatprep.subr.mxu0 0.0
      %1496 = vmatpush1.msra.mxu0 0.0
      %1497 = vmatprep.subr.mxu0 0.0
      %1498 = vmatpush1.msra.mxu0 0.0
      %1499 = vmatprep.subr.mxu0 0.0
      %1500 = vmatpush1.msra.mxu0 0.0
      %1501 = vmatprep.subr.mxu0 0.0
      %1502 = vmatpush1.msra.mxu0 %v1466
      %1503 = vmatprep.subr.mxu0 0.0
      %1504 = vmatpush2.msra.mxu0 0.0
      %1505 = vmatprep.subr.mxu0 0.0
      %1506 = vmatpush2.msra.mxu0 0.0
      %1507 = vmatprep.subr.mxu0 0.0
      %1508 = vmatpush2.msra.mxu0 0.0
      %1509 = vmatprep.subr.mxu0 0.0
      %1510 = vmatpush2.msra.mxu0 0.0
      %1511 = vmatprep.subr.mxu0 0.0
      %1512 = vmatpush2.msra.mxu0 0.0
      %1513 = vmatprep.subr.mxu0 0.0
      %1514 = vmatpush2.msra.mxu0 0.0
      %1515 = vmatprep.subr.mxu0 0.0
      %1516 = vmatpush2.msra.mxu0 0.0
      %1517 = vmatprep.subr.mxu0 0.0
      %1518 = vmatpush2.msra.mxu0 0.0
      %1519 = vmatprep.subr.mxu0 0.0
      %1520 = vmatpush2.msra.mxu0 0.0
      %1521 = vmatprep.subr.mxu0 0.0
      %1522 = vmatpush2.msra.mxu0 0.0
      %1523 = vmatprep.subr.mxu0 0.0
      %1524 = vmatpush2.msra.mxu0 0.0
      %1525 = vmatprep.subr.mxu0 0.0
      %1526 = vmatpush2.msra.mxu0 0.0
      %1527 = vmatprep.subr.mxu0 0.0
      %1528 = vmatpush2.msra.mxu0 0.0
      %1529 = vmatprep.subr.mxu0 0.0
      %1530 = vmatpush2.msra.mxu0 0.0
      %1531 = vmatprep.subr.mxu0 0.0
      %1532 = vmatpush2.msra.mxu0 0.0
      %1533 = vmatprep.subr.mxu0 0.0
      %1534 = vmatpush2.msra.mxu0 0.0
      %1535 = vmatprep.mubr.f32.mxu0 0.0
      %1536 = vmatmul.mubr.f32.gmra.mxu0 %v1469
      %v1537 = vpop.f32.mrf.mxu0
      %v1538 = vadd.f32 0.0, %v1537
      %v1539 = vpop.f32.mrf.mxu0
      %1540 = vdwg.mxu0
      %v1541 = vld [vmem:[%s6 + $0x20] sm:$0xff]
      %v1542 = vld [vmem:[%s6 + $0x28] sm:$0xff]
      %v1544 = vsel %vm894, %v1538, 0
      %1546 = vmatprep.subr.mxu0 0.0
      %1547 = vmatpush1.msra.mxu0 0.0
      %1548 = vmatprep.subr.mxu0 0.0
      %1549 = vmatpush1.msra.mxu0 0.0
      %1550 = vmatprep.subr.mxu0 0.0
      %1551 = vmatpush1.msra.mxu0 0.0
      %1552 = vmatprep.subr.mxu0 0.0
      %1553 = vmatpush1.msra.mxu0 0.0
      %1554 = vmatprep.subr.mxu0 0.0
      %1555 = vmatpush1.msra.mxu0 0.0
      %1556 = vmatprep.subr.mxu0 0.0
      %1557 = vmatpush1.msra.mxu0 0.0
      %1558 = vmatprep.subr.mxu0 0.0
      %1559 = vmatpush1.msra.mxu0 0.0
      %1560 = vmatprep.subr.mxu0 0.0
      %1561 = vmatpush1.msra.mxu0 0.0
      %1562 = vmatprep.subr.mxu0 0.0
      %1563 = vmatpush1.msra.mxu0 0.0
      %1564 = vmatprep.subr.mxu0 0.0
      %1565 = vmatpush1.msra.mxu0 0.0
      %1566 = vmatprep.subr.mxu0 0.0
      %1567 = vmatpush1.msra.mxu0 0.0
      %1568 = vmatprep.subr.mxu0 0.0
      %1569 = vmatpush1.msra.mxu0 0.0
      %1570 = vmatprep.subr.mxu0 0.0
      %1571 = vmatpush1.msra.mxu0 0.0
      %1572 = vmatprep.subr.mxu0 0.0
      %1573 = vmatpush1.msra.mxu0 0.0
      %1574 = vmatprep.subr.mxu0 0.0
      %1575 = vmatpush1.msra.mxu0 %v1542
      %1576 = vmatprep.subr.mxu0 0.0
      %1577 = vmatpush1.msra.mxu0 %v1541
      %1578 = vmatprep.subr.mxu0 0.0
      %1579 = vmatpush2.msra.mxu0 0.0
      %1580 = vmatprep.subr.mxu0 0.0
      %1581 = vmatpush2.msra.mxu0 0.0
      %1582 = vmatprep.subr.mxu0 0.0
      %1583 = vmatpush2.msra.mxu0 0.0
      %1584 = vmatprep.subr.mxu0 0.0
      %1585 = vmatpush2.msra.mxu0 0.0
      %1586 = vmatprep.subr.mxu0 0.0
      %1587 = vmatpush2.msra.mxu0 0.0
      %1588 = vmatprep.subr.mxu0 0.0
      %1589 = vmatpush2.msra.mxu0 0.0
      %1590 = vmatprep.subr.mxu0 0.0
      %1591 = vmatpush2.msra.mxu0 0.0
      %1592 = vmatprep.subr.mxu0 0.0
      %1593 = vmatpush2.msra.mxu0 0.0
      %1594 = vmatprep.subr.mxu0 0.0
      %1595 = vmatpush2.msra.mxu0 0.0
      %1596 = vmatprep.subr.mxu0 0.0
      %1597 = vmatpush2.msra.mxu0 0.0
      %1598 = vmatprep.subr.mxu0 0.0
      %1599 = vmatpush2.msra.mxu0 0.0
      %1600 = vmatprep.subr.mxu0 0.0
      %1601 = vmatpush2.msra.mxu0 0.0
      %1602 = vmatprep.subr.mxu0 0.0
      %1603 = vmatpush2.msra.mxu0 0.0
      %1604 = vmatprep.subr.mxu0 0.0
      %1605 = vmatpush2.msra.mxu0 0.0
      %1606 = vmatprep.subr.mxu0 0.0
      %1607 = vmatpush2.msra.mxu0 0.0
      %1608 = vmatprep.subr.mxu0 0.0
      %1609 = vmatpush2.msra.mxu0 0.0
      %1610 = vmatprep.mubr.f32.mxu0 0.0
      %1611 = vmatmul.mubr.f32.gmra.mxu0 %v1544
      %v1612 = vpop.f32.mrf.mxu0
      %v1613 = vadd.f32 0.0, %v1612
      %v1614 = vpop.f32.mrf.mxu0
      %1615 = vdwg.mxu0
      %v1616 = vadd.f32 %v1371, %v1613
      %1617 = vrot.lane.b32.xlu0 %v887, 80
      %v1618 = vpop.permute.xlu0 %1617
      %1619 = vrot.lane.b32.xlu0 %v887, 16
      %v1620 = vpop.permute.xlu0 %1619
      %v1621 = vsel %vm894, %v1618, 0
      %v1623 = vsel %vm894, %v1620, 0
      %1625 = vmatprep.subr.mxu0 0.0
      %1626 = vmatpush1.xpose.msra.mxu0 0.0
      %1627 = vmatprep.subr.mxu0 0.0
      %1628 = vmatpush1.xpose.msra.mxu0 0.0
      %1629 = vmatprep.subr.mxu0 0.0
      %1630 = vmatpush1.xpose.msra.mxu0 0.0
      %1631 = vmatprep.subr.mxu0 0.0
      %1632 = vmatpush1.xpose.msra.mxu0 0.0
      %1633 = vmatprep.subr.mxu0 0.0
      %1634 = vmatpush1.xpose.msra.mxu0 0.0
      %1635 = vmatprep.subr.mxu0 0.0
      %1636 = vmatpush1.xpose.msra.mxu0 0.0
      %1637 = vmatprep.subr.mxu0 0.0
      %1638 = vmatpush1.xpose.msra.mxu0 0.0
      %1639 = vmatprep.subr.mxu0 0.0
      %1640 = vmatpush1.xpose.msra.mxu0 0.0
      %1641 = vmatprep.subr.mxu0 0.0
      %1642 = vmatpush1.xpose.msra.mxu0 0.0
      %1643 = vmatprep.subr.mxu0 0.0
      %1644 = vmatpush1.xpose.msra.mxu0 0.0
      %1645 = vmatprep.subr.mxu0 0.0
      %1646 = vmatpush1.xpose.msra.mxu0 0.0
      %1647 = vmatprep.subr.mxu0 0.0
      %1648 = vmatpush1.xpose.msra.mxu0 0.0
      %1649 = vmatprep.subr.mxu0 0.0
      %1650 = vmatpush1.xpose.msra.mxu0 0.0
      %1651 = vmatprep.subr.mxu0 0.0
      %1652 = vmatpush1.xpose.msra.mxu0 0.0
      %1653 = vmatprep.subr.mxu0 0.0
      %1654 = vmatpush1.xpose.msra.mxu0 0.0
      %1655 = vmatprep.subr.mxu0 0.0
      %1656 = vmatpush1.xpose.msra.mxu0 %v1623
      %1657 = vmatprep.subr.mxu0 0.0
      %1658 = vmatpush2.xpose.msra.mxu0 0.0
      %1659 = vmatprep.subr.mxu0 0.0
      %1660 = vmatpush2.xpose.msra.mxu0 0.0
      %1661 = vmatprep.subr.mxu0 0.0
      %1662 = vmatpush2.xpose.msra.mxu0 0.0
      %1663 = vmatprep.subr.mxu0 0.0
      %1664 = vmatpush2.xpose.msra.mxu0 0.0
      %1665 = vmatprep.subr.mxu0 0.0
      %1666 = vmatpush2.xpose.msra.mxu0 0.0
      %1667 = vmatprep.subr.mxu0 0.0
      %1668 = vmatpush2.xpose.msra.mxu0 0.0
      %1669 = vmatprep.subr.mxu0 0.0
      %1670 = vmatpush2.xpose.msra.mxu0 0.0
      %1671 = vmatprep.subr.mxu0 0.0
      %1672 = vmatpush2.xpose.msra.mxu0 0.0
      %1673 = vmatprep.subr.mxu0 0.0
      %1674 = vmatpush2.xpose.msra.mxu0 0.0
      %1675 = vmatprep.subr.mxu0 0.0
      %1676 = vmatpush2.xpose.msra.mxu0 0.0
      %1677 = vmatprep.subr.mxu0 0.0
      %1678 = vmatpush2.xpose.msra.mxu0 0.0
      %1679 = vmatprep.subr.mxu0 0.0
      %1680 = vmatpush2.xpose.msra.mxu0 0.0
      %1681 = vmatprep.subr.mxu0 0.0
      %1682 = vmatpush2.xpose.msra.mxu0 0.0
      %1683 = vmatprep.subr.mxu0 0.0
      %1684 = vmatpush2.xpose.msra.mxu0 0.0
      %1685 = vmatprep.subr.mxu0 0.0
      %1686 = vmatpush2.xpose.msra.mxu0 0.0
      %1687 = vmatprep.subr.mxu0 0.0
      %1688 = vmatpush2.xpose.msra.mxu0 0.0
      %1689 = vmatprep.mubr.f32.mxu0 0.0
      %1690 = vmatmul.mubr.f32.gmra.mxu0 %v1621
      %v1691 = vpop.f32.mrf.mxu0
      %v1692 = vadd.f32 0.0, %v1691
      %v1693 = vpop.f32.mrf.mxu0
      %1694 = vdwg.mxu0
      %v1695 = vmul.f32 %v1692, 0.25
      %v1696 = vadd.f32 %v1695, %v786
      %v1697 = vsel %vm971, %v1696, -inf
      %1698 = vmax.xlane.f32.xlu0 %v1697
      %v1699 = vpop.xlane.xlu0 %1698
      %v1700 = vsub.f32 %v1696, %v1699
      %v1701 = vmul.f32 %v1700, 1.442695
      %v1702 = vpow.pop %v1701
      %v1703 = vsel %vm971, %v1702, 0.0
      %1704 = vadd.xlane.f32.xlu0 %v1703
      %v1705 = vpop.xlane.xlu0 %1704
      %v1706 = vrcp.pop %v1705
      %v1707 = vmul.f32 %v1702, %v1706
      %1708 = vrot.lane.b32.xlu0 %v889, 80
      %v1709 = vpop.permute.xlu0 %1708
      %v1712 = vsel %vm971, %v1707, 0
      %1714 = vmatprep.subr.mxu0 0.0
      %1715 = vmatpush1.msra.mxu0 0.0
      %1716 = vmatprep.subr.mxu0 0.0
      %1717 = vmatpush1.msra.mxu0 0.0
      %1718 = vmatprep.subr.mxu0 0.0
      %1719 = vmatpush1.msra.mxu0 0.0
      %1720 = vmatprep.subr.mxu0 0.0
      %1721 = vmatpush1.msra.mxu0 0.0
      %1722 = vmatprep.subr.mxu0 0.0
      %1723 = vmatpush1.msra.mxu0 0.0
      %1724 = vmatprep.subr.mxu0 0.0
      %1725 = vmatpush1.msra.mxu0 0.0
      %1726 = vmatprep.subr.mxu0 0.0
      %1727 = vmatpush1.msra.mxu0 0.0
      %1728 = vmatprep.subr.mxu0 0.0
      %1729 = vmatpush1.msra.mxu0 0.0
      %1730 = vmatprep.subr.mxu0 0.0
      %1731 = vmatpush1.msra.mxu0 0.0
      %1732 = vmatprep.subr.mxu0 0.0
      %1733 = vmatpush1.msra.mxu0 0.0
      %1734 = vmatprep.subr.mxu0 0.0
      %1735 = vmatpush1.msra.mxu0 0.0
      %1736 = vmatprep.subr.mxu0 0.0
      %1737 = vmatpush1.msra.mxu0 0.0
      %1738 = vmatprep.subr.mxu0 0.0
      %1739 = vmatpush1.msra.mxu0 0.0
      %1740 = vmatprep.subr.mxu0 0.0
      %1741 = vmatpush1.msra.mxu0 0.0
      %1742 = vmatprep.subr.mxu0 0.0
      %1743 = vmatpush1.msra.mxu0 0.0
      %1744 = vmatprep.subr.mxu0 0.0
      %1745 = vmatpush1.msra.mxu0 %v1709
      %1746 = vmatprep.subr.mxu0 0.0
      %1747 = vmatpush2.msra.mxu0 0.0
      %1748 = vmatprep.subr.mxu0 0.0
      %1749 = vmatpush2.msra.mxu0 0.0
      %1750 = vmatprep.subr.mxu0 0.0
      %1751 = vmatpush2.msra.mxu0 0.0
      %1752 = vmatprep.subr.mxu0 0.0
      %1753 = vmatpush2.msra.mxu0 0.0
      %1754 = vmatprep.subr.mxu0 0.0
      %1755 = vmatpush2.msra.mxu0 0.0
      %1756 = vmatprep.subr.mxu0 0.0
      %1757 = vmatpush2.msra.mxu0 0.0
      %1758 = vmatprep.subr.mxu0 0.0
      %1759 = vmatpush2.msra.mxu0 0.0
      %1760 = vmatprep.subr.mxu0 0.0
      %1761 = vmatpush2.msra.mxu0 0.0
      %1762 = vmatprep.subr.mxu0 0.0
      %1763 = vmatpush2.msra.mxu0 0.0
      %1764 = vmatprep.subr.mxu0 0.0
      %1765 = vmatpush2.msra.mxu0 0.0
      %1766 = vmatprep.subr.mxu0 0.0
      %1767 = vmatpush2.msra.mxu0 0.0
      %1768 = vmatprep.subr.mxu0 0.0
      %1769 = vmatpush2.msra.mxu0 0.0
      %1770 = vmatprep.subr.mxu0 0.0
      %1771 = vmatpush2.msra.mxu0 0.0
      %1772 = vmatprep.subr.mxu0 0.0
      %1773 = vmatpush2.msra.mxu0 0.0
      %1774 = vmatprep.subr.mxu0 0.0
      %1775 = vmatpush2.msra.mxu0 0.0
      %1776 = vmatprep.subr.mxu0 0.0
      %1777 = vmatpush2.msra.mxu0 0.0
      %1778 = vmatprep.mubr.f32.mxu0 0.0
      %1779 = vmatmul.mubr.f32.gmra.mxu0 %v1712
      %v1780 = vpop.f32.mrf.mxu0
      %v1781 = vadd.f32 0.0, %v1780
      %v1782 = vpop.f32.mrf.mxu0
      %1783 = vdwg.mxu0
      %v1784 = vld [vmem:[%s6 + $0x30] sm:$0xff]
      %v1785 = vld [vmem:[%s6 + $0x38] sm:$0xff]
      %v1787 = vsel %vm894, %v1781, 0
      %1789 = vmatprep.subr.mxu0 0.0
      %1790 = vmatpush1.msra.mxu0 0.0
      %1791 = vmatprep.subr.mxu0 0.0
      %1792 = vmatpush1.msra.mxu0 0.0
      %1793 = vmatprep.subr.mxu0 0.0
      %1794 = vmatpush1.msra.mxu0 0.0
      %1795 = vmatprep.subr.mxu0 0.0
      %1796 = vmatpush1.msra.mxu0 0.0
      %1797 = vmatprep.subr.mxu0 0.0
      %1798 = vmatpush1.msra.mxu0 0.0
      %1799 = vmatprep.subr.mxu0 0.0
      %1800 = vmatpush1.msra.mxu0 0.0
      %1801 = vmatprep.subr.mxu0 0.0
      %1802 = vmatpush1.msra.mxu0 0.0
      %1803 = vmatprep.subr.mxu0 0.0
      %1804 = vmatpush1.msra.mxu0 0.0
      %1805 = vmatprep.subr.mxu0 0.0
      %1806 = vmatpush1.msra.mxu0 0.0
      %1807 = vmatprep.subr.mxu0 0.0
      %1808 = vmatpush1.msra.mxu0 0.0
      %1809 = vmatprep.subr.mxu0 0.0
      %1810 = vmatpush1.msra.mxu0 0.0
      %1811 = vmatprep.subr.mxu0 0.0
      %1812 = vmatpush1.msra.mxu0 0.0
      %1813 = vmatprep.subr.mxu0 0.0
      %1814 = vmatpush1.msra.mxu0 0.0
      %1815 = vmatprep.subr.mxu0 0.0
      %1816 = vmatpush1.msra.mxu0 0.0
      %1817 = vmatprep.subr.mxu0 0.0
      %1818 = vmatpush1.msra.mxu0 %v1785
      %1819 = vmatprep.subr.mxu0 0.0
      %1820 = vmatpush1.msra.mxu0 %v1784
      %1821 = vmatprep.subr.mxu0 0.0
      %1822 = vmatpush2.msra.mxu0 0.0
      %1823 = vmatprep.subr.mxu0 0.0
      %1824 = vmatpush2.msra.mxu0 0.0
      %1825 = vmatprep.subr.mxu0 0.0
      %1826 = vmatpush2.msra.mxu0 0.0
      %1827 = vmatprep.subr.mxu0 0.0
      %1828 = vmatpush2.msra.mxu0 0.0
      %1829 = vmatprep.subr.mxu0 0.0
      %1830 = vmatpush2.msra.mxu0 0.0
      %1831 = vmatprep.subr.mxu0 0.0
      %1832 = vmatpush2.msra.mxu0 0.0
      %1833 = vmatprep.subr.mxu0 0.0
      %1834 = vmatpush2.msra.mxu0 0.0
      %1835 = vmatprep.subr.mxu0 0.0
      %1836 = vmatpush2.msra.mxu0 0.0
      %1837 = vmatprep.subr.mxu0 0.0
      %1838 = vmatpush2.msra.mxu0 0.0
      %1839 = vmatprep.subr.mxu0 0.0
      %1840 = vmatpush2.msra.mxu0 0.0
      %1841 = vmatprep.subr.mxu0 0.0
      %1842 = vmatpush2.msra.mxu0 0.0
      %1843 = vmatprep.subr.mxu0 0.0
      %1844 = vmatpush2.msra.mxu0 0.0
      %1845 = vmatprep.subr.mxu0 0.0
      %1846 = vmatpush2.msra.mxu0 0.0
      %1847 = vmatprep.subr.mxu0 0.0
      %1848 = vmatpush2.msra.mxu0 0.0
      %1849 = vmatprep.subr.mxu0 0.0
      %1850 = vmatpush2.msra.mxu0 0.0
      %1851 = vmatprep.subr.mxu0 0.0
      %1852 = vmatpush2.msra.mxu0 0.0
      %1853 = vmatprep.mubr.f32.mxu0 0.0
      %1854 = vmatmul.mubr.f32.gmra.mxu0 %v1787
      %v1855 = vpop.f32.mrf.mxu0
      %v1856 = vadd.f32 0.0, %v1855
      %v1857 = vpop.f32.mrf.mxu0
      %1858 = vdwg.mxu0
      %v1859 = vadd.f32 %v1616, %v1856
      %v1860 = vld [vmem:[%s7] sm:$0x1]
      %v1862 = vlaneseq
      %v1863 = vshrl.u32 %v1862, 7
      %v1864 = vsub.s32 0, %v1863
      %v1865 = vrot.slane %v1860, %v1864
      %v1867 = vadd.f32 %v1859, %v1865
      %v1868 = vadd.f32 %v784, %v1867
      %v1869 = vld [vmem:[%s18] sm:$0x1]
      %v1870 = vld [vmem:[%s19] sm:$0x1]
      %v1871 = vsel %vm816, %v1868, 0.0
      %1872 = vadd.xlane.f32.xlu0 %v1871
      %v1873 = vpop.xlane.xlu0 %1872
      %v1874 = vrcp.pop 64.0
      %v1875 = vmul.f32 %v1873, %v1874
      %v1876 = vsub.f32 %v1868, %v1875
      %v1877 = vmul.f32 %v1876, %v1876
      %v1878 = vsel %vm816, %v1877, 0.0
      %1879 = vadd.xlane.f32.xlu0 %v1878
      %v1880 = vpop.xlane.xlu0 %1879
      %v1881 = vmul.f32 %v1880, %v1874
      %v1882 = vadd.f32 %v1881, 1e-05
      %v1883 = vrsqrt.pop %v1882
      %v1884 = vmul.f32 %v1876, %v1883
      %v1886 = vlaneseq
      %v1887 = vshrl.u32 %v1886, 7
      %v1888 = vsub.s32 0, %v1887
      %v1889 = vrot.slane %v1869, %v1888
      %v1891 = vmul.f32 %v1884, %v1889
      %v1893 = vlaneseq
      %v1894 = vshrl.u32 %v1893, 7
      %v1895 = vsub.s32 0, %v1894
      %v1896 = vrot.slane %v1870, %v1895
      %v1898 = vadd.f32 %v1891, %v1896
      %v1899 = vld [vmem:[%s8] sm:$0xff]
      %v1900 = vld [vmem:[%s8 + $0x8] sm:$0xff]
      %v1901 = vld [vmem:[%s8 + $0x10] sm:$0xff]
      %v1902 = vld [vmem:[%s8 + $0x18] sm:$0xff]
      %v1903 = vld [vmem:[%s8 + $0x20] sm:$0xff]
      %v1904 = vld [vmem:[%s8 + $0x28] sm:$0xff]
      %v1905 = vld [vmem:[%s8 + $0x30] sm:$0xff]
      %v1906 = vld [vmem:[%s8 + $0x38] sm:$0xff]
      %v1907 = vld [vmem:[%s9] sm:$0x1]
      %v1909 = vlaneseq
      %v1910 = vshrl.u32 %v1909, 7
      %v1911 = vsub.s32 0, %v1910
      %v1912 = vrot.slane %v1907, %v1911
      %v1915 = vsel %vm816, %v1898, 0
      %1917 = vmatprep.subr.mxu0 0.0
      %1918 = vmatpush1.msra.mxu0 0.0
      %1919 = vmatprep.subr.mxu0 0.0
      %1920 = vmatpush1.msra.mxu0 0.0
      %1921 = vmatprep.subr.mxu0 0.0
      %1922 = vmatpush1.msra.mxu0 0.0
      %1923 = vmatprep.subr.mxu0 0.0
      %1924 = vmatpush1.msra.mxu0 0.0
      %1925 = vmatprep.subr.mxu0 0.0
      %1926 = vmatpush1.msra.mxu0 0.0
      %1927 = vmatprep.subr.mxu0 0.0
      %1928 = vmatpush1.msra.mxu0 0.0
      %1929 = vmatprep.subr.mxu0 0.0
      %1930 = vmatpush1.msra.mxu0 0.0
      %1931 = vmatprep.subr.mxu0 0.0
      %1932 = vmatpush1.msra.mxu0 0.0
      %1933 = vmatprep.subr.mxu0 0.0
      %1934 = vmatpush1.msra.mxu0 %v1906
      %1935 = vmatprep.subr.mxu0 0.0
      %1936 = vmatpush1.msra.mxu0 %v1905
      %1937 = vmatprep.subr.mxu0 0.0
      %1938 = vmatpush1.msra.mxu0 %v1904
      %1939 = vmatprep.subr.mxu0 0.0
      %1940 = vmatpush1.msra.mxu0 %v1903
      %1941 = vmatprep.subr.mxu0 0.0
      %1942 = vmatpush1.msra.mxu0 %v1902
      %1943 = vmatprep.subr.mxu0 0.0
      %1944 = vmatpush1.msra.mxu0 %v1901
      %1945 = vmatprep.subr.mxu0 0.0
      %1946 = vmatpush1.msra.mxu0 %v1900
      %1947 = vmatprep.subr.mxu0 0.0
      %1948 = vmatpush1.msra.mxu0 %v1899
      %1949 = vmatprep.subr.mxu0 0.0
      %1950 = vmatpush2.msra.mxu0 0.0
      %1951 = vmatprep.subr.mxu0 0.0
      %1952 = vmatpush2.msra.mxu0 0.0
      %1953 = vmatprep.subr.mxu0 0.0
      %1954 = vmatpush2.msra.mxu0 0.0
      %1955 = vmatprep.subr.mxu0 0.0
      %1956 = vmatpush2.msra.mxu0 0.0
      %1957 = vmatprep.subr.mxu0 0.0
      %1958 = vmatpush2.msra.mxu0 0.0
      %1959 = vmatprep.subr.mxu0 0.0
      %1960 = vmatpush2.msra.mxu0 0.0
      %1961 = vmatprep.subr.mxu0 0.0
      %1962 = vmatpush2.msra.mxu0 0.0
      %1963 = vmatprep.subr.mxu0 0.0
      %1964 = vmatpush2.msra.mxu0 0.0
      %1965 = vmatprep.subr.mxu0 0.0
      %1966 = vmatpush2.msra.mxu0 0.0
      %1967 = vmatprep.subr.mxu0 0.0
      %1968 = vmatpush2.msra.mxu0 0.0
      %1969 = vmatprep.subr.mxu0 0.0
      %1970 = vmatpush2.msra.mxu0 0.0
      %1971 = vmatprep.subr.mxu0 0.0
      %1972 = vmatpush2.msra.mxu0 0.0
      %1973 = vmatprep.subr.mxu0 0.0
      %1974 = vmatpush2.msra.mxu0 0.0
      %1975 = vmatprep.subr.mxu0 0.0
      %1976 = vmatpush2.msra.mxu0 0.0
      %1977 = vmatprep.subr.mxu0 0.0
      %1978 = vmatpush2.msra.mxu0 0.0
      %1979 = vmatprep.subr.mxu0 0.0
      %1980 = vmatpush2.msra.mxu0 0.0
      %1981 = vmatprep.mubr.f32.mxu0 0.0
      %1982 = vmatmul.mubr.f32.gmra.mxu0 %v1915
      %v1983 = vpop.f32.mrf.mxu0
      %v1984 = vadd.f32 %v1912, %v1983
      %v1985 = vpop.f32.mrf.mxu0
      %1986 = vdwg.mxu0
      %v1987 = vld [vmem:[%s10] sm:$0xff]
      %v1988 = vld [vmem:[%s10 + $0x8] sm:$0xff]
      %v1989 = vld [vmem:[%s10 + $0x10] sm:$0xff]
      %v1990 = vld [vmem:[%s10 + $0x18] sm:$0xff]
      %v1991 = vld [vmem:[%s10 + $0x20] sm:$0xff]
      %v1992 = vld [vmem:[%s10 + $0x28] sm:$0xff]
      %v1993 = vld [vmem:[%s10 + $0x30] sm:$0xff]
      %v1994 = vld [vmem:[%s10 + $0x38] sm:$0xff]
      %v1995 = vld [vmem:[%s11] sm:$0x1]
      %v1997 = vlaneseq
      %v1998 = vshrl.u32 %v1997, 7
      %v1999 = vsub.s32 0, %v1998
      %v2000 = vrot.slane %v1995, %v1999
      %v2003 = vsel %vm816, %v785, 0
      %2005 = vmatprep.subr.mxu0 0.0
      %2006 = vmatpush1.msra.mxu0 0.0
      %2007 = vmatprep.subr.mxu0 0.0
      %2008 = vmatpush1.msra.mxu0 0.0
      %2009 = vmatprep.subr.mxu0 0.0
      %2010 = vmatpush1.msra.mxu0 0.0
      %2011 = vmatprep.subr.mxu0 0.0
      %2012 = vmatpush1.msra.mxu0 0.0
      %2013 = vmatprep.subr.mxu0 0.0
      %2014 = vmatpush1.msra.mxu0 0.0
      %2015 = vmatprep.subr.mxu0 0.0
      %2016 = vmatpush1.msra.mxu0 0.0
      %2017 = vmatprep.subr.mxu0 0.0
      %2018 = vmatpush1.msra.mxu0 0.0
      %2019 = vmatprep.subr.mxu0 0.0
      %2020 = vmatpush1.msra.mxu0 0.0
      %2021 = vmatprep.subr.mxu0 0.0
      %2022 = vmatpush1.msra.mxu0 %v1994
      %2023 = vmatprep.subr.mxu0 0.0
      %2024 = vmatpush1.msra.mxu0 %v1993
      %2025 = vmatprep.subr.mxu0 0.0
      %2026 = vmatpush1.msra.mxu0 %v1992
      %2027 = vmatprep.subr.mxu0 0.0
      %2028 = vmatpush1.msra.mxu0 %v1991
      %2029 = vmatprep.subr.mxu0 0.0
      %2030 = vmatpush1.msra.mxu0 %v1990
      %2031 = vmatprep.subr.mxu0 0.0
      %2032 = vmatpush1.msra.mxu0 %v1989
      %2033 = vmatprep.subr.mxu0 0.0
      %2034 = vmatpush1.msra.mxu0 %v1988
      %2035 = vmatprep.subr.mxu0 0.0
      %2036 = vmatpush1.msra.mxu0 %v1987
      %2037 = vmatprep.subr.mxu0 0.0
      %2038 = vmatpush2.msra.mxu0 0.0
      %2039 = vmatprep.subr.mxu0 0.0
      %2040 = vmatpush2.msra.mxu0 0.0
      %2041 = vmatprep.subr.mxu0 0.0
      %2042 = vmatpush2.msra.mxu0 0.0
      %2043 = vmatprep.subr.mxu0 0.0
      %2044 = vmatpush2.msra.mxu0 0.0
      %2045 = vmatprep.subr.mxu0 0.0
      %2046 = vmatpush2.msra.mxu0 0.0
      %2047 = vmatprep.subr.mxu0 0.0
      %2048 = vmatpush2.msra.mxu0 0.0
      %2049 = vmatprep.subr.mxu0 0.0
      %2050 = vmatpush2.msra.mxu0 0.0
      %2051 = vmatprep.subr.mxu0 0.0
      %2052 = vmatpush2.msra.mxu0 0.0
      %2053 = vmatprep.subr.mxu0 0.0
      %2054 = vmatpush2.msra.mxu0 0.0
      %2055 = vmatprep.subr.mxu0 0.0
      %2056 = vmatpush2.msra.mxu0 0.0
      %2057 = vmatprep.subr.mxu0 0.0
      %2058 = vmatpush2.msra.mxu0 0.0
      %2059 = vmatprep.subr.mxu0 0.0
      %2060 = vmatpush2.msra.mxu0 0.0
      %2061 = vmatprep.subr.mxu0 0.0
      %2062 = vmatpush2.msra.mxu0 0.0
      %2063 = vmatprep.subr.mxu0 0.0
      %2064 = vmatpush2.msra.mxu0 0.0
      %2065 = vmatprep.subr.mxu0 0.0
      %2066 = vmatpush2.msra.mxu0 0.0
      %2067 = vmatprep.subr.mxu0 0.0
      %2068 = vmatpush2.msra.mxu0 0.0
      %2069 = vmatprep.mubr.f32.mxu0 0.0
      %2070 = vmatmul.mubr.f32.gmra.mxu0 %v2003
      %v2071 = vpop.f32.mrf.mxu0
      %v2072 = vadd.f32 %v2000, %v2071
      %v2073 = vpop.f32.mrf.mxu0
      %2074 = vdwg.mxu0
      %v2076 = vsel %vm894, %v1984, 0
      %v2079 = vsel %vm894, %v2072, 0
      %2081 = vmatprep.subr.mxu0 0.0
      %2082 = vmatpush1.xpose.msra.mxu0 0.0
      %2083 = vmatprep.subr.mxu0 0.0
      %2084 = vmatpush1.xpose.msra.mxu0 0.0
      %2085 = vmatprep.subr.mxu0 0.0
      %2086 = vmatpush1.xpose.msra.mxu0 0.0
      %2087 = vmatprep.subr.mxu0 0.0
      %2088 = vmatpush1.xpose.msra.mxu0 0.0
      %2089 = vmatprep.subr.mxu0 0.0
      %2090 = vmatpush1.xpose.msra.mxu0 0.0
      %2091 = vmatprep.subr.mxu0 0.0
      %2092 = vmatpush1.xpose.msra.mxu0 0.0
      %2093 = vmatprep.subr.mxu0 0.0
      %2094 = vmatpush1.xpose.msra.mxu0 0.0
      %2095 = vmatprep.subr.mxu0 0.0
      %2096 = vmatpush1.xpose.msra.mxu0 0.0
      %2097 = vmatprep.subr.mxu0 0.0
      %2098 = vmatpush1.xpose.msra.mxu0 0.0
      %2099 = vmatprep.subr.mxu0 0.0
      %2100 = vmatpush1.xpose.msra.mxu0 0.0
      %2101 = vmatprep.subr.mxu0 0.0
      %2102 = vmatpush1.xpose.msra.mxu0 0.0
      %2103 = vmatprep.subr.mxu0 0.0
      %2104 = vmatpush1.xpose.msra.mxu0 0.0
      %2105 = vmatprep.subr.mxu0 0.0
      %2106 = vmatpush1.xpose.msra.mxu0 0.0
      %2107 = vmatprep.subr.mxu0 0.0
      %2108 = vmatpush1.xpose.msra.mxu0 0.0
      %2109 = vmatprep.subr.mxu0 0.0
      %2110 = vmatpush1.xpose.msra.mxu0 0.0
      %2111 = vmatprep.subr.mxu0 0.0
      %2112 = vmatpush1.xpose.msra.mxu0 %v2079
      %2113 = vmatprep.subr.mxu0 0.0
      %2114 = vmatpush2.xpose.msra.mxu0 0.0
      %2115 = vmatprep.subr.mxu0 0.0
      %2116 = vmatpush2.xpose.msra.mxu0 0.0
      %2117 = vmatprep.subr.mxu0 0.0
      %2118 = vmatpush2.xpose.msra.mxu0 0.0
      %2119 = vmatprep.subr.mxu0 0.0
      %2120 = vmatpush2.xpose.msra.mxu0 0.0
      %2121 = vmatprep.subr.mxu0 0.0
      %2122 = vmatpush2.xpose.msra.mxu0 0.0
      %2123 = vmatprep.subr.mxu0 0.0
      %2124 = vmatpush2.xpose.msra.mxu0 0.0
      %2125 = vmatprep.subr.mxu0 0.0
      %2126 = vmatpush2.xpose.msra.mxu0 0.0
      %2127 = vmatprep.subr.mxu0 0.0
      %2128 = vmatpush2.xpose.msra.mxu0 0.0
      %2129 = vmatprep.subr.mxu0 0.0
      %2130 = vmatpush2.xpose.msra.mxu0 0.0
      %2131 = vmatprep.subr.mxu0 0.0
      %2132 = vmatpush2.xpose.msra.mxu0 0.0
      %2133 = vmatprep.subr.mxu0 0.0
      %2134 = vmatpush2.xpose.msra.mxu0 0.0
      %2135 = vmatprep.subr.mxu0 0.0
      %2136 = vmatpush2.xpose.msra.mxu0 0.0
      %2137 = vmatprep.subr.mxu0 0.0
      %2138 = vmatpush2.xpose.msra.mxu0 0.0
      %2139 = vmatprep.subr.mxu0 0.0
      %2140 = vmatpush2.xpose.msra.mxu0 0.0
      %2141 = vmatprep.subr.mxu0 0.0
      %2142 = vmatpush2.xpose.msra.mxu0 0.0
      %2143 = vmatprep.subr.mxu0 0.0
      %2144 = vmatpush2.xpose.msra.mxu0 0.0
      %2145 = vmatprep.mubr.f32.mxu0 0.0
      %2146 = vmatmul.mubr.f32.gmra.mxu0 %v2076
      %v2147 = vpop.f32.mrf.mxu0
      %v2148 = vadd.f32 0.0, %v2147
      %v2149 = vpop.f32.mrf.mxu0
      %2150 = vdwg.mxu0
      %v2151 = vmul.f32 %v2148, 0.25
      %v2152 = vadd.f32 %v2151, %v787
      %v2153 = vsel %vm971, %v2152, -inf
      %2154 = vmax.xlane.f32.xlu0 %v2153
      %v2155 = vpop.xlane.xlu0 %2154
      %v2156 = vsub.f32 %v2152, %v2155
      %v2157 = vmul.f32 %v2156, 1.442695
      %v2158 = vpow.pop %v2157
      %v2159 = vsel %vm971, %v2158, 0.0
      %2160 = vadd.xlane.f32.xlu0 %v2159
      %v2161 = vpop.xlane.xlu0 %2160
      %v2162 = vrcp.pop %v2161
      %v2163 = vmul.f32 %v2158, %v2162
      %2164 = vrot.lane.b32.xlu0 %v2072, 64
      %v2165 = vpop.permute.xlu0 %2164
      %v2168 = vsel %vm971, %v2163, 0
      %2170 = vmatprep.subr.mxu0 0.0
      %2171 = vmatpush1.msra.mxu0 0.0
      %2172 = vmatprep.subr.mxu0 0.0
      %2173 = vmatpush1.msra.mxu0 0.0
      %2174 = vmatprep.subr.mxu0 0.0
      %2175 = vmatpush1.msra.mxu0 0.0
      %2176 = vmatprep.subr.mxu0 0.0
      %2177 = vmatpush1.msra.mxu0 0.0
      %2178 = vmatprep.subr.mxu0 0.0
      %2179 = vmatpush1.msra.mxu0 0.0
      %2180 = vmatprep.subr.mxu0 0.0
      %2181 = vmatpush1.msra.mxu0 0.0
      %2182 = vmatprep.subr.mxu0 0.0
      %2183 = vmatpush1.msra.mxu0 0.0
      %2184 = vmatprep.subr.mxu0 0.0
      %2185 = vmatpush1.msra.mxu0 0.0
      %2186 = vmatprep.subr.mxu0 0.0
      %2187 = vmatpush1.msra.mxu0 0.0
      %2188 = vmatprep.subr.mxu0 0.0
      %2189 = vmatpush1.msra.mxu0 0.0
      %2190 = vmatprep.subr.mxu0 0.0
      %2191 = vmatpush1.msra.mxu0 0.0
      %2192 = vmatprep.subr.mxu0 0.0
      %2193 = vmatpush1.msra.mxu0 0.0
      %2194 = vmatprep.subr.mxu0 0.0
      %2195 = vmatpush1.msra.mxu0 0.0
      %2196 = vmatprep.subr.mxu0 0.0
      %2197 = vmatpush1.msra.mxu0 0.0
      %2198 = vmatprep.subr.mxu0 0.0
      %2199 = vmatpush1.msra.mxu0 0.0
      %2200 = vmatprep.subr.mxu0 0.0
      %2201 = vmatpush1.msra.mxu0 %v2165
      %2202 = vmatprep.subr.mxu0 0.0
      %2203 = vmatpush2.msra.mxu0 0.0
      %2204 = vmatprep.subr.mxu0 0.0
      %2205 = vmatpush2.msra.mxu0 0.0
      %2206 = vmatprep.subr.mxu0 0.0
      %2207 = vmatpush2.msra.mxu0 0.0
      %2208 = vmatprep.subr.mxu0 0.0
      %2209 = vmatpush2.msra.mxu0 0.0
      %2210 = vmatprep.subr.mxu0 0.0
      %2211 = vmatpush2.msra.mxu0 0.0
      %2212 = vmatprep.subr.mxu0 0.0
      %2213 = vmatpush2.msra.mxu0 0.0
      %2214 = vmatprep.subr.mxu0 0.0
      %2215 = vmatpush2.msra.mxu0 0.0
      %2216 = vmatprep.subr.mxu0 0.0
      %2217 = vmatpush2.msra.mxu0 0.0
      %2218 = vmatprep.subr.mxu0 0.0
      %2219 = vmatpush2.msra.mxu0 0.0
      %2220 = vmatprep.subr.mxu0 0.0
      %2221 = vmatpush2.msra.mxu0 0.0
      %2222 = vmatprep.subr.mxu0 0.0
      %2223 = vmatpush2.msra.mxu0 0.0
      %2224 = vmatprep.subr.mxu0 0.0
      %2225 = vmatpush2.msra.mxu0 0.0
      %2226 = vmatprep.subr.mxu0 0.0
      %2227 = vmatpush2.msra.mxu0 0.0
      %2228 = vmatprep.subr.mxu0 0.0
      %2229 = vmatpush2.msra.mxu0 0.0
      %2230 = vmatprep.subr.mxu0 0.0
      %2231 = vmatpush2.msra.mxu0 0.0
      %2232 = vmatprep.subr.mxu0 0.0
      %2233 = vmatpush2.msra.mxu0 0.0
      %2234 = vmatprep.mubr.f32.mxu0 0.0
      %2235 = vmatmul.mubr.f32.gmra.mxu0 %v2168
      %v2236 = vpop.f32.mrf.mxu0
      %v2237 = vadd.f32 0.0, %v2236
      %v2238 = vpop.f32.mrf.mxu0
      %2239 = vdwg.mxu0
      %v2240 = vld [vmem:[%s12] sm:$0xff]
      %v2241 = vld [vmem:[%s12 + $0x8] sm:$0xff]
      %2242 = vrot.lane.b32.xlu0 %v1984, 112
      %v2243 = vpop.permute.xlu0 %2242
      %2244 = vrot.lane.b32.xlu0 %v2072, 112
      %v2245 = vpop.permute.xlu0 %2244
      %v2246 = vsel %vm894, %v2243, 0
      %v2248 = vsel %vm894, %v2245, 0
      %2250 = vmatprep.subr.mxu0 0.0
      %2251 = vmatpush1.xpose.msra.mxu0 0.0
      %2252 = vmatprep.subr.mxu0 0.0
      %2253 = vmatpush1.xpose.msra.mxu0 0.0
      %2254 = vmatprep.subr.mxu0 0.0
      %2255 = vmatpush1.xpose.msra.mxu0 0.0
      %2256 = vmatprep.subr.mxu0 0.0
      %2257 = vmatpush1.xpose.msra.mxu0 0.0
      %2258 = vmatprep.subr.mxu0 0.0
      %2259 = vmatpush1.xpose.msra.mxu0 0.0
      %2260 = vmatprep.subr.mxu0 0.0
      %2261 = vmatpush1.xpose.msra.mxu0 0.0
      %2262 = vmatprep.subr.mxu0 0.0
      %2263 = vmatpush1.xpose.msra.mxu0 0.0
      %2264 = vmatprep.subr.mxu0 0.0
      %2265 = vmatpush1.xpose.msra.mxu0 0.0
      %2266 = vmatprep.subr.mxu0 0.0
      %2267 = vmatpush1.xpose.msra.mxu0 0.0
      %2268 = vmatprep.subr.mxu0 0.0
      %2269 = vmatpush1.xpose.msra.mxu0 0.0
      %2270 = vmatprep.subr.mxu0 0.0
      %2271 = vmatpush1.xpose.msra.mxu0 0.0
      %2272 = vmatprep.subr.mxu0 0.0
      %2273 = vmatpush1.xpose.msra.mxu0 0.0
      %2274 = vmatprep.subr.mxu0 0.0
      %2275 = vmatpush1.xpose.msra.mxu0 0.0
      %2276 = vmatprep.subr.mxu0 0.0
      %2277 = vmatpush1.xpose.msra.mxu0 0.0
      %2278 = vmatprep.subr.mxu0 0.0
      %2279 = vmatpush1.xpose.msra.mxu0 0.0
      %2280 = vmatprep.subr.mxu0 0.0
      %2281 = vmatpush1.xpose.msra.mxu0 %v2248
      %2282 = vmatprep.subr.mxu0 0.0
      %2283 = vmatpush2.xpose.msra.mxu0 0.0
      %2284 = vmatprep.subr.mxu0 0.0
      %2285 = vmatpush2.xpose.msra.mxu0 0.0
      %2286 = vmatprep.subr.mxu0 0.0
      %2287 = vmatpush2.xpose.msra.mxu0 0.0
      %2288 = vmatprep.subr.mxu0 0.0
      %2289 = vmatpush2.xpose.msra.mxu0 0.0
      %2290 = vmatprep.subr.mxu0 0.0
      %2291 = vmatpush2.xpose.msra.mxu0 0.0
      %2292 = vmatprep.subr.mxu0 0.0
      %2293 = vmatpush2.xpose.msra.mxu0 0.0
      %2294 = vmatprep.subr.mxu0 0.0
      %2295 = vmatpush2.xpose.msra.mxu0 0.0
      %2296 = vmatprep.subr.mxu0 0.0
      %2297 = vmatpush2.xpose.msra.mxu0 0.0
      %2298 = vmatprep.subr.mxu0 0.0
      %2299 = vmatpush2.xpose.msra.mxu0 0.0
      %2300 = vmatprep.subr.mxu0 0.0
      %2301 = vmatpush2.xpose.msra.mxu0 0.0
      %2302 = vmatprep.subr.mxu0 0.0
      %2303 = vmatpush2.xpose.msra.mxu0 0.0
      %2304 = vmatprep.subr.mxu0 0.0
      %2305 = vmatpush2.xpose.msra.mxu0 0.0
      %2306 = vmatprep.subr.mxu0 0.0
      %2307 = vmatpush2.xpose.msra.mxu0 0.0
      %2308 = vmatprep.subr.mxu0 0.0
      %2309 = vmatpush2.xpose.msra.mxu0 0.0
      %2310 = vmatprep.subr.mxu0 0.0
      %2311 = vmatpush2.xpose.msra.mxu0 0.0
      %2312 = vmatprep.subr.mxu0 0.0
      %2313 = vmatpush2.xpose.msra.mxu0 0.0
      %2314 = vmatprep.mubr.f32.mxu0 0.0
      %2315 = vmatmul.mubr.f32.gmra.mxu0 %v2246
      %v2316 = vpop.f32.mrf.mxu0
      %v2317 = vadd.f32 0.0, %v2316
      %v2318 = vpop.f32.mrf.mxu0
      %2319 = vdwg.mxu0
      %v2320 = vmul.f32 %v2317, 0.25
      %v2321 = vadd.f32 %v2320, %v787
      %v2322 = vsel %vm971, %v2321, -inf
      %2323 = vmax.xlane.f32.xlu0 %v2322
      %v2324 = vpop.xlane.xlu0 %2323
      %v2325 = vsub.f32 %v2321, %v2324
      %v2326 = vmul.f32 %v2325, 1.442695
      %v2327 = vpow.pop %v2326
      %v2328 = vsel %vm971, %v2327, 0.0
      %2329 = vadd.xlane.f32.xlu0 %v2328
      %v2330 = vpop.xlane.xlu0 %2329
      %v2331 = vrcp.pop %v2330
      %v2332 = vmul.f32 %v2327, %v2331
      %2333 = vrot.lane.b32.xlu0 %v2072, 48
      %v2334 = vpop.permute.xlu0 %2333
      %v2337 = vsel %vm971, %v2332, 0
      %2339 = vmatprep.subr.mxu0 0.0
      %2340 = vmatpush1.msra.mxu0 0.0
      %2341 = vmatprep.subr.mxu0 0.0
      %2342 = vmatpush1.msra.mxu0 0.0
      %2343 = vmatprep.subr.mxu0 0.0
      %2344 = vmatpush1.msra.mxu0 0.0
      %2345 = vmatprep.subr.mxu0 0.0
      %2346 = vmatpush1.msra.mxu0 0.0
      %2347 = vmatprep.subr.mxu0 0.0
      %2348 = vmatpush1.msra.mxu0 0.0
      %2349 = vmatprep.subr.mxu0 0.0
      %2350 = vmatpush1.msra.mxu0 0.0
      %2351 = vmatprep.subr.mxu0 0.0
      %2352 = vmatpush1.msra.mxu0 0.0
      %2353 = vmatprep.subr.mxu0 0.0
      %2354 = vmatpush1.msra.mxu0 0.0
      %2355 = vmatprep.subr.mxu0 0.0
      %2356 = vmatpush1.msra.mxu0 0.0
      %2357 = vmatprep.subr.mxu0 0.0
      %2358 = vmatpush1.msra.mxu0 0.0
      %2359 = vmatprep.subr.mxu0 0.0
      %2360 = vmatpush1.msra.mxu0 0.0
      %2361 = vmatprep.subr.mxu0 0.0
      %2362 = vmatpush1.msra.mxu0 0.0
      %2363 = vmatprep.subr.mxu0 0.0
      %2364 = vmatpush1.msra.mxu0 0.0
      %2365 = vmatprep.subr.mxu0 0.0
      %2366 = vmatpush1.msra.mxu0 0.0
      %2367 = vmatprep.subr.mxu0 0.0
      %2368 = vmatpush1.msra.mxu0 0.0
      %2369 = vmatprep.subr.mxu0 0.0
      %2370 = vmatpush1.msra.mxu0 %v2334
      %2371 = vmatprep.subr.mxu0 0.0
      %2372 = vmatpush2.msra.mxu0 0.0
      %2373 = vmatprep.subr.mxu0 0.0
      %2374 = vmatpush2.msra.mxu0 0.0
      %2375 = vmatprep.subr.mxu0 0.0
      %2376 = vmatpush2.msra.mxu0 0.0
      %2377 = vmatprep.subr.mxu0 0.0
      %2378 = vmatpush2.msra.mxu0 0.0
      %2379 = vmatprep.subr.mxu0 0.0
      %2380 = vmatpush2.msra.mxu0 0.0
      %2381 = vmatprep.subr.mxu0 0.0
      %2382 = vmatpush2.msra.mxu0 0.0
      %2383 = vmatprep.subr.mxu0 0.0
      %2384 = vmatpush2.msra.mxu0 0.0
      %2385 = vmatprep.subr.mxu0 0.0
      %2386 = vmatpush2.msra.mxu0 0.0
      %2387 = vmatprep.subr.mxu0 0.0
      %2388 = vmatpush2.msra.mxu0 0.0
      %2389 = vmatprep.subr.mxu0 0.0
      %2390 = vmatpush2.msra.mxu0 0.0
      %2391 = vmatprep.subr.mxu0 0.0
      %2392 = vmatpush2.msra.mxu0 0.0
      %2393 = vmatprep.subr.mxu0 0.0
      %2394 = vmatpush2.msra.mxu0 0.0
      %2395 = vmatprep.subr.mxu0 0.0
      %2396 = vmatpush2.msra.mxu0 0.0
      %2397 = vmatprep.subr.mxu0 0.0
      %2398 = vmatpush2.msra.mxu0 0.0
      %2399 = vmatprep.subr.mxu0 0.0
      %2400 = vmatpush2.msra.mxu0 0.0
      %2401 = vmatprep.subr.mxu0 0.0
      %2402 = vmatpush2.msra.mxu0 0.0
      %2403 = vmatprep.mubr.f32.mxu0 0.0
      %2404 = vmatmul.mubr.f32.gmra.mxu0 %v2337
      %v2405 = vpop.f32.mrf.mxu0
      %v2406 = vadd.f32 0.0, %v2405
      %v2407 = vpop.f32.mrf.mxu0
      %2408 = vdwg.mxu0
      %v2409 = vld [vmem:[%s12 + $0x10] sm:$0xff]
      %v2410 = vld [vmem:[%s12 + $0x18] sm:$0xff]
      %v2412 = vsel %vm894, %v2406, 0
      %2414 = vmatprep.subr.mxu0 0.0
      %2415 = vmatpush1.msra.mxu0 0.0
      %2416 = vmatprep.subr.mxu0 0.0
      %2417 = vmatpush1.msra.mxu0 0.0
      %2418 = vmatprep.subr.mxu0 0.0
      %2419 = vmatpush1.msra.mxu0 0.0
      %2420 = vmatprep.subr.mxu0 0.0
      %2421 = vmatpush1.msra.mxu0 0.0
      %2422 = vmatprep.subr.mxu0 0.0
      %2423 = vmatpush1.msra.mxu0 0.0
      %2424 = vmatprep.subr.mxu0 0.0
      %2425 = vmatpush1.msra.mxu0 0.0
      %2426 = vmatprep.subr.mxu0 0.0
      %2427 = vmatpush1.msra.mxu0 0.0
      %2428 = vmatprep.subr.mxu0 0.0
      %2429 = vmatpush1.msra.mxu0 0.0
      %2430 = vmatprep.subr.mxu0 0.0
      %2431 = vmatpush1.msra.mxu0 0.0
      %2432 = vmatprep.subr.mxu0 0.0
      %2433 = vmatpush1.msra.mxu0 0.0
      %2434 = vmatprep.subr.mxu0 0.0
      %2435 = vmatpush1.msra.mxu0 0.0
      %2436 = vmatprep.subr.mxu0 0.0
      %2437 = vmatpush1.msra.mxu0 0.0
      %2438 = vmatprep.subr.mxu0 0.0
      %2439 = vmatpush1.msra.mxu0 0.0
      %2440 = vmatprep.subr.mxu0 0.0
      %2441 = vmatpush1.msra.mxu0 0.0
      %2442 = vmatprep.subr.mxu0 0.0
      %2443 = vmatpush1.msra.mxu0 %v2410
      %2444 = vmatprep.subr.mxu0 0.0
      %2445 = vmatpush1.msra.mxu0 %v2409
      %2446 = vmatprep.subr.mxu0 0.0
      %2447 = vmatpush2.msra.mxu0 0.0
      %2448 = vmatprep.subr.mxu0 0.0
      %2449 = vmatpush2.msra.mxu0 0.0
      %2450 = vmatprep.subr.mxu0 0.0
      %2451 = vmatpush2.msra.mxu0 0.0
      %2452 = vmatprep.subr.mxu0 0.0
      %2453 = vmatpush2.msra.mxu0 0.0
      %2454 = vmatprep.subr.mxu0 0.0
      %2455 = vmatpush2.msra.mxu0 0.0
      %2456 = vmatprep.subr.mxu0 0.0
      %2457 = vmatpush2.msra.mxu0 0.0
      %2458 = vmatprep.subr.mxu0 0.0
      %2459 = vmatpush2.msra.mxu0 0.0
      %2460 = vmatprep.subr.mxu0 0.0
      %2461 = vmatpush2.msra.mxu0 0.0
      %2462 = vmatprep.subr.mxu0 0.0
      %2463 = vmatpush2.msra.mxu0 0.0
      %2464 = vmatprep.subr.mxu0 0.0
      %2465 = vmatpush2.msra.mxu0 0.0
      %2466 = vmatprep.subr.mxu0 0.0
      %2467 = vmatpush2.msra.mxu0 0.0
      %2468 = vmatprep.subr.mxu0 0.0
      %2469 = vmatpush2.msra.mxu0 0.0
      %2470 = vmatprep.subr.mxu0 0.0
      %2471 = vmatpush2.msra.mxu0 0.0
      %2472 = vmatprep.subr.mxu0 0.0
      %2473 = vmatpush2.msra.mxu0 0.0
      %2474 = vmatprep.subr.mxu0 0.0
      %2475 = vmatpush2.msra.mxu0 0.0
      %2476 = vmatprep.subr.mxu0 0.0
      %2477 = vmatpush2.msra.mxu0 0.0
      %2478 = vmatprep.mubr.f32.mxu0 0.0
      %2479 = vmatmul.mubr.f32.gmra.mxu0 %v2412
      %v2480 = vpop.f32.mrf.mxu0
      %v2481 = vadd.f32 0.0, %v2480
      %v2482 = vpop.f32.mrf.mxu0
      %2483 = vdwg.mxu0
      %v2485 = vsel %vm894, %v2237, 0
      %2487 = vmatprep.subr.mxu0 0.0
      %2488 = vmatpush1.msra.mxu0 0.0
      %2489 = vmatprep.subr.mxu0 0.0
      %2490 = vmatpush1.msra.mxu0 0.0
      %2491 = vmatprep.subr.mxu0 0.0
      %2492 = vmatpush1.msra.mxu0 0.0
      %2493 = vmatprep.subr.mxu0 0.0
      %2494 = vmatpush1.msra.mxu0 0.0
      %2495 = vmatprep.subr.mxu0 0.0
      %2496 = vmatpush1.msra.mxu0 0.0
      %2497 = vmatprep.subr.mxu0 0.0
      %2498 = vmatpush1.msra.mxu0 0.0
      %2499 = vmatprep.subr.mxu0 0.0
      %2500 = vmatpush1.msra.mxu0 0.0
      %2501 = vmatprep.subr.mxu0 0.0
      %2502 = vmatpush1.msra.mxu0 0.0
      %2503 = vmatprep.subr.mxu0 0.0
      %2504 = vmatpush1.msra.mxu0 0.0
      %2505 = vmatprep.subr.mxu0 0.0
      %2506 = vmatpush1.msra.mxu0 0.0
      %2507 = vmatprep.subr.mxu0 0.0
      %2508 = vmatpush1.msra.mxu0 0.0
      %2509 = vmatprep.subr.mxu0 0.0
      %2510 = vmatpush1.msra.mxu0 0.0
      %2511 = vmatprep.subr.mxu0 0.0
      %2512 = vmatpush1.msra.mxu0 0.0
      %2513 = vmatprep.subr.mxu0 0.0
      %2514 = vmatpush1.msra.mxu0 0.0
      %2515 = vmatprep.subr.mxu0 0.0
      %2516 = vmatpush1.msra.mxu0 %v2241
      %2517 = vmatprep.subr.mxu0 0.0
      %2518 = vmatpush1.msra.mxu0 %v2240
      %2519 = vmatprep.subr.mxu0 0.0
      %2520 = vmatpush2.msra.mxu0 0.0
      %2521 = vmatprep.subr.mxu0 0.0
      %2522 = vmatpush2.msra.mxu0 0.0
      %2523 = vmatprep.subr.mxu0 0.0
      %2524 = vmatpush2.msra.mxu0 0.0
      %2525 = vmatprep.subr.mxu0 0.0
      %2526 = vmatpush2.msra.mxu0 0.0
      %2527 = vmatprep.subr.mxu0 0.0
      %2528 = vmatpush2.msra.mxu0 0.0
      %2529 = vmatprep.subr.mxu0 0.0
      %2530 = vmatpush2.msra.mxu0 0.0
      %2531 = vmatprep.subr.mxu0 0.0
      %2532 = vmatpush2.msra.mxu0 0.0
      %2533 = vmatprep.subr.mxu0 0.0
      %2534 = vmatpush2.msra.mxu0 0.0
      %2535 = vmatprep.subr.mxu0 0.0
      %2536 = vmatpush2.msra.mxu0 0.0
      %2537 = vmatprep.subr.mxu0 0.0
      %2538 = vmatpush2.msra.mxu0 0.0
      %2539 = vmatprep.subr.mxu0 0.0
      %2540 = vmatpush2.msra.mxu0 0.0
      %2541 = vmatprep.subr.mxu0 0.0
      %2542 = vmatpush2.msra.mxu0 0.0
      %2543 = vmatprep.subr.mxu0 0.0
      %2544 = vmatpush2.msra.mxu0 0.0
      %2545 = vmatprep.subr.mxu0 0.0
      %2546 = vmatpush2.msra.mxu0 0.0
      %2547 = vmatprep.subr.mxu0 0.0
      %2548 = vmatpush2.msra.mxu0 0.0
      %2549 = vmatprep.subr.mxu0 0.0
      %2550 = vmatpush2.msra.mxu0 0.0
      %2551 = vmatprep.mubr.f32.mxu0 0.0
      %2552 = vmatmul.mubr.f32.gmra.mxu0 %v2485
      %v2553 = vpop.f32.mrf.mxu0
      %v2554 = vadd.f32 %v2481, %v2553
      %v2555 = vpop.f32.mrf.mxu0
      %2556 = vdwg.mxu0
      %2557 = vrot.lane.b32.xlu0 %v1984, 96
      %v2558 = vpop.permute.xlu0 %2557
      %2559 = vrot.lane.b32.xlu0 %v2072, 96
      %v2560 = vpop.permute.xlu0 %2559
      %v2561 = vsel %vm894, %v2558, 0
      %v2563 = vsel %vm894, %v2560, 0
      %2565 = vmatprep.subr.mxu0 0.0
      %2566 = vmatpush1.xpose.msra.mxu0 0.0
      %2567 = vmatprep.subr.mxu0 0.0
      %2568 = vmatpush1.xpose.msra.mxu0 0.0
      %2569 = vmatprep.subr.mxu0 0.0
      %2570 = vmatpush1.xpose.msra.mxu0 0.0
      %2571 = vmatprep.subr.mxu0 0.0
      %2572 = vmatpush1.xpose.msra.mxu0 0.0
      %2573 = vmatprep.subr.mxu0 0.0
      %2574 = vmatpush1.xpose.msra.mxu0 0.0
      %2575 = vmatprep.subr.mxu0 0.0
      %2576 = vmatpush1.xpose.msra.mxu0 0.0
      %2577 = vmatprep.subr.mxu0 0.0
      %2578 = vmatpush1.xpose.msra.mxu0 0.0
      %2579 = vmatprep.subr.mxu0 0.0
      %2580 = vmatpush1.xpose.msra.mxu0 0.0
      %2581 = vmatprep.subr.mxu0 0.0
      %2582 = vmatpush1.xpose.msra.mxu0 0.0
      %2583 = vmatprep.subr.mxu0 0.0
      %2584 = vmatpush1.xpose.msra.mxu0 0.0
      %2585 = vmatprep.subr.mxu0 0.0
      %2586 = vmatpush1.xpose.msra.mxu0 0.0
      %2587 = vmatprep.subr.mxu0 0.0
      %2588 = vmatpush1.xpose.msra.mxu0 0.0
      %2589 = vmatprep.subr.mxu0 0.0
      %2590 = vmatpush1.xpose.msra.mxu0 0.0
      %2591 = vmatprep.subr.mxu0 0.0
      %2592 = vmatpush1.xpose.msra.mxu0 0.0
      %2593 = vmatprep.subr.mxu0 0.0
      %2594 = vmatpush1.xpose.msra.mxu0 0.0
      %2595 = vmatprep.subr.mxu0 0.0
      %2596 = vmatpush1.xpose.msra.mxu0 %v2563
      %2597 = vmatprep.subr.mxu0 0.0
      %2598 = vmatpush2.xpose.msra.mxu0 0.0
      %2599 = vmatprep.subr.mxu0 0.0
      %2600 = vmatpush2.xpose.msra.mxu0 0.0
      %2601 = vmatprep.subr.mxu0 0.0
      %2602 = vmatpush2.xpose.msra.mxu0 0.0
      %2603 = vmatprep.subr.mxu0 0.0
      %2604 = vmatpush2.xpose.msra.mxu0 0.0
      %2605 = vmatprep.subr.mxu0 0.0
      %2606 = vmatpush2.xpose.msra.mxu0 0.0
      %2607 = vmatprep.subr.mxu0 0.0
      %2608 = vmatpush2.xpose.msra.mxu0 0.0
      %2609 = vmatprep.subr.mxu0 0.0
      %2610 = vmatpush2.xpose.msra.mxu0 0.0
      %2611 = vmatprep.subr.mxu0 0.0
      %2612 = vmatpush2.xpose.msra.mxu0 0.0
      %2613 = vmatprep.subr.mxu0 0.0
      %2614 = vmatpush2.xpose.msra.mxu0 0.0
      %2615 = vmatprep.subr.mxu0 0.0
      %2616 = vmatpush2.xpose.msra.mxu0 0.0
      %2617 = vmatprep.subr.mxu0 0.0
      %2618 = vmatpush2.xpose.msra.mxu0 0.0
      %2619 = vmatprep.subr.mxu0 0.0
      %2620 = vmatpush2.xpose.msra.mxu0 0.0
      %2621 = vmatprep.subr.mxu0 0.0
      %2622 = vmatpush2.xpose.msra.mxu0 0.0
      %2623 = vmatprep.subr.mxu0 0.0
      %2624 = vmatpush2.xpose.msra.mxu0 0.0
      %2625 = vmatprep.subr.mxu0 0.0
      %2626 = vmatpush2.xpose.msra.mxu0 0.0
      %2627 = vmatprep.subr.mxu0 0.0
      %2628 = vmatpush2.xpose.msra.mxu0 0.0
      %2629 = vmatprep.mubr.f32.mxu0 0.0
      %2630 = vmatmul.mubr.f32.gmra.mxu0 %v2561
      %v2631 = vpop.f32.mrf.mxu0
      %v2632 = vadd.f32 0.0, %v2631
      %v2633 = vpop.f32.mrf.mxu0
      %2634 = vdwg.mxu0
      %v2635 = vmul.f32 %v2632, 0.25
      %v2636 = vadd.f32 %v2635, %v787
      %v2637 = vsel %vm971, %v2636, -inf
      %2638 = vmax.xlane.f32.xlu0 %v2637
      %v2639 = vpop.xlane.xlu0 %2638
      %v2640 = vsub.f32 %v2636, %v2639
      %v2641 = vmul.f32 %v2640, 1.442695
      %v2642 = vpow.pop %v2641
      %v2643 = vsel %vm971, %v2642, 0.0
      %2644 = vadd.xlane.f32.xlu0 %v2643
      %v2645 = vpop.xlane.xlu0 %2644
      %v2646 = vrcp.pop %v2645
      %v2647 = vmul.f32 %v2642, %v2646
      %2648 = vrot.lane.b32.xlu0 %v2072, 32
      %v2649 = vpop.permute.xlu0 %2648
      %v2652 = vsel %vm971, %v2647, 0
      %2654 = vmatprep.subr.mxu0 0.0
      %2655 = vmatpush1.msra.mxu0 0.0
      %2656 = vmatprep.subr.mxu0 0.0
      %2657 = vmatpush1.msra.mxu0 0.0
      %2658 = vmatprep.subr.mxu0 0.0
      %2659 = vmatpush1.msra.mxu0 0.0
      %2660 = vmatprep.subr.mxu0 0.0
      %2661 = vmatpush1.msra.mxu0 0.0
      %2662 = vmatprep.subr.mxu0 0.0
      %2663 = vmatpush1.msra.mxu0 0.0
      %2664 = vmatprep.subr.mxu0 0.0
      %2665 = vmatpush1.msra.mxu0 0.0
      %2666 = vmatprep.subr.mxu0 0.0
      %2667 = vmatpush1.msra.mxu0 0.0
      %2668 = vmatprep.subr.mxu0 0.0
      %2669 = vmatpush1.msra.mxu0 0.0
      %2670 = vmatprep.subr.mxu0 0.0
      %2671 = vmatpush1.msra.mxu0 0.0
      %2672 = vmatprep.subr.mxu0 0.0
      %2673 = vmatpush1.msra.mxu0 0.0
      %2674 = vmatprep.subr.mxu0 0.0
      %2675 = vmatpush1.msra.mxu0 0.0
      %2676 = vmatprep.subr.mxu0 0.0
      %2677 = vmatpush1.msra.mxu0 0.0
      %2678 = vmatprep.subr.mxu0 0.0
      %2679 = vmatpush1.msra.mxu0 0.0
      %2680 = vmatprep.subr.mxu0 0.0
      %2681 = vmatpush1.msra.mxu0 0.0
      %2682 = vmatprep.subr.mxu0 0.0
      %2683 = vmatpush1.msra.mxu0 0.0
      %2684 = vmatprep.subr.mxu0 0.0
      %2685 = vmatpush1.msra.mxu0 %v2649
      %2686 = vmatprep.subr.mxu0 0.0
      %2687 = vmatpush2.msra.mxu0 0.0
      %2688 = vmatprep.subr.mxu0 0.0
      %2689 = vmatpush2.msra.mxu0 0.0
      %2690 = vmatprep.subr.mxu0 0.0
      %2691 = vmatpush2.msra.mxu0 0.0
      %2692 = vmatprep.subr.mxu0 0.0
      %2693 = vmatpush2.msra.mxu0 0.0
      %2694 = vmatprep.subr.mxu0 0.0
      %2695 = vmatpush2.msra.mxu0 0.0
      %2696 = vmatprep.subr.mxu0 0.0
      %2697 = vmatpush2.msra.mxu0 0.0
      %2698 = vmatprep.subr.mxu0 0.0
      %2699 = vmatpush2.msra.mxu0 0.0
      %2700 = vmatprep.subr.mxu0 0.0
      %2701 = vmatpush2.msra.mxu0 0.0
      %2702 = vmatprep.subr.mxu0 0.0
      %2703 = vmatpush2.msra.mxu0 0.0
      %2704 = vmatprep.subr.mxu0 0.0
      %2705 = vmatpush2.msra.mxu0 0.0
      %2706 = vmatprep.subr.mxu0 0.0
      %2707 = vmatpush2.msra.mxu0 0.0
      %2708 = vmatprep.subr.mxu0 0.0
      %2709 = vmatpush2.msra.mxu0 0.0
      %2710 = vmatprep.subr.mxu0 0.0
      %2711 = vmatpush2.msra.mxu0 0.0
      %2712 = vmatprep.subr.mxu0 0.0
      %2713 = vmatpush2.msra.mxu0 0.0
      %2714 = vmatprep.subr.mxu0 0.0
      %2715 = vmatpush2.msra.mxu0 0.0
      %2716 = vmatprep.subr.mxu0 0.0
      %2717 = vmatpush2.msra.mxu0 0.0
      %2718 = vmatprep.mubr.f32.mxu0 0.0
      %2719 = vmatmul.mubr.f32.gmra.mxu0 %v2652
      %v2720 = vpop.f32.mrf.mxu0
      %v2721 = vadd.f32 0.0, %v2720
      %v2722 = vpop.f32.mrf.mxu0
      %2723 = vdwg.mxu0
      %v2724 = vld [vmem:[%s12 + $0x20] sm:$0xff]
      %v2725 = vld [vmem:[%s12 + $0x28] sm:$0xff]
      %v2727 = vsel %vm894, %v2721, 0
      %2729 = vmatprep.subr.mxu0 0.0
      %2730 = vmatpush1.msra.mxu0 0.0
      %2731 = vmatprep.subr.mxu0 0.0
      %2732 = vmatpush1.msra.mxu0 0.0
      %2733 = vmatprep.subr.mxu0 0.0
      %2734 = vmatpush1.msra.mxu0 0.0
      %2735 = vmatprep.subr.mxu0 0.0
      %2736 = vmatpush1.msra.mxu0 0.0
      %2737 = vmatprep.subr.mxu0 0.0
      %2738 = vmatpush1.msra.mxu0 0.0
      %2739 = vmatprep.subr.mxu0 0.0
      %2740 = vmatpush1.msra.mxu0 0.0
      %2741 = vmatprep.subr.mxu0 0.0
      %2742 = vmatpush1.msra.mxu0 0.0
      %2743 = vmatprep.subr.mxu0 0.0
      %2744 = vmatpush1.msra.mxu0 0.0
      %2745 = vmatprep.subr.mxu0 0.0
      %2746 = vmatpush1.msra.mxu0 0.0
      %2747 = vmatprep.subr.mxu0 0.0
      %2748 = vmatpush1.msra.mxu0 0.0
      %2749 = vmatprep.subr.mxu0 0.0
      %2750 = vmatpush1.msra.mxu0 0.0
      %2751 = vmatprep.subr.mxu0 0.0
      %2752 = vmatpush1.msra.mxu0 0.0
      %2753 = vmatprep.subr.mxu0 0.0
      %2754 = vmatpush1.msra.mxu0 0.0
      %2755 = vmatprep.subr.mxu0 0.0
      %2756 = vmatpush1.msra.mxu0 0.0
      %2757 = vmatprep.subr.mxu0 0.0
      %2758 = vmatpush1.msra.mxu0 %v2725
      %2759 = vmatprep.subr.mxu0 0.0
      %2760 = vmatpush1.msra.mxu0 %v2724
      %2761 = vmatprep.subr.mxu0 0.0
      %2762 = vmatpush2.msra.mxu0 0.0
      %2763 = vmatprep.subr.mxu0 0.0
      %2764 = vmatpush2.msra.mxu0 0.0
      %2765 = vmatprep.subr.mxu0 0.0
      %2766 = vmatpush2.msra.mxu0 0.0
      %2767 = vmatprep.subr.mxu0 0.0
      %2768 = vmatpush2.msra.mxu0 0.0
      %2769 = vmatprep.subr.mxu0 0.0
      %2770 = vmatpush2.msra.mxu0 0.0
      %2771 = vmatprep.subr.mxu0 0.0
      %2772 = vmatpush2.msra.mxu0 0.0
      %2773 = vmatprep.subr.mxu0 0.0
      %2774 = vmatpush2.msra.mxu0 0.0
      %2775 = vmatprep.subr.mxu0 0.0
      %2776 = vmatpush2.msra.mxu0 0.0
      %2777 = vmatprep.subr.mxu0 0.0
      %2778 = vmatpush2.msra.mxu0 0.0
      %2779 = vmatprep.subr.mxu0 0.0
      %2780 = vmatpush2.msra.mxu0 0.0
      %2781 = vmatprep.subr.mxu0 0.0
      %2782 = vmatpush2.msra.mxu0 0.0
      %2783 = vmatprep.subr.mxu0 0.0
      %2784 = vmatpush2.msra.mxu0 0.0
      %2785 = vmatprep.subr.mxu0 0.0
      %2786 = vmatpush2.msra.mxu0 0.0
      %2787 = vmatprep.subr.mxu0 0.0
      %2788 = vmatpush2.msra.mxu0 0.0
      %2789 = vmatprep.subr.mxu0 0.0
      %2790 = vmatpush2.msra.mxu0 0.0
      %2791 = vmatprep.subr.mxu0 0.0
      %2792 = vmatpush2.msra.mxu0 0.0
      %2793 = vmatprep.mubr.f32.mxu0 0.0
      %2794 = vmatmul.mubr.f32.gmra.mxu0 %v2727
      %v2795 = vpop.f32.mrf.mxu0
      %v2796 = vadd.f32 0.0, %v2795
      %v2797 = vpop.f32.mrf.mxu0
      %2798 = vdwg.mxu0
      %v2799 = vadd.f32 %v2554, %v2796
      %2800 = vrot.lane.b32.xlu0 %v1984, 80
      %v2801 = vpop.permute.xlu0 %2800
      %2802 = vrot.lane.b32.xlu0 %v2072, 80
      %v2803 = vpop.permute.xlu0 %2802
      %v2804 = vsel %vm894, %v2801, 0
      %v2806 = vsel %vm894, %v2803, 0
      %2808 = vmatprep.subr.mxu0 0.0
      %2809 = vmatpush1.xpose.msra.mxu0 0.0
      %2810 = vmatprep.subr.mxu0 0.0
      %2811 = vmatpush1.xpose.msra.mxu0 0.0
      %2812 = vmatprep.subr.mxu0 0.0
      %2813 = vmatpush1.xpose.msra.mxu0 0.0
      %2814 = vmatprep.subr.mxu0 0.0
      %2815 = vmatpush1.xpose.msra.mxu0 0.0
      %2816 = vmatprep.subr.mxu0 0.0
      %2817 = vmatpush1.xpose.msra.mxu0 0.0
      %2818 = vmatprep.subr.mxu0 0.0
      %2819 = vmatpush1.xpose.msra.mxu0 0.0
      %2820 = vmatprep.subr.mxu0 0.0
      %2821 = vmatpush1.xpose.msra.mxu0 0.0
      %2822 = vmatprep.subr.mxu0 0.0
      %2823 = vmatpush1.xpose.msra.mxu0 0.0
      %2824 = vmatprep.subr.mxu0 0.0
      %2825 = vmatpush1.xpose.msra.mxu0 0.0
      %2826 = vmatprep.subr.mxu0 0.0
      %2827 = vmatpush1.xpose.msra.mxu0 0.0
      %2828 = vmatprep.subr.mxu0 0.0
      %2829 = vmatpush1.xpose.msra.mxu0 0.0
      %2830 = vmatprep.subr.mxu0 0.0
      %2831 = vmatpush1.xpose.msra.mxu0 0.0
      %2832 = vmatprep.subr.mxu0 0.0
      %2833 = vmatpush1.xpose.msra.mxu0 0.0
      %2834 = vmatprep.subr.mxu0 0.0
      %2835 = vmatpush1.xpose.msra.mxu0 0.0
      %2836 = vmatprep.subr.mxu0 0.0
      %2837 = vmatpush1.xpose.msra.mxu0 0.0
      %2838 = vmatprep.subr.mxu0 0.0
      %2839 = vmatpush1.xpose.msra.mxu0 %v2806
      %2840 = vmatprep.subr.mxu0 0.0
      %2841 = vmatpush2.xpose.msra.mxu0 0.0
      %2842 = vmatprep.subr.mxu0 0.0
      %2843 = vmatpush2.xpose.msra.mxu0 0.0
      %2844 = vmatprep.subr.mxu0 0.0
      %2845 = vmatpush2.xpose.msra.mxu0 0.0
      %2846 = vmatprep.subr.mxu0 0.0
      %2847 = vmatpush2.xpose.msra.mxu0 0.0
      %2848 = vmatprep.subr.mxu0 0.0
      %2849 = vmatpush2.xpose.msra.mxu0 0.0
      %2850 = vmatprep.subr.mxu0 0.0
      %2851 = vmatpush2.xpose.msra.mxu0 0.0
      %2852 = vmatprep.subr.mxu0 0.0
      %2853 = vmatpush2.xpose.msra.mxu0 0.0
      %2854 = vmatprep.subr.mxu0 0.0
      %2855 = vmatpush2.xpose.msra.mxu0 0.0
      %2856 = vmatprep.subr.mxu0 0.0
      %2857 = vmatpush2.xpose.msra.mxu0 0.0
      %2858 = vmatprep.subr.mxu0 0.0
      %2859 = vmatpush2.xpose.msra.mxu0 0.0
      %2860 = vmatprep.subr.mxu0 0.0
      %2861 = vmatpush2.xpose.msra.mxu0 0.0
      %2862 = vmatprep.subr.mxu0 0.0
      %2863 = vmatpush2.xpose.msra.mxu0 0.0
      %2864 = vmatprep.subr.mxu0 0.0
      %2865 = vmatpush2.xpose.msra.mxu0 0.0
      %2866 = vmatprep.subr.mxu0 0.0
      %2867 = vmatpush2.xpose.msra.mxu0 0.0
      %2868 = vmatprep.subr.mxu0 0.0
      %2869 = vmatpush2.xpose.msra.mxu0 0.0
      %2870 = vmatprep.subr.mxu0 0.0
      %2871 = vmatpush2.xpose.msra.mxu0 0.0
      %2872 = vmatprep.mubr.f32.mxu0 0.0
      %2873 = vmatmul.mubr.f32.gmra.mxu0 %v2804
      %v2874 = vpop.f32.mrf.mxu0
      %v2875 = vadd.f32 0.0, %v2874
      %v2876 = vpop.f32.mrf.mxu0
      %2877 = vdwg.mxu0
      %v2878 = vmul.f32 %v2875, 0.25
      %v2879 = vadd.f32 %v2878, %v787
      %v2880 = vsel %vm971, %v2879, -inf
      %2881 = vmax.xlane.f32.xlu0 %v2880
      %v2882 = vpop.xlane.xlu0 %2881
      %v2883 = vsub.f32 %v2879, %v2882
      %v2884 = vmul.f32 %v2883, 1.442695
      %v2885 = vpow.pop %v2884
      %v2886 = vsel %vm971, %v2885, 0.0
      %2887 = vadd.xlane.f32.xlu0 %v2886
      %v2888 = vpop.xlane.xlu0 %2887
      %v2889 = vrcp.pop %v2888
      %v2890 = vmul.f32 %v2885, %v2889
      %2891 = vrot.lane.b32.xlu0 %v2072, 16
      %v2892 = vpop.permute.xlu0 %2891
      %v2895 = vsel %vm971, %v2890, 0
      %2897 = vmatprep.subr.mxu0 0.0
      %2898 = vmatpush1.msra.mxu0 0.0
      %2899 = vmatprep.subr.mxu0 0.0
      %2900 = vmatpush1.msra.mxu0 0.0
      %2901 = vmatprep.subr.mxu0 0.0
      %2902 = vmatpush1.msra.mxu0 0.0
      %2903 = vmatprep.subr.mxu0 0.0
      %2904 = vmatpush1.msra.mxu0 0.0
      %2905 = vmatprep.subr.mxu0 0.0
      %2906 = vmatpush1.msra.mxu0 0.0
      %2907 = vmatprep.subr.mxu0 0.0
      %2908 = vmatpush1.msra.mxu0 0.0
      %2909 = vmatprep.subr.mxu0 0.0
      %2910 = vmatpush1.msra.mxu0 0.0
      %2911 = vmatprep.subr.mxu0 0.0
      %2912 = vmatpush1.msra.mxu0 0.0
      %2913 = vmatprep.subr.mxu0 0.0
      %2914 = vmatpush1.msra.mxu0 0.0
      %2915 = vmatprep.subr.mxu0 0.0
      %2916 = vmatpush1.msra.mxu0 0.0
      %2917 = vmatprep.subr.mxu0 0.0
      %2918 = vmatpush1.msra.mxu0 0.0
      %2919 = vmatprep.subr.mxu0 0.0
      %2920 = vmatpush1.msra.mxu0 0.0
      %2921 = vmatprep.subr.mxu0 0.0
      %2922 = vmatpush1.msra.mxu0 0.0
      %2923 = vmatprep.subr.mxu0 0.0
      %2924 = vmatpush1.msra.mxu0 0.0
      %2925 = vmatprep.subr.mxu0 0.0
      %2926 = vmatpush1.msra.mxu0 0.0
      %2927 = vmatprep.subr.mxu0 0.0
      %2928 = vmatpush1.msra.mxu0 %v2892
      %2929 = vmatprep.subr.mxu0 0.0
      %2930 = vmatpush2.msra.mxu0 0.0
      %2931 = vmatprep.subr.mxu0 0.0
      %2932 = vmatpush2.msra.mxu0 0.0
      %2933 = vmatprep.subr.mxu0 0.0
      %2934 = vmatpush2.msra.mxu0 0.0
      %2935 = vmatprep.subr.mxu0 0.0
      %2936 = vmatpush2.msra.mxu0 0.0
      %2937 = vmatprep.subr.mxu0 0.0
      %2938 = vmatpush2.msra.mxu0 0.0
      %2939 = vmatprep.subr.mxu0 0.0
      %2940 = vmatpush2.msra.mxu0 0.0
      %2941 = vmatprep.subr.mxu0 0.0
      %2942 = vmatpush2.msra.mxu0 0.0
      %2943 = vmatprep.subr.mxu0 0.0
      %2944 = vmatpush2.msra.mxu0 0.0
      %2945 = vmatprep.subr.mxu0 0.0
      %2946 = vmatpush2.msra.mxu0 0.0
      %2947 = vmatprep.subr.mxu0 0.0
      %2948 = vmatpush2.msra.mxu0 0.0
      %2949 = vmatprep.subr.mxu0 0.0
      %2950 = vmatpush2.msra.mxu0 0.0
      %2951 = vmatprep.subr.mxu0 0.0
      %2952 = vmatpush2.msra.mxu0 0.0
      %2953 = vmatprep.subr.mxu0 0.0
      %2954 = vmatpush2.msra.mxu0 0.0
      %2955 = vmatprep.subr.mxu0 0.0
      %2956 = vmatpush2.msra.mxu0 0.0
      %2957 = vmatprep.subr.mxu0 0.0
      %2958 = vmatpush2.msra.mxu0 0.0
      %2959 = vmatprep.subr.mxu0 0.0
      %2960 = vmatpush2.msra.mxu0 0.0
      %2961 = vmatprep.mubr.f32.mxu0 0.0
      %2962 = vmatmul.mubr.f32.gmra.mxu0 %v2895
      %v2963 = vpop.f32.mrf.mxu0
      %v2964 = vadd.f32 0.0, %v2963
      %v2965 = vpop.f32.mrf.mxu0
      %2966 = vdwg.mxu0
      %v2967 = vld [vmem:[%s12 + $0x30] sm:$0xff]
      %v2968 = vld [vmem:[%s12 + $0x38] sm:$0xff]
      %v2970 = vsel %vm894, %v2964, 0
      %2972 = vmatprep.subr.mxu0 0.0
      %2973 = vmatpush1.msra.mxu0 0.0
      %2974 = vmatprep.subr.mxu0 0.0
      %2975 = vmatpush1.msra.mxu0 0.0
      %2976 = vmatprep.subr.mxu0 0.0
      %2977 = vmatpush1.msra.mxu0 0.0
      %2978 = vmatprep.subr.mxu0 0.0
      %2979 = vmatpush1.msra.mxu0 0.0
      %2980 = vmatprep.subr.mxu0 0.0
      %2981 = vmatpush1.msra.mxu0 0.0
      %2982 = vmatprep.subr.mxu0 0.0
      %2983 = vmatpush1.msra.mxu0 0.0
      %2984 = vmatprep.subr.mxu0 0.0
      %2985 = vmatpush1.msra.mxu0 0.0
      %2986 = vmatprep.subr.mxu0 0.0
      %2987 = vmatpush1.msra.mxu0 0.0
      %2988 = vmatprep.subr.mxu0 0.0
      %2989 = vmatpush1.msra.mxu0 0.0
      %2990 = vmatprep.subr.mxu0 0.0
      %2991 = vmatpush1.msra.mxu0 0.0
      %2992 = vmatprep.subr.mxu0 0.0
      %2993 = vmatpush1.msra.mxu0 0.0
      %2994 = vmatprep.subr.mxu0 0.0
      %2995 = vmatpush1.msra.mxu0 0.0
      %2996 = vmatprep.subr.mxu0 0.0
      %2997 = vmatpush1.msra.mxu0 0.0
      %2998 = vmatprep.subr.mxu0 0.0
      %2999 = vmatpush1.msra.mxu0 0.0
      %3000 = vmatprep.subr.mxu0 0.0
      %3001 = vmatpush1.msra.mxu0 %v2968
      %3002 = vmatprep.subr.mxu0 0.0
      %3003 = vmatpush1.msra.mxu0 %v2967
      %3004 = vmatprep.subr.mxu0 0.0
      %3005 = vmatpush2.msra.mxu0 0.0
      %3006 = vmatprep.subr.mxu0 0.0
      %3007 = vmatpush2.msra.mxu0 0.0
      %3008 = vmatprep.subr.mxu0 0.0
      %3009 = vmatpush2.msra.mxu0 0.0
      %3010 = vmatprep.subr.mxu0 0.0
      %3011 = vmatpush2.msra.mxu0 0.0
      %3012 = vmatprep.subr.mxu0 0.0
      %3013 = vmatpush2.msra.mxu0 0.0
      %3014 = vmatprep.subr.mxu0 0.0
      %3015 = vmatpush2.msra.mxu0 0.0
      %3016 = vmatprep.subr.mxu0 0.0
      %3017 = vmatpush2.msra.mxu0 0.0
      %3018 = vmatprep.subr.mxu0 0.0
      %3019 = vmatpush2.msra.mxu0 0.0
      %3020 = vmatprep.subr.mxu0 0.0
      %3021 = vmatpush2.msra.mxu0 0.0
      %3022 = vmatprep.subr.mxu0 0.0
      %3023 = vmatpush2.msra.mxu0 0.0
      %3024 = vmatprep.subr.mxu0 0.0
      %3025 = vmatpush2.msra.mxu0 0.0
      %3026 = vmatprep.subr.mxu0 0.0
      %3027 = vmatpush2.msra.mxu0 0.0
      %3028 = vmatprep.subr.mxu0 0.0
      %3029 = vmatpush2.msra.mxu0 0.0
      %3030 = vmatprep.subr.mxu0 0.0
      %3031 = vmatpush2.msra.mxu0 0.0
      %3032 = vmatprep.subr.mxu0 0.0
      %3033 = vmatpush2.msra.mxu0 0.0
      %3034 = vmatprep.subr.mxu0 0.0
      %3035 = vmatpush2.msra.mxu0 0.0
      %3036 = vmatprep.mubr.f32.mxu0 0.0
      %3037 = vmatmul.mubr.f32.gmra.mxu0 %v2970
      %v3038 = vpop.f32.mrf.mxu0
      %v3039 = vadd.f32 0.0, %v3038
      %v3040 = vpop.f32.mrf.mxu0
      %3041 = vdwg.mxu0
      %v3042 = vadd.f32 %v2799, %v3039
      %v3043 = vld [vmem:[%s13] sm:$0x1]
      %v3045 = vlaneseq
      %v3046 = vshrl.u32 %v3045, 7
      %v3047 = vsub.s32 0, %v3046
      %v3048 = vrot.slane %v3043, %v3047
      %v3050 = vadd.f32 %v3042, %v3048
      %v3051 = vadd.f32 %v1898, %v3050
      %v3052 = vld [vmem:[%s20] sm:$0x1]
      %v3053 = vld [vmem:[%s21] sm:$0x1]
      %v3054 = vsel %vm816, %v3051, 0.0
      %3055 = vadd.xlane.f32.xlu0 %v3054
      %v3056 = vpop.xlane.xlu0 %3055
      %v3057 = vmul.f32 %v3056, %v1874
      %v3058 = vsub.f32 %v3051, %v3057
      %v3059 = vmul.f32 %v3058, %v3058
      %v3060 = vsel %vm816, %v3059, 0.0
      %3061 = vadd.xlane.f32.xlu0 %v3060
      %v3062 = vpop.xlane.xlu0 %3061
      %v3063 = vmul.f32 %v3062, %v1874
      %v3064 = vadd.f32 %v3063, 1e-05
      %v3065 = vrsqrt.pop %v3064
      %v3066 = vmul.f32 %v3058, %v3065
      %v3068 = vlaneseq
      %v3069 = vshrl.u32 %v3068, 7
      %v3070 = vsub.s32 0, %v3069
      %v3071 = vrot.slane %v3052, %v3070
      %v3073 = vmul.f32 %v3066, %v3071
      %v3075 = vlaneseq
      %v3076 = vshrl.u32 %v3075, 7
      %v3077 = vsub.s32 0, %v3076
      %v3078 = vrot.slane %v3053, %v3077
      %v3080 = vadd.f32 %v3073, %v3078
      %v3081 = vld [vmem:[%s14] sm:$0xff]
      %v3082 = vld [vmem:[%s14 + $0x8] sm:$0xff]
      %v3083 = vld [vmem:[%s14 + $0x10] sm:$0xff]
      %v3084 = vld [vmem:[%s14 + $0x18] sm:$0xff]
      %v3085 = vld [vmem:[%s14 + $0x20] sm:$0xff]
      %v3086 = vld [vmem:[%s14 + $0x28] sm:$0xff]
      %v3087 = vld [vmem:[%s14 + $0x30] sm:$0xff]
      %v3088 = vld [vmem:[%s14 + $0x38] sm:$0xff]
      %v3089 = vld [vmem:[%s15] sm:$0x1]
      %v3091 = vlaneseq
      %v3092 = vshrl.u32 %v3091, 7
      %v3093 = vsub.s32 0, %v3092
      %v3094 = vrot.slane %v3089, %v3093
      %v3097 = vsel %vm816, %v3080, 0
      %3099 = vmatprep.subr.mxu0 0.0
      %3100 = vmatpush1.msra.mxu0 0.0
      %3101 = vmatprep.subr.mxu0 0.0
      %3102 = vmatpush1.msra.mxu0 0.0
      %3103 = vmatprep.subr.mxu0 0.0
      %3104 = vmatpush1.msra.mxu0 0.0
      %3105 = vmatprep.subr.mxu0 0.0
      %3106 = vmatpush1.msra.mxu0 0.0
      %3107 = vmatprep.subr.mxu0 0.0
      %3108 = vmatpush1.msra.mxu0 0.0
      %3109 = vmatprep.subr.mxu0 0.0
      %3110 = vmatpush1.msra.mxu0 0.0
      %3111 = vmatprep.subr.mxu0 0.0
      %3112 = vmatpush1.msra.mxu0 0.0
      %3113 = vmatprep.subr.mxu0 0.0
      %3114 = vmatpush1.msra.mxu0 0.0
      %3115 = vmatprep.subr.mxu0 0.0
      %3116 = vmatpush1.msra.mxu0 %v3088
      %3117 = vmatprep.subr.mxu0 0.0
      %3118 = vmatpush1.msra.mxu0 %v3087
      %3119 = vmatprep.subr.mxu0 0.0
      %3120 = vmatpush1.msra.mxu0 %v3086
      %3121 = vmatprep.subr.mxu0 0.0
      %3122 = vmatpush1.msra.mxu0 %v3085
      %3123 = vmatprep.subr.mxu0 0.0
      %3124 = vmatpush1.msra.mxu0 %v3084
      %3125 = vmatprep.subr.mxu0 0.0
      %3126 = vmatpush1.msra.mxu0 %v3083
      %3127 = vmatprep.subr.mxu0 0.0
      %3128 = vmatpush1.msra.mxu0 %v3082
      %3129 = vmatprep.subr.mxu0 0.0
      %3130 = vmatpush1.msra.mxu0 %v3081
      %3131 = vmatprep.subr.mxu0 0.0
      %3132 = vmatpush2.msra.mxu0 0.0
      %3133 = vmatprep.subr.mxu0 0.0
      %3134 = vmatpush2.msra.mxu0 0.0
      %3135 = vmatprep.subr.mxu0 0.0
      %3136 = vmatpush2.msra.mxu0 0.0
      %3137 = vmatprep.subr.mxu0 0.0
      %3138 = vmatpush2.msra.mxu0 0.0
      %3139 = vmatprep.subr.mxu0 0.0
      %3140 = vmatpush2.msra.mxu0 0.0
      %3141 = vmatprep.subr.mxu0 0.0
      %3142 = vmatpush2.msra.mxu0 0.0
      %3143 = vmatprep.subr.mxu0 0.0
      %3144 = vmatpush2.msra.mxu0 0.0
      %3145 = vmatprep.subr.mxu0 0.0
      %3146 = vmatpush2.msra.mxu0 0.0
      %3147 = vmatprep.subr.mxu0 0.0
      %3148 = vmatpush2.msra.mxu0 0.0
      %3149 = vmatprep.subr.mxu0 0.0
      %3150 = vmatpush2.msra.mxu0 0.0
      %3151 = vmatprep.subr.mxu0 0.0
      %3152 = vmatpush2.msra.mxu0 0.0
      %3153 = vmatprep.subr.mxu0 0.0
      %3154 = vmatpush2.msra.mxu0 0.0
      %3155 = vmatprep.subr.mxu0 0.0
      %3156 = vmatpush2.msra.mxu0 0.0
      %3157 = vmatprep.subr.mxu0 0.0
      %3158 = vmatpush2.msra.mxu0 0.0
      %3159 = vmatprep.subr.mxu0 0.0
      %3160 = vmatpush2.msra.mxu0 0.0
      %3161 = vmatprep.subr.mxu0 0.0
      %3162 = vmatpush2.msra.mxu0 0.0
      %3163 = vmatprep.mubr.f32.mxu0 0.0
      %3164 = vmatmul.mubr.f32.gmra.mxu0 %v3097
      %v3165 = vpop.f32.mrf.mxu0
      %v3166 = vadd.f32 %v3094, %v3165
      %v3167 = vpop.f32.mrf.mxu0
      %3168 = vdwg.mxu0
      %v3169 = vmax.f32 %v3166, 0.0
      %v3170 = vld [vmem:[%s16] sm:$0xff]
      %v3171 = vld [vmem:[%s16 + $0x8] sm:$0xff]
      %v3172 = vld [vmem:[%s16 + $0x10] sm:$0xff]
      %v3173 = vld [vmem:[%s16 + $0x18] sm:$0xff]
      %v3174 = vld [vmem:[%s16 + $0x20] sm:$0xff]
      %v3175 = vld [vmem:[%s16 + $0x28] sm:$0xff]
      %v3176 = vld [vmem:[%s16 + $0x30] sm:$0xff]
      %v3177 = vld [vmem:[%s16 + $0x38] sm:$0xff]
      %v3178 = vld [vmem:[%s16 + $0x40] sm:$0xff]
      %v3179 = vld [vmem:[%s16 + $0x48] sm:$0xff]
      %v3180 = vld [vmem:[%s16 + $0x50] sm:$0xff]
      %v3181 = vld [vmem:[%s16 + $0x58] sm:$0xff]
      %v3182 = vld [vmem:[%s16 + $0x60] sm:$0xff]
      %v3183 = vld [vmem:[%s16 + $0x68] sm:$0xff]
      %v3184 = vld [vmem:[%s16 + $0x70] sm:$0xff]
      %v3185 = vld [vmem:[%s16 + $0x78] sm:$0xff]
      %v3186 = vld [vmem:[%s17] sm:$0x1]
      %v3188 = vlaneseq
      %v3189 = vshrl.u32 %v3188, 7
      %v3190 = vsub.s32 0, %v3189
      %v3191 = vrot.slane %v3186, %v3190
      %3193 = vmatprep.subr.mxu0 0.0
      %3194 = vmatpush1.msra.mxu0 %v3185
      %3195 = vmatprep.subr.mxu0 0.0
      %3196 = vmatpush1.msra.mxu0 %v3184
      %3197 = vmatprep.subr.mxu0 0.0
      %3198 = vmatpush1.msra.mxu0 %v3183
      %3199 = vmatprep.subr.mxu0 0.0
      %3200 = vmatpush1.msra.mxu0 %v3182
      %3201 = vmatprep.subr.mxu0 0.0
      %3202 = vmatpush1.msra.mxu0 %v3181
      %3203 = vmatprep.subr.mxu0 0.0
      %3204 = vmatpush1.msra.mxu0 %v3180
      %3205 = vmatprep.subr.mxu0 0.0
      %3206 = vmatpush1.msra.mxu0 %v3179
      %3207 = vmatprep.subr.mxu0 0.0
      %3208 = vmatpush1.msra.mxu0 %v3178
      %3209 = vmatprep.subr.mxu0 0.0
      %3210 = vmatpush1.msra.mxu0 %v3177
      %3211 = vmatprep.subr.mxu0 0.0
      %3212 = vmatpush1.msra.mxu0 %v3176
      %3213 = vmatprep.subr.mxu0 0.0
      %3214 = vmatpush1.msra.mxu0 %v3175
      %3215 = vmatprep.subr.mxu0 0.0
      %3216 = vmatpush1.msra.mxu0 %v3174
      %3217 = vmatprep.subr.mxu0 0.0
      %3218 = vmatpush1.msra.mxu0 %v3173
      %3219 = vmatprep.subr.mxu0 0.0
      %3220 = vmatpush1.msra.mxu0 %v3172
      %3221 = vmatprep.subr.mxu0 0.0
      %3222 = vmatpush1.msra.mxu0 %v3171
      %3223 = vmatprep.subr.mxu0 0.0
      %3224 = vmatpush1.msra.mxu0 %v3170
      %3225 = vmatprep.subr.mxu0 0.0
      %3226 = vmatpush2.msra.mxu0 0.0
      %3227 = vmatprep.subr.mxu0 0.0
      %3228 = vmatpush2.msra.mxu0 0.0
      %3229 = vmatprep.subr.mxu0 0.0
      %3230 = vmatpush2.msra.mxu0 0.0
      %3231 = vmatprep.subr.mxu0 0.0
      %3232 = vmatpush2.msra.mxu0 0.0
      %3233 = vmatprep.subr.mxu0 0.0
      %3234 = vmatpush2.msra.mxu0 0.0
      %3235 = vmatprep.subr.mxu0 0.0
      %3236 = vmatpush2.msra.mxu0 0.0
      %3237 = vmatprep.subr.mxu0 0.0
      %3238 = vmatpush2.msra.mxu0 0.0
      %3239 = vmatprep.subr.mxu0 0.0
      %3240 = vmatpush2.msra.mxu0 0.0
      %3241 = vmatprep.subr.mxu0 0.0
      %3242 = vmatpush2.msra.mxu0 0.0
      %3243 = vmatprep.subr.mxu0 0.0
      %3244 = vmatpush2.msra.mxu0 0.0
      %3245 = vmatprep.subr.mxu0 0.0
      %3246 = vmatpush2.msra.mxu0 0.0
      %3247 = vmatprep.subr.mxu0 0.0
      %3248 = vmatpush2.msra.mxu0 0.0
      %3249 = vmatprep.subr.mxu0 0.0
      %3250 = vmatpush2.msra.mxu0 0.0
      %3251 = vmatprep.subr.mxu0 0.0
      %3252 = vmatpush2.msra.mxu0 0.0
      %3253 = vmatprep.subr.mxu0 0.0
      %3254 = vmatpush2.msra.mxu0 0.0
      %3255 = vmatprep.subr.mxu0 0.0
      %3256 = vmatpush2.msra.mxu0 0.0
      %3257 = vmatprep.mubr.f32.mxu0 0.0
      %3258 = vmatmul.mubr.f32.gmra.mxu0 %v3169
      %v3259 = vpop.f32.mrf.mxu0
      %v3260 = vadd.f32 %v3191, %v3259
      %v3261 = vpop.f32.mrf.mxu0
      %3262 = vdwg.mxu0
      %v3263 = vadd.f32 %v3080, %v3260
      %v3264 = vld [vmem:[%s22] sm:$0x1]
      %v3265 = vld [vmem:[%s23] sm:$0x1]
      %v3266 = vsel %vm816, %v3263, 0.0
      %3267 = vadd.xlane.f32.xlu0 %v3266
      %v3268 = vpop.xlane.xlu0 %3267
      %v3269 = vmul.f32 %v3268, %v1874
      %v3270 = vsub.f32 %v3263, %v3269
      %v3271 = vmul.f32 %v3270, %v3270
      %v3272 = vsel %vm816, %v3271, 0.0
      %3273 = vadd.xlane.f32.xlu0 %v3272
      %v3274 = vpop.xlane.xlu0 %3273
      %v3275 = vmul.f32 %v3274, %v1874
      %v3276 = vadd.f32 %v3275, 1e-05
      %v3277 = vrsqrt.pop %v3276
      %v3278 = vmul.f32 %v3270, %v3277
      %v3280 = vlaneseq
      %v3281 = vshrl.u32 %v3280, 7
      %v3282 = vsub.s32 0, %v3281
      %v3283 = vrot.slane %v3264, %v3282
      %v3285 = vmul.f32 %v3278, %v3283
      %v3287 = vlaneseq
      %v3288 = vshrl.u32 %v3287, 7
      %v3289 = vsub.s32 0, %v3288
      %v3290 = vrot.slane %v3265, %v3289
      %v3292 = vadd.f32 %v3285, %v3290
      %3293 = vst.msk [vmem:[%s783] sm:$0xff] %vm816, %v3292
      %p3294 = scmp.lt.s32.totalorder %s35, 1
      %s3295 = scalar_select %p3294, %s35, 1
      %s3296 = smul.addr %s3295, 8
      %s3297 = scalar_lea.vmem %s24, %s3296
      // Predicated region
      $region117: #{trans_model_forward.7} parent=115 // pred_check
        %p3298 = pneg %p577
      $region118: #{trans_model_forward.7} parent=115 // pred_check_branch
        %3300 = sbr.rel (%p3298) target = $region120
      $region119: #{trans_model_forward.7} parent=115 // pred_region
        _
      $region120: #{trans_model_forward.7} parent=115 // pred_fallthru
        _
    $region116: #{trans_model_forward.7} parent=5 // pred_fallthru
      _
    %p3301 = scmp.le.s32.totalorder 2, %s30
    // Predicated region
    $region121: #{trans_model_forward.7} parent=5 // pred_check
      %p3302 = pneg %p3301
    $region122: #{trans_model_forward.7} parent=5 // pred_check_branch
      %3304 = sbr.rel (%p3302) target = $region124
    $region123: #{trans_model_forward.7} parent=5 // pred_region
      %s3305 = ssub.s32 %s30, 2
      // Predicated region
      $region125: #{trans_model_forward.7} parent=123 // pred_check
        %p3306 = pneg %p583
      $region126: #{trans_model_forward.7} parent=123 // pred_check_branch
        %3308 = sbr.rel (%p3306) target = $region128
      $region127: #{trans_model_forward.7} parent=123 // pred_region
        %p3309 = scmp.lt.s32.totalorder %s36, 1
        %s3310 = scalar_select %p3309, %s36, 1
        %s3311 = smul.addr %s3310, 8
        %s3312 = scalar_lea.vmem %s24, %s3311
      $region128: #{trans_model_forward.7} parent=123 // pred_fallthru
        _
    $region124: #{trans_model_forward.7} parent=5 // pred_fallthru
      _
  $region6: #{trans_model_forward.7} parent=0 // loop_footer
    %s34 = sadd.s32 1, %s30
  $region7: #{trans_model_forward.7} parent=0 // loop_footer_branch
    %29 = sbr.rel target = $region3
  $region8: #{trans_model_forward.7} parent=0 // loop_exit
    _

</llo_original>
